<compile_context>
chip_gen: v5e
topology: v5e:2x2
jax: 0.10.0
libtpu: 0.0.40
codegen_flags: <defaults>
</compile_context>

<pallas_src>
import functools

import jax
import jax.numpy as jnp
import numpy as np
from jax.experimental import pallas as pl
from jax.experimental.pallas import tpu as pltpu

EPS = 1e-5  # BatchNorm2d default eps


# ---------------------------------------------------------------------------
# Per-generation VMEM sizing helpers.
# ---------------------------------------------------------------------------
def _round_up(x, m):
    return -(-int(x) // m) * m


def _vmem_block_bytes(shape, itemsize):
    """Approximate padded VMEM footprint of an array ((8,128)-tiled last dims)."""
    shape = tuple(int(s) for s in shape)
    if len(shape) < 2:
        n = max(int(np.prod(shape, dtype=np.int64)), 1)
        return _round_up(n * itemsize, 512)
    lead = int(np.prod(shape[:-2], dtype=np.int64)) if len(shape) > 2 else 1
    return lead * _round_up(shape[-2], 8) * _round_up(shape[-1], 128) * itemsize


def _vmem_limit_bytes():
    """~48 MiB on v7x (64 MiB/TC), ~96 MiB on v5e/v6e (128 MiB); safe fallback."""
    cap = 64 * 1024 * 1024
    try:
        cap = int(pltpu.get_tpu_info().vmem_capacity_bytes)
    except Exception:
        pass
    return int(min(0.75 * cap, 100 * 1024 * 1024))


def _estimate_step_bytes(B, H, W, C):
    """Rough per-grid-step VMEM use (double-buffered blocks + scratch + temps)."""
    Mblk = B * H * W
    pad = (B, H + 2, W + 2, C)
    b1 = 2 * _vmem_block_bytes(pad, 4)                   # padded activation block
    b1 += 2 * _vmem_block_bytes((9 * C, 2 * C), 2)       # fused conv weight
    b1 += 2 * _vmem_block_bytes((1, H, W, 1), 4)         # pool reciprocal counts
    b1 += 2 * _vmem_block_bytes((B, H, W, 2 * C), 2)     # conv slab out (bf16)
    b1 += 4 * _vmem_block_bytes((1, 2, 2 * C), 4)        # stats outputs
    b1 += _vmem_block_bytes(pad, 2)                      # ReLU'd bf16 scratch
    b1 += _vmem_block_bytes((Mblk, 9 * C), 2)            # im2col scratch
    b1 += _vmem_block_bytes((B, H, W, C), 4)             # pool-sum scratch
    b1 += 2 * _vmem_block_bytes((Mblk, 2 * C), 4)        # matmul result temporaries

    b2 = 2 * _vmem_block_bytes(pad, 4)
    b2 += 2 * _vmem_block_bytes((B, H, W, 2 * C), 2)
    b2 += 2 * _vmem_block_bytes((B, H, W, C), 4)         # output block
    b2 += _vmem_block_bytes((B, H, W, C), 4)             # pool-sum scratch
    b2 += 2 * _vmem_block_bytes((Mblk, 2 * C), 4)        # BN temporaries
    return max(b1, b2) + (2 << 20)                       # slack for compiler temps


def _pick_image_block(N, H, W, C, budget_bytes):
    """Largest divisor of N that fits the VMEM budget, keeping >= min(N,8) steps."""
    min_steps = min(N, 8)
    for B in range(N, 0, -1):
        if N % B:
            continue
        if B > 1 and N // B < min_steps:
            continue
        if _estimate_step_bytes(B, H, W, C) <= budget_bytes:
            return B
    # TODO(synk): add an H-tile grid axis when even a single image exceeds the budget.
    return 1


# ---------------------------------------------------------------------------
# Pass 1: fused conv (single K=9C matmul) + partial BN statistics.
# ---------------------------------------------------------------------------
def _pass1_kernel(xpad_ref, wf_ref, inv_ref, c13_ref, s13_ref, sp_ref,
                  xrelu_scr, col_scr, psum_scr, *, H, W, C, B):
    """xpad_ref : (B, H+2, W+2, C) f32   zero-padded NHWC activation block
    wf_ref   : (9C, 2C)         bf16  fused weight (cols [:C]=3x3, [C:]=1x1@tap 4)
    inv_ref  : (1, H, W, 1)     f32   1 / avg-pool window count (no pad counted)
    c13_ref  : (B, H, W, 2C)    bf16  conv outputs (3x3 in [:C], 1x1 in [C:])
    s13_ref  : (1, 2, 2C)       f32   per-block [sum; centred sum-of-squares] of conv
    sp_ref   : (1, 2, C)        f32   per-block [sum; centred sum-of-squares] of pool
    """
    f32 = jnp.float32
    Mblk = B * H * W

    # ReLU + bf16 cast hoisted out of the tap loop (pad zeros stay zero).
    xrelu_scr[...] = jnp.maximum(xpad_ref[...], 0.0).astype(jnp.bfloat16)

    # Build the (Mblk, 9C) im2col slab in VMEM and the raw 3x3 tap sum for the pool.
    for t in range(9):
        dh, dw = t // 3, t % 3
        col_scr[:, t * C:(t + 1) * C] = (
            xrelu_scr[:, dh:dh + H, dw:dw + W, :].reshape(Mblk, C))
        raw = xpad_ref[:, dh:dh + H, dw:dw + W, :]
        if t == 0:
            psum_scr[...] = raw
        else:
            psum_scr[...] = psum_scr[...] + raw

    # Single MXU matmul, contraction depth 9C (bf16 operands, f32 accumulation).
    acc = jnp.dot(col_scr[...], wf_ref[...], preferred_element_type=f32)  # (Mblk, 2C)
    c13_ref[...] = acc.reshape(B, H, W, 2 * C).astype(jnp.bfloat16)

    # Per-block centred statistics (numerically safe parallel-variance partials).
    s = jnp.sum(acc, axis=0, keepdims=True)                       # (1, 2C)
    d = acc - s * (1.0 / Mblk)
    m2 = jnp.sum(d * d, axis=0, keepdims=True)
    s13_ref[0] = jnp.concatenate([s, m2], axis=0)

    # avg_pool_3x3 (count_include_pad=False): reciprocal-count multiply, then stats.
    pool = (psum_scr[...] * inv_ref[...]).reshape(Mblk, C)
    sp = jnp.sum(pool, axis=0, keepdims=True)
    dp = pool - sp * (1.0 / Mblk)
    m2p = jnp.sum(dp * dp, axis=0, keepdims=True)
    sp_ref[0] = jnp.concatenate([sp, m2p], axis=0)


# ---------------------------------------------------------------------------
# Pass 2: alpha-folded BN, skip connection, recomputed avg-pool.
# ---------------------------------------------------------------------------
def _pass2_kernel(a1_ref, xpad_ref, c13_ref, inv_ref, sc13_ref, b13_ref,
                  scp_ref, bp_ref, o_ref, psum_scr, *, H, W, C):
    """a1_ref   : (1,) f32 SMEM   alpha for 'skip_connect'
    sc13/b13 : (1,1,1,2C) f32  alpha*BN scale / bias for the conv slab
    scp/bp   : (1,1,1,C)  f32  alpha*BN scale / bias for the pool branch
    """
    f32 = jnp.float32
    a_skip = a1_ref[0]

    # Recompute the 3x3 tap sum from the padded tile already resident in VMEM
    # (cheaper than round-tripping the pooled slab through HBM).
    for t in range(9):
        dh, dw = t // 3, t % 3
        raw = xpad_ref[:, dh:dh + H, dw:dw + W, :]
        if t == 0:
            psum_scr[...] = raw
        else:
            psum_scr[...] = psum_scr[...] + raw
    pool = psum_scr[...] * inv_ref[...]                           # (B, H, W, C)

    x = xpad_ref[:, 1:H + 1, 1:W + 1, :]                          # identity branch
    # BN in f32 on the bf16 conv slab; alphas already folded into scale/bias,
    # and the 'none' branch contributes exactly zero -> dropped.
    y = c13_ref[...].astype(f32) * sc13_ref[...] + b13_ref[...]   # (B, H, W, 2C)
    o_ref[...] = (a_skip * x
                  + y[..., 0:C] + y[..., C:2 * C]
                  + pool * scp_ref[...] + bp_ref[...])


# ---------------------------------------------------------------------------
# Wrapper.
# ---------------------------------------------------------------------------
@jax.jit
def mixed_op_forward(x_nchw, weights, w1_oihw, w3_oihw):
    N, C, H, W = x_nchw.shape
    M = N * H * W
    f32 = jnp.float32
    weights = weights.astype(f32)

    # TODO(synk): keep the surrounding network NHWC end-to-end (interface here is
    # NCHW) and pad into a VMEM scratch inside the kernels to also drop this xpad
    # HBM materialization.
    x_nhwc = jnp.transpose(x_nchw, (0, 2, 3, 1)).astype(f32)
    xpad = jnp.pad(x_nhwc, ((0, 0), (1, 1), (1, 1), (0, 0)))

    # Fused conv weight (9C, 2C) bf16: cols [:C]=conv3x3 (rows ordered kh,kw,cin),
    # cols [C:]=conv1x1 placed at the centre-tap row block.
    w3_mat = jnp.transpose(w3_oihw.astype(f32), (2, 3, 1, 0)).reshape(9 * C, C)
    w1_mat = jnp.transpose(w1_oihw[:, :, 0, 0].astype(f32), (1, 0))
    w1_rows = jnp.zeros((9 * C, C), f32).at[4 * C:5 * C, :].set(w1_mat)
    wfused = jnp.concatenate([w3_mat, w1_rows], axis=1).astype(jnp.bfloat16)

    # Exact reciprocal 3x3 window counts (count_include_pad=False), valid for any H, W.
    hh = jnp.arange(H, dtype=jnp.int32)
    ww = jnp.arange(W, dtype=jnp.int32)
    nh = jnp.minimum(hh + 1, H - 1) - jnp.maximum(hh - 1, 0) + 1
    nw = jnp.minimum(ww + 1, W - 1) - jnp.maximum(ww - 1, 0) + 1
    inv_cnt = (1.0 / (nh[:, None] * nw[None, :]).astype(f32)).reshape(1, H, W, 1)

    # Per-generation sizing: image-block B fills the scoped VMEM budget while
    # keeping >= min(N, 8) grid steps for megacore / dual-TC pipelining.
    vmem_limit = _vmem_limit_bytes()
    B = _pick_image_block(N, H, W, C, int(0.7 * vmem_limit))
    nblk = N // B
    Mblk = B * H * W

    cparams = pltpu.CompilerParams(
        dimension_semantics=("parallel",), vmem_limit_bytes=vmem_limit)

    # ---------------- pass 1: conv slab + partial BN statistics ----------------
    kern1 = functools.partial(_pass1_kernel, H=H, W=W, C=C, B=B)
    cost1 = pl.CostEstimate(
        flops=2 * M * 9 * C * 2 * C,
        transcendentals=0,
        bytes_accessed=(N * (H + 2) * (W + 2) * C * 4 + 9 * C * 2 * C * 2
                        + M * 2 * C * 2 + nblk * 12 * C * 4))
    c13, stats13, statsp = pl.pallas_call(
        kern1,
        grid=(nblk,),
        out_shape=(
            jax.ShapeDtypeStruct((N, H, W, 2 * C), jnp.bfloat16),
            jax.ShapeDtypeStruct((nblk, 2, 2 * C), f32),
            jax.ShapeDtypeStruct((nblk, 2, C), f32),
        ),
        in_specs=[
            pl.BlockSpec((B, H + 2, W + 2, C), lambda i: (i, 0, 0, 0)),
            pl.BlockSpec((9 * C, 2 * C), lambda i: (0, 0)),
            pl.BlockSpec((1, H, W, 1), lambda i: (0, 0, 0, 0)),
        ],
        out_specs=(
            pl.BlockSpec((B, H, W, 2 * C), lambda i: (i, 0, 0, 0)),
            pl.BlockSpec((1, 2, 2 * C), lambda i: (i, 0, 0)),
            pl.BlockSpec((1, 2, C), lambda i: (i, 0, 0)),
        ),
        scratch_shapes=[
            pltpu.VMEM((B, H + 2, W + 2, C), jnp.bfloat16),   # ReLU'd padded tile
            pltpu.VMEM((Mblk, 9 * C), jnp.bfloat16),          # im2col slab
            pltpu.VMEM((B, H, W, C), f32),                    # pool tap sum
        ],
        compiler_params=cparams,
        cost_estimate=cost1,
    )(xpad, wfused, inv_cnt)

    # ----- tiny XLA glue: merge block stats, fold alphas into BN scale/bias -----
    def _merge(stats):
        s, m2 = stats[:, 0, :], stats[:, 1, :]
        mean_blk = s / Mblk
        mean = jnp.sum(s, axis=0) / M
        var = (jnp.sum(m2, axis=0)
               + Mblk * jnp.sum(jnp.square(mean_blk - mean), axis=0)) / M
        return mean, var

    mean13, var13 = _merge(stats13)
    meanp, varp = _merge(statsp)
    a13 = jnp.concatenate([jnp.broadcast_to(weights[3], (C,)),    # conv3x3 cols
                           jnp.broadcast_to(weights[2], (C,))])   # conv1x1 cols
    sc13 = a13 * jax.lax.rsqrt(var13 + EPS)
    b13 = -mean13 * sc13
    scp = weights[4] * jax.lax.rsqrt(varp + EPS)
    bp = -meanp * scp

    # ---------------- pass 2: normalize + weighted sum ----------------
    kern2 = functools.partial(_pass2_kernel, H=H, W=W, C=C)
    cost2 = pl.CostEstimate(
        flops=40 * M * C,
        transcendentals=0,
        bytes_accessed=(N * (H + 2) * (W + 2) * C * 4 + M * 2 * C * 2 + M * C * 4))
    out_nhwc = pl.pallas_call(
        kern2,
        grid=(nblk,),
        out_shape=jax.ShapeDtypeStruct((N, H, W, C), f32),
        in_specs=[
            pl.BlockSpec(memory_space=pltpu.MemorySpace.SMEM),              # alpha_skip
            pl.BlockSpec((B, H + 2, W + 2, C), lambda i: (i, 0, 0, 0)),     # padded x
            pl.BlockSpec((B, H, W, 2 * C), lambda i: (i, 0, 0, 0)),         # conv slab
            pl.BlockSpec((1, H, W, 1), lambda i: (0, 0, 0, 0)),             # 1/count
            pl.BlockSpec((1, 1, 1, 2 * C), lambda i: (0, 0, 0, 0)),         # scale conv
            pl.BlockSpec((1, 1, 1, 2 * C), lambda i: (0, 0, 0, 0)),         # bias  conv
            pl.BlockSpec((1, 1, 1, C), lambda i: (0, 0, 0, 0)),             # scale pool
            pl.BlockSpec((1, 1, 1, C), lambda i: (0, 0, 0, 0)),             # bias  pool
        ],
        out_specs=pl.BlockSpec((B, H, W, C), lambda i: (i, 0, 0, 0)),
        scratch_shapes=[pltpu.VMEM((B, H, W, C), f32)],                     # pool sum
        compiler_params=cparams,
        cost_estimate=cost2,
    )(weights[1:2], xpad, c13, inv_cnt,
      sc13.reshape(1, 1, 1, 2 * C), b13.reshape(1, 1, 1, 2 * C),
      scp.reshape(1, 1, 1, C), bp.reshape(1, 1, 1, C))

    # TODO(synk): for C < 64, reshape the conv slab / output to a W*2C / W*C last
    # dim (lane-dense stores) and pre-tile scale/bias accordingly.
    return jnp.transpose(out_nhwc, (0, 3, 1, 2))


# ---------------------------------------------------------------------------
# Pure-JAX (XLA) reference mirroring the PyTorch forward (f32 everywhere).
# ---------------------------------------------------------------------------
def mixed_op_reference(x_nchw, weights, w1_oihw, w3_oihw):
    x = jnp.transpose(x_nchw, (0, 2, 3, 1)).astype(jnp.float32)  # NHWC
    rx = jnp.maximum(x, 0.0)

    def bn(z):
        mu = jnp.mean(z, axis=(0, 1, 2), keepdims=True)
        var = jnp.mean(jnp.square(z - mu), axis=(0, 1, 2), keepdims=True)
        return (z - mu) * jax.lax.rsqrt(var + EPS)

    def conv(z, w_oihw, pad):
        w_hwio = jnp.transpose(w_oihw, (2, 3, 1, 0)).astype(jnp.float32)
        return jax.lax.conv_general_dilated(
            z, w_hwio, (1, 1), [(pad, pad), (pad, pad)],
            dimension_numbers=('NHWC', 'HWIO', 'NHWC'),
            precision=jax.lax.Precision.HIGHEST)

    c1 = bn(conv(rx, w1_oihw, 0))
    c3 = bn(conv(rx, w3_oihw, 1))

    win = (1, 3, 3, 1)
    strides = (1, 1, 1, 1)
    pad = [(0, 0), (1, 1), (1, 1), (0, 0)]
    s = jax.lax.reduce_window(x, 0.0, jax.lax.add, win, strides, pad)
    cnt = jax.lax.reduce_window(jnp.ones_like(x), 0.0, jax.lax.add, win, strides, pad)
    pool = bn(s / cnt)

    out = (weights[0] * (x * 0.0) + weights[1] * x + weights[2] * c1
           + weights[3] * c3 + weights[4] * pool)
    return jnp.transpose(out, (0, 3, 1, 2))


if __name__ == "__main__":
    key = jax.random.PRNGKey(0)
    k1, k2, k3, k4 = jax.random.split(key, 4)

    N, C, H, W = 2, 4, 16, 16
    x = jax.random.normal(k1, (N, C, H, W), jnp.float32)
    # architecture weights (one per primitive), e.g. a softmax over alphas
    alpha = jax.nn.softmax(jax.random.normal(k2, (5,), jnp.float32))
    # deterministic synthetic conv parameters (Conv2d weights, bias=False)
    w1 = 0.1 * jax.random.normal(k3, (C, C, 1, 1), jnp.float32)   # nor_conv_1x1
    w3 = 0.1 * jax.random.normal(k4, (C, C, 3, 3), jnp.float32)   # nor_conv_3x3

    out = jax.block_until_ready(mixed_op_forward(x, alpha, w1, w3))
    ref = mixed_op_reference(x, alpha, w1, w3)
    # Kernel uses bf16 MXU operands and a bf16 conv slab (f32 accumulation / BN
    # math); vs the f32/HIGHEST reference the error stays well below 1e-2.
    np.testing.assert_allclose(np.asarray(out), np.asarray(ref),
                               rtol=1e-2, atol=1e-2)
    print("KERNEL_OK")
</pallas_src>

<mosaic_0001>
module attributes {stable_mosaic.version = 11 : i64} {
  func.func @_pass1_kernel(%arg0: i32, %arg1: memref<1x18x18x4xf32, #tpu.memory_space<vmem>>, %arg2: memref<36x8xbf16, #tpu.memory_space<vmem>>, %arg3: memref<1x16x16x1xf32, #tpu.memory_space<vmem>>, %arg4: memref<1x16x16x8xbf16, #tpu.memory_space<vmem>>, %arg5: memref<1x2x8xf32, #tpu.memory_space<vmem>>, %arg6: memref<1x2x4xf32, #tpu.memory_space<vmem>>, %arg7: memref<1x18x18x4xbf16, #tpu.memory_space<vmem>>, %arg8: memref<256x36xbf16, #tpu.memory_space<vmem>>, %arg9: memref<1x16x16x4xf32, #tpu.memory_space<vmem>>) attributes {dimension_semantics = [#tpu.dimension_semantics<parallel>], iteration_bounds = array<i64: 2>, scalar_prefetch = 0 : i64, scratch_operands = 3 : i64, tpu.core_type = #tpu.core_type<tc>, window_params = [{transform_indices = @transform_0, window_bounds = array<i64: 1, 18, 18, 4>}, {pipeline_mode = #tpu.pipeline_mode<synchronous>, transform_indices = @transform_1, window_bounds = array<i64: 36, 8>}, {pipeline_mode = #tpu.pipeline_mode<synchronous>, transform_indices = @transform_2, window_bounds = array<i64: 1, 16, 16, 1>}, {transform_indices = @transform_3, window_bounds = array<i64: 1, 16, 16, 8>}, {transform_indices = @transform_4, window_bounds = array<i64: 1, 2, 8>}, {transform_indices = @transform_5, window_bounds = array<i64: 1, 2, 4>}]} {
    %c0 = arith.constant 0 : index
    %c0_0 = arith.constant 0 : index
    %c0_1 = arith.constant 0 : index
    %c0_2 = arith.constant 0 : index
    %0 = vector.load %arg1[%c0, %c0_0, %c0_1, %c0_2] : memref<1x18x18x4xf32, #tpu.memory_space<vmem>>, vector<1x18x18x4xf32>
    %cst = arith.constant 0.000000e+00 : f32
    %1 = vector.broadcast %cst : f32 to vector<1x18x18x4xf32>
    %2 = arith.maximumf %0, %1 : vector<1x18x18x4xf32>
    %3 = arith.truncf %2 : vector<1x18x18x4xf32> to vector<1x18x18x4xbf16>
    %c0_3 = arith.constant 0 : index
    %c0_4 = arith.constant 0 : index
    %c0_5 = arith.constant 0 : index
    %c0_6 = arith.constant 0 : index
    %4 = vector.load %arg7[%c0_3, %c0_4, %c0_5, %c0_6] : memref<1x18x18x4xbf16, #tpu.memory_space<vmem>>, vector<1x18x18x4xbf16>
    tpu.vector_store %arg7[%c0_3, %c0_4, %c0_5, %c0_6], %3 {strides = array<i32>} : memref<1x18x18x4xbf16, #tpu.memory_space<vmem>>, vector<1x18x18x4xbf16>,
    %c0_7 = arith.constant 0 : index
    %c0_8 = arith.constant 0 : index
    %c0_9 = arith.constant 0 : index
    %c0_10 = arith.constant 0 : index
    %5 = vector.load %arg7[%c0_7, %c0_8, %c0_9, %c0_10] : memref<1x18x18x4xbf16, #tpu.memory_space<vmem>>, vector<1x16x16x4xbf16>
    %6 = vector.shape_cast %5 : vector<1x16x16x4xbf16> to vector<256x4xbf16>
    %c0_11 = arith.constant 0 : index
    %c0_12 = arith.constant 0 : index
    %7 = vector.load %arg8[%c0_11, %c0_12] : memref<256x36xbf16, #tpu.memory_space<vmem>>, vector<256x4xbf16>
    tpu.vector_store %arg8[%c0_11, %c0_12], %6 {strides = array<i32>} : memref<256x36xbf16, #tpu.memory_space<vmem>>, vector<256x4xbf16>,
    %c0_13 = arith.constant 0 : index
    %c0_14 = arith.constant 0 : index
    %c0_15 = arith.constant 0 : index
    %c0_16 = arith.constant 0 : index
    %8 = vector.load %arg1[%c0_13, %c0_14, %c0_15, %c0_16] : memref<1x18x18x4xf32, #tpu.memory_space<vmem>>, vector<1x16x16x4xf32>
    %c0_17 = arith.constant 0 : index
    %c0_18 = arith.constant 0 : index
    %c0_19 = arith.constant 0 : index
    %c0_20 = arith.constant 0 : index
    %9 = vector.load %arg9[%c0_17, %c0_18, %c0_19, %c0_20] : memref<1x16x16x4xf32, #tpu.memory_space<vmem>>, vector<1x16x16x4xf32>
    tpu.vector_store %arg9[%c0_17, %c0_18, %c0_19, %c0_20], %8 {strides = array<i32>} : memref<1x16x16x4xf32, #tpu.memory_space<vmem>>, vector<1x16x16x4xf32>,
    %c0_21 = arith.constant 0 : index
    %c0_22 = arith.constant 0 : index
    %c1 = arith.constant 1 : index
    %c0_23 = arith.constant 0 : index
    %10 = vector.load %arg7[%c0_21, %c0_22, %c1, %c0_23] : memref<1x18x18x4xbf16, #tpu.memory_space<vmem>>, vector<1x16x16x4xbf16>
    %11 = vector.shape_cast %10 : vector<1x16x16x4xbf16> to vector<256x4xbf16>
    %c0_24 = arith.constant 0 : index
    %c4 = arith.constant 4 : index
    %12 = vector.load %arg8[%c0_24, %c4] : memref<256x36xbf16, #tpu.memory_space<vmem>>, vector<256x4xbf16>
    tpu.vector_store %arg8[%c0_24, %c4], %11 {strides = array<i32>} : memref<256x36xbf16, #tpu.memory_space<vmem>>, vector<256x4xbf16>,
    %c0_25 = arith.constant 0 : index
    %c0_26 = arith.constant 0 : index
    %c1_27 = arith.constant 1 : index
    %c0_28 = arith.constant 0 : index
    %13 = vector.load %arg1[%c0_25, %c0_26, %c1_27, %c0_28] : memref<1x18x18x4xf32, #tpu.memory_space<vmem>>, vector<1x16x16x4xf32>
    %c0_29 = arith.constant 0 : index
    %c0_30 = arith.constant 0 : index
    %c0_31 = arith.constant 0 : index
    %c0_32 = arith.constant 0 : index
    %14 = vector.load %arg9[%c0_29, %c0_30, %c0_31, %c0_32] : memref<1x16x16x4xf32, #tpu.memory_space<vmem>>, vector<1x16x16x4xf32>
    %15 = arith.addf %14, %13 : vector<1x16x16x4xf32>
    %c0_33 = arith.constant 0 : index
    %c0_34 = arith.constant 0 : index
    %c0_35 = arith.constant 0 : index
    %c0_36 = arith.constant 0 : index
    %16 = vector.load %arg9[%c0_33, %c0_34, %c0_35, %c0_36] : memref<1x16x16x4xf32, #tpu.memory_space<vmem>>, vector<1x16x16x4xf32>
    tpu.vector_store %arg9[%c0_33, %c0_34, %c0_35, %c0_36], %15 {strides = array<i32>} : memref<1x16x16x4xf32, #tpu.memory_space<vmem>>, vector<1x16x16x4xf32>,
    %c0_37 = arith.constant 0 : index
    %c0_38 = arith.constant 0 : index
    %c2 = arith.constant 2 : index
    %c0_39 = arith.constant 0 : index
    %17 = vector.load %arg7[%c0_37, %c0_38, %c2, %c0_39] : memref<1x18x18x4xbf16, #tpu.memory_space<vmem>>, vector<1x16x16x4xbf16>
    %18 = vector.shape_cast %17 : vector<1x16x16x4xbf16> to vector<256x4xbf16>
    %c0_40 = arith.constant 0 : index
    %c8 = arith.constant 8 : index
    %19 = vector.load %arg8[%c0_40, %c8] : memref<256x36xbf16, #tpu.memory_space<vmem>>, vector<256x4xbf16>
    tpu.vector_store %arg8[%c0_40, %c8], %18 {strides = array<i32>} : memref<256x36xbf16, #tpu.memory_space<vmem>>, vector<256x4xbf16>,
    %c0_41 = arith.constant 0 : index
    %c0_42 = arith.constant 0 : index
    %c2_43 = arith.constant 2 : index
    %c0_44 = arith.constant 0 : index
    %20 = vector.load %arg1[%c0_41, %c0_42, %c2_43, %c0_44] : memref<1x18x18x4xf32, #tpu.memory_space<vmem>>, vector<1x16x16x4xf32>
    %c0_45 = arith.constant 0 : index
    %c0_46 = arith.constant 0 : index
    %c0_47 = arith.constant 0 : index
    %c0_48 = arith.constant 0 : index
    %21 = vector.load %arg9[%c0_45, %c0_46, %c0_47, %c0_48] : memref<1x16x16x4xf32, #tpu.memory_space<vmem>>, vector<1x16x16x4xf32>
    %22 = arith.addf %21, %20 : vector<1x16x16x4xf32>
    %c0_49 = arith.constant 0 : index
    %c0_50 = arith.constant 0 : index
    %c0_51 = arith.constant 0 : index
    %c0_52 = arith.constant 0 : index
    %23 = vector.load %arg9[%c0_49, %c0_50, %c0_51, %c0_52] : memref<1x16x16x4xf32, #tpu.memory_space<vmem>>, vector<1x16x16x4xf32>
    tpu.vector_store %arg9[%c0_49, %c0_50, %c0_51, %c0_52], %22 {strides = array<i32>} : memref<1x16x16x4xf32, #tpu.memory_space<vmem>>, vector<1x16x16x4xf32>,
    %c0_53 = arith.constant 0 : index
    %c1_54 = arith.constant 1 : index
    %c0_55 = arith.constant 0 : index
    %c0_56 = arith.constant 0 : index
    %24 = vector.load %arg7[%c0_53, %c1_54, %c0_55, %c0_56] : memref<1x18x18x4xbf16, #tpu.memory_space<vmem>>, vector<1x16x16x4xbf16>
    %25 = vector.shape_cast %24 : vector<1x16x16x4xbf16> to vector<256x4xbf16>
    %c0_57 = arith.constant 0 : index
    %c12 = arith.constant 12 : index
    %26 = vector.load %arg8[%c0_57, %c12] : memref<256x36xbf16, #tpu.memory_space<vmem>>, vector<256x4xbf16>
    tpu.vector_store %arg8[%c0_57, %c12], %25 {strides = array<i32>} : memref<256x36xbf16, #tpu.memory_space<vmem>>, vector<256x4xbf16>,
    %c0_58 = arith.constant 0 : index
    %c1_59 = arith.constant 1 : index
    %c0_60 = arith.constant 0 : index
    %c0_61 = arith.constant 0 : index
    %27 = vector.load %arg1[%c0_58, %c1_59, %c0_60, %c0_61] : memref<1x18x18x4xf32, #tpu.memory_space<vmem>>, vector<1x16x16x4xf32>
    %c0_62 = arith.constant 0 : index
    %c0_63 = arith.constant 0 : index
    %c0_64 = arith.constant 0 : index
    %c0_65 = arith.constant 0 : index
    %28 = vector.load %arg9[%c0_62, %c0_63, %c0_64, %c0_65] : memref<1x16x16x4xf32, #tpu.memory_space<vmem>>, vector<1x16x16x4xf32>
    %29 = arith.addf %28, %27 : vector<1x16x16x4xf32>
    %c0_66 = arith.constant 0 : index
    %c0_67 = arith.constant 0 : index
    %c0_68 = arith.constant 0 : index
    %c0_69 = arith.constant 0 : index
    %30 = vector.load %arg9[%c0_66, %c0_67, %c0_68, %c0_69] : memref<1x16x16x4xf32, #tpu.memory_space<vmem>>, vector<1x16x16x4xf32>
    tpu.vector_store %arg9[%c0_66, %c0_67, %c0_68, %c0_69], %29 {strides = array<i32>} : memref<1x16x16x4xf32, #tpu.memory_space<vmem>>, vector<1x16x16x4xf32>,
    %c0_70 = arith.constant 0 : index
    %c1_71 = arith.constant 1 : index
    %c1_72 = arith.constant 1 : index
    %c0_73 = arith.constant 0 : index
    %31 = vector.load %arg7[%c0_70, %c1_71, %c1_72, %c0_73] : memref<1x18x18x4xbf16, #tpu.memory_space<vmem>>, vector<1x16x16x4xbf16>
    %32 = vector.shape_cast %31 : vector<1x16x16x4xbf16> to vector<256x4xbf16>
    %c0_74 = arith.constant 0 : index
    %c16 = arith.constant 16 : index
    %33 = vector.load %arg8[%c0_74, %c16] : memref<256x36xbf16, #tpu.memory_space<vmem>>, vector<256x4xbf16>
    tpu.vector_store %arg8[%c0_74, %c16], %32 {strides = array<i32>} : memref<256x36xbf16, #tpu.memory_space<vmem>>, vector<256x4xbf16>,
    %c0_75 = arith.constant 0 : index
    %c1_76 = arith.constant 1 : index
    %c1_77 = arith.constant 1 : index
    %c0_78 = arith.constant 0 : index
    %34 = vector.load %arg1[%c0_75, %c1_76, %c1_77, %c0_78] : memref<1x18x18x4xf32, #tpu.memory_space<vmem>>, vector<1x16x16x4xf32>
    %c0_79 = arith.constant 0 : index
    %c0_80 = arith.constant 0 : index
    %c0_81 = arith.constant 0 : index
    %c0_82 = arith.constant 0 : index
    %35 = vector.load %arg9[%c0_79, %c0_80, %c0_81, %c0_82] : memref<1x16x16x4xf32, #tpu.memory_space<vmem>>, vector<1x16x16x4xf32>
    %36 = arith.addf %35, %34 : vector<1x16x16x4xf32>
    %c0_83 = arith.constant 0 : index
    %c0_84 = arith.constant 0 : index
    %c0_85 = arith.constant 0 : index
    %c0_86 = arith.constant 0 : index
    %37 = vector.load %arg9[%c0_83, %c0_84, %c0_85, %c0_86] : memref<1x16x16x4xf32, #tpu.memory_space<vmem>>, vector<1x16x16x4xf32>
    tpu.vector_store %arg9[%c0_83, %c0_84, %c0_85, %c0_86], %36 {strides = array<i32>} : memref<1x16x16x4xf32, #tpu.memory_space<vmem>>, vector<1x16x16x4xf32>,
    %c0_87 = arith.constant 0 : index
    %c1_88 = arith.constant 1 : index
    %c2_89 = arith.constant 2 : index
    %c0_90 = arith.constant 0 : index
    %38 = vector.load %arg7[%c0_87, %c1_88, %c2_89, %c0_90] : memref<1x18x18x4xbf16, #tpu.memory_space<vmem>>, vector<1x16x16x4xbf16>
    %39 = vector.shape_cast %38 : vector<1x16x16x4xbf16> to vector<256x4xbf16>
    %c0_91 = arith.constant 0 : index
    %c20 = arith.constant 20 : index
    %40 = vector.load %arg8[%c0_91, %c20] : memref<256x36xbf16, #tpu.memory_space<vmem>>, vector<256x4xbf16>
    tpu.vector_store %arg8[%c0_91, %c20], %39 {strides = array<i32>} : memref<256x36xbf16, #tpu.memory_space<vmem>>, vector<256x4xbf16>,
    %c0_92 = arith.constant 0 : index
    %c1_93 = arith.constant 1 : index
    %c2_94 = arith.constant 2 : index
    %c0_95 = arith.constant 0 : index
    %41 = vector.load %arg1[%c0_92, %c1_93, %c2_94, %c0_95] : memref<1x18x18x4xf32, #tpu.memory_space<vmem>>, vector<1x16x16x4xf32>
    %c0_96 = arith.constant 0 : index
    %c0_97 = arith.constant 0 : index
    %c0_98 = arith.constant 0 : index
    %c0_99 = arith.constant 0 : index
    %42 = vector.load %arg9[%c0_96, %c0_97, %c0_98, %c0_99] : memref<1x16x16x4xf32, #tpu.memory_space<vmem>>, vector<1x16x16x4xf32>
    %43 = arith.addf %42, %41 : vector<1x16x16x4xf32>
    %c0_100 = arith.constant 0 : index
    %c0_101 = arith.constant 0 : index
    %c0_102 = arith.constant 0 : index
    %c0_103 = arith.constant 0 : index
    %44 = vector.load %arg9[%c0_100, %c0_101, %c0_102, %c0_103] : memref<1x16x16x4xf32, #tpu.memory_space<vmem>>, vector<1x16x16x4xf32>
    tpu.vector_store %arg9[%c0_100, %c0_101, %c0_102, %c0_103], %43 {strides = array<i32>} : memref<1x16x16x4xf32, #tpu.memory_space<vmem>>, vector<1x16x16x4xf32>,
    %c0_104 = arith.constant 0 : index
    %c2_105 = arith.constant 2 : index
    %c0_106 = arith.constant 0 : index
    %c0_107 = arith.constant 0 : index
    %45 = vector.load %arg7[%c0_104, %c2_105, %c0_106, %c0_107] : memref<1x18x18x4xbf16, #tpu.memory_space<vmem>>, vector<1x16x16x4xbf16>
    %46 = vector.shape_cast %45 : vector<1x16x16x4xbf16> to vector<256x4xbf16>
    %c0_108 = arith.constant 0 : index
    %c24 = arith.constant 24 : index
    %47 = vector.load %arg8[%c0_108, %c24] : memref<256x36xbf16, #tpu.memory_space<vmem>>, vector<256x4xbf16>
    tpu.vector_store %arg8[%c0_108, %c24], %46 {strides = array<i32>} : memref<256x36xbf16, #tpu.memory_space<vmem>>, vector<256x4xbf16>,
    %c0_109 = arith.constant 0 : index
    %c2_110 = arith.constant 2 : index
    %c0_111 = arith.constant 0 : index
    %c0_112 = arith.constant 0 : index
    %48 = vector.load %arg1[%c0_109, %c2_110, %c0_111, %c0_112] : memref<1x18x18x4xf32, #tpu.memory_space<vmem>>, vector<1x16x16x4xf32>
    %c0_113 = arith.constant 0 : index
    %c0_114 = arith.constant 0 : index
    %c0_115 = arith.constant 0 : index
    %c0_116 = arith.constant 0 : index
    %49 = vector.load %arg9[%c0_113, %c0_114, %c0_115, %c0_116] : memref<1x16x16x4xf32, #tpu.memory_space<vmem>>, vector<1x16x16x4xf32>
    %50 = arith.addf %49, %48 : vector<1x16x16x4xf32>
    %c0_117 = arith.constant 0 : index
    %c0_118 = arith.constant 0 : index
    %c0_119 = arith.constant 0 : index
    %c0_120 = arith.constant 0 : index
    %51 = vector.load %arg9[%c0_117, %c0_118, %c0_119, %c0_120] : memref<1x16x16x4xf32, #tpu.memory_space<vmem>>, vector<1x16x16x4xf32>
    tpu.vector_store %arg9[%c0_117, %c0_118, %c0_119, %c0_120], %50 {strides = array<i32>} : memref<1x16x16x4xf32, #tpu.memory_space<vmem>>, vector<1x16x16x4xf32>,
    %c0_121 = arith.constant 0 : index
    %c2_122 = arith.constant 2 : index
    %c1_123 = arith.constant 1 : index
    %c0_124 = arith.constant 0 : index
    %52 = vector.load %arg7[%c0_121, %c2_122, %c1_123, %c0_124] : memref<1x18x18x4xbf16, #tpu.memory_space<vmem>>, vector<1x16x16x4xbf16>
    %53 = vector.shape_cast %52 : vector<1x16x16x4xbf16> to vector<256x4xbf16>
    %c0_125 = arith.constant 0 : index
    %c28 = arith.constant 28 : index
    %54 = vector.load %arg8[%c0_125, %c28] : memref<256x36xbf16, #tpu.memory_space<vmem>>, vector<256x4xbf16>
    tpu.vector_store %arg8[%c0_125, %c28], %53 {strides = array<i32>} : memref<256x36xbf16, #tpu.memory_space<vmem>>, vector<256x4xbf16>,
    %c0_126 = arith.constant 0 : index
    %c2_127 = arith.constant 2 : index
    %c1_128 = arith.constant 1 : index
    %c0_129 = arith.constant 0 : index
    %55 = vector.load %arg1[%c0_126, %c2_127, %c1_128, %c0_129] : memref<1x18x18x4xf32, #tpu.memory_space<vmem>>, vector<1x16x16x4xf32>
    %c0_130 = arith.constant 0 : index
    %c0_131 = arith.constant 0 : index
    %c0_132 = arith.constant 0 : index
    %c0_133 = arith.constant 0 : index
    %56 = vector.load %arg9[%c0_130, %c0_131, %c0_132, %c0_133] : memref<1x16x16x4xf32, #tpu.memory_space<vmem>>, vector<1x16x16x4xf32>
    %57 = arith.addf %56, %55 : vector<1x16x16x4xf32>
    %c0_134 = arith.constant 0 : index
    %c0_135 = arith.constant 0 : index
    %c0_136 = arith.constant 0 : index
    %c0_137 = arith.constant 0 : index
    %58 = vector.load %arg9[%c0_134, %c0_135, %c0_136, %c0_137] : memref<1x16x16x4xf32, #tpu.memory_space<vmem>>, vector<1x16x16x4xf32>
    tpu.vector_store %arg9[%c0_134, %c0_135, %c0_136, %c0_137], %57 {strides = array<i32>} : memref<1x16x16x4xf32, #tpu.memory_space<vmem>>, vector<1x16x16x4xf32>,
    %c0_138 = arith.constant 0 : index
    %c2_139 = arith.constant 2 : index
    %c2_140 = arith.constant 2 : index
    %c0_141 = arith.constant 0 : index
    %59 = vector.load %arg7[%c0_138, %c2_139, %c2_140, %c0_141] : memref<1x18x18x4xbf16, #tpu.memory_space<vmem>>, vector<1x16x16x4xbf16>
    %60 = vector.shape_cast %59 : vector<1x16x16x4xbf16> to vector<256x4xbf16>
    %c0_142 = arith.constant 0 : index
    %c32 = arith.constant 32 : index
    %61 = vector.load %arg8[%c0_142, %c32] : memref<256x36xbf16, #tpu.memory_space<vmem>>, vector<256x4xbf16>
    tpu.vector_store %arg8[%c0_142, %c32], %60 {strides = array<i32>} : memref<256x36xbf16, #tpu.memory_space<vmem>>, vector<256x4xbf16>,
    %c0_143 = arith.constant 0 : index
    %c2_144 = arith.constant 2 : index
    %c2_145 = arith.constant 2 : index
    %c0_146 = arith.constant 0 : index
    %62 = vector.load %arg1[%c0_143, %c2_144, %c2_145, %c0_146] : memref<1x18x18x4xf32, #tpu.memory_space<vmem>>, vector<1x16x16x4xf32>
    %c0_147 = arith.constant 0 : index
    %c0_148 = arith.constant 0 : index
    %c0_149 = arith.constant 0 : index
    %c0_150 = arith.constant 0 : index
    %63 = vector.load %arg9[%c0_147, %c0_148, %c0_149, %c0_150] : memref<1x16x16x4xf32, #tpu.memory_space<vmem>>, vector<1x16x16x4xf32>
    %64 = arith.addf %63, %62 : vector<1x16x16x4xf32>
    %c0_151 = arith.constant 0 : index
    %c0_152 = arith.constant 0 : index
    %c0_153 = arith.constant 0 : index
    %c0_154 = arith.constant 0 : index
    %65 = vector.load %arg9[%c0_151, %c0_152, %c0_153, %c0_154] : memref<1x16x16x4xf32, #tpu.memory_space<vmem>>, vector<1x16x16x4xf32>
    tpu.vector_store %arg9[%c0_151, %c0_152, %c0_153, %c0_154], %64 {strides = array<i32>} : memref<1x16x16x4xf32, #tpu.memory_space<vmem>>, vector<1x16x16x4xf32>,
    %c0_155 = arith.constant 0 : index
    %c0_156 = arith.constant 0 : index
    %66 = vector.load %arg8[%c0_155, %c0_156] : memref<256x36xbf16, #tpu.memory_space<vmem>>, vector<256x36xbf16>
    %c0_157 = arith.constant 0 : index
    %c0_158 = arith.constant 0 : index
    %67 = vector.load %arg2[%c0_157, %c0_158] : memref<36x8xbf16, #tpu.memory_space<vmem>>, vector<36x8xbf16>
    %cst_159 = arith.constant dense<0.000000e+00> : vector<256x8xf32>
    %68 = tpu.matmul %66, %67, %cst_159 {dimension_numbers = #tpu.dot_dimension_numbers<[1], [0], [0], [1], [0, 0, 1, 1], [], []>} : vector<256x36xbf16>, vector<36x8xbf16>, vector<256x8xf32> -> vector<256x8xf32>
    %69 = vector.shape_cast %68 : vector<256x8xf32> to vector<1x16x16x8xf32>
    %70 = arith.truncf %69 : vector<1x16x16x8xf32> to vector<1x16x16x8xbf16>
    %c0_160 = arith.constant 0 : index
    %c0_161 = arith.constant 0 : index
    %c0_162 = arith.constant 0 : index
    %c0_163 = arith.constant 0 : index
    %71 = vector.load %arg4[%c0_160, %c0_161, %c0_162, %c0_163] : memref<1x16x16x8xbf16, #tpu.memory_space<vmem>>, vector<1x16x16x8xbf16>
    tpu.vector_store %arg4[%c0_160, %c0_161, %c0_162, %c0_163], %70 {strides = array<i32>} : memref<1x16x16x8xbf16, #tpu.memory_space<vmem>>, vector<1x16x16x8xbf16>,
    %cst_164 = arith.constant dense<0.000000e+00> : vector<8xf32>
    %72 = vector.multi_reduction <add>, %68, %cst_164 [0] : vector<256x8xf32> to vector<8xf32>
    %73 = vector.shape_cast %72 : vector<8xf32> to vector<1x8xf32>
    %cst_165 = arith.constant 3.906250e-03 : f32
    %74 = vector.broadcast %cst_165 : f32 to vector<1x8xf32>
    %75 = arith.mulf %73, %74 : vector<1x8xf32>
    %76 = vector.broadcast %75 : vector<1x8xf32> to vector<256x8xf32>
    %77 = arith.subf %68, %76 : vector<256x8xf32>
    %78 = arith.mulf %77, %77 : vector<256x8xf32>
    %cst_166 = arith.constant dense<0.000000e+00> : vector<8xf32>
    %79 = vector.multi_reduction <add>, %78, %cst_166 [0] : vector<256x8xf32> to vector<8xf32>
    %80 = vector.shape_cast %79 : vector<8xf32> to vector<1x8xf32>
    %81 = tpu.concatenate %73, %80 in 0 : vector<1x8xf32>, vector<1x8xf32> -> vector<2x8xf32>
    %c0_167 = arith.constant 0 : index
    %c0_168 = arith.constant 0 : index
    %c0_169 = arith.constant 0 : index
    %82 = vector.load %arg5[%c0_167, %c0_168, %c0_169] : memref<1x2x8xf32, #tpu.memory_space<vmem>>, vector<1x2x8xf32>
    %83 = vector.shape_cast %82 : vector<1x2x8xf32> to vector<2x8xf32>
    %84 = vector.shape_cast %81 : vector<2x8xf32> to vector<1x2x8xf32>
    tpu.vector_store %arg5[%c0_167, %c0_168, %c0_169], %84 {strides = array<i32>} : memref<1x2x8xf32, #tpu.memory_space<vmem>>, vector<1x2x8xf32>,
    %c0_170 = arith.constant 0 : index
    %c0_171 = arith.constant 0 : index
    %c0_172 = arith.constant 0 : index
    %c0_173 = arith.constant 0 : index
    %85 = vector.load %arg9[%c0_170, %c0_171, %c0_172, %c0_173] : memref<1x16x16x4xf32, #tpu.memory_space<vmem>>, vector<1x16x16x4xf32>
    %c0_174 = arith.constant 0 : index
    %c0_175 = arith.constant 0 : index
    %c0_176 = arith.constant 0 : index
    %c0_177 = arith.constant 0 : index
    %86 = vector.load %arg3[%c0_174, %c0_175, %c0_176, %c0_177] : memref<1x16x16x1xf32, #tpu.memory_space<vmem>>, vector<1x16x16x1xf32>
    %87 = vector.broadcast %86 : vector<1x16x16x1xf32> to vector<1x16x16x4xf32>
    %88 = arith.mulf %85, %87 : vector<1x16x16x4xf32>
    %89 = vector.shape_cast %88 : vector<1x16x16x4xf32> to vector<256x4xf32>
    %cst_178 = arith.constant dense<0.000000e+00> : vector<4xf32>
    %90 = vector.multi_reduction <add>, %89, %cst_178 [0] : vector<256x4xf32> to vector<4xf32>
    %91 = vector.shape_cast %90 : vector<4xf32> to vector<1x4xf32>
    %cst_179 = arith.constant 3.906250e-03 : f32
    %92 = vector.broadcast %cst_179 : f32 to vector<1x4xf32>
    %93 = arith.mulf %91, %92 : vector<1x4xf32>
    %94 = vector.broadcast %93 : vector<1x4xf32> to vector<256x4xf32>
    %95 = arith.subf %89, %94 : vector<256x4xf32>
    %96 = arith.mulf %95, %95 : vector<256x4xf32>
    %cst_180 = arith.constant dense<0.000000e+00> : vector<4xf32>
    %97 = vector.multi_reduction <add>, %96, %cst_180 [0] : vector<256x4xf32> to vector<4xf32>
    %98 = vector.shape_cast %97 : vector<4xf32> to vector<1x4xf32>
    %99 = tpu.concatenate %91, %98 in 0 : vector<1x4xf32>, vector<1x4xf32> -> vector<2x4xf32>
    %c0_181 = arith.constant 0 : index
    %c0_182 = arith.constant 0 : index
    %c0_183 = arith.constant 0 : index
    %100 = vector.load %arg6[%c0_181, %c0_182, %c0_183] : memref<1x2x4xf32, #tpu.memory_space<vmem>>, vector<1x2x4xf32>
    %101 = vector.shape_cast %100 : vector<1x2x4xf32> to vector<2x4xf32>
    %102 = vector.shape_cast %99 : vector<2x4xf32> to vector<1x2x4xf32>
    tpu.vector_store %arg6[%c0_181, %c0_182, %c0_183], %102 {strides = array<i32>} : memref<1x2x4xf32, #tpu.memory_space<vmem>>, vector<1x2x4xf32>,
    return
  }
  func.func @transform_0(%arg0: i32) -> (i32, i32, i32, i32) {
    %c0_i32 = arith.constant 0 : i32
    %c0_i32_0 = arith.constant 0 : i32
    %c0_i32_1 = arith.constant 0 : i32
    %c0_i32_2 = arith.constant 0 : i32
    return %arg0, %c0_i32, %c0_i32_0, %c0_i32_1 : i32, i32, i32, i32
  }
  func.func @transform_1(%arg0: i32) -> (i32, i32) {
    %c0_i32 = arith.constant 0 : i32
    %c0_i32_0 = arith.constant 0 : i32
    %c0_i32_1 = arith.constant 0 : i32
    return %c0_i32, %c0_i32_0 : i32, i32
  }
  func.func @transform_2(%arg0: i32) -> (i32, i32, i32, i32) {
    %c0_i32 = arith.constant 0 : i32
    %c0_i32_0 = arith.constant 0 : i32
    %c0_i32_1 = arith.constant 0 : i32
    %c0_i32_2 = arith.constant 0 : i32
    %c0_i32_3 = arith.constant 0 : i32
    return %c0_i32, %c0_i32_0, %c0_i32_1, %c0_i32_2 : i32, i32, i32, i32
  }
  func.func @transform_3(%arg0: i32) -> (i32, i32, i32, i32) {
    %c0_i32 = arith.constant 0 : i32
    %c0_i32_0 = arith.constant 0 : i32
    %c0_i32_1 = arith.constant 0 : i32
    %c0_i32_2 = arith.constant 0 : i32
    return %arg0, %c0_i32, %c0_i32_0, %c0_i32_1 : i32, i32, i32, i32
  }
  func.func @transform_4(%arg0: i32) -> (i32, i32, i32) {
    %c0_i32 = arith.constant 0 : i32
    %c0_i32_0 = arith.constant 0 : i32
    %c0_i32_1 = arith.constant 0 : i32
    return %arg0, %c0_i32, %c0_i32_0 : i32, i32, i32
  }
  func.func @transform_5(%arg0: i32) -> (i32, i32, i32) {
    %c0_i32 = arith.constant 0 : i32
    %c0_i32_0 = arith.constant 0 : i32
    %c0_i32_1 = arith.constant 0 : i32
    return %arg0, %c0_i32, %c0_i32_0 : i32, i32, i32
  }
}

module attributes {stable_mosaic.version = 11 : i64} {
  func.func @_pass2_kernel(%arg0: i32, %arg1: memref<1xf32, #tpu.memory_space<smem>>, %arg2: memref<1x18x18x4xf32, #tpu.memory_space<vmem>>, %arg3: memref<1x16x16x8xbf16, #tpu.memory_space<vmem>>, %arg4: memref<1x16x16x1xf32, #tpu.memory_space<vmem>>, %arg5: memref<1x1x1x8xf32, #tpu.memory_space<vmem>>, %arg6: memref<1x1x1x8xf32, #tpu.memory_space<vmem>>, %arg7: memref<1x1x1x4xf32, #tpu.memory_space<vmem>>, %arg8: memref<1x1x1x4xf32, #tpu.memory_space<vmem>>, %arg9: memref<1x16x16x4xf32, #tpu.memory_space<vmem>>, %arg10: memref<1x16x16x4xf32, #tpu.memory_space<vmem>>) attributes {dimension_semantics = [#tpu.dimension_semantics<parallel>], iteration_bounds = array<i64: 2>, scalar_prefetch = 0 : i64, scratch_operands = 1 : i64, tpu.core_type = #tpu.core_type<tc>, window_params = [{transform_indices = @transform_0, window_bounds = array<i64: 1>}, {transform_indices = @transform_1, window_bounds = array<i64: 1, 18, 18, 4>}, {transform_indices = @transform_2, window_bounds = array<i64: 1, 16, 16, 8>}, {pipeline_mode = #tpu.pipeline_mode<synchronous>, transform_indices = @transform_3, window_bounds = array<i64: 1, 16, 16, 1>}, {pipeline_mode = #tpu.pipeline_mode<synchronous>, transform_indices = @transform_4, window_bounds = array<i64: 1, 1, 1, 8>}, {pipeline_mode = #tpu.pipeline_mode<synchronous>, transform_indices = @transform_5, window_bounds = array<i64: 1, 1, 1, 8>}, {pipeline_mode = #tpu.pipeline_mode<synchronous>, transform_indices = @transform_6, window_bounds = array<i64: 1, 1, 1, 4>}, {pipeline_mode = #tpu.pipeline_mode<synchronous>, transform_indices = @transform_7, window_bounds = array<i64: 1, 1, 1, 4>}, {transform_indices = @transform_8, window_bounds = array<i64: 1, 16, 16, 4>}]} {
    %c0 = arith.constant 0 : index
    %0 = memref.load %arg1[%c0] : memref<1xf32, #tpu.memory_space<smem>>
    %c0_0 = arith.constant 0 : index
    %c0_1 = arith.constant 0 : index
    %c0_2 = arith.constant 0 : index
    %c0_3 = arith.constant 0 : index
    %1 = vector.load %arg2[%c0_0, %c0_1, %c0_2, %c0_3] : memref<1x18x18x4xf32, #tpu.memory_space<vmem>>, vector<1x16x16x4xf32>
    %c0_4 = arith.constant 0 : index
    %c0_5 = arith.constant 0 : index
    %c0_6 = arith.constant 0 : index
    %c0_7 = arith.constant 0 : index
    %2 = vector.load %arg10[%c0_4, %c0_5, %c0_6, %c0_7] : memref<1x16x16x4xf32, #tpu.memory_space<vmem>>, vector<1x16x16x4xf32>
    tpu.vector_store %arg10[%c0_4, %c0_5, %c0_6, %c0_7], %1 {strides = array<i32>} : memref<1x16x16x4xf32, #tpu.memory_space<vmem>>, vector<1x16x16x4xf32>,
    %c0_8 = arith.constant 0 : index
    %c0_9 = arith.constant 0 : index
    %c1 = arith.constant 1 : index
    %c0_10 = arith.constant 0 : index
    %3 = vector.load %arg2[%c0_8, %c0_9, %c1, %c0_10] : memref<1x18x18x4xf32, #tpu.memory_space<vmem>>, vector<1x16x16x4xf32>
    %c0_11 = arith.constant 0 : index
    %c0_12 = arith.constant 0 : index
    %c0_13 = arith.constant 0 : index
    %c0_14 = arith.constant 0 : index
    %4 = vector.load %arg10[%c0_11, %c0_12, %c0_13, %c0_14] : memref<1x16x16x4xf32, #tpu.memory_space<vmem>>, vector<1x16x16x4xf32>
    %5 = arith.addf %4, %3 : vector<1x16x16x4xf32>
    %c0_15 = arith.constant 0 : index
    %c0_16 = arith.constant 0 : index
    %c0_17 = arith.constant 0 : index
    %c0_18 = arith.constant 0 : index
    %6 = vector.load %arg10[%c0_15, %c0_16, %c0_17, %c0_18] : memref<1x16x16x4xf32, #tpu.memory_space<vmem>>, vector<1x16x16x4xf32>
    tpu.vector_store %arg10[%c0_15, %c0_16, %c0_17, %c0_18], %5 {strides = array<i32>} : memref<1x16x16x4xf32, #tpu.memory_space<vmem>>, vector<1x16x16x4xf32>,
    %c0_19 = arith.constant 0 : index
    %c0_20 = arith.constant 0 : index
    %c2 = arith.constant 2 : index
    %c0_21 = arith.constant 0 : index
    %7 = vector.load %arg2[%c0_19, %c0_20, %c2, %c0_21] : memref<1x18x18x4xf32, #tpu.memory_space<vmem>>, vector<1x16x16x4xf32>
    %c0_22 = arith.constant 0 : index
    %c0_23 = arith.constant 0 : index
    %c0_24 = arith.constant 0 : index
    %c0_25 = arith.constant 0 : index
    %8 = vector.load %arg10[%c0_22, %c0_23, %c0_24, %c0_25] : memref<1x16x16x4xf32, #tpu.memory_space<vmem>>, vector<1x16x16x4xf32>
    %9 = arith.addf %8, %7 : vector<1x16x16x4xf32>
    %c0_26 = arith.constant 0 : index
    %c0_27 = arith.constant 0 : index
    %c0_28 = arith.constant 0 : index
    %c0_29 = arith.constant 0 : index
    %10 = vector.load %arg10[%c0_26, %c0_27, %c0_28, %c0_29] : memref<1x16x16x4xf32, #tpu.memory_space<vmem>>, vector<1x16x16x4xf32>
    tpu.vector_store %arg10[%c0_26, %c0_27, %c0_28, %c0_29], %9 {strides = array<i32>} : memref<1x16x16x4xf32, #tpu.memory_space<vmem>>, vector<1x16x16x4xf32>,
    %c0_30 = arith.constant 0 : index
    %c1_31 = arith.constant 1 : index
    %c0_32 = arith.constant 0 : index
    %c0_33 = arith.constant 0 : index
    %11 = vector.load %arg2[%c0_30, %c1_31, %c0_32, %c0_33] : memref<1x18x18x4xf32, #tpu.memory_space<vmem>>, vector<1x16x16x4xf32>
    %c0_34 = arith.constant 0 : index
    %c0_35 = arith.constant 0 : index
    %c0_36 = arith.constant 0 : index
    %c0_37 = arith.constant 0 : index
    %12 = vector.load %arg10[%c0_34, %c0_35, %c0_36, %c0_37] : memref<1x16x16x4xf32, #tpu.memory_space<vmem>>, vector<1x16x16x4xf32>
    %13 = arith.addf %12, %11 : vector<1x16x16x4xf32>
    %c0_38 = arith.constant 0 : index
    %c0_39 = arith.constant 0 : index
    %c0_40 = arith.constant 0 : index
    %c0_41 = arith.constant 0 : index
    %14 = vector.load %arg10[%c0_38, %c0_39, %c0_40, %c0_41] : memref<1x16x16x4xf32, #tpu.memory_space<vmem>>, vector<1x16x16x4xf32>
    tpu.vector_store %arg10[%c0_38, %c0_39, %c0_40, %c0_41], %13 {strides = array<i32>} : memref<1x16x16x4xf32, #tpu.memory_space<vmem>>, vector<1x16x16x4xf32>,
    %c0_42 = arith.constant 0 : index
    %c1_43 = arith.constant 1 : index
    %c1_44 = arith.constant 1 : index
    %c0_45 = arith.constant 0 : index
    %15 = vector.load %arg2[%c0_42, %c1_43, %c1_44, %c0_45] : memref<1x18x18x4xf32, #tpu.memory_space<vmem>>, vector<1x16x16x4xf32>
    %c0_46 = arith.constant 0 : index
    %c0_47 = arith.constant 0 : index
    %c0_48 = arith.constant 0 : index
    %c0_49 = arith.constant 0 : index
    %16 = vector.load %arg10[%c0_46, %c0_47, %c0_48, %c0_49] : memref<1x16x16x4xf32, #tpu.memory_space<vmem>>, vector<1x16x16x4xf32>
    %17 = arith.addf %16, %15 : vector<1x16x16x4xf32>
    %c0_50 = arith.constant 0 : index
    %c0_51 = arith.constant 0 : index
    %c0_52 = arith.constant 0 : index
    %c0_53 = arith.constant 0 : index
    %18 = vector.load %arg10[%c0_50, %c0_51, %c0_52, %c0_53] : memref<1x16x16x4xf32, #tpu.memory_space<vmem>>, vector<1x16x16x4xf32>
    tpu.vector_store %arg10[%c0_50, %c0_51, %c0_52, %c0_53], %17 {strides = array<i32>} : memref<1x16x16x4xf32, #tpu.memory_space<vmem>>, vector<1x16x16x4xf32>,
    %c0_54 = arith.constant 0 : index
    %c1_55 = arith.constant 1 : index
    %c2_56 = arith.constant 2 : index
    %c0_57 = arith.constant 0 : index
    %19 = vector.load %arg2[%c0_54, %c1_55, %c2_56, %c0_57] : memref<1x18x18x4xf32, #tpu.memory_space<vmem>>, vector<1x16x16x4xf32>
    %c0_58 = arith.constant 0 : index
    %c0_59 = arith.constant 0 : index
    %c0_60 = arith.constant 0 : index
    %c0_61 = arith.constant 0 : index
    %20 = vector.load %arg10[%c0_58, %c0_59, %c0_60, %c0_61] : memref<1x16x16x4xf32, #tpu.memory_space<vmem>>, vector<1x16x16x4xf32>
    %21 = arith.addf %20, %19 : vector<1x16x16x4xf32>
    %c0_62 = arith.constant 0 : index
    %c0_63 = arith.constant 0 : index
    %c0_64 = arith.constant 0 : index
    %c0_65 = arith.constant 0 : index
    %22 = vector.load %arg10[%c0_62, %c0_63, %c0_64, %c0_65] : memref<1x16x16x4xf32, #tpu.memory_space<vmem>>, vector<1x16x16x4xf32>
    tpu.vector_store %arg10[%c0_62, %c0_63, %c0_64, %c0_65], %21 {strides = array<i32>} : memref<1x16x16x4xf32, #tpu.memory_space<vmem>>, vector<1x16x16x4xf32>,
    %c0_66 = arith.constant 0 : index
    %c2_67 = arith.constant 2 : index
    %c0_68 = arith.constant 0 : index
    %c0_69 = arith.constant 0 : index
    %23 = vector.load %arg2[%c0_66, %c2_67, %c0_68, %c0_69] : memref<1x18x18x4xf32, #tpu.memory_space<vmem>>, vector<1x16x16x4xf32>
    %c0_70 = arith.constant 0 : index
    %c0_71 = arith.constant 0 : index
    %c0_72 = arith.constant 0 : index
    %c0_73 = arith.constant 0 : index
    %24 = vector.load %arg10[%c0_70, %c0_71, %c0_72, %c0_73] : memref<1x16x16x4xf32, #tpu.memory_space<vmem>>, vector<1x16x16x4xf32>
    %25 = arith.addf %24, %23 : vector<1x16x16x4xf32>
    %c0_74 = arith.constant 0 : index
    %c0_75 = arith.constant 0 : index
    %c0_76 = arith.constant 0 : index
    %c0_77 = arith.constant 0 : index
    %26 = vector.load %arg10[%c0_74, %c0_75, %c0_76, %c0_77] : memref<1x16x16x4xf32, #tpu.memory_space<vmem>>, vector<1x16x16x4xf32>
    tpu.vector_store %arg10[%c0_74, %c0_75, %c0_76, %c0_77], %25 {strides = array<i32>} : memref<1x16x16x4xf32, #tpu.memory_space<vmem>>, vector<1x16x16x4xf32>,
    %c0_78 = arith.constant 0 : index
    %c2_79 = arith.constant 2 : index
    %c1_80 = arith.constant 1 : index
    %c0_81 = arith.constant 0 : index
    %27 = vector.load %arg2[%c0_78, %c2_79, %c1_80, %c0_81] : memref<1x18x18x4xf32, #tpu.memory_space<vmem>>, vector<1x16x16x4xf32>
    %c0_82 = arith.constant 0 : index
    %c0_83 = arith.constant 0 : index
    %c0_84 = arith.constant 0 : index
    %c0_85 = arith.constant 0 : index
    %28 = vector.load %arg10[%c0_82, %c0_83, %c0_84, %c0_85] : memref<1x16x16x4xf32, #tpu.memory_space<vmem>>, vector<1x16x16x4xf32>
    %29 = arith.addf %28, %27 : vector<1x16x16x4xf32>
    %c0_86 = arith.constant 0 : index
    %c0_87 = arith.constant 0 : index
    %c0_88 = arith.constant 0 : index
    %c0_89 = arith.constant 0 : index
    %30 = vector.load %arg10[%c0_86, %c0_87, %c0_88, %c0_89] : memref<1x16x16x4xf32, #tpu.memory_space<vmem>>, vector<1x16x16x4xf32>
    tpu.vector_store %arg10[%c0_86, %c0_87, %c0_88, %c0_89], %29 {strides = array<i32>} : memref<1x16x16x4xf32, #tpu.memory_space<vmem>>, vector<1x16x16x4xf32>,
    %c0_90 = arith.constant 0 : index
    %c2_91 = arith.constant 2 : index
    %c2_92 = arith.constant 2 : index
    %c0_93 = arith.constant 0 : index
    %31 = vector.load %arg2[%c0_90, %c2_91, %c2_92, %c0_93] : memref<1x18x18x4xf32, #tpu.memory_space<vmem>>, vector<1x16x16x4xf32>
    %c0_94 = arith.constant 0 : index
    %c0_95 = arith.constant 0 : index
    %c0_96 = arith.constant 0 : index
    %c0_97 = arith.constant 0 : index
    %32 = vector.load %arg10[%c0_94, %c0_95, %c0_96, %c0_97] : memref<1x16x16x4xf32, #tpu.memory_space<vmem>>, vector<1x16x16x4xf32>
    %33 = arith.addf %32, %31 : vector<1x16x16x4xf32>
    %c0_98 = arith.constant 0 : index
    %c0_99 = arith.constant 0 : index
    %c0_100 = arith.constant 0 : index
    %c0_101 = arith.constant 0 : index
    %34 = vector.load %arg10[%c0_98, %c0_99, %c0_100, %c0_101] : memref<1x16x16x4xf32, #tpu.memory_space<vmem>>, vector<1x16x16x4xf32>
    tpu.vector_store %arg10[%c0_98, %c0_99, %c0_100, %c0_101], %33 {strides = array<i32>} : memref<1x16x16x4xf32, #tpu.memory_space<vmem>>, vector<1x16x16x4xf32>,
    %c0_102 = arith.constant 0 : index
    %c0_103 = arith.constant 0 : index
    %c0_104 = arith.constant 0 : index
    %c0_105 = arith.constant 0 : index
    %35 = vector.load %arg10[%c0_102, %c0_103, %c0_104, %c0_105] : memref<1x16x16x4xf32, #tpu.memory_space<vmem>>, vector<1x16x16x4xf32>
    %c0_106 = arith.constant 0 : index
    %c0_107 = arith.constant 0 : index
    %c0_108 = arith.constant 0 : index
    %c0_109 = arith.constant 0 : index
    %36 = vector.load %arg4[%c0_106, %c0_107, %c0_108, %c0_109] : memref<1x16x16x1xf32, #tpu.memory_space<vmem>>, vector<1x16x16x1xf32>
    %37 = vector.broadcast %36 : vector<1x16x16x1xf32> to vector<1x16x16x4xf32>
    %38 = arith.mulf %35, %37 : vector<1x16x16x4xf32>
    %c0_110 = arith.constant 0 : index
    %c1_111 = arith.constant 1 : index
    %c1_112 = arith.constant 1 : index
    %c0_113 = arith.constant 0 : index
    %39 = vector.load %arg2[%c0_110, %c1_111, %c1_112, %c0_113] : memref<1x18x18x4xf32, #tpu.memory_space<vmem>>, vector<1x16x16x4xf32>
    %c0_114 = arith.constant 0 : index
    %c0_115 = arith.constant 0 : index
    %c0_116 = arith.constant 0 : index
    %c0_117 = arith.constant 0 : index
    %40 = vector.load %arg3[%c0_114, %c0_115, %c0_116, %c0_117] : memref<1x16x16x8xbf16, #tpu.memory_space<vmem>>, vector<1x16x16x8xbf16>
    %41 = arith.extf %40 : vector<1x16x16x8xbf16> to vector<1x16x16x8xf32>
    %c0_118 = arith.constant 0 : index
    %c0_119 = arith.constant 0 : index
    %c0_120 = arith.constant 0 : index
    %c0_121 = arith.constant 0 : index
    %42 = vector.load %arg5[%c0_118, %c0_119, %c0_120, %c0_121] : memref<1x1x1x8xf32, #tpu.memory_space<vmem>>, vector<1x1x1x8xf32>
    %43 = vector.broadcast %42 : vector<1x1x1x8xf32> to vector<1x16x16x8xf32>
    %44 = arith.mulf %41, %43 : vector<1x16x16x8xf32>
    %c0_122 = arith.constant 0 : index
    %c0_123 = arith.constant 0 : index
    %c0_124 = arith.constant 0 : index
    %c0_125 = arith.constant 0 : index
    %45 = vector.load %arg6[%c0_122, %c0_123, %c0_124, %c0_125] : memref<1x1x1x8xf32, #tpu.memory_space<vmem>>, vector<1x1x1x8xf32>
    %46 = vector.broadcast %45 : vector<1x1x1x8xf32> to vector<1x16x16x8xf32>
    %47 = arith.addf %44, %46 : vector<1x16x16x8xf32>
    %48 = vector.broadcast %0 : f32 to vector<1x16x16x4xf32>
    %49 = arith.mulf %48, %39 : vector<1x16x16x4xf32>
    %50 = vector.extract_strided_slice %47 {offsets = [0, 0, 0, 0], sizes = [1, 16, 16, 4], strides = [1, 1, 1, 1]} : vector<1x16x16x8xf32> to vector<1x16x16x4xf32>
    %51 = arith.addf %49, %50 : vector<1x16x16x4xf32>
    %52 = vector.extract_strided_slice %47 {offsets = [0, 0, 0, 4], sizes = [1, 16, 16, 4], strides = [1, 1, 1, 1]} : vector<1x16x16x8xf32> to vector<1x16x16x4xf32>
    %53 = arith.addf %51, %52 : vector<1x16x16x4xf32>
    %c0_126 = arith.constant 0 : index
    %c0_127 = arith.constant 0 : index
    %c0_128 = arith.constant 0 : index
    %c0_129 = arith.constant 0 : index
    %54 = vector.load %arg7[%c0_126, %c0_127, %c0_128, %c0_129] : memref<1x1x1x4xf32, #tpu.memory_space<vmem>>, vector<1x1x1x4xf32>
    %55 = vector.broadcast %54 : vector<1x1x1x4xf32> to vector<1x16x16x4xf32>
    %56 = arith.mulf %38, %55 : vector<1x16x16x4xf32>
    %57 = arith.addf %53, %56 : vector<1x16x16x4xf32>
    %c0_130 = arith.constant 0 : index
    %c0_131 = arith.constant 0 : index
    %c0_132 = arith.constant 0 : index
    %c0_133 = arith.constant 0 : index
    %58 = vector.load %arg8[%c0_130, %c0_131, %c0_132, %c0_133] : memref<1x1x1x4xf32, #tpu.memory_space<vmem>>, vector<1x1x1x4xf32>
    %59 = vector.broadcast %58 : vector<1x1x1x4xf32> to vector<1x16x16x4xf32>
    %60 = arith.addf %57, %59 : vector<1x16x16x4xf32>
    %c0_134 = arith.constant 0 : index
    %c0_135 = arith.constant 0 : index
    %c0_136 = arith.constant 0 : index
    %c0_137 = arith.constant 0 : index
    %61 = vector.load %arg9[%c0_134, %c0_135, %c0_136, %c0_137] : memref<1x16x16x4xf32, #tpu.memory_space<vmem>>, vector<1x16x16x4xf32>
    tpu.vector_store %arg9[%c0_134, %c0_135, %c0_136, %c0_137], %60 {strides = array<i32>} : memref<1x16x16x4xf32, #tpu.memory_space<vmem>>, vector<1x16x16x4xf32>,
    return
  }
  func.func @transform_0(%arg0: i32) -> i32 {
    %c0_i32 = arith.constant 0 : i32
    %c0_i32_0 = arith.constant 0 : i32
    return %c0_i32 : i32
  }
  func.func @transform_1(%arg0: i32) -> (i32, i32, i32, i32) {
    %c0_i32 = arith.constant 0 : i32
    %c0_i32_0 = arith.constant 0 : i32
    %c0_i32_1 = arith.constant 0 : i32
    %c0_i32_2 = arith.constant 0 : i32
    return %arg0, %c0_i32, %c0_i32_0, %c0_i32_1 : i32, i32, i32, i32
  }
  func.func @transform_2(%arg0: i32) -> (i32, i32, i32, i32) {
    %c0_i32 = arith.constant 0 : i32
    %c0_i32_0 = arith.constant 0 : i32
    %c0_i32_1 = arith.constant 0 : i32
    %c0_i32_2 = arith.constant 0 : i32
    return %arg0, %c0_i32, %c0_i32_0, %c0_i32_1 : i32, i32, i32, i32
  }
  func.func @transform_3(%arg0: i32) -> (i32, i32, i32, i32) {
    %c0_i32 = arith.constant 0 : i32
    %c0_i32_0 = arith.constant 0 : i32
    %c0_i32_1 = arith.constant 0 : i32
    %c0_i32_2 = arith.constant 0 : i32
    %c0_i32_3 = arith.constant 0 : i32
    return %c0_i32, %c0_i32_0, %c0_i32_1, %c0_i32_2 : i32, i32, i32, i32
  }
  func.func @transform_4(%arg0: i32) -> (i32, i32, i32, i32) {
    %c0_i32 = arith.constant 0 : i32
    %c0_i32_0 = arith.constant 0 : i32
    %c0_i32_1 = arith.constant 0 : i32
    %c0_i32_2 = arith.constant 0 : i32
    %c0_i32_3 = arith.constant 0 : i32
    return %c0_i32, %c0_i32_0, %c0_i32_1, %c0_i32_2 : i32, i32, i32, i32
  }
  func.func @transform_5(%arg0: i32) -> (i32, i32, i32, i32) {
    %c0_i32 = arith.constant 0 : i32
    %c0_i32_0 = arith.constant 0 : i32
    %c0_i32_1 = arith.constant 0 : i32
    %c0_i32_2 = arith.constant 0 : i32
    %c0_i32_3 = arith.constant 0 : i32
    return %c0_i32, %c0_i32_0, %c0_i32_1, %c0_i32_2 : i32, i32, i32, i32
  }
  func.func @transform_6(%arg0: i32) -> (i32, i32, i32, i32) {
    %c0_i32 = arith.constant 0 : i32
    %c0_i32_0 = arith.constant 0 : i32
    %c0_i32_1 = arith.constant 0 : i32
    %c0_i32_2 = arith.constant 0 : i32
    %c0_i32_3 = arith.constant 0 : i32
    return %c0_i32, %c0_i32_0, %c0_i32_1, %c0_i32_2 : i32, i32, i32, i32
  }
  func.func @transform_7(%arg0: i32) -> (i32, i32, i32, i32) {
    %c0_i32 = arith.constant 0 : i32
    %c0_i32_0 = arith.constant 0 : i32
    %c0_i32_1 = arith.constant 0 : i32
    %c0_i32_2 = arith.constant 0 : i32
    %c0_i32_3 = arith.constant 0 : i32
    return %c0_i32, %c0_i32_0, %c0_i32_1, %c0_i32_2 : i32, i32, i32, i32
  }
  func.func @transform_8(%arg0: i32) -> (i32, i32, i32, i32) {
    %c0_i32 = arith.constant 0 : i32
    %c0_i32_0 = arith.constant 0 : i32
    %c0_i32_1 = arith.constant 0 : i32
    %c0_i32_2 = arith.constant 0 : i32
    return %arg0, %c0_i32, %c0_i32_0, %c0_i32_1 : i32, i32, i32, i32
  }
}

</mosaic_0001>

<llo_original>
// kernel: mixed_op_forward.3
$region0: #{mixed_op_forward.3}
  #allocation0 [shape = 'u32[]', space=smem, size = 0x4, offset = 0x4, fixed_abs, tag = 'smem constant byte address 0x4 - core index']
  #allocation1 [shape = 'u32[72,128]{1,0:T(1,128)}', space=vmem, size = 0x9000, scoped, tag = 'internal scratch']
  #allocation2 [shape = 'f32[1,16,16,4]{3,2,1,0:T(8,128)}', space=vmem, size = 0x20000, scoped, tag = 'scratch operand']
  #allocation3 [shape = 'f32[1]{0:T(128)S(6)}', space=smem, size = 0x200, scoped, tag = 'scoped memory for mixed_op_forward.3']
  %s0 = inlined_call_operand.<no memory space> [shape: f32[1], index: 0, kind: input, shape index: {}]
  %s1 = inlined_call_operand.vmem [shape: f32[2,18,18,4], index: 1, kind: input, shape index: {}]
  %s2 = inlined_call_operand.vmem [shape: bf16[2,16,16,8], index: 2, kind: input, shape index: {}]
  %s3 = inlined_call_operand.vmem [shape: f32[1,16,16,1], index: 3, kind: input, shape index: {}]
  %s4 = inlined_call_operand.vmem [shape: f32[1,1,1,8], index: 4, kind: input, shape index: {}]
  %s5 = inlined_call_operand.vmem [shape: f32[1,1,1,8], index: 5, kind: input, shape index: {}]
  %s6 = inlined_call_operand.vmem [shape: f32[1,1,1,4], index: 6, kind: input, shape index: {}]
  %s7 = inlined_call_operand.vmem [shape: f32[1,1,1,4], index: 7, kind: input, shape index: {}]
  %s8 = inlined_call_operand.vmem [shape: f32[2,16,16,4], index: 8, kind: output, shape index: {}]
  %s9 = sld [smem:[#allocation0]]
  $region65: #{mixed_op_forward.3} parent=0
    _
  %s11 = ssub.s32 1, %s9
  %s12 = scalar_select 0, %s11, %s9
  %13 = sst [smem:[#allocation3]] %s0
  loop: start=0, step=1, limit=4
  $region2: #{mixed_op_forward.3} parent=0 // loop_pre_header
    _
  $region3: #{mixed_op_forward.3} parent=0 // loop_header
    %s15 = sphi 0, %s19
    %p16 = scmp.ge.s32.totalorder %s15, 4
    %s23 = sphi 0, %s23
    %s25 = sphi 0, %s23
    %s26 = sphi 0, %s25
    %s40 = sphi 0, %s26
    %s46 = sphi 0, %s48
    %s49 = sphi 0, %s46
    %s50 = sphi 0, %s49
    %s66 = sphi 0, %s50
    %s72 = sphi 0, %s74
    %s75 = sphi 0, %s72
    %s76 = sphi 0, %s75
    %s92 = sphi 0, %s76
    %s96 = sphi 0, %s96
    %s98 = sphi 0, %s96
    %s99 = sphi 0, %s98
    %s113 = sphi 0, %s99
    %s117 = sphi 0, %s117
    %s119 = sphi 0, %s117
    %s120 = sphi 0, %s119
    %s134 = sphi 0, %s120
    %s138 = sphi 0, %s138
    %s140 = sphi 0, %s138
    %s141 = sphi 0, %s140
    %s155 = sphi 0, %s141
    %s159 = sphi 0, %s159
    %s161 = sphi 0, %s159
    %s162 = sphi 0, %s161
    %s176 = sphi 0, %s162
    %s180 = sphi 0, %s180
    %s182 = sphi 0, %s180
    %s183 = sphi 0, %s182
    %s197 = sphi 0, %s183
    %s203 = sphi 0, %s205
    %s206 = sphi 0, %s203
    %s207 = sphi 0, %s206
    %s223 = sphi 0, %s207
  $region4: #{mixed_op_forward.3} parent=0 // loop_header_branch
    %18 = sbr.rel (%p16) target = $region8
  $region5: #{mixed_op_forward.3} parent=0 // loop_body
    %s20 = ssub.s32 %s15, 1
    %s21 = ssub.s32 %s15, 2
    %s22 = sadd.s32 %s15, 1
    %s24 = sadd.s32 %s23, 1
    %p27 = scmp.eq.s32.totalorder %s15, 1
    %p28 = scmp.ne.s32.totalorder %s23, %s25
    %p29 = scmp.eq.s32.totalorder %s15, 0
    %p30 = por %p28, %p29
    %p31 = scmp.ne.s32.totalorder %s23, %s25
    %p32 = scmp.eq.s32.totalorder %s20, 1
    %p33 = por %p31, %p32
    %p34 = scmp.ne.s32.totalorder %s25, %s26
    %p35 = scmp.eq.s32.totalorder %s20, 0
    %p36 = por %p34, %p35
    %p37 = scmp.ne.s32.totalorder %s25, %s26
    %p38 = scmp.eq.s32.totalorder %s21, 1
    %p39 = por %p37, %p38
    %p41 = scmp.ne.s32.totalorder %s26, %s40
    %p42 = scmp.eq.s32.totalorder %s21, 0
    %p43 = por %p41, %p42
    %s44 = ssub.s32 %s15, %s22
    %p45 = scmp.eq.s32.totalorder %s44, 0
    %s47 = sadd.s32 %s46, 1
    %s48 = scalar_select %p45, %s46, %s47
    %p51 = pneg %p45
    %p52 = scmp.eq.s32.totalorder %s15, 1
    %p53 = por %p51, %p52
    %p54 = scmp.ne.s32.totalorder %s46, %s49
    %p55 = scmp.eq.s32.totalorder %s15, 0
    %p56 = por %p54, %p55
    %p57 = scmp.ne.s32.totalorder %s46, %s49
    %p58 = scmp.eq.s32.totalorder %s20, 1
    %p59 = por %p57, %p58
    %p60 = scmp.ne.s32.totalorder %s49, %s50
    %p61 = scmp.eq.s32.totalorder %s20, 0
    %p62 = por %p60, %p61
    %p63 = scmp.ne.s32.totalorder %s49, %s50
    %p64 = scmp.eq.s32.totalorder %s21, 1
    %p65 = por %p63, %p64
    %p67 = scmp.ne.s32.totalorder %s50, %s66
    %p68 = scmp.eq.s32.totalorder %s21, 0
    %p69 = por %p67, %p68
    %s70 = ssub.s32 %s15, %s22
    %p71 = scmp.eq.s32.totalorder %s70, 0
    %s73 = sadd.s32 %s72, 1
    %s74 = scalar_select %p71, %s72, %s73
    %p77 = pneg %p71
    %p78 = scmp.eq.s32.totalorder %s15, 1
    %p79 = por %p77, %p78
    %p80 = scmp.ne.s32.totalorder %s72, %s75
    %p81 = scmp.eq.s32.totalorder %s15, 0
    %p82 = por %p80, %p81
    %p83 = scmp.ne.s32.totalorder %s72, %s75
    %p84 = scmp.eq.s32.totalorder %s20, 1
    %p85 = por %p83, %p84
    %p86 = scmp.ne.s32.totalorder %s75, %s76
    %p87 = scmp.eq.s32.totalorder %s20, 0
    %p88 = por %p86, %p87
    %p89 = scmp.ne.s32.totalorder %s75, %s76
    %p90 = scmp.eq.s32.totalorder %s21, 1
    %p91 = por %p89, %p90
    %p93 = scmp.ne.s32.totalorder %s76, %s92
    %p94 = scmp.eq.s32.totalorder %s21, 0
    %p95 = por %p93, %p94
    %s97 = sadd.s32 %s96, 1
    %p100 = scmp.eq.s32.totalorder %s15, 1
    %p101 = scmp.ne.s32.totalorder %s96, %s98
    %p102 = scmp.eq.s32.totalorder %s15, 0
    %p103 = por %p101, %p102
    %p104 = scmp.ne.s32.totalorder %s96, %s98
    %p105 = scmp.eq.s32.totalorder %s20, 1
    %p106 = por %p104, %p105
    %p107 = scmp.ne.s32.totalorder %s98, %s99
    %p108 = scmp.eq.s32.totalorder %s20, 0
    %p109 = por %p107, %p108
    %p110 = scmp.ne.s32.totalorder %s98, %s99
    %p111 = scmp.eq.s32.totalorder %s21, 1
    %p112 = por %p110, %p111
    %p114 = scmp.ne.s32.totalorder %s99, %s113
    %p115 = scmp.eq.s32.totalorder %s21, 0
    %p116 = por %p114, %p115
    %s118 = sadd.s32 %s117, 1
    %p121 = scmp.eq.s32.totalorder %s15, 1
    %p122 = scmp.ne.s32.totalorder %s117, %s119
    %p123 = scmp.eq.s32.totalorder %s15, 0
    %p124 = por %p122, %p123
    %p125 = scmp.ne.s32.totalorder %s117, %s119
    %p126 = scmp.eq.s32.totalorder %s20, 1
    %p127 = por %p125, %p126
    %p128 = scmp.ne.s32.totalorder %s119, %s120
    %p129 = scmp.eq.s32.totalorder %s20, 0
    %p130 = por %p128, %p129
    %p131 = scmp.ne.s32.totalorder %s119, %s120
    %p132 = scmp.eq.s32.totalorder %s21, 1
    %p133 = por %p131, %p132
    %p135 = scmp.ne.s32.totalorder %s120, %s134
    %p136 = scmp.eq.s32.totalorder %s21, 0
    %p137 = por %p135, %p136
    %s139 = sadd.s32 %s138, 1
    %p142 = scmp.eq.s32.totalorder %s15, 1
    %p143 = scmp.ne.s32.totalorder %s138, %s140
    %p144 = scmp.eq.s32.totalorder %s15, 0
    %p145 = por %p143, %p144
    %p146 = scmp.ne.s32.totalorder %s138, %s140
    %p147 = scmp.eq.s32.totalorder %s20, 1
    %p148 = por %p146, %p147
    %p149 = scmp.ne.s32.totalorder %s140, %s141
    %p150 = scmp.eq.s32.totalorder %s20, 0
    %p151 = por %p149, %p150
    %p152 = scmp.ne.s32.totalorder %s140, %s141
    %p153 = scmp.eq.s32.totalorder %s21, 1
    %p154 = por %p152, %p153
    %p156 = scmp.ne.s32.totalorder %s141, %s155
    %p157 = scmp.eq.s32.totalorder %s21, 0
    %p158 = por %p156, %p157
    %s160 = sadd.s32 %s159, 1
    %p163 = scmp.eq.s32.totalorder %s15, 1
    %p164 = scmp.ne.s32.totalorder %s159, %s161
    %p165 = scmp.eq.s32.totalorder %s15, 0
    %p166 = por %p164, %p165
    %p167 = scmp.ne.s32.totalorder %s159, %s161
    %p168 = scmp.eq.s32.totalorder %s20, 1
    %p169 = por %p167, %p168
    %p170 = scmp.ne.s32.totalorder %s161, %s162
    %p171 = scmp.eq.s32.totalorder %s20, 0
    %p172 = por %p170, %p171
    %p173 = scmp.ne.s32.totalorder %s161, %s162
    %p174 = scmp.eq.s32.totalorder %s21, 1
    %p175 = por %p173, %p174
    %p177 = scmp.ne.s32.totalorder %s162, %s176
    %p178 = scmp.eq.s32.totalorder %s21, 0
    %p179 = por %p177, %p178
    %s181 = sadd.s32 %s180, 1
    %p184 = scmp.eq.s32.totalorder %s15, 1
    %p185 = scmp.ne.s32.totalorder %s180, %s182
    %p186 = scmp.eq.s32.totalorder %s15, 0
    %p187 = por %p185, %p186
    %p188 = scmp.ne.s32.totalorder %s180, %s182
    %p189 = scmp.eq.s32.totalorder %s20, 1
    %p190 = por %p188, %p189
    %p191 = scmp.ne.s32.totalorder %s182, %s183
    %p192 = scmp.eq.s32.totalorder %s20, 0
    %p193 = por %p191, %p192
    %p194 = scmp.ne.s32.totalorder %s182, %s183
    %p195 = scmp.eq.s32.totalorder %s21, 1
    %p196 = por %p194, %p195
    %p198 = scmp.ne.s32.totalorder %s183, %s197
    %p199 = scmp.eq.s32.totalorder %s21, 0
    %p200 = por %p198, %p199
    %s201 = ssub.s32 %s15, %s22
    %p202 = scmp.eq.s32.totalorder %s201, 0
    %s204 = sadd.s32 %s203, 1
    %s205 = scalar_select %p202, %s203, %s204
    %p208 = pneg %p202
    %p209 = scmp.eq.s32.totalorder %s15, 1
    %p210 = por %p208, %p209
    %p211 = scmp.ne.s32.totalorder %s203, %s206
    %p212 = scmp.eq.s32.totalorder %s15, 0
    %p213 = por %p211, %p212
    %p214 = scmp.ne.s32.totalorder %s203, %s206
    %p215 = scmp.eq.s32.totalorder %s20, 1
    %p216 = por %p214, %p215
    %p217 = scmp.ne.s32.totalorder %s206, %s207
    %p218 = scmp.eq.s32.totalorder %s20, 0
    %p219 = por %p217, %p218
    %p220 = scmp.ne.s32.totalorder %s206, %s207
    %p221 = scmp.eq.s32.totalorder %s21, 1
    %p222 = por %p220, %p221
    %p224 = scmp.ne.s32.totalorder %s207, %s223
    %p225 = scmp.eq.s32.totalorder %s21, 0
    %p226 = por %p224, %p225
    %p227 = scmp.le.s32.totalorder 1, %s15
    %p228 = scmp.lt.s32.totalorder %s15, 3
    %p229 = pnand %p227, %p228
    %p230 = pneg %p229
    // Predicated region
    $region9: #{mixed_op_forward.3} parent=5 // pred_check
      _
    $region10: #{mixed_op_forward.3} parent=5 // pred_check_branch
      %232 = sbr.rel (%p229) target = $region12
    $region11: #{mixed_op_forward.3} parent=5 // pred_region
      %s233 = ssub.s32 %s15, 1
      // Predicated region
      $region13: #{mixed_op_forward.3} parent=11 // pred_check
        %p234 = pneg %p36
      $region14: #{mixed_op_forward.3} parent=11 // pred_check_branch
        %236 = sbr.rel (%p234) target = $region16
      $region15: #{mixed_op_forward.3} parent=11 // pred_region
        _
      $region16: #{mixed_op_forward.3} parent=11 // pred_fallthru
        _
      // Predicated region
      $region17: #{mixed_op_forward.3} parent=11 // pred_check
        %p237 = pneg %p109
      $region18: #{mixed_op_forward.3} parent=11 // pred_check_branch
        %239 = sbr.rel (%p237) target = $region20
      $region19: #{mixed_op_forward.3} parent=11 // pred_region
        _
      $region20: #{mixed_op_forward.3} parent=11 // pred_fallthru
        _
      // Predicated region
      $region21: #{mixed_op_forward.3} parent=11 // pred_check
        %p240 = pneg %p130
      $region22: #{mixed_op_forward.3} parent=11 // pred_check_branch
        %242 = sbr.rel (%p240) target = $region24
      $region23: #{mixed_op_forward.3} parent=11 // pred_region
        _
      $region24: #{mixed_op_forward.3} parent=11 // pred_fallthru
        _
      // Predicated region
      $region25: #{mixed_op_forward.3} parent=11 // pred_check
        %p243 = pneg %p151
      $region26: #{mixed_op_forward.3} parent=11 // pred_check_branch
        %245 = sbr.rel (%p243) target = $region28
      $region27: #{mixed_op_forward.3} parent=11 // pred_region
        _
      $region28: #{mixed_op_forward.3} parent=11 // pred_fallthru
        _
      // Predicated region
      $region29: #{mixed_op_forward.3} parent=11 // pred_check
        %p246 = pneg %p172
      $region30: #{mixed_op_forward.3} parent=11 // pred_check_branch
        %248 = sbr.rel (%p246) target = $region32
      $region31: #{mixed_op_forward.3} parent=11 // pred_region
        _
      $region32: #{mixed_op_forward.3} parent=11 // pred_fallthru
        _
      // Predicated region
      $region33: #{mixed_op_forward.3} parent=11 // pred_check
        %p249 = pneg %p193
      $region34: #{mixed_op_forward.3} parent=11 // pred_check_branch
        %251 = sbr.rel (%p249) target = $region36
      $region35: #{mixed_op_forward.3} parent=11 // pred_region
        _
      $region36: #{mixed_op_forward.3} parent=11 // pred_fallthru
        _
    $region12: #{mixed_op_forward.3} parent=5 // pred_fallthru
      _
    %p252 = scmp.lt.s32.totalorder %s15, 2
    // Predicated region
    $region37: #{mixed_op_forward.3} parent=5 // pred_check
      %p253 = pneg %p252
    $region38: #{mixed_op_forward.3} parent=5 // pred_check_branch
      %255 = sbr.rel (%p253) target = $region40
    $region39: #{mixed_op_forward.3} parent=5 // pred_region
      // Predicated region
      $region41: #{mixed_op_forward.3} parent=39 // pred_check
        %p256 = pneg %p56
      $region42: #{mixed_op_forward.3} parent=39 // pred_check_branch
        %258 = sbr.rel (%p256) target = $region44
      $region43: #{mixed_op_forward.3} parent=39 // pred_region
        %p259 = scmp.lt.s32.totalorder %s15, 1
        %s260 = scalar_select %p259, %s15, 1
        %s261 = smul.addr %s260, 54
        %s262 = smul.addr %s261, 8
        %s263 = scalar_lea.vmem %s1, %s262
      $region44: #{mixed_op_forward.3} parent=39 // pred_fallthru
        _
      // Predicated region
      $region45: #{mixed_op_forward.3} parent=39 // pred_check
        %p264 = pneg %p82
      $region46: #{mixed_op_forward.3} parent=39 // pred_check_branch
        %266 = sbr.rel (%p264) target = $region48
      $region47: #{mixed_op_forward.3} parent=39 // pred_region
        %p267 = scmp.lt.s32.totalorder %s15, 1
        %s268 = scalar_select %p267, %s15, 1
        %s269 = smul.addr %s268, 32
        %s270 = smul.addr %s269, 4
        %s271 = scalar_lea.vmem %s2, %s270
      $region48: #{mixed_op_forward.3} parent=39 // pred_fallthru
        _
    $region40: #{mixed_op_forward.3} parent=5 // pred_fallthru
      _
    %p272 = scmp.le.s32.totalorder 1, %s15
    %p273 = scmp.lt.s32.totalorder %s15, 3
    %p274 = pnand %p272, %p273
    %p275 = pneg %p274
    // Predicated region
    $region49: #{mixed_op_forward.3} parent=5 // pred_check
      _
    $region50: #{mixed_op_forward.3} parent=5 // pred_check_branch
      %277 = sbr.rel (%p274) target = $region52
    $region51: #{mixed_op_forward.3} parent=5 // pred_region
      %s278 = ssub.s32 %s15, 1
      %p279 = pneg %p36
      %p280 = pneg %p33
      %p281 = scmp.lt.s32.totalorder %s20, 1
      %s282 = scalar_select %p281, %s20, 1
      %s283 = smul.addr %s282, 54
      %s284 = smul.addr %s283, 8
      %s285 = scalar_lea.vmem %s1, %s284
      %p286 = pneg %p62
      %p287 = pneg %p59
      %p288 = scmp.lt.s32.totalorder %s20, 1
      %s289 = scalar_select %p288, %s20, 1
      %s290 = smul.addr %s289, 32
      %s291 = smul.addr %s290, 4
      %s292 = scalar_lea.vmem %s2, %s291
      %p293 = pneg %p88
      %p294 = pneg %p85
      %p295 = pneg %p109
      %p296 = pneg %p106
      %p297 = pneg %p130
      %p298 = pneg %p127
      %p299 = pneg %p151
      %p300 = pneg %p148
      %p301 = pneg %p172
      %p302 = pneg %p169
      %p303 = pneg %p193
      %p304 = pneg %p190
      %p305 = pneg %p219
      %p306 = pneg %p216
      %p307 = scmp.lt.s32.totalorder %s20, 1
      %s308 = scalar_select %p307, %s20, 1
      %s309 = smul.addr %s308, 32
      %s310 = smul.addr %s309, 8
      %s311 = scalar_lea.vmem %s8, %s310
      %p312 = scmp.lt.s32.totalorder %s20, 1
      %s313 = scalar_select %p312, %s20, 1
      %s314 = smul.addr %s313, 54
      %s315 = smul.addr %s314, 8
      %s316 = scalar_lea.vmem %s1, %s315
      %p317 = scmp.lt.s32.totalorder %s20, 1
      %s318 = scalar_select %p317, %s20, 1
      %s319 = smul.addr %s318, 32
      %s320 = smul.addr %s319, 4
      %s321 = scalar_lea.vmem %s2, %s320
      %p322 = scmp.lt.s32.totalorder %s20, 1
      %s323 = scalar_select %p322, %s20, 1
      %s324 = smul.addr %s323, 32
      %s325 = smul.addr %s324, 8
      %s326 = scalar_lea.vmem %s8, %s325
      %s327 = sld [smem:[#allocation3]]
      %v328 = vld [vmem:[%s316] sm:$0xff]
      %v329 = vld [vmem:[%s316 + $0x8] sm:$0xff]
      %v330 = vld [vmem:[%s316 + $0x18] sm:$0xff]
      %v331 = vld [vmem:[%s316 + $0x20] sm:$0xff]
      %v332 = vld [vmem:[%s316 + $0x30] sm:$0xff]
      %v333 = vld [vmem:[%s316 + $0x38] sm:$0xff]
      %v334 = vld [vmem:[%s316 + $0x48] sm:$0xff]
      %v335 = vld [vmem:[%s316 + $0x50] sm:$0xff]
      %v336 = vld [vmem:[%s316 + $0x60] sm:$0xff]
      %v337 = vld [vmem:[%s316 + $0x68] sm:$0xff]
      %v338 = vld [vmem:[%s316 + $0x78] sm:$0xff]
      %v339 = vld [vmem:[%s316 + $0x80] sm:$0xff]
      %v340 = vld [vmem:[%s316 + $0x90] sm:$0xff]
      %v341 = vld [vmem:[%s316 + $0x98] sm:$0xff]
      %v342 = vld [vmem:[%s316 + $0xa8] sm:$0xff]
      %v343 = vld [vmem:[%s316 + $0xb0] sm:$0xff]
      %v344 = vld [vmem:[%s316 + $0xc0] sm:$0xff]
      %v345 = vld [vmem:[%s316 + $0xc8] sm:$0xff]
      %v346 = vld [vmem:[%s316 + $0xd8] sm:$0xff]
      %v347 = vld [vmem:[%s316 + $0xe0] sm:$0xff]
      %v348 = vld [vmem:[%s316 + $0xf0] sm:$0xff]
      %v349 = vld [vmem:[%s316 + $0xf8] sm:$0xff]
      %v350 = vld [vmem:[%s316 + $0x108] sm:$0xff]
      %v351 = vld [vmem:[%s316 + $0x110] sm:$0xff]
      %v352 = vld [vmem:[%s316 + $0x120] sm:$0xff]
      %v353 = vld [vmem:[%s316 + $0x128] sm:$0xff]
      %v354 = vld [vmem:[%s316 + $0x138] sm:$0xff]
      %v355 = vld [vmem:[%s316 + $0x140] sm:$0xff]
      %v356 = vld [vmem:[%s316 + $0x150] sm:$0xff]
      %v357 = vld [vmem:[%s316 + $0x158] sm:$0xff]
      %v358 = vld [vmem:[%s316 + $0x168] sm:$0xff]
      %v359 = vld [vmem:[%s316 + $0x170] sm:$0xff]
      %vm360 = vcmask 31744
      %361 = vst.msk [vmem:[#allocation2] sm:$0xff] %vm360, %v328
      %362 = vst.msk [vmem:[#allocation2 + $0x8] sm:$0xff] %vm360, %v329
      %363 = vst.msk [vmem:[#allocation2 + $0x10] sm:$0xff] %vm360, %v330
      %364 = vst.msk [vmem:[#allocation2 + $0x18] sm:$0xff] %vm360, %v331
      %365 = vst.msk [vmem:[#allocation2 + $0x20] sm:$0xff] %vm360, %v332
      %366 = vst.msk [vmem:[#allocation2 + $0x28] sm:$0xff] %vm360, %v333
      %367 = vst.msk [vmem:[#allocation2 + $0x30] sm:$0xff] %vm360, %v334
      %368 = vst.msk [vmem:[#allocation2 + $0x38] sm:$0xff] %vm360, %v335
      %369 = vst.msk [vmem:[#allocation2 + $0x40] sm:$0xff] %vm360, %v336
      %370 = vst.msk [vmem:[#allocation2 + $0x48] sm:$0xff] %vm360, %v337
      %371 = vst.msk [vmem:[#allocation2 + $0x50] sm:$0xff] %vm360, %v338
      %372 = vst.msk [vmem:[#allocation2 + $0x58] sm:$0xff] %vm360, %v339
      %373 = vst.msk [vmem:[#allocation2 + $0x60] sm:$0xff] %vm360, %v340
      %374 = vst.msk [vmem:[#allocation2 + $0x68] sm:$0xff] %vm360, %v341
      %375 = vst.msk [vmem:[#allocation2 + $0x70] sm:$0xff] %vm360, %v342
      %376 = vst.msk [vmem:[#allocation2 + $0x78] sm:$0xff] %vm360, %v343
      %377 = vst.msk [vmem:[#allocation2 + $0x80] sm:$0xff] %vm360, %v344
      %378 = vst.msk [vmem:[#allocation2 + $0x88] sm:$0xff] %vm360, %v345
      %379 = vst.msk [vmem:[#allocation2 + $0x90] sm:$0xff] %vm360, %v346
      %380 = vst.msk [vmem:[#allocation2 + $0x98] sm:$0xff] %vm360, %v347
      %381 = vst.msk [vmem:[#allocation2 + $0xa0] sm:$0xff] %vm360, %v348
      %382 = vst.msk [vmem:[#allocation2 + $0xa8] sm:$0xff] %vm360, %v349
      %383 = vst.msk [vmem:[#allocation2 + $0xb0] sm:$0xff] %vm360, %v350
      %384 = vst.msk [vmem:[#allocation2 + $0xb8] sm:$0xff] %vm360, %v351
      %385 = vst.msk [vmem:[#allocation2 + $0xc0] sm:$0xff] %vm360, %v352
      %386 = vst.msk [vmem:[#allocation2 + $0xc8] sm:$0xff] %vm360, %v353
      %387 = vst.msk [vmem:[#allocation2 + $0xd0] sm:$0xff] %vm360, %v354
      %388 = vst.msk [vmem:[#allocation2 + $0xd8] sm:$0xff] %vm360, %v355
      %389 = vst.msk [vmem:[#allocation2 + $0xe0] sm:$0xff] %vm360, %v356
      %390 = vst.msk [vmem:[#allocation2 + $0xe8] sm:$0xff] %vm360, %v357
      %391 = vst.msk [vmem:[#allocation2 + $0xf0] sm:$0xff] %vm360, %v358
      %392 = vst.msk [vmem:[#allocation2 + $0xf8] sm:$0xff] %vm360, %v359
      %v393 = vld [vmem:[%s316 + $0x1] sm:$0xff]
      %v394 = vld [vmem:[%s316 + $0x9] sm:$0xff]
      %v395 = vld [vmem:[%s316 + $0x19] sm:$0xff]
      %v396 = vld [vmem:[%s316 + $0x21] sm:$0xff]
      %v397 = vld [vmem:[%s316 + $0x31] sm:$0xff]
      %v398 = vld [vmem:[%s316 + $0x39] sm:$0xff]
      %v399 = vld [vmem:[%s316 + $0x49] sm:$0xff]
      %v400 = vld [vmem:[%s316 + $0x51] sm:$0xff]
      %v401 = vld [vmem:[%s316 + $0x61] sm:$0xff]
      %v402 = vld [vmem:[%s316 + $0x69] sm:$0xff]
      %v403 = vld [vmem:[%s316 + $0x79] sm:$0xff]
      %v404 = vld [vmem:[%s316 + $0x81] sm:$0xff]
      %v405 = vld [vmem:[%s316 + $0x91] sm:$0xff]
      %v406 = vld [vmem:[%s316 + $0x99] sm:$0xff]
      %v407 = vld [vmem:[%s316 + $0xa9] sm:$0xff]
      %v408 = vld [vmem:[%s316 + $0xb1] sm:$0xff]
      %v409 = vld [vmem:[%s316 + $0xc1] sm:$0xff]
      %v410 = vld [vmem:[%s316 + $0xc9] sm:$0xff]
      %v411 = vld [vmem:[%s316 + $0xd9] sm:$0xff]
      %v412 = vld [vmem:[%s316 + $0xe1] sm:$0xff]
      %v413 = vld [vmem:[%s316 + $0xf1] sm:$0xff]
      %v414 = vld [vmem:[%s316 + $0xf9] sm:$0xff]
      %v415 = vld [vmem:[%s316 + $0x109] sm:$0xff]
      %v416 = vld [vmem:[%s316 + $0x111] sm:$0xff]
      %v417 = vld [vmem:[%s316 + $0x121] sm:$0xff]
      %v418 = vld [vmem:[%s316 + $0x129] sm:$0xff]
      %v419 = vld [vmem:[%s316 + $0x139] sm:$0xff]
      %v420 = vld [vmem:[%s316 + $0x141] sm:$0xff]
      %v421 = vld [vmem:[%s316 + $0x151] sm:$0xff]
      %v422 = vld [vmem:[%s316 + $0x159] sm:$0xff]
      %v423 = vld [vmem:[%s316 + $0x169] sm:$0xff]
      %v424 = vld [vmem:[%s316 + $0x171] sm:$0xff]
      %v425 = vld [vmem:[#allocation2] sm:$0xff]
      %v426 = vld [vmem:[#allocation2 + $0x8] sm:$0xff]
      %v427 = vld [vmem:[#allocation2 + $0x10] sm:$0xff]
      %v428 = vld [vmem:[#allocation2 + $0x18] sm:$0xff]
      %v429 = vld [vmem:[#allocation2 + $0x20] sm:$0xff]
      %v430 = vld [vmem:[#allocation2 + $0x28] sm:$0xff]
      %v431 = vld [vmem:[#allocation2 + $0x30] sm:$0xff]
      %v432 = vld [vmem:[#allocation2 + $0x38] sm:$0xff]
      %v433 = vld [vmem:[#allocation2 + $0x40] sm:$0xff]
      %v434 = vld [vmem:[#allocation2 + $0x48] sm:$0xff]
      %v435 = vld [vmem:[#allocation2 + $0x50] sm:$0xff]
      %v436 = vld [vmem:[#allocation2 + $0x58] sm:$0xff]
      %v437 = vld [vmem:[#allocation2 + $0x60] sm:$0xff]
      %v438 = vld [vmem:[#allocation2 + $0x68] sm:$0xff]
      %v439 = vld [vmem:[#allocation2 + $0x70] sm:$0xff]
      %v440 = vld [vmem:[#allocation2 + $0x78] sm:$0xff]
      %v441 = vld [vmem:[#allocation2 + $0x80] sm:$0xff]
      %v442 = vld [vmem:[#allocation2 + $0x88] sm:$0xff]
      %v443 = vld [vmem:[#allocation2 + $0x90] sm:$0xff]
      %v444 = vld [vmem:[#allocation2 + $0x98] sm:$0xff]
      %v445 = vld [vmem:[#allocation2 + $0xa0] sm:$0xff]
      %v446 = vld [vmem:[#allocation2 + $0xa8] sm:$0xff]
      %v447 = vld [vmem:[#allocation2 + $0xb0] sm:$0xff]
      %v448 = vld [vmem:[#allocation2 + $0xb8] sm:$0xff]
      %v449 = vld [vmem:[#allocation2 + $0xc0] sm:$0xff]
      %v450 = vld [vmem:[#allocation2 + $0xc8] sm:$0xff]
      %v451 = vld [vmem:[#allocation2 + $0xd0] sm:$0xff]
      %v452 = vld [vmem:[#allocation2 + $0xd8] sm:$0xff]
      %v453 = vld [vmem:[#allocation2 + $0xe0] sm:$0xff]
      %v454 = vld [vmem:[#allocation2 + $0xe8] sm:$0xff]
      %v455 = vld [vmem:[#allocation2 + $0xf0] sm:$0xff]
      %v456 = vld [vmem:[#allocation2 + $0xf8] sm:$0xff]
      %v457 = vadd.f32 %v425, %v393
      %v458 = vadd.f32 %v426, %v394
      %v459 = vadd.f32 %v427, %v395
      %v460 = vadd.f32 %v428, %v396
      %v461 = vadd.f32 %v429, %v397
      %v462 = vadd.f32 %v430, %v398
      %v463 = vadd.f32 %v431, %v399
      %v464 = vadd.f32 %v432, %v400
      %v465 = vadd.f32 %v433, %v401
      %v466 = vadd.f32 %v434, %v402
      %v467 = vadd.f32 %v435, %v403
      %v468 = vadd.f32 %v436, %v404
      %v469 = vadd.f32 %v437, %v405
      %v470 = vadd.f32 %v438, %v406
      %v471 = vadd.f32 %v439, %v407
      %v472 = vadd.f32 %v440, %v408
      %v473 = vadd.f32 %v441, %v409
      %v474 = vadd.f32 %v442, %v410
      %v475 = vadd.f32 %v443, %v411
      %v476 = vadd.f32 %v444, %v412
      %v477 = vadd.f32 %v445, %v413
      %v478 = vadd.f32 %v446, %v414
      %v479 = vadd.f32 %v447, %v415
      %v480 = vadd.f32 %v448, %v416
      %v481 = vadd.f32 %v449, %v417
      %v482 = vadd.f32 %v450, %v418
      %v483 = vadd.f32 %v451, %v419
      %v484 = vadd.f32 %v452, %v420
      %v485 = vadd.f32 %v453, %v421
      %v486 = vadd.f32 %v454, %v422
      %v487 = vadd.f32 %v455, %v423
      %v488 = vadd.f32 %v456, %v424
      %489 = vst.msk [vmem:[#allocation2] sm:$0xff] %vm360, %v457
      %490 = vst.msk [vmem:[#allocation2 + $0x8] sm:$0xff] %vm360, %v458
      %491 = vst.msk [vmem:[#allocation2 + $0x10] sm:$0xff] %vm360, %v459
      %492 = vst.msk [vmem:[#allocation2 + $0x18] sm:$0xff] %vm360, %v460
      %493 = vst.msk [vmem:[#allocation2 + $0x20] sm:$0xff] %vm360, %v461
      %494 = vst.msk [vmem:[#allocation2 + $0x28] sm:$0xff] %vm360, %v462
      %495 = vst.msk [vmem:[#allocation2 + $0x30] sm:$0xff] %vm360, %v463
      %496 = vst.msk [vmem:[#allocation2 + $0x38] sm:$0xff] %vm360, %v464
      %497 = vst.msk [vmem:[#allocation2 + $0x40] sm:$0xff] %vm360, %v465
      %498 = vst.msk [vmem:[#allocation2 + $0x48] sm:$0xff] %vm360, %v466
      %499 = vst.msk [vmem:[#allocation2 + $0x50] sm:$0xff] %vm360, %v467
      %500 = vst.msk [vmem:[#allocation2 + $0x58] sm:$0xff] %vm360, %v468
      %501 = vst.msk [vmem:[#allocation2 + $0x60] sm:$0xff] %vm360, %v469
      %502 = vst.msk [vmem:[#allocation2 + $0x68] sm:$0xff] %vm360, %v470
      %503 = vst.msk [vmem:[#allocation2 + $0x70] sm:$0xff] %vm360, %v471
      %504 = vst.msk [vmem:[#allocation2 + $0x78] sm:$0xff] %vm360, %v472
      %505 = vst.msk [vmem:[#allocation2 + $0x80] sm:$0xff] %vm360, %v473
      %506 = vst.msk [vmem:[#allocation2 + $0x88] sm:$0xff] %vm360, %v474
      %507 = vst.msk [vmem:[#allocation2 + $0x90] sm:$0xff] %vm360, %v475
      %508 = vst.msk [vmem:[#allocation2 + $0x98] sm:$0xff] %vm360, %v476
      %509 = vst.msk [vmem:[#allocation2 + $0xa0] sm:$0xff] %vm360, %v477
      %510 = vst.msk [vmem:[#allocation2 + $0xa8] sm:$0xff] %vm360, %v478
      %511 = vst.msk [vmem:[#allocation2 + $0xb0] sm:$0xff] %vm360, %v479
      %512 = vst.msk [vmem:[#allocation2 + $0xb8] sm:$0xff] %vm360, %v480
      %513 = vst.msk [vmem:[#allocation2 + $0xc0] sm:$0xff] %vm360, %v481
      %514 = vst.msk [vmem:[#allocation2 + $0xc8] sm:$0xff] %vm360, %v482
      %515 = vst.msk [vmem:[#allocation2 + $0xd0] sm:$0xff] %vm360, %v483
      %516 = vst.msk [vmem:[#allocation2 + $0xd8] sm:$0xff] %vm360, %v484
      %517 = vst.msk [vmem:[#allocation2 + $0xe0] sm:$0xff] %vm360, %v485
      %518 = vst.msk [vmem:[#allocation2 + $0xe8] sm:$0xff] %vm360, %v486
      %519 = vst.msk [vmem:[#allocation2 + $0xf0] sm:$0xff] %vm360, %v487
      %520 = vst.msk [vmem:[#allocation2 + $0xf8] sm:$0xff] %vm360, %v488
      %v521 = vld [vmem:[%s316 + $0x2] sm:$0xff]
      %v522 = vld [vmem:[%s316 + $0xa] sm:$0xff]
      %v523 = vld [vmem:[%s316 + $0x1a] sm:$0xff]
      %v524 = vld [vmem:[%s316 + $0x22] sm:$0xff]
      %v525 = vld [vmem:[%s316 + $0x32] sm:$0xff]
      %v526 = vld [vmem:[%s316 + $0x3a] sm:$0xff]
      %v527 = vld [vmem:[%s316 + $0x4a] sm:$0xff]
      %v528 = vld [vmem:[%s316 + $0x52] sm:$0xff]
      %v529 = vld [vmem:[%s316 + $0x62] sm:$0xff]
      %v530 = vld [vmem:[%s316 + $0x6a] sm:$0xff]
      %v531 = vld [vmem:[%s316 + $0x7a] sm:$0xff]
      %v532 = vld [vmem:[%s316 + $0x82] sm:$0xff]
      %v533 = vld [vmem:[%s316 + $0x92] sm:$0xff]
      %v534 = vld [vmem:[%s316 + $0x9a] sm:$0xff]
      %v535 = vld [vmem:[%s316 + $0xaa] sm:$0xff]
      %v536 = vld [vmem:[%s316 + $0xb2] sm:$0xff]
      %v537 = vld [vmem:[%s316 + $0xc2] sm:$0xff]
      %v538 = vld [vmem:[%s316 + $0xca] sm:$0xff]
      %v539 = vld [vmem:[%s316 + $0xda] sm:$0xff]
      %v540 = vld [vmem:[%s316 + $0xe2] sm:$0xff]
      %v541 = vld [vmem:[%s316 + $0xf2] sm:$0xff]
      %v542 = vld [vmem:[%s316 + $0xfa] sm:$0xff]
      %v543 = vld [vmem:[%s316 + $0x10a] sm:$0xff]
      %v544 = vld [vmem:[%s316 + $0x112] sm:$0xff]
      %v545 = vld [vmem:[%s316 + $0x122] sm:$0xff]
      %v546 = vld [vmem:[%s316 + $0x12a] sm:$0xff]
      %v547 = vld [vmem:[%s316 + $0x13a] sm:$0xff]
      %v548 = vld [vmem:[%s316 + $0x142] sm:$0xff]
      %v549 = vld [vmem:[%s316 + $0x152] sm:$0xff]
      %v550 = vld [vmem:[%s316 + $0x15a] sm:$0xff]
      %v551 = vld [vmem:[%s316 + $0x16a] sm:$0xff]
      %v552 = vld [vmem:[%s316 + $0x172] sm:$0xff]
      %v553 = vld [vmem:[#allocation2] sm:$0xff]
      %v554 = vld [vmem:[#allocation2 + $0x8] sm:$0xff]
      %v555 = vld [vmem:[#allocation2 + $0x10] sm:$0xff]
      %v556 = vld [vmem:[#allocation2 + $0x18] sm:$0xff]
      %v557 = vld [vmem:[#allocation2 + $0x20] sm:$0xff]
      %v558 = vld [vmem:[#allocation2 + $0x28] sm:$0xff]
      %v559 = vld [vmem:[#allocation2 + $0x30] sm:$0xff]
      %v560 = vld [vmem:[#allocation2 + $0x38] sm:$0xff]
      %v561 = vld [vmem:[#allocation2 + $0x40] sm:$0xff]
      %v562 = vld [vmem:[#allocation2 + $0x48] sm:$0xff]
      %v563 = vld [vmem:[#allocation2 + $0x50] sm:$0xff]
      %v564 = vld [vmem:[#allocation2 + $0x58] sm:$0xff]
      %v565 = vld [vmem:[#allocation2 + $0x60] sm:$0xff]
      %v566 = vld [vmem:[#allocation2 + $0x68] sm:$0xff]
      %v567 = vld [vmem:[#allocation2 + $0x70] sm:$0xff]
      %v568 = vld [vmem:[#allocation2 + $0x78] sm:$0xff]
      %v569 = vld [vmem:[#allocation2 + $0x80] sm:$0xff]
      %v570 = vld [vmem:[#allocation2 + $0x88] sm:$0xff]
      %v571 = vld [vmem:[#allocation2 + $0x90] sm:$0xff]
      %v572 = vld [vmem:[#allocation2 + $0x98] sm:$0xff]
      %v573 = vld [vmem:[#allocation2 + $0xa0] sm:$0xff]
      %v574 = vld [vmem:[#allocation2 + $0xa8] sm:$0xff]
      %v575 = vld [vmem:[#allocation2 + $0xb0] sm:$0xff]
      %v576 = vld [vmem:[#allocation2 + $0xb8] sm:$0xff]
      %v577 = vld [vmem:[#allocation2 + $0xc0] sm:$0xff]
      %v578 = vld [vmem:[#allocation2 + $0xc8] sm:$0xff]
      %v579 = vld [vmem:[#allocation2 + $0xd0] sm:$0xff]
      %v580 = vld [vmem:[#allocation2 + $0xd8] sm:$0xff]
      %v581 = vld [vmem:[#allocation2 + $0xe0] sm:$0xff]
      %v582 = vld [vmem:[#allocation2 + $0xe8] sm:$0xff]
      %v583 = vld [vmem:[#allocation2 + $0xf0] sm:$0xff]
      %v584 = vld [vmem:[#allocation2 + $0xf8] sm:$0xff]
      %v585 = vadd.f32 %v553, %v521
      %v586 = vadd.f32 %v554, %v522
      %v587 = vadd.f32 %v555, %v523
      %v588 = vadd.f32 %v556, %v524
      %v589 = vadd.f32 %v557, %v525
      %v590 = vadd.f32 %v558, %v526
      %v591 = vadd.f32 %v559, %v527
      %v592 = vadd.f32 %v560, %v528
      %v593 = vadd.f32 %v561, %v529
      %v594 = vadd.f32 %v562, %v530
      %v595 = vadd.f32 %v563, %v531
      %v596 = vadd.f32 %v564, %v532
      %v597 = vadd.f32 %v565, %v533
      %v598 = vadd.f32 %v566, %v534
      %v599 = vadd.f32 %v567, %v535
      %v600 = vadd.f32 %v568, %v536
      %v601 = vadd.f32 %v569, %v537
      %v602 = vadd.f32 %v570, %v538
      %v603 = vadd.f32 %v571, %v539
      %v604 = vadd.f32 %v572, %v540
      %v605 = vadd.f32 %v573, %v541
      %v606 = vadd.f32 %v574, %v542
      %v607 = vadd.f32 %v575, %v543
      %v608 = vadd.f32 %v576, %v544
      %v609 = vadd.f32 %v577, %v545
      %v610 = vadd.f32 %v578, %v546
      %v611 = vadd.f32 %v579, %v547
      %v612 = vadd.f32 %v580, %v548
      %v613 = vadd.f32 %v581, %v549
      %v614 = vadd.f32 %v582, %v550
      %v615 = vadd.f32 %v583, %v551
      %v616 = vadd.f32 %v584, %v552
      %617 = vst.msk [vmem:[#allocation2] sm:$0xff] %vm360, %v585
      %618 = vst.msk [vmem:[#allocation2 + $0x8] sm:$0xff] %vm360, %v586
      %619 = vst.msk [vmem:[#allocation2 + $0x10] sm:$0xff] %vm360, %v587
      %620 = vst.msk [vmem:[#allocation2 + $0x18] sm:$0xff] %vm360, %v588
      %621 = vst.msk [vmem:[#allocation2 + $0x20] sm:$0xff] %vm360, %v589
      %622 = vst.msk [vmem:[#allocation2 + $0x28] sm:$0xff] %vm360, %v590
      %623 = vst.msk [vmem:[#allocation2 + $0x30] sm:$0xff] %vm360, %v591
      %624 = vst.msk [vmem:[#allocation2 + $0x38] sm:$0xff] %vm360, %v592
      %625 = vst.msk [vmem:[#allocation2 + $0x40] sm:$0xff] %vm360, %v593
      %626 = vst.msk [vmem:[#allocation2 + $0x48] sm:$0xff] %vm360, %v594
      %627 = vst.msk [vmem:[#allocation2 + $0x50] sm:$0xff] %vm360, %v595
      %628 = vst.msk [vmem:[#allocation2 + $0x58] sm:$0xff] %vm360, %v596
      %629 = vst.msk [vmem:[#allocation2 + $0x60] sm:$0xff] %vm360, %v597
      %630 = vst.msk [vmem:[#allocation2 + $0x68] sm:$0xff] %vm360, %v598
      %631 = vst.msk [vmem:[#allocation2 + $0x70] sm:$0xff] %vm360, %v599
      %632 = vst.msk [vmem:[#allocation2 + $0x78] sm:$0xff] %vm360, %v600
      %633 = vst.msk [vmem:[#allocation2 + $0x80] sm:$0xff] %vm360, %v601
      %634 = vst.msk [vmem:[#allocation2 + $0x88] sm:$0xff] %vm360, %v602
      %635 = vst.msk [vmem:[#allocation2 + $0x90] sm:$0xff] %vm360, %v603
      %636 = vst.msk [vmem:[#allocation2 + $0x98] sm:$0xff] %vm360, %v604
      %637 = vst.msk [vmem:[#allocation2 + $0xa0] sm:$0xff] %vm360, %v605
      %638 = vst.msk [vmem:[#allocation2 + $0xa8] sm:$0xff] %vm360, %v606
      %639 = vst.msk [vmem:[#allocation2 + $0xb0] sm:$0xff] %vm360, %v607
      %640 = vst.msk [vmem:[#allocation2 + $0xb8] sm:$0xff] %vm360, %v608
      %641 = vst.msk [vmem:[#allocation2 + $0xc0] sm:$0xff] %vm360, %v609
      %642 = vst.msk [vmem:[#allocation2 + $0xc8] sm:$0xff] %vm360, %v610
      %643 = vst.msk [vmem:[#allocation2 + $0xd0] sm:$0xff] %vm360, %v611
      %644 = vst.msk [vmem:[#allocation2 + $0xd8] sm:$0xff] %vm360, %v612
      %645 = vst.msk [vmem:[#allocation2 + $0xe0] sm:$0xff] %vm360, %v613
      %646 = vst.msk [vmem:[#allocation2 + $0xe8] sm:$0xff] %vm360, %v614
      %647 = vst.msk [vmem:[#allocation2 + $0xf0] sm:$0xff] %vm360, %v615
      %648 = vst.msk [vmem:[#allocation2 + $0xf8] sm:$0xff] %vm360, %v616
      %s649 = scalar_lea.vmem %s316, 24
      %v650 = vld [vmem:[%s649] sm:$0xff]
      %v651 = vld [vmem:[%s649 + $0x8] sm:$0xff]
      %v652 = vld [vmem:[%s649 + $0x18] sm:$0xff]
      %v653 = vld [vmem:[%s649 + $0x20] sm:$0xff]
      %v654 = vld [vmem:[%s649 + $0x30] sm:$0xff]
      %v655 = vld [vmem:[%s649 + $0x38] sm:$0xff]
      %v656 = vld [vmem:[%s649 + $0x48] sm:$0xff]
      %v657 = vld [vmem:[%s649 + $0x50] sm:$0xff]
      %v658 = vld [vmem:[%s649 + $0x60] sm:$0xff]
      %v659 = vld [vmem:[%s649 + $0x68] sm:$0xff]
      %v660 = vld [vmem:[%s649 + $0x78] sm:$0xff]
      %v661 = vld [vmem:[%s649 + $0x80] sm:$0xff]
      %v662 = vld [vmem:[%s649 + $0x90] sm:$0xff]
      %v663 = vld [vmem:[%s649 + $0x98] sm:$0xff]
      %v664 = vld [vmem:[%s649 + $0xa8] sm:$0xff]
      %v665 = vld [vmem:[%s649 + $0xb0] sm:$0xff]
      %v666 = vld [vmem:[%s649 + $0xc0] sm:$0xff]
      %v667 = vld [vmem:[%s649 + $0xc8] sm:$0xff]
      %v668 = vld [vmem:[%s649 + $0xd8] sm:$0xff]
      %v669 = vld [vmem:[%s649 + $0xe0] sm:$0xff]
      %v670 = vld [vmem:[%s649 + $0xf0] sm:$0xff]
      %v671 = vld [vmem:[%s649 + $0xf8] sm:$0xff]
      %v672 = vld [vmem:[%s649 + $0x108] sm:$0xff]
      %v673 = vld [vmem:[%s649 + $0x110] sm:$0xff]
      %v674 = vld [vmem:[%s649 + $0x120] sm:$0xff]
      %v675 = vld [vmem:[%s649 + $0x128] sm:$0xff]
      %v676 = vld [vmem:[%s649 + $0x138] sm:$0xff]
      %v677 = vld [vmem:[%s649 + $0x140] sm:$0xff]
      %v678 = vld [vmem:[%s649 + $0x150] sm:$0xff]
      %v679 = vld [vmem:[%s649 + $0x158] sm:$0xff]
      %v680 = vld [vmem:[%s649 + $0x168] sm:$0xff]
      %v681 = vld [vmem:[%s649 + $0x170] sm:$0xff]
      %v682 = vld [vmem:[#allocation2] sm:$0xff]
      %v683 = vld [vmem:[#allocation2 + $0x8] sm:$0xff]
      %v684 = vld [vmem:[#allocation2 + $0x10] sm:$0xff]
      %v685 = vld [vmem:[#allocation2 + $0x18] sm:$0xff]
      %v686 = vld [vmem:[#allocation2 + $0x20] sm:$0xff]
      %v687 = vld [vmem:[#allocation2 + $0x28] sm:$0xff]
      %v688 = vld [vmem:[#allocation2 + $0x30] sm:$0xff]
      %v689 = vld [vmem:[#allocation2 + $0x38] sm:$0xff]
      %v690 = vld [vmem:[#allocation2 + $0x40] sm:$0xff]
      %v691 = vld [vmem:[#allocation2 + $0x48] sm:$0xff]
      %v692 = vld [vmem:[#allocation2 + $0x50] sm:$0xff]
      %v693 = vld [vmem:[#allocation2 + $0x58] sm:$0xff]
      %v694 = vld [vmem:[#allocation2 + $0x60] sm:$0xff]
      %v695 = vld [vmem:[#allocation2 + $0x68] sm:$0xff]
      %v696 = vld [vmem:[#allocation2 + $0x70] sm:$0xff]
      %v697 = vld [vmem:[#allocation2 + $0x78] sm:$0xff]
      %v698 = vld [vmem:[#allocation2 + $0x80] sm:$0xff]
      %v699 = vld [vmem:[#allocation2 + $0x88] sm:$0xff]
      %v700 = vld [vmem:[#allocation2 + $0x90] sm:$0xff]
      %v701 = vld [vmem:[#allocation2 + $0x98] sm:$0xff]
      %v702 = vld [vmem:[#allocation2 + $0xa0] sm:$0xff]
      %v703 = vld [vmem:[#allocation2 + $0xa8] sm:$0xff]
      %v704 = vld [vmem:[#allocation2 + $0xb0] sm:$0xff]
      %v705 = vld [vmem:[#allocation2 + $0xb8] sm:$0xff]
      %v706 = vld [vmem:[#allocation2 + $0xc0] sm:$0xff]
      %v707 = vld [vmem:[#allocation2 + $0xc8] sm:$0xff]
      %v708 = vld [vmem:[#allocation2 + $0xd0] sm:$0xff]
      %v709 = vld [vmem:[#allocation2 + $0xd8] sm:$0xff]
      %v710 = vld [vmem:[#allocation2 + $0xe0] sm:$0xff]
      %v711 = vld [vmem:[#allocation2 + $0xe8] sm:$0xff]
      %v712 = vld [vmem:[#allocation2 + $0xf0] sm:$0xff]
      %v713 = vld [vmem:[#allocation2 + $0xf8] sm:$0xff]
      %v714 = vadd.f32 %v682, %v650
      %v715 = vadd.f32 %v683, %v651
      %v716 = vadd.f32 %v684, %v652
      %v717 = vadd.f32 %v685, %v653
      %v718 = vadd.f32 %v686, %v654
      %v719 = vadd.f32 %v687, %v655
      %v720 = vadd.f32 %v688, %v656
      %v721 = vadd.f32 %v689, %v657
      %v722 = vadd.f32 %v690, %v658
      %v723 = vadd.f32 %v691, %v659
      %v724 = vadd.f32 %v692, %v660
      %v725 = vadd.f32 %v693, %v661
      %v726 = vadd.f32 %v694, %v662
      %v727 = vadd.f32 %v695, %v663
      %v728 = vadd.f32 %v696, %v664
      %v729 = vadd.f32 %v697, %v665
      %v730 = vadd.f32 %v698, %v666
      %v731 = vadd.f32 %v699, %v667
      %v732 = vadd.f32 %v700, %v668
      %v733 = vadd.f32 %v701, %v669
      %v734 = vadd.f32 %v702, %v670
      %v735 = vadd.f32 %v703, %v671
      %v736 = vadd.f32 %v704, %v672
      %v737 = vadd.f32 %v705, %v673
      %v738 = vadd.f32 %v706, %v674
      %v739 = vadd.f32 %v707, %v675
      %v740 = vadd.f32 %v708, %v676
      %v741 = vadd.f32 %v709, %v677
      %v742 = vadd.f32 %v710, %v678
      %v743 = vadd.f32 %v711, %v679
      %v744 = vadd.f32 %v712, %v680
      %v745 = vadd.f32 %v713, %v681
      %746 = vst.msk [vmem:[#allocation2] sm:$0xff] %vm360, %v714
      %747 = vst.msk [vmem:[#allocation2 + $0x8] sm:$0xff] %vm360, %v715
      %748 = vst.msk [vmem:[#allocation2 + $0x10] sm:$0xff] %vm360, %v716
      %749 = vst.msk [vmem:[#allocation2 + $0x18] sm:$0xff] %vm360, %v717
      %750 = vst.msk [vmem:[#allocation2 + $0x20] sm:$0xff] %vm360, %v718
      %751 = vst.msk [vmem:[#allocation2 + $0x28] sm:$0xff] %vm360, %v719
      %752 = vst.msk [vmem:[#allocation2 + $0x30] sm:$0xff] %vm360, %v720
      %753 = vst.msk [vmem:[#allocation2 + $0x38] sm:$0xff] %vm360, %v721
      %754 = vst.msk [vmem:[#allocation2 + $0x40] sm:$0xff] %vm360, %v722
      %755 = vst.msk [vmem:[#allocation2 + $0x48] sm:$0xff] %vm360, %v723
      %756 = vst.msk [vmem:[#allocation2 + $0x50] sm:$0xff] %vm360, %v724
      %757 = vst.msk [vmem:[#allocation2 + $0x58] sm:$0xff] %vm360, %v725
      %758 = vst.msk [vmem:[#allocation2 + $0x60] sm:$0xff] %vm360, %v726
      %759 = vst.msk [vmem:[#allocation2 + $0x68] sm:$0xff] %vm360, %v727
      %760 = vst.msk [vmem:[#allocation2 + $0x70] sm:$0xff] %vm360, %v728
      %761 = vst.msk [vmem:[#allocation2 + $0x78] sm:$0xff] %vm360, %v729
      %762 = vst.msk [vmem:[#allocation2 + $0x80] sm:$0xff] %vm360, %v730
      %763 = vst.msk [vmem:[#allocation2 + $0x88] sm:$0xff] %vm360, %v731
      %764 = vst.msk [vmem:[#allocation2 + $0x90] sm:$0xff] %vm360, %v732
      %765 = vst.msk [vmem:[#allocation2 + $0x98] sm:$0xff] %vm360, %v733
      %766 = vst.msk [vmem:[#allocation2 + $0xa0] sm:$0xff] %vm360, %v734
      %767 = vst.msk [vmem:[#allocation2 + $0xa8] sm:$0xff] %vm360, %v735
      %768 = vst.msk [vmem:[#allocation2 + $0xb0] sm:$0xff] %vm360, %v736
      %769 = vst.msk [vmem:[#allocation2 + $0xb8] sm:$0xff] %vm360, %v737
      %770 = vst.msk [vmem:[#allocation2 + $0xc0] sm:$0xff] %vm360, %v738
      %771 = vst.msk [vmem:[#allocation2 + $0xc8] sm:$0xff] %vm360, %v739
      %772 = vst.msk [vmem:[#allocation2 + $0xd0] sm:$0xff] %vm360, %v740
      %773 = vst.msk [vmem:[#allocation2 + $0xd8] sm:$0xff] %vm360, %v741
      %774 = vst.msk [vmem:[#allocation2 + $0xe0] sm:$0xff] %vm360, %v742
      %775 = vst.msk [vmem:[#allocation2 + $0xe8] sm:$0xff] %vm360, %v743
      %776 = vst.msk [vmem:[#allocation2 + $0xf0] sm:$0xff] %vm360, %v744
      %777 = vst.msk [vmem:[#allocation2 + $0xf8] sm:$0xff] %vm360, %v745
      %v778 = vld [vmem:[%s649 + $0x1] sm:$0xff]
      %v779 = vld [vmem:[%s649 + $0x9] sm:$0xff]
      %v780 = vld [vmem:[%s649 + $0x19] sm:$0xff]
      %v781 = vld [vmem:[%s649 + $0x21] sm:$0xff]
      %v782 = vld [vmem:[%s649 + $0x31] sm:$0xff]
      %v783 = vld [vmem:[%s649 + $0x39] sm:$0xff]
      %v784 = vld [vmem:[%s649 + $0x49] sm:$0xff]
      %v785 = vld [vmem:[%s649 + $0x51] sm:$0xff]
      %v786 = vld [vmem:[%s649 + $0x61] sm:$0xff]
      %v787 = vld [vmem:[%s649 + $0x69] sm:$0xff]
      %v788 = vld [vmem:[%s649 + $0x79] sm:$0xff]
      %v789 = vld [vmem:[%s649 + $0x81] sm:$0xff]
      %v790 = vld [vmem:[%s649 + $0x91] sm:$0xff]
      %v791 = vld [vmem:[%s649 + $0x99] sm:$0xff]
      %v792 = vld [vmem:[%s649 + $0xa9] sm:$0xff]
      %v793 = vld [vmem:[%s649 + $0xb1] sm:$0xff]
      %v794 = vld [vmem:[%s649 + $0xc1] sm:$0xff]
      %v795 = vld [vmem:[%s649 + $0xc9] sm:$0xff]
      %v796 = vld [vmem:[%s649 + $0xd9] sm:$0xff]
      %v797 = vld [vmem:[%s649 + $0xe1] sm:$0xff]
      %v798 = vld [vmem:[%s649 + $0xf1] sm:$0xff]
      %v799 = vld [vmem:[%s649 + $0xf9] sm:$0xff]
      %v800 = vld [vmem:[%s649 + $0x109] sm:$0xff]
      %v801 = vld [vmem:[%s649 + $0x111] sm:$0xff]
      %v802 = vld [vmem:[%s649 + $0x121] sm:$0xff]
      %v803 = vld [vmem:[%s649 + $0x129] sm:$0xff]
      %v804 = vld [vmem:[%s649 + $0x139] sm:$0xff]
      %v805 = vld [vmem:[%s649 + $0x141] sm:$0xff]
      %v806 = vld [vmem:[%s649 + $0x151] sm:$0xff]
      %v807 = vld [vmem:[%s649 + $0x159] sm:$0xff]
      %v808 = vld [vmem:[%s649 + $0x169] sm:$0xff]
      %v809 = vld [vmem:[%s649 + $0x171] sm:$0xff]
      %v810 = vld [vmem:[#allocation2] sm:$0xff]
      %v811 = vld [vmem:[#allocation2 + $0x8] sm:$0xff]
      %v812 = vld [vmem:[#allocation2 + $0x10] sm:$0xff]
      %v813 = vld [vmem:[#allocation2 + $0x18] sm:$0xff]
      %v814 = vld [vmem:[#allocation2 + $0x20] sm:$0xff]
      %v815 = vld [vmem:[#allocation2 + $0x28] sm:$0xff]
      %v816 = vld [vmem:[#allocation2 + $0x30] sm:$0xff]
      %v817 = vld [vmem:[#allocation2 + $0x38] sm:$0xff]
      %v818 = vld [vmem:[#allocation2 + $0x40] sm:$0xff]
      %v819 = vld [vmem:[#allocation2 + $0x48] sm:$0xff]
      %v820 = vld [vmem:[#allocation2 + $0x50] sm:$0xff]
      %v821 = vld [vmem:[#allocation2 + $0x58] sm:$0xff]
      %v822 = vld [vmem:[#allocation2 + $0x60] sm:$0xff]
      %v823 = vld [vmem:[#allocation2 + $0x68] sm:$0xff]
      %v824 = vld [vmem:[#allocation2 + $0x70] sm:$0xff]
      %v825 = vld [vmem:[#allocation2 + $0x78] sm:$0xff]
      %v826 = vld [vmem:[#allocation2 + $0x80] sm:$0xff]
      %v827 = vld [vmem:[#allocation2 + $0x88] sm:$0xff]
      %v828 = vld [vmem:[#allocation2 + $0x90] sm:$0xff]
      %v829 = vld [vmem:[#allocation2 + $0x98] sm:$0xff]
      %v830 = vld [vmem:[#allocation2 + $0xa0] sm:$0xff]
      %v831 = vld [vmem:[#allocation2 + $0xa8] sm:$0xff]
      %v832 = vld [vmem:[#allocation2 + $0xb0] sm:$0xff]
      %v833 = vld [vmem:[#allocation2 + $0xb8] sm:$0xff]
      %v834 = vld [vmem:[#allocation2 + $0xc0] sm:$0xff]
      %v835 = vld [vmem:[#allocation2 + $0xc8] sm:$0xff]
      %v836 = vld [vmem:[#allocation2 + $0xd0] sm:$0xff]
      %v837 = vld [vmem:[#allocation2 + $0xd8] sm:$0xff]
      %v838 = vld [vmem:[#allocation2 + $0xe0] sm:$0xff]
      %v839 = vld [vmem:[#allocation2 + $0xe8] sm:$0xff]
      %v840 = vld [vmem:[#allocation2 + $0xf0] sm:$0xff]
      %v841 = vld [vmem:[#allocation2 + $0xf8] sm:$0xff]
      %v842 = vadd.f32 %v810, %v778
      %v843 = vadd.f32 %v811, %v779
      %v844 = vadd.f32 %v812, %v780
      %v845 = vadd.f32 %v813, %v781
      %v846 = vadd.f32 %v814, %v782
      %v847 = vadd.f32 %v815, %v783
      %v848 = vadd.f32 %v816, %v784
      %v849 = vadd.f32 %v817, %v785
      %v850 = vadd.f32 %v818, %v786
      %v851 = vadd.f32 %v819, %v787
      %v852 = vadd.f32 %v820, %v788
      %v853 = vadd.f32 %v821, %v789
      %v854 = vadd.f32 %v822, %v790
      %v855 = vadd.f32 %v823, %v791
      %v856 = vadd.f32 %v824, %v792
      %v857 = vadd.f32 %v825, %v793
      %v858 = vadd.f32 %v826, %v794
      %v859 = vadd.f32 %v827, %v795
      %v860 = vadd.f32 %v828, %v796
      %v861 = vadd.f32 %v829, %v797
      %v862 = vadd.f32 %v830, %v798
      %v863 = vadd.f32 %v831, %v799
      %v864 = vadd.f32 %v832, %v800
      %v865 = vadd.f32 %v833, %v801
      %v866 = vadd.f32 %v834, %v802
      %v867 = vadd.f32 %v835, %v803
      %v868 = vadd.f32 %v836, %v804
      %v869 = vadd.f32 %v837, %v805
      %v870 = vadd.f32 %v838, %v806
      %v871 = vadd.f32 %v839, %v807
      %v872 = vadd.f32 %v840, %v808
      %v873 = vadd.f32 %v841, %v809
      %874 = vst.msk [vmem:[#allocation2] sm:$0xff] %vm360, %v842
      %875 = vst.msk [vmem:[#allocation2 + $0x8] sm:$0xff] %vm360, %v843
      %876 = vst.msk [vmem:[#allocation2 + $0x10] sm:$0xff] %vm360, %v844
      %877 = vst.msk [vmem:[#allocation2 + $0x18] sm:$0xff] %vm360, %v845
      %878 = vst.msk [vmem:[#allocation2 + $0x20] sm:$0xff] %vm360, %v846
      %879 = vst.msk [vmem:[#allocation2 + $0x28] sm:$0xff] %vm360, %v847
      %880 = vst.msk [vmem:[#allocation2 + $0x30] sm:$0xff] %vm360, %v848
      %881 = vst.msk [vmem:[#allocation2 + $0x38] sm:$0xff] %vm360, %v849
      %882 = vst.msk [vmem:[#allocation2 + $0x40] sm:$0xff] %vm360, %v850
      %883 = vst.msk [vmem:[#allocation2 + $0x48] sm:$0xff] %vm360, %v851
      %884 = vst.msk [vmem:[#allocation2 + $0x50] sm:$0xff] %vm360, %v852
      %885 = vst.msk [vmem:[#allocation2 + $0x58] sm:$0xff] %vm360, %v853
      %886 = vst.msk [vmem:[#allocation2 + $0x60] sm:$0xff] %vm360, %v854
      %887 = vst.msk [vmem:[#allocation2 + $0x68] sm:$0xff] %vm360, %v855
      %888 = vst.msk [vmem:[#allocation2 + $0x70] sm:$0xff] %vm360, %v856
      %889 = vst.msk [vmem:[#allocation2 + $0x78] sm:$0xff] %vm360, %v857
      %890 = vst.msk [vmem:[#allocation2 + $0x80] sm:$0xff] %vm360, %v858
      %891 = vst.msk [vmem:[#allocation2 + $0x88] sm:$0xff] %vm360, %v859
      %892 = vst.msk [vmem:[#allocation2 + $0x90] sm:$0xff] %vm360, %v860
      %893 = vst.msk [vmem:[#allocation2 + $0x98] sm:$0xff] %vm360, %v861
      %894 = vst.msk [vmem:[#allocation2 + $0xa0] sm:$0xff] %vm360, %v862
      %895 = vst.msk [vmem:[#allocation2 + $0xa8] sm:$0xff] %vm360, %v863
      %896 = vst.msk [vmem:[#allocation2 + $0xb0] sm:$0xff] %vm360, %v864
      %897 = vst.msk [vmem:[#allocation2 + $0xb8] sm:$0xff] %vm360, %v865
      %898 = vst.msk [vmem:[#allocation2 + $0xc0] sm:$0xff] %vm360, %v866
      %899 = vst.msk [vmem:[#allocation2 + $0xc8] sm:$0xff] %vm360, %v867
      %900 = vst.msk [vmem:[#allocation2 + $0xd0] sm:$0xff] %vm360, %v868
      %901 = vst.msk [vmem:[#allocation2 + $0xd8] sm:$0xff] %vm360, %v869
      %902 = vst.msk [vmem:[#allocation2 + $0xe0] sm:$0xff] %vm360, %v870
      %903 = vst.msk [vmem:[#allocation2 + $0xe8] sm:$0xff] %vm360, %v871
      %904 = vst.msk [vmem:[#allocation2 + $0xf0] sm:$0xff] %vm360, %v872
      %905 = vst.msk [vmem:[#allocation2 + $0xf8] sm:$0xff] %vm360, %v873
      %v906 = vld [vmem:[%s649 + $0x2] sm:$0xff]
      %v907 = vld [vmem:[%s649 + $0xa] sm:$0xff]
      %v908 = vld [vmem:[%s649 + $0x1a] sm:$0xff]
      %v909 = vld [vmem:[%s649 + $0x22] sm:$0xff]
      %v910 = vld [vmem:[%s649 + $0x32] sm:$0xff]
      %v911 = vld [vmem:[%s649 + $0x3a] sm:$0xff]
      %v912 = vld [vmem:[%s649 + $0x4a] sm:$0xff]
      %v913 = vld [vmem:[%s649 + $0x52] sm:$0xff]
      %v914 = vld [vmem:[%s649 + $0x62] sm:$0xff]
      %v915 = vld [vmem:[%s649 + $0x6a] sm:$0xff]
      %v916 = vld [vmem:[%s649 + $0x7a] sm:$0xff]
      %v917 = vld [vmem:[%s649 + $0x82] sm:$0xff]
      %v918 = vld [vmem:[%s649 + $0x92] sm:$0xff]
      %v919 = vld [vmem:[%s649 + $0x9a] sm:$0xff]
      %v920 = vld [vmem:[%s649 + $0xaa] sm:$0xff]
      %v921 = vld [vmem:[%s649 + $0xb2] sm:$0xff]
      %v922 = vld [vmem:[%s649 + $0xc2] sm:$0xff]
      %v923 = vld [vmem:[%s649 + $0xca] sm:$0xff]
      %v924 = vld [vmem:[%s649 + $0xda] sm:$0xff]
      %v925 = vld [vmem:[%s649 + $0xe2] sm:$0xff]
      %v926 = vld [vmem:[%s649 + $0xf2] sm:$0xff]
      %v927 = vld [vmem:[%s649 + $0xfa] sm:$0xff]
      %v928 = vld [vmem:[%s649 + $0x10a] sm:$0xff]
      %v929 = vld [vmem:[%s649 + $0x112] sm:$0xff]
      %v930 = vld [vmem:[%s649 + $0x122] sm:$0xff]
      %v931 = vld [vmem:[%s649 + $0x12a] sm:$0xff]
      %v932 = vld [vmem:[%s649 + $0x13a] sm:$0xff]
      %v933 = vld [vmem:[%s649 + $0x142] sm:$0xff]
      %v934 = vld [vmem:[%s649 + $0x152] sm:$0xff]
      %v935 = vld [vmem:[%s649 + $0x15a] sm:$0xff]
      %v936 = vld [vmem:[%s649 + $0x16a] sm:$0xff]
      %v937 = vld [vmem:[%s649 + $0x172] sm:$0xff]
      %v938 = vld [vmem:[#allocation2] sm:$0xff]
      %v939 = vld [vmem:[#allocation2 + $0x8] sm:$0xff]
      %v940 = vld [vmem:[#allocation2 + $0x10] sm:$0xff]
      %v941 = vld [vmem:[#allocation2 + $0x18] sm:$0xff]
      %v942 = vld [vmem:[#allocation2 + $0x20] sm:$0xff]
      %v943 = vld [vmem:[#allocation2 + $0x28] sm:$0xff]
      %v944 = vld [vmem:[#allocation2 + $0x30] sm:$0xff]
      %v945 = vld [vmem:[#allocation2 + $0x38] sm:$0xff]
      %v946 = vld [vmem:[#allocation2 + $0x40] sm:$0xff]
      %v947 = vld [vmem:[#allocation2 + $0x48] sm:$0xff]
      %v948 = vld [vmem:[#allocation2 + $0x50] sm:$0xff]
      %v949 = vld [vmem:[#allocation2 + $0x58] sm:$0xff]
      %v950 = vld [vmem:[#allocation2 + $0x60] sm:$0xff]
      %v951 = vld [vmem:[#allocation2 + $0x68] sm:$0xff]
      %v952 = vld [vmem:[#allocation2 + $0x70] sm:$0xff]
      %v953 = vld [vmem:[#allocation2 + $0x78] sm:$0xff]
      %v954 = vld [vmem:[#allocation2 + $0x80] sm:$0xff]
      %v955 = vld [vmem:[#allocation2 + $0x88] sm:$0xff]
      %v956 = vld [vmem:[#allocation2 + $0x90] sm:$0xff]
      %v957 = vld [vmem:[#allocation2 + $0x98] sm:$0xff]
      %v958 = vld [vmem:[#allocation2 + $0xa0] sm:$0xff]
      %v959 = vld [vmem:[#allocation2 + $0xa8] sm:$0xff]
      %v960 = vld [vmem:[#allocation2 + $0xb0] sm:$0xff]
      %v961 = vld [vmem:[#allocation2 + $0xb8] sm:$0xff]
      %v962 = vld [vmem:[#allocation2 + $0xc0] sm:$0xff]
      %v963 = vld [vmem:[#allocation2 + $0xc8] sm:$0xff]
      %v964 = vld [vmem:[#allocation2 + $0xd0] sm:$0xff]
      %v965 = vld [vmem:[#allocation2 + $0xd8] sm:$0xff]
      %v966 = vld [vmem:[#allocation2 + $0xe0] sm:$0xff]
      %v967 = vld [vmem:[#allocation2 + $0xe8] sm:$0xff]
      %v968 = vld [vmem:[#allocation2 + $0xf0] sm:$0xff]
      %v969 = vld [vmem:[#allocation2 + $0xf8] sm:$0xff]
      %v970 = vadd.f32 %v938, %v906
      %v971 = vadd.f32 %v939, %v907
      %v972 = vadd.f32 %v940, %v908
      %v973 = vadd.f32 %v941, %v909
      %v974 = vadd.f32 %v942, %v910
      %v975 = vadd.f32 %v943, %v911
      %v976 = vadd.f32 %v944, %v912
      %v977 = vadd.f32 %v945, %v913
      %v978 = vadd.f32 %v946, %v914
      %v979 = vadd.f32 %v947, %v915
      %v980 = vadd.f32 %v948, %v916
      %v981 = vadd.f32 %v949, %v917
      %v982 = vadd.f32 %v950, %v918
      %v983 = vadd.f32 %v951, %v919
      %v984 = vadd.f32 %v952, %v920
      %v985 = vadd.f32 %v953, %v921
      %v986 = vadd.f32 %v954, %v922
      %v987 = vadd.f32 %v955, %v923
      %v988 = vadd.f32 %v956, %v924
      %v989 = vadd.f32 %v957, %v925
      %v990 = vadd.f32 %v958, %v926
      %v991 = vadd.f32 %v959, %v927
      %v992 = vadd.f32 %v960, %v928
      %v993 = vadd.f32 %v961, %v929
      %v994 = vadd.f32 %v962, %v930
      %v995 = vadd.f32 %v963, %v931
      %v996 = vadd.f32 %v964, %v932
      %v997 = vadd.f32 %v965, %v933
      %v998 = vadd.f32 %v966, %v934
      %v999 = vadd.f32 %v967, %v935
      %v1000 = vadd.f32 %v968, %v936
      %v1001 = vadd.f32 %v969, %v937
      %1002 = vst.msk [vmem:[#allocation2] sm:$0xff] %vm360, %v970
      %1003 = vst.msk [vmem:[#allocation2 + $0x8] sm:$0xff] %vm360, %v971
      %1004 = vst.msk [vmem:[#allocation2 + $0x10] sm:$0xff] %vm360, %v972
      %1005 = vst.msk [vmem:[#allocation2 + $0x18] sm:$0xff] %vm360, %v973
      %1006 = vst.msk [vmem:[#allocation2 + $0x20] sm:$0xff] %vm360, %v974
      %1007 = vst.msk [vmem:[#allocation2 + $0x28] sm:$0xff] %vm360, %v975
      %1008 = vst.msk [vmem:[#allocation2 + $0x30] sm:$0xff] %vm360, %v976
      %1009 = vst.msk [vmem:[#allocation2 + $0x38] sm:$0xff] %vm360, %v977
      %1010 = vst.msk [vmem:[#allocation2 + $0x40] sm:$0xff] %vm360, %v978
      %1011 = vst.msk [vmem:[#allocation2 + $0x48] sm:$0xff] %vm360, %v979
      %1012 = vst.msk [vmem:[#allocation2 + $0x50] sm:$0xff] %vm360, %v980
      %1013 = vst.msk [vmem:[#allocation2 + $0x58] sm:$0xff] %vm360, %v981
      %1014 = vst.msk [vmem:[#allocation2 + $0x60] sm:$0xff] %vm360, %v982
      %1015 = vst.msk [vmem:[#allocation2 + $0x68] sm:$0xff] %vm360, %v983
      %1016 = vst.msk [vmem:[#allocation2 + $0x70] sm:$0xff] %vm360, %v984
      %1017 = vst.msk [vmem:[#allocation2 + $0x78] sm:$0xff] %vm360, %v985
      %1018 = vst.msk [vmem:[#allocation2 + $0x80] sm:$0xff] %vm360, %v986
      %1019 = vst.msk [vmem:[#allocation2 + $0x88] sm:$0xff] %vm360, %v987
      %1020 = vst.msk [vmem:[#allocation2 + $0x90] sm:$0xff] %vm360, %v988
      %1021 = vst.msk [vmem:[#allocation2 + $0x98] sm:$0xff] %vm360, %v989
      %1022 = vst.msk [vmem:[#allocation2 + $0xa0] sm:$0xff] %vm360, %v990
      %1023 = vst.msk [vmem:[#allocation2 + $0xa8] sm:$0xff] %vm360, %v991
      %1024 = vst.msk [vmem:[#allocation2 + $0xb0] sm:$0xff] %vm360, %v992
      %1025 = vst.msk [vmem:[#allocation2 + $0xb8] sm:$0xff] %vm360, %v993
      %1026 = vst.msk [vmem:[#allocation2 + $0xc0] sm:$0xff] %vm360, %v994
      %1027 = vst.msk [vmem:[#allocation2 + $0xc8] sm:$0xff] %vm360, %v995
      %1028 = vst.msk [vmem:[#allocation2 + $0xd0] sm:$0xff] %vm360, %v996
      %1029 = vst.msk [vmem:[#allocation2 + $0xd8] sm:$0xff] %vm360, %v997
      %1030 = vst.msk [vmem:[#allocation2 + $0xe0] sm:$0xff] %vm360, %v998
      %1031 = vst.msk [vmem:[#allocation2 + $0xe8] sm:$0xff] %vm360, %v999
      %1032 = vst.msk [vmem:[#allocation2 + $0xf0] sm:$0xff] %vm360, %v1000
      %1033 = vst.msk [vmem:[#allocation2 + $0xf8] sm:$0xff] %vm360, %v1001
      %s1034 = scalar_lea.vmem %s316, 48
      %v1035 = vld [vmem:[%s1034] sm:$0xff]
      %v1036 = vld [vmem:[%s1034 + $0x8] sm:$0xff]
      %v1037 = vld [vmem:[%s1034 + $0x18] sm:$0xff]
      %v1038 = vld [vmem:[%s1034 + $0x20] sm:$0xff]
      %v1039 = vld [vmem:[%s1034 + $0x30] sm:$0xff]
      %v1040 = vld [vmem:[%s1034 + $0x38] sm:$0xff]
      %v1041 = vld [vmem:[%s1034 + $0x48] sm:$0xff]
      %v1042 = vld [vmem:[%s1034 + $0x50] sm:$0xff]
      %v1043 = vld [vmem:[%s1034 + $0x60] sm:$0xff]
      %v1044 = vld [vmem:[%s1034 + $0x68] sm:$0xff]
      %v1045 = vld [vmem:[%s1034 + $0x78] sm:$0xff]
      %v1046 = vld [vmem:[%s1034 + $0x80] sm:$0xff]
      %v1047 = vld [vmem:[%s1034 + $0x90] sm:$0xff]
      %v1048 = vld [vmem:[%s1034 + $0x98] sm:$0xff]
      %v1049 = vld [vmem:[%s1034 + $0xa8] sm:$0xff]
      %v1050 = vld [vmem:[%s1034 + $0xb0] sm:$0xff]
      %v1051 = vld [vmem:[%s1034 + $0xc0] sm:$0xff]
      %v1052 = vld [vmem:[%s1034 + $0xc8] sm:$0xff]
      %v1053 = vld [vmem:[%s1034 + $0xd8] sm:$0xff]
      %v1054 = vld [vmem:[%s1034 + $0xe0] sm:$0xff]
      %v1055 = vld [vmem:[%s1034 + $0xf0] sm:$0xff]
      %v1056 = vld [vmem:[%s1034 + $0xf8] sm:$0xff]
      %v1057 = vld [vmem:[%s1034 + $0x108] sm:$0xff]
      %v1058 = vld [vmem:[%s1034 + $0x110] sm:$0xff]
      %v1059 = vld [vmem:[%s1034 + $0x120] sm:$0xff]
      %v1060 = vld [vmem:[%s1034 + $0x128] sm:$0xff]
      %v1061 = vld [vmem:[%s1034 + $0x138] sm:$0xff]
      %v1062 = vld [vmem:[%s1034 + $0x140] sm:$0xff]
      %v1063 = vld [vmem:[%s1034 + $0x150] sm:$0xff]
      %v1064 = vld [vmem:[%s1034 + $0x158] sm:$0xff]
      %v1065 = vld [vmem:[%s1034 + $0x168] sm:$0xff]
      %v1066 = vld [vmem:[%s1034 + $0x170] sm:$0xff]
      %v1067 = vld [vmem:[#allocation2] sm:$0xff]
      %v1068 = vld [vmem:[#allocation2 + $0x8] sm:$0xff]
      %v1069 = vld [vmem:[#allocation2 + $0x10] sm:$0xff]
      %v1070 = vld [vmem:[#allocation2 + $0x18] sm:$0xff]
      %v1071 = vld [vmem:[#allocation2 + $0x20] sm:$0xff]
      %v1072 = vld [vmem:[#allocation2 + $0x28] sm:$0xff]
      %v1073 = vld [vmem:[#allocation2 + $0x30] sm:$0xff]
      %v1074 = vld [vmem:[#allocation2 + $0x38] sm:$0xff]
      %v1075 = vld [vmem:[#allocation2 + $0x40] sm:$0xff]
      %v1076 = vld [vmem:[#allocation2 + $0x48] sm:$0xff]
      %v1077 = vld [vmem:[#allocation2 + $0x50] sm:$0xff]
      %v1078 = vld [vmem:[#allocation2 + $0x58] sm:$0xff]
      %v1079 = vld [vmem:[#allocation2 + $0x60] sm:$0xff]
      %v1080 = vld [vmem:[#allocation2 + $0x68] sm:$0xff]
      %v1081 = vld [vmem:[#allocation2 + $0x70] sm:$0xff]
      %v1082 = vld [vmem:[#allocation2 + $0x78] sm:$0xff]
      %v1083 = vld [vmem:[#allocation2 + $0x80] sm:$0xff]
      %v1084 = vld [vmem:[#allocation2 + $0x88] sm:$0xff]
      %v1085 = vld [vmem:[#allocation2 + $0x90] sm:$0xff]
      %v1086 = vld [vmem:[#allocation2 + $0x98] sm:$0xff]
      %v1087 = vld [vmem:[#allocation2 + $0xa0] sm:$0xff]
      %v1088 = vld [vmem:[#allocation2 + $0xa8] sm:$0xff]
      %v1089 = vld [vmem:[#allocation2 + $0xb0] sm:$0xff]
      %v1090 = vld [vmem:[#allocation2 + $0xb8] sm:$0xff]
      %v1091 = vld [vmem:[#allocation2 + $0xc0] sm:$0xff]
      %v1092 = vld [vmem:[#allocation2 + $0xc8] sm:$0xff]
      %v1093 = vld [vmem:[#allocation2 + $0xd0] sm:$0xff]
      %v1094 = vld [vmem:[#allocation2 + $0xd8] sm:$0xff]
      %v1095 = vld [vmem:[#allocation2 + $0xe0] sm:$0xff]
      %v1096 = vld [vmem:[#allocation2 + $0xe8] sm:$0xff]
      %v1097 = vld [vmem:[#allocation2 + $0xf0] sm:$0xff]
      %v1098 = vld [vmem:[#allocation2 + $0xf8] sm:$0xff]
      %v1099 = vadd.f32 %v1067, %v1035
      %v1100 = vadd.f32 %v1068, %v1036
      %v1101 = vadd.f32 %v1069, %v1037
      %v1102 = vadd.f32 %v1070, %v1038
      %v1103 = vadd.f32 %v1071, %v1039
      %v1104 = vadd.f32 %v1072, %v1040
      %v1105 = vadd.f32 %v1073, %v1041
      %v1106 = vadd.f32 %v1074, %v1042
      %v1107 = vadd.f32 %v1075, %v1043
      %v1108 = vadd.f32 %v1076, %v1044
      %v1109 = vadd.f32 %v1077, %v1045
      %v1110 = vadd.f32 %v1078, %v1046
      %v1111 = vadd.f32 %v1079, %v1047
      %v1112 = vadd.f32 %v1080, %v1048
      %v1113 = vadd.f32 %v1081, %v1049
      %v1114 = vadd.f32 %v1082, %v1050
      %v1115 = vadd.f32 %v1083, %v1051
      %v1116 = vadd.f32 %v1084, %v1052
      %v1117 = vadd.f32 %v1085, %v1053
      %v1118 = vadd.f32 %v1086, %v1054
      %v1119 = vadd.f32 %v1087, %v1055
      %v1120 = vadd.f32 %v1088, %v1056
      %v1121 = vadd.f32 %v1089, %v1057
      %v1122 = vadd.f32 %v1090, %v1058
      %v1123 = vadd.f32 %v1091, %v1059
      %v1124 = vadd.f32 %v1092, %v1060
      %v1125 = vadd.f32 %v1093, %v1061
      %v1126 = vadd.f32 %v1094, %v1062
      %v1127 = vadd.f32 %v1095, %v1063
      %v1128 = vadd.f32 %v1096, %v1064
      %v1129 = vadd.f32 %v1097, %v1065
      %v1130 = vadd.f32 %v1098, %v1066
      %1131 = vst.msk [vmem:[#allocation2] sm:$0xff] %vm360, %v1099
      %1132 = vst.msk [vmem:[#allocation2 + $0x8] sm:$0xff] %vm360, %v1100
      %1133 = vst.msk [vmem:[#allocation2 + $0x10] sm:$0xff] %vm360, %v1101
      %1134 = vst.msk [vmem:[#allocation2 + $0x18] sm:$0xff] %vm360, %v1102
      %1135 = vst.msk [vmem:[#allocation2 + $0x20] sm:$0xff] %vm360, %v1103
      %1136 = vst.msk [vmem:[#allocation2 + $0x28] sm:$0xff] %vm360, %v1104
      %1137 = vst.msk [vmem:[#allocation2 + $0x30] sm:$0xff] %vm360, %v1105
      %1138 = vst.msk [vmem:[#allocation2 + $0x38] sm:$0xff] %vm360, %v1106
      %1139 = vst.msk [vmem:[#allocation2 + $0x40] sm:$0xff] %vm360, %v1107
      %1140 = vst.msk [vmem:[#allocation2 + $0x48] sm:$0xff] %vm360, %v1108
      %1141 = vst.msk [vmem:[#allocation2 + $0x50] sm:$0xff] %vm360, %v1109
      %1142 = vst.msk [vmem:[#allocation2 + $0x58] sm:$0xff] %vm360, %v1110
      %1143 = vst.msk [vmem:[#allocation2 + $0x60] sm:$0xff] %vm360, %v1111
      %1144 = vst.msk [vmem:[#allocation2 + $0x68] sm:$0xff] %vm360, %v1112
      %1145 = vst.msk [vmem:[#allocation2 + $0x70] sm:$0xff] %vm360, %v1113
      %1146 = vst.msk [vmem:[#allocation2 + $0x78] sm:$0xff] %vm360, %v1114
      %1147 = vst.msk [vmem:[#allocation2 + $0x80] sm:$0xff] %vm360, %v1115
      %1148 = vst.msk [vmem:[#allocation2 + $0x88] sm:$0xff] %vm360, %v1116
      %1149 = vst.msk [vmem:[#allocation2 + $0x90] sm:$0xff] %vm360, %v1117
      %1150 = vst.msk [vmem:[#allocation2 + $0x98] sm:$0xff] %vm360, %v1118
      %1151 = vst.msk [vmem:[#allocation2 + $0xa0] sm:$0xff] %vm360, %v1119
      %1152 = vst.msk [vmem:[#allocation2 + $0xa8] sm:$0xff] %vm360, %v1120
      %1153 = vst.msk [vmem:[#allocation2 + $0xb0] sm:$0xff] %vm360, %v1121
      %1154 = vst.msk [vmem:[#allocation2 + $0xb8] sm:$0xff] %vm360, %v1122
      %1155 = vst.msk [vmem:[#allocation2 + $0xc0] sm:$0xff] %vm360, %v1123
      %1156 = vst.msk [vmem:[#allocation2 + $0xc8] sm:$0xff] %vm360, %v1124
      %1157 = vst.msk [vmem:[#allocation2 + $0xd0] sm:$0xff] %vm360, %v1125
      %1158 = vst.msk [vmem:[#allocation2 + $0xd8] sm:$0xff] %vm360, %v1126
      %1159 = vst.msk [vmem:[#allocation2 + $0xe0] sm:$0xff] %vm360, %v1127
      %1160 = vst.msk [vmem:[#allocation2 + $0xe8] sm:$0xff] %vm360, %v1128
      %1161 = vst.msk [vmem:[#allocation2 + $0xf0] sm:$0xff] %vm360, %v1129
      %1162 = vst.msk [vmem:[#allocation2 + $0xf8] sm:$0xff] %vm360, %v1130
      %v1163 = vld [vmem:[%s1034 + $0x1] sm:$0xff]
      %v1164 = vld [vmem:[%s1034 + $0x9] sm:$0xff]
      %v1165 = vld [vmem:[%s1034 + $0x19] sm:$0xff]
      %v1166 = vld [vmem:[%s1034 + $0x21] sm:$0xff]
      %v1167 = vld [vmem:[%s1034 + $0x31] sm:$0xff]
      %v1168 = vld [vmem:[%s1034 + $0x39] sm:$0xff]
      %v1169 = vld [vmem:[%s1034 + $0x49] sm:$0xff]
      %v1170 = vld [vmem:[%s1034 + $0x51] sm:$0xff]
      %v1171 = vld [vmem:[%s1034 + $0x61] sm:$0xff]
      %v1172 = vld [vmem:[%s1034 + $0x69] sm:$0xff]
      %v1173 = vld [vmem:[%s1034 + $0x79] sm:$0xff]
      %v1174 = vld [vmem:[%s1034 + $0x81] sm:$0xff]
      %v1175 = vld [vmem:[%s1034 + $0x91] sm:$0xff]
      %v1176 = vld [vmem:[%s1034 + $0x99] sm:$0xff]
      %v1177 = vld [vmem:[%s1034 + $0xa9] sm:$0xff]
      %v1178 = vld [vmem:[%s1034 + $0xb1] sm:$0xff]
      %v1179 = vld [vmem:[%s1034 + $0xc1] sm:$0xff]
      %v1180 = vld [vmem:[%s1034 + $0xc9] sm:$0xff]
      %v1181 = vld [vmem:[%s1034 + $0xd9] sm:$0xff]
      %v1182 = vld [vmem:[%s1034 + $0xe1] sm:$0xff]
      %v1183 = vld [vmem:[%s1034 + $0xf1] sm:$0xff]
      %v1184 = vld [vmem:[%s1034 + $0xf9] sm:$0xff]
      %v1185 = vld [vmem:[%s1034 + $0x109] sm:$0xff]
      %v1186 = vld [vmem:[%s1034 + $0x111] sm:$0xff]
      %v1187 = vld [vmem:[%s1034 + $0x121] sm:$0xff]
      %v1188 = vld [vmem:[%s1034 + $0x129] sm:$0xff]
      %v1189 = vld [vmem:[%s1034 + $0x139] sm:$0xff]
      %v1190 = vld [vmem:[%s1034 + $0x141] sm:$0xff]
      %v1191 = vld [vmem:[%s1034 + $0x151] sm:$0xff]
      %v1192 = vld [vmem:[%s1034 + $0x159] sm:$0xff]
      %v1193 = vld [vmem:[%s1034 + $0x169] sm:$0xff]
      %v1194 = vld [vmem:[%s1034 + $0x171] sm:$0xff]
      %v1195 = vld [vmem:[#allocation2] sm:$0xff]
      %v1196 = vld [vmem:[#allocation2 + $0x8] sm:$0xff]
      %v1197 = vld [vmem:[#allocation2 + $0x10] sm:$0xff]
      %v1198 = vld [vmem:[#allocation2 + $0x18] sm:$0xff]
      %v1199 = vld [vmem:[#allocation2 + $0x20] sm:$0xff]
      %v1200 = vld [vmem:[#allocation2 + $0x28] sm:$0xff]
      %v1201 = vld [vmem:[#allocation2 + $0x30] sm:$0xff]
      %v1202 = vld [vmem:[#allocation2 + $0x38] sm:$0xff]
      %v1203 = vld [vmem:[#allocation2 + $0x40] sm:$0xff]
      %v1204 = vld [vmem:[#allocation2 + $0x48] sm:$0xff]
      %v1205 = vld [vmem:[#allocation2 + $0x50] sm:$0xff]
      %v1206 = vld [vmem:[#allocation2 + $0x58] sm:$0xff]
      %v1207 = vld [vmem:[#allocation2 + $0x60] sm:$0xff]
      %v1208 = vld [vmem:[#allocation2 + $0x68] sm:$0xff]
      %v1209 = vld [vmem:[#allocation2 + $0x70] sm:$0xff]
      %v1210 = vld [vmem:[#allocation2 + $0x78] sm:$0xff]
      %v1211 = vld [vmem:[#allocation2 + $0x80] sm:$0xff]
      %v1212 = vld [vmem:[#allocation2 + $0x88] sm:$0xff]
      %v1213 = vld [vmem:[#allocation2 + $0x90] sm:$0xff]
      %v1214 = vld [vmem:[#allocation2 + $0x98] sm:$0xff]
      %v1215 = vld [vmem:[#allocation2 + $0xa0] sm:$0xff]
      %v1216 = vld [vmem:[#allocation2 + $0xa8] sm:$0xff]
      %v1217 = vld [vmem:[#allocation2 + $0xb0] sm:$0xff]
      %v1218 = vld [vmem:[#allocation2 + $0xb8] sm:$0xff]
      %v1219 = vld [vmem:[#allocation2 + $0xc0] sm:$0xff]
      %v1220 = vld [vmem:[#allocation2 + $0xc8] sm:$0xff]
      %v1221 = vld [vmem:[#allocation2 + $0xd0] sm:$0xff]
      %v1222 = vld [vmem:[#allocation2 + $0xd8] sm:$0xff]
      %v1223 = vld [vmem:[#allocation2 + $0xe0] sm:$0xff]
      %v1224 = vld [vmem:[#allocation2 + $0xe8] sm:$0xff]
      %v1225 = vld [vmem:[#allocation2 + $0xf0] sm:$0xff]
      %v1226 = vld [vmem:[#allocation2 + $0xf8] sm:$0xff]
      %v1227 = vadd.f32 %v1195, %v1163
      %v1228 = vadd.f32 %v1196, %v1164
      %v1229 = vadd.f32 %v1197, %v1165
      %v1230 = vadd.f32 %v1198, %v1166
      %v1231 = vadd.f32 %v1199, %v1167
      %v1232 = vadd.f32 %v1200, %v1168
      %v1233 = vadd.f32 %v1201, %v1169
      %v1234 = vadd.f32 %v1202, %v1170
      %v1235 = vadd.f32 %v1203, %v1171
      %v1236 = vadd.f32 %v1204, %v1172
      %v1237 = vadd.f32 %v1205, %v1173
      %v1238 = vadd.f32 %v1206, %v1174
      %v1239 = vadd.f32 %v1207, %v1175
      %v1240 = vadd.f32 %v1208, %v1176
      %v1241 = vadd.f32 %v1209, %v1177
      %v1242 = vadd.f32 %v1210, %v1178
      %v1243 = vadd.f32 %v1211, %v1179
      %v1244 = vadd.f32 %v1212, %v1180
      %v1245 = vadd.f32 %v1213, %v1181
      %v1246 = vadd.f32 %v1214, %v1182
      %v1247 = vadd.f32 %v1215, %v1183
      %v1248 = vadd.f32 %v1216, %v1184
      %v1249 = vadd.f32 %v1217, %v1185
      %v1250 = vadd.f32 %v1218, %v1186
      %v1251 = vadd.f32 %v1219, %v1187
      %v1252 = vadd.f32 %v1220, %v1188
      %v1253 = vadd.f32 %v1221, %v1189
      %v1254 = vadd.f32 %v1222, %v1190
      %v1255 = vadd.f32 %v1223, %v1191
      %v1256 = vadd.f32 %v1224, %v1192
      %v1257 = vadd.f32 %v1225, %v1193
      %v1258 = vadd.f32 %v1226, %v1194
      %1259 = vst.msk [vmem:[#allocation2] sm:$0xff] %vm360, %v1227
      %1260 = vst.msk [vmem:[#allocation2 + $0x8] sm:$0xff] %vm360, %v1228
      %1261 = vst.msk [vmem:[#allocation2 + $0x10] sm:$0xff] %vm360, %v1229
      %1262 = vst.msk [vmem:[#allocation2 + $0x18] sm:$0xff] %vm360, %v1230
      %1263 = vst.msk [vmem:[#allocation2 + $0x20] sm:$0xff] %vm360, %v1231
      %1264 = vst.msk [vmem:[#allocation2 + $0x28] sm:$0xff] %vm360, %v1232
      %1265 = vst.msk [vmem:[#allocation2 + $0x30] sm:$0xff] %vm360, %v1233
      %1266 = vst.msk [vmem:[#allocation2 + $0x38] sm:$0xff] %vm360, %v1234
      %1267 = vst.msk [vmem:[#allocation2 + $0x40] sm:$0xff] %vm360, %v1235
      %1268 = vst.msk [vmem:[#allocation2 + $0x48] sm:$0xff] %vm360, %v1236
      %1269 = vst.msk [vmem:[#allocation2 + $0x50] sm:$0xff] %vm360, %v1237
      %1270 = vst.msk [vmem:[#allocation2 + $0x58] sm:$0xff] %vm360, %v1238
      %1271 = vst.msk [vmem:[#allocation2 + $0x60] sm:$0xff] %vm360, %v1239
      %1272 = vst.msk [vmem:[#allocation2 + $0x68] sm:$0xff] %vm360, %v1240
      %1273 = vst.msk [vmem:[#allocation2 + $0x70] sm:$0xff] %vm360, %v1241
      %1274 = vst.msk [vmem:[#allocation2 + $0x78] sm:$0xff] %vm360, %v1242
      %1275 = vst.msk [vmem:[#allocation2 + $0x80] sm:$0xff] %vm360, %v1243
      %1276 = vst.msk [vmem:[#allocation2 + $0x88] sm:$0xff] %vm360, %v1244
      %1277 = vst.msk [vmem:[#allocation2 + $0x90] sm:$0xff] %vm360, %v1245
      %1278 = vst.msk [vmem:[#allocation2 + $0x98] sm:$0xff] %vm360, %v1246
      %1279 = vst.msk [vmem:[#allocation2 + $0xa0] sm:$0xff] %vm360, %v1247
      %1280 = vst.msk [vmem:[#allocation2 + $0xa8] sm:$0xff] %vm360, %v1248
      %1281 = vst.msk [vmem:[#allocation2 + $0xb0] sm:$0xff] %vm360, %v1249
      %1282 = vst.msk [vmem:[#allocation2 + $0xb8] sm:$0xff] %vm360, %v1250
      %1283 = vst.msk [vmem:[#allocation2 + $0xc0] sm:$0xff] %vm360, %v1251
      %1284 = vst.msk [vmem:[#allocation2 + $0xc8] sm:$0xff] %vm360, %v1252
      %1285 = vst.msk [vmem:[#allocation2 + $0xd0] sm:$0xff] %vm360, %v1253
      %1286 = vst.msk [vmem:[#allocation2 + $0xd8] sm:$0xff] %vm360, %v1254
      %1287 = vst.msk [vmem:[#allocation2 + $0xe0] sm:$0xff] %vm360, %v1255
      %1288 = vst.msk [vmem:[#allocation2 + $0xe8] sm:$0xff] %vm360, %v1256
      %1289 = vst.msk [vmem:[#allocation2 + $0xf0] sm:$0xff] %vm360, %v1257
      %1290 = vst.msk [vmem:[#allocation2 + $0xf8] sm:$0xff] %vm360, %v1258
      %v1291 = vld [vmem:[%s1034 + $0x2] sm:$0xff]
      %v1292 = vld [vmem:[%s1034 + $0xa] sm:$0xff]
      %v1293 = vld [vmem:[%s1034 + $0x1a] sm:$0xff]
      %v1294 = vld [vmem:[%s1034 + $0x22] sm:$0xff]
      %v1295 = vld [vmem:[%s1034 + $0x32] sm:$0xff]
      %v1296 = vld [vmem:[%s1034 + $0x3a] sm:$0xff]
      %v1297 = vld [vmem:[%s1034 + $0x4a] sm:$0xff]
      %v1298 = vld [vmem:[%s1034 + $0x52] sm:$0xff]
      %v1299 = vld [vmem:[%s1034 + $0x62] sm:$0xff]
      %v1300 = vld [vmem:[%s1034 + $0x6a] sm:$0xff]
      %v1301 = vld [vmem:[%s1034 + $0x7a] sm:$0xff]
      %v1302 = vld [vmem:[%s1034 + $0x82] sm:$0xff]
      %v1303 = vld [vmem:[%s1034 + $0x92] sm:$0xff]
      %v1304 = vld [vmem:[%s1034 + $0x9a] sm:$0xff]
      %v1305 = vld [vmem:[%s1034 + $0xaa] sm:$0xff]
      %v1306 = vld [vmem:[%s1034 + $0xb2] sm:$0xff]
      %v1307 = vld [vmem:[%s1034 + $0xc2] sm:$0xff]
      %v1308 = vld [vmem:[%s1034 + $0xca] sm:$0xff]
      %v1309 = vld [vmem:[%s1034 + $0xda] sm:$0xff]
      %v1310 = vld [vmem:[%s1034 + $0xe2] sm:$0xff]
      %v1311 = vld [vmem:[%s1034 + $0xf2] sm:$0xff]
      %v1312 = vld [vmem:[%s1034 + $0xfa] sm:$0xff]
      %v1313 = vld [vmem:[%s1034 + $0x10a] sm:$0xff]
      %v1314 = vld [vmem:[%s1034 + $0x112] sm:$0xff]
      %v1315 = vld [vmem:[%s1034 + $0x122] sm:$0xff]
      %v1316 = vld [vmem:[%s1034 + $0x12a] sm:$0xff]
      %v1317 = vld [vmem:[%s1034 + $0x13a] sm:$0xff]
      %v1318 = vld [vmem:[%s1034 + $0x142] sm:$0xff]
      %v1319 = vld [vmem:[%s1034 + $0x152] sm:$0xff]
      %v1320 = vld [vmem:[%s1034 + $0x15a] sm:$0xff]
      %v1321 = vld [vmem:[%s1034 + $0x16a] sm:$0xff]
      %v1322 = vld [vmem:[%s1034 + $0x172] sm:$0xff]
      %v1323 = vld [vmem:[#allocation2] sm:$0xff]
      %v1324 = vld [vmem:[#allocation2 + $0x8] sm:$0xff]
      %v1325 = vld [vmem:[#allocation2 + $0x10] sm:$0xff]
      %v1326 = vld [vmem:[#allocation2 + $0x18] sm:$0xff]
      %v1327 = vld [vmem:[#allocation2 + $0x20] sm:$0xff]
      %v1328 = vld [vmem:[#allocation2 + $0x28] sm:$0xff]
      %v1329 = vld [vmem:[#allocation2 + $0x30] sm:$0xff]
      %v1330 = vld [vmem:[#allocation2 + $0x38] sm:$0xff]
      %v1331 = vld [vmem:[#allocation2 + $0x40] sm:$0xff]
      %v1332 = vld [vmem:[#allocation2 + $0x48] sm:$0xff]
      %v1333 = vld [vmem:[#allocation2 + $0x50] sm:$0xff]
      %v1334 = vld [vmem:[#allocation2 + $0x58] sm:$0xff]
      %v1335 = vld [vmem:[#allocation2 + $0x60] sm:$0xff]
      %v1336 = vld [vmem:[#allocation2 + $0x68] sm:$0xff]
      %v1337 = vld [vmem:[#allocation2 + $0x70] sm:$0xff]
      %v1338 = vld [vmem:[#allocation2 + $0x78] sm:$0xff]
      %v1339 = vld [vmem:[#allocation2 + $0x80] sm:$0xff]
      %v1340 = vld [vmem:[#allocation2 + $0x88] sm:$0xff]
      %v1341 = vld [vmem:[#allocation2 + $0x90] sm:$0xff]
      %v1342 = vld [vmem:[#allocation2 + $0x98] sm:$0xff]
      %v1343 = vld [vmem:[#allocation2 + $0xa0] sm:$0xff]
      %v1344 = vld [vmem:[#allocation2 + $0xa8] sm:$0xff]
      %v1345 = vld [vmem:[#allocation2 + $0xb0] sm:$0xff]
      %v1346 = vld [vmem:[#allocation2 + $0xb8] sm:$0xff]
      %v1347 = vld [vmem:[#allocation2 + $0xc0] sm:$0xff]
      %v1348 = vld [vmem:[#allocation2 + $0xc8] sm:$0xff]
      %v1349 = vld [vmem:[#allocation2 + $0xd0] sm:$0xff]
      %v1350 = vld [vmem:[#allocation2 + $0xd8] sm:$0xff]
      %v1351 = vld [vmem:[#allocation2 + $0xe0] sm:$0xff]
      %v1352 = vld [vmem:[#allocation2 + $0xe8] sm:$0xff]
      %v1353 = vld [vmem:[#allocation2 + $0xf0] sm:$0xff]
      %v1354 = vld [vmem:[#allocation2 + $0xf8] sm:$0xff]
      %v1355 = vadd.f32 %v1323, %v1291
      %v1356 = vadd.f32 %v1324, %v1292
      %v1357 = vadd.f32 %v1325, %v1293
      %v1358 = vadd.f32 %v1326, %v1294
      %v1359 = vadd.f32 %v1327, %v1295
      %v1360 = vadd.f32 %v1328, %v1296
      %v1361 = vadd.f32 %v1329, %v1297
      %v1362 = vadd.f32 %v1330, %v1298
      %v1363 = vadd.f32 %v1331, %v1299
      %v1364 = vadd.f32 %v1332, %v1300
      %v1365 = vadd.f32 %v1333, %v1301
      %v1366 = vadd.f32 %v1334, %v1302
      %v1367 = vadd.f32 %v1335, %v1303
      %v1368 = vadd.f32 %v1336, %v1304
      %v1369 = vadd.f32 %v1337, %v1305
      %v1370 = vadd.f32 %v1338, %v1306
      %v1371 = vadd.f32 %v1339, %v1307
      %v1372 = vadd.f32 %v1340, %v1308
      %v1373 = vadd.f32 %v1341, %v1309
      %v1374 = vadd.f32 %v1342, %v1310
      %v1375 = vadd.f32 %v1343, %v1311
      %v1376 = vadd.f32 %v1344, %v1312
      %v1377 = vadd.f32 %v1345, %v1313
      %v1378 = vadd.f32 %v1346, %v1314
      %v1379 = vadd.f32 %v1347, %v1315
      %v1380 = vadd.f32 %v1348, %v1316
      %v1381 = vadd.f32 %v1349, %v1317
      %v1382 = vadd.f32 %v1350, %v1318
      %v1383 = vadd.f32 %v1351, %v1319
      %v1384 = vadd.f32 %v1352, %v1320
      %v1385 = vadd.f32 %v1353, %v1321
      %v1386 = vadd.f32 %v1354, %v1322
      %1387 = vst.msk [vmem:[#allocation2] sm:$0xff] %vm360, %v1355
      %1388 = vst.msk [vmem:[#allocation2 + $0x8] sm:$0xff] %vm360, %v1356
      %1389 = vst.msk [vmem:[#allocation2 + $0x10] sm:$0xff] %vm360, %v1357
      %1390 = vst.msk [vmem:[#allocation2 + $0x18] sm:$0xff] %vm360, %v1358
      %1391 = vst.msk [vmem:[#allocation2 + $0x20] sm:$0xff] %vm360, %v1359
      %1392 = vst.msk [vmem:[#allocation2 + $0x28] sm:$0xff] %vm360, %v1360
      %1393 = vst.msk [vmem:[#allocation2 + $0x30] sm:$0xff] %vm360, %v1361
      %1394 = vst.msk [vmem:[#allocation2 + $0x38] sm:$0xff] %vm360, %v1362
      %1395 = vst.msk [vmem:[#allocation2 + $0x40] sm:$0xff] %vm360, %v1363
      %1396 = vst.msk [vmem:[#allocation2 + $0x48] sm:$0xff] %vm360, %v1364
      %1397 = vst.msk [vmem:[#allocation2 + $0x50] sm:$0xff] %vm360, %v1365
      %1398 = vst.msk [vmem:[#allocation2 + $0x58] sm:$0xff] %vm360, %v1366
      %1399 = vst.msk [vmem:[#allocation2 + $0x60] sm:$0xff] %vm360, %v1367
      %1400 = vst.msk [vmem:[#allocation2 + $0x68] sm:$0xff] %vm360, %v1368
      %1401 = vst.msk [vmem:[#allocation2 + $0x70] sm:$0xff] %vm360, %v1369
      %1402 = vst.msk [vmem:[#allocation2 + $0x78] sm:$0xff] %vm360, %v1370
      %1403 = vst.msk [vmem:[#allocation2 + $0x80] sm:$0xff] %vm360, %v1371
      %1404 = vst.msk [vmem:[#allocation2 + $0x88] sm:$0xff] %vm360, %v1372
      %1405 = vst.msk [vmem:[#allocation2 + $0x90] sm:$0xff] %vm360, %v1373
      %1406 = vst.msk [vmem:[#allocation2 + $0x98] sm:$0xff] %vm360, %v1374
      %1407 = vst.msk [vmem:[#allocation2 + $0xa0] sm:$0xff] %vm360, %v1375
      %1408 = vst.msk [vmem:[#allocation2 + $0xa8] sm:$0xff] %vm360, %v1376
      %1409 = vst.msk [vmem:[#allocation2 + $0xb0] sm:$0xff] %vm360, %v1377
      %1410 = vst.msk [vmem:[#allocation2 + $0xb8] sm:$0xff] %vm360, %v1378
      %1411 = vst.msk [vmem:[#allocation2 + $0xc0] sm:$0xff] %vm360, %v1379
      %1412 = vst.msk [vmem:[#allocation2 + $0xc8] sm:$0xff] %vm360, %v1380
      %1413 = vst.msk [vmem:[#allocation2 + $0xd0] sm:$0xff] %vm360, %v1381
      %1414 = vst.msk [vmem:[#allocation2 + $0xd8] sm:$0xff] %vm360, %v1382
      %1415 = vst.msk [vmem:[#allocation2 + $0xe0] sm:$0xff] %vm360, %v1383
      %1416 = vst.msk [vmem:[#allocation2 + $0xe8] sm:$0xff] %vm360, %v1384
      %1417 = vst.msk [vmem:[#allocation2 + $0xf0] sm:$0xff] %vm360, %v1385
      %1418 = vst.msk [vmem:[#allocation2 + $0xf8] sm:$0xff] %vm360, %v1386
      %v1419 = vld [vmem:[#allocation2] sm:$0xff]
      %v1420 = vld [vmem:[#allocation2 + $0x8] sm:$0xff]
      %v1421 = vld [vmem:[#allocation2 + $0x10] sm:$0xff]
      %v1422 = vld [vmem:[#allocation2 + $0x18] sm:$0xff]
      %v1423 = vld [vmem:[#allocation2 + $0x20] sm:$0xff]
      %v1424 = vld [vmem:[#allocation2 + $0x28] sm:$0xff]
      %v1425 = vld [vmem:[#allocation2 + $0x30] sm:$0xff]
      %v1426 = vld [vmem:[#allocation2 + $0x38] sm:$0xff]
      %v1427 = vld [vmem:[#allocation2 + $0x40] sm:$0xff]
      %v1428 = vld [vmem:[#allocation2 + $0x48] sm:$0xff]
      %v1429 = vld [vmem:[#allocation2 + $0x50] sm:$0xff]
      %v1430 = vld [vmem:[#allocation2 + $0x58] sm:$0xff]
      %v1431 = vld [vmem:[#allocation2 + $0x60] sm:$0xff]
      %v1432 = vld [vmem:[#allocation2 + $0x68] sm:$0xff]
      %v1433 = vld [vmem:[#allocation2 + $0x70] sm:$0xff]
      %v1434 = vld [vmem:[#allocation2 + $0x78] sm:$0xff]
      %v1435 = vld [vmem:[#allocation2 + $0x80] sm:$0xff]
      %v1436 = vld [vmem:[#allocation2 + $0x88] sm:$0xff]
      %v1437 = vld [vmem:[#allocation2 + $0x90] sm:$0xff]
      %v1438 = vld [vmem:[#allocation2 + $0x98] sm:$0xff]
      %v1439 = vld [vmem:[#allocation2 + $0xa0] sm:$0xff]
      %v1440 = vld [vmem:[#allocation2 + $0xa8] sm:$0xff]
      %v1441 = vld [vmem:[#allocation2 + $0xb0] sm:$0xff]
      %v1442 = vld [vmem:[#allocation2 + $0xb8] sm:$0xff]
      %v1443 = vld [vmem:[#allocation2 + $0xc0] sm:$0xff]
      %v1444 = vld [vmem:[#allocation2 + $0xc8] sm:$0xff]
      %v1445 = vld [vmem:[#allocation2 + $0xd0] sm:$0xff]
      %v1446 = vld [vmem:[#allocation2 + $0xd8] sm:$0xff]
      %v1447 = vld [vmem:[#allocation2 + $0xe0] sm:$0xff]
      %v1448 = vld [vmem:[#allocation2 + $0xe8] sm:$0xff]
      %v1449 = vld [vmem:[#allocation2 + $0xf0] sm:$0xff]
      %v1450 = vld [vmem:[#allocation2 + $0xf8] sm:$0xff]
      %v1451 = vld [vmem:[%s3] sm:$0xff]
      %v1452 = vld [vmem:[%s3 + $0x8] sm:$0xff]
      %v1453 = vld [vmem:[%s3 + $0x10] sm:$0xff]
      %v1454 = vld [vmem:[%s3 + $0x18] sm:$0xff]
      %v1455 = vld [vmem:[%s3 + $0x20] sm:$0xff]
      %v1456 = vld [vmem:[%s3 + $0x28] sm:$0xff]
      %v1457 = vld [vmem:[%s3 + $0x30] sm:$0xff]
      %v1458 = vld [vmem:[%s3 + $0x38] sm:$0xff]
      %v1459 = vld [vmem:[%s3 + $0x40] sm:$0xff]
      %v1460 = vld [vmem:[%s3 + $0x48] sm:$0xff]
      %v1461 = vld [vmem:[%s3 + $0x50] sm:$0xff]
      %v1462 = vld [vmem:[%s3 + $0x58] sm:$0xff]
      %v1463 = vld [vmem:[%s3 + $0x60] sm:$0xff]
      %v1464 = vld [vmem:[%s3 + $0x68] sm:$0xff]
      %v1465 = vld [vmem:[%s3 + $0x70] sm:$0xff]
      %v1466 = vld [vmem:[%s3 + $0x78] sm:$0xff]
      %v1467 = vld [vmem:[%s3 + $0x80] sm:$0xff]
      %v1468 = vld [vmem:[%s3 + $0x88] sm:$0xff]
      %v1469 = vld [vmem:[%s3 + $0x90] sm:$0xff]
      %v1470 = vld [vmem:[%s3 + $0x98] sm:$0xff]
      %v1471 = vld [vmem:[%s3 + $0xa0] sm:$0xff]
      %v1472 = vld [vmem:[%s3 + $0xa8] sm:$0xff]
      %v1473 = vld [vmem:[%s3 + $0xb0] sm:$0xff]
      %v1474 = vld [vmem:[%s3 + $0xb8] sm:$0xff]
      %v1475 = vld [vmem:[%s3 + $0xc0] sm:$0xff]
      %v1476 = vld [vmem:[%s3 + $0xc8] sm:$0xff]
      %v1477 = vld [vmem:[%s3 + $0xd0] sm:$0xff]
      %v1478 = vld [vmem:[%s3 + $0xd8] sm:$0xff]
      %v1479 = vld [vmem:[%s3 + $0xe0] sm:$0xff]
      %v1480 = vld [vmem:[%s3 + $0xe8] sm:$0xff]
      %v1481 = vld [vmem:[%s3 + $0xf0] sm:$0xff]
      %v1482 = vld [vmem:[%s3 + $0xf8] sm:$0xff]
      %1484 = vset.pattern.permute.xlu0 0
      %1485 = vperm.xlu0 %1484, %v1451
      %v1486 = vpop.permute.xlu0 %1485
      %1489 = vset.pattern.permute.xlu0 0
      %1490 = vperm.xlu0 %1489, %v1452
      %v1491 = vpop.permute.xlu0 %1490
      %1494 = vset.pattern.permute.xlu0 0
      %1495 = vperm.xlu0 %1494, %v1453
      %v1496 = vpop.permute.xlu0 %1495
      %1499 = vset.pattern.permute.xlu0 0
      %1500 = vperm.xlu0 %1499, %v1454
      %v1501 = vpop.permute.xlu0 %1500
      %1504 = vset.pattern.permute.xlu0 0
      %1505 = vperm.xlu0 %1504, %v1455
      %v1506 = vpop.permute.xlu0 %1505
      %1509 = vset.pattern.permute.xlu0 0
      %1510 = vperm.xlu0 %1509, %v1456
      %v1511 = vpop.permute.xlu0 %1510
      %1514 = vset.pattern.permute.xlu0 0
      %1515 = vperm.xlu0 %1514, %v1457
      %v1516 = vpop.permute.xlu0 %1515
      %1519 = vset.pattern.permute.xlu0 0
      %1520 = vperm.xlu0 %1519, %v1458
      %v1521 = vpop.permute.xlu0 %1520
      %1524 = vset.pattern.permute.xlu0 0
      %1525 = vperm.xlu0 %1524, %v1459
      %v1526 = vpop.permute.xlu0 %1525
      %1529 = vset.pattern.permute.xlu0 0
      %1530 = vperm.xlu0 %1529, %v1460
      %v1531 = vpop.permute.xlu0 %1530
      %1534 = vset.pattern.permute.xlu0 0
      %1535 = vperm.xlu0 %1534, %v1461
      %v1536 = vpop.permute.xlu0 %1535
      %1539 = vset.pattern.permute.xlu0 0
      %1540 = vperm.xlu0 %1539, %v1462
      %v1541 = vpop.permute.xlu0 %1540
      %1544 = vset.pattern.permute.xlu0 0
      %1545 = vperm.xlu0 %1544, %v1463
      %v1546 = vpop.permute.xlu0 %1545
      %1549 = vset.pattern.permute.xlu0 0
      %1550 = vperm.xlu0 %1549, %v1464
      %v1551 = vpop.permute.xlu0 %1550
      %1554 = vset.pattern.permute.xlu0 0
      %1555 = vperm.xlu0 %1554, %v1465
      %v1556 = vpop.permute.xlu0 %1555
      %1559 = vset.pattern.permute.xlu0 0
      %1560 = vperm.xlu0 %1559, %v1466
      %v1561 = vpop.permute.xlu0 %1560
      %1564 = vset.pattern.permute.xlu0 0
      %1565 = vperm.xlu0 %1564, %v1467
      %v1566 = vpop.permute.xlu0 %1565
      %1569 = vset.pattern.permute.xlu0 0
      %1570 = vperm.xlu0 %1569, %v1468
      %v1571 = vpop.permute.xlu0 %1570
      %1574 = vset.pattern.permute.xlu0 0
      %1575 = vperm.xlu0 %1574, %v1469
      %v1576 = vpop.permute.xlu0 %1575
      %1579 = vset.pattern.permute.xlu0 0
      %1580 = vperm.xlu0 %1579, %v1470
      %v1581 = vpop.permute.xlu0 %1580
      %1584 = vset.pattern.permute.xlu0 0
      %1585 = vperm.xlu0 %1584, %v1471
      %v1586 = vpop.permute.xlu0 %1585
      %1589 = vset.pattern.permute.xlu0 0
      %1590 = vperm.xlu0 %1589, %v1472
      %v1591 = vpop.permute.xlu0 %1590
      %1594 = vset.pattern.permute.xlu0 0
      %1595 = vperm.xlu0 %1594, %v1473
      %v1596 = vpop.permute.xlu0 %1595
      %1599 = vset.pattern.permute.xlu0 0
      %1600 = vperm.xlu0 %1599, %v1474
      %v1601 = vpop.permute.xlu0 %1600
      %1604 = vset.pattern.permute.xlu0 0
      %1605 = vperm.xlu0 %1604, %v1475
      %v1606 = vpop.permute.xlu0 %1605
      %1609 = vset.pattern.permute.xlu0 0
      %1610 = vperm.xlu0 %1609, %v1476
      %v1611 = vpop.permute.xlu0 %1610
      %1614 = vset.pattern.permute.xlu0 0
      %1615 = vperm.xlu0 %1614, %v1477
      %v1616 = vpop.permute.xlu0 %1615
      %1619 = vset.pattern.permute.xlu0 0
      %1620 = vperm.xlu0 %1619, %v1478
      %v1621 = vpop.permute.xlu0 %1620
      %1624 = vset.pattern.permute.xlu0 0
      %1625 = vperm.xlu0 %1624, %v1479
      %v1626 = vpop.permute.xlu0 %1625
      %1629 = vset.pattern.permute.xlu0 0
      %1630 = vperm.xlu0 %1629, %v1480
      %v1631 = vpop.permute.xlu0 %1630
      %1634 = vset.pattern.permute.xlu0 0
      %1635 = vperm.xlu0 %1634, %v1481
      %v1636 = vpop.permute.xlu0 %1635
      %1639 = vset.pattern.permute.xlu0 0
      %1640 = vperm.xlu0 %1639, %v1482
      %v1641 = vpop.permute.xlu0 %1640
      %v1643 = vmul.f32 %v1419, %v1486
      %v1644 = vmul.f32 %v1420, %v1491
      %v1645 = vmul.f32 %v1421, %v1496
      %v1646 = vmul.f32 %v1422, %v1501
      %v1647 = vmul.f32 %v1423, %v1506
      %v1648 = vmul.f32 %v1424, %v1511
      %v1649 = vmul.f32 %v1425, %v1516
      %v1650 = vmul.f32 %v1426, %v1521
      %v1651 = vmul.f32 %v1427, %v1526
      %v1652 = vmul.f32 %v1428, %v1531
      %v1653 = vmul.f32 %v1429, %v1536
      %v1654 = vmul.f32 %v1430, %v1541
      %v1655 = vmul.f32 %v1431, %v1546
      %v1656 = vmul.f32 %v1432, %v1551
      %v1657 = vmul.f32 %v1433, %v1556
      %v1658 = vmul.f32 %v1434, %v1561
      %v1659 = vmul.f32 %v1435, %v1566
      %v1660 = vmul.f32 %v1436, %v1571
      %v1661 = vmul.f32 %v1437, %v1576
      %v1662 = vmul.f32 %v1438, %v1581
      %v1663 = vmul.f32 %v1439, %v1586
      %v1664 = vmul.f32 %v1440, %v1591
      %v1665 = vmul.f32 %v1441, %v1596
      %v1666 = vmul.f32 %v1442, %v1601
      %v1667 = vmul.f32 %v1443, %v1606
      %v1668 = vmul.f32 %v1444, %v1611
      %v1669 = vmul.f32 %v1445, %v1616
      %v1670 = vmul.f32 %v1446, %v1621
      %v1671 = vmul.f32 %v1447, %v1626
      %v1672 = vmul.f32 %v1448, %v1631
      %v1673 = vmul.f32 %v1449, %v1636
      %v1674 = vmul.f32 %v1450, %v1641
      %v1675 = vld [vmem:[%s649 + $0x1] sm:$0xff]
      %v1676 = vld [vmem:[%s649 + $0x9] sm:$0xff]
      %v1677 = vld [vmem:[%s649 + $0x19] sm:$0xff]
      %v1678 = vld [vmem:[%s649 + $0x21] sm:$0xff]
      %v1679 = vld [vmem:[%s649 + $0x31] sm:$0xff]
      %v1680 = vld [vmem:[%s649 + $0x39] sm:$0xff]
      %v1681 = vld [vmem:[%s649 + $0x49] sm:$0xff]
      %v1682 = vld [vmem:[%s649 + $0x51] sm:$0xff]
      %v1683 = vld [vmem:[%s649 + $0x61] sm:$0xff]
      %v1684 = vld [vmem:[%s649 + $0x69] sm:$0xff]
      %v1685 = vld [vmem:[%s649 + $0x79] sm:$0xff]
      %v1686 = vld [vmem:[%s649 + $0x81] sm:$0xff]
      %v1687 = vld [vmem:[%s649 + $0x91] sm:$0xff]
      %v1688 = vld [vmem:[%s649 + $0x99] sm:$0xff]
      %v1689 = vld [vmem:[%s649 + $0xa9] sm:$0xff]
      %v1690 = vld [vmem:[%s649 + $0xb1] sm:$0xff]
      %v1691 = vld [vmem:[%s649 + $0xc1] sm:$0xff]
      %v1692 = vld [vmem:[%s649 + $0xc9] sm:$0xff]
      %v1693 = vld [vmem:[%s649 + $0xd9] sm:$0xff]
      %v1694 = vld [vmem:[%s649 + $0xe1] sm:$0xff]
      %v1695 = vld [vmem:[%s649 + $0xf1] sm:$0xff]
      %v1696 = vld [vmem:[%s649 + $0xf9] sm:$0xff]
      %v1697 = vld [vmem:[%s649 + $0x109] sm:$0xff]
      %v1698 = vld [vmem:[%s649 + $0x111] sm:$0xff]
      %v1699 = vld [vmem:[%s649 + $0x121] sm:$0xff]
      %v1700 = vld [vmem:[%s649 + $0x129] sm:$0xff]
      %v1701 = vld [vmem:[%s649 + $0x139] sm:$0xff]
      %v1702 = vld [vmem:[%s649 + $0x141] sm:$0xff]
      %v1703 = vld [vmem:[%s649 + $0x151] sm:$0xff]
      %v1704 = vld [vmem:[%s649 + $0x159] sm:$0xff]
      %v1705 = vld [vmem:[%s649 + $0x169] sm:$0xff]
      %v1706 = vld [vmem:[%s649 + $0x171] sm:$0xff]
      %v1707 = vld [vmem:[%s321] sm:$0xf]
      %v1708 = vld [vmem:[%s321 + $0x4] sm:$0xf]
      %v1709 = vld [vmem:[%s321 + $0x8] sm:$0xf]
      %v1710 = vld [vmem:[%s321 + $0xc] sm:$0xf]
      %v1711 = vld [vmem:[%s321 + $0x10] sm:$0xf]
      %v1712 = vld [vmem:[%s321 + $0x14] sm:$0xf]
      %v1713 = vld [vmem:[%s321 + $0x18] sm:$0xf]
      %v1714 = vld [vmem:[%s321 + $0x1c] sm:$0xf]
      %v1715 = vld [vmem:[%s321 + $0x20] sm:$0xf]
      %v1716 = vld [vmem:[%s321 + $0x24] sm:$0xf]
      %v1717 = vld [vmem:[%s321 + $0x28] sm:$0xf]
      %v1718 = vld [vmem:[%s321 + $0x2c] sm:$0xf]
      %v1719 = vld [vmem:[%s321 + $0x30] sm:$0xf]
      %v1720 = vld [vmem:[%s321 + $0x34] sm:$0xf]
      %v1721 = vld [vmem:[%s321 + $0x38] sm:$0xf]
      %v1722 = vld [vmem:[%s321 + $0x3c] sm:$0xf]
      %v1723 = vld [vmem:[%s321 + $0x40] sm:$0xf]
      %v1724 = vld [vmem:[%s321 + $0x44] sm:$0xf]
      %v1725 = vld [vmem:[%s321 + $0x48] sm:$0xf]
      %v1726 = vld [vmem:[%s321 + $0x4c] sm:$0xf]
      %v1727 = vld [vmem:[%s321 + $0x50] sm:$0xf]
      %v1728 = vld [vmem:[%s321 + $0x54] sm:$0xf]
      %v1729 = vld [vmem:[%s321 + $0x58] sm:$0xf]
      %v1730 = vld [vmem:[%s321 + $0x5c] sm:$0xf]
      %v1731 = vld [vmem:[%s321 + $0x60] sm:$0xf]
      %v1732 = vld [vmem:[%s321 + $0x64] sm:$0xf]
      %v1733 = vld [vmem:[%s321 + $0x68] sm:$0xf]
      %v1734 = vld [vmem:[%s321 + $0x6c] sm:$0xf]
      %v1735 = vld [vmem:[%s321 + $0x70] sm:$0xf]
      %v1736 = vld [vmem:[%s321 + $0x74] sm:$0xf]
      %v1737 = vld [vmem:[%s321 + $0x78] sm:$0xf]
      %v1738 = vld [vmem:[%s321 + $0x7c] sm:$0xf]
      %v1739 = vunpack.c.l.bf16 %v1707
      %v1740 = vunpack.c.l.bf16 %v1708
      %v1741 = vunpack.c.l.bf16 %v1709
      %v1742 = vunpack.c.l.bf16 %v1710
      %v1743 = vunpack.c.l.bf16 %v1711
      %v1744 = vunpack.c.l.bf16 %v1712
      %v1745 = vunpack.c.l.bf16 %v1713
      %v1746 = vunpack.c.l.bf16 %v1714
      %v1747 = vunpack.c.l.bf16 %v1715
      %v1748 = vunpack.c.l.bf16 %v1716
      %v1749 = vunpack.c.l.bf16 %v1717
      %v1750 = vunpack.c.l.bf16 %v1718
      %v1751 = vunpack.c.l.bf16 %v1719
      %v1752 = vunpack.c.l.bf16 %v1720
      %v1753 = vunpack.c.l.bf16 %v1721
      %v1754 = vunpack.c.l.bf16 %v1722
      %v1755 = vunpack.c.l.bf16 %v1723
      %v1756 = vunpack.c.l.bf16 %v1724
      %v1757 = vunpack.c.l.bf16 %v1725
      %v1758 = vunpack.c.l.bf16 %v1726
      %v1759 = vunpack.c.l.bf16 %v1727
      %v1760 = vunpack.c.l.bf16 %v1728
      %v1761 = vunpack.c.l.bf16 %v1729
      %v1762 = vunpack.c.l.bf16 %v1730
      %v1763 = vunpack.c.l.bf16 %v1731
      %v1764 = vunpack.c.l.bf16 %v1732
      %v1765 = vunpack.c.l.bf16 %v1733
      %v1766 = vunpack.c.l.bf16 %v1734
      %v1767 = vunpack.c.l.bf16 %v1735
      %v1768 = vunpack.c.l.bf16 %v1736
      %v1769 = vunpack.c.l.bf16 %v1737
      %v1770 = vunpack.c.l.bf16 %v1738
      %v1771 = vld [vmem:[%s4] sm:$0x1]
      %v1773 = vperm.slane %v1771, 0
      %v1775 = vmul.f32 %v1739, %v1773
      %v1776 = vmul.f32 %v1740, %v1773
      %v1777 = vmul.f32 %v1741, %v1773
      %v1778 = vmul.f32 %v1742, %v1773
      %v1779 = vmul.f32 %v1743, %v1773
      %v1780 = vmul.f32 %v1744, %v1773
      %v1781 = vmul.f32 %v1745, %v1773
      %v1782 = vmul.f32 %v1746, %v1773
      %v1783 = vmul.f32 %v1747, %v1773
      %v1784 = vmul.f32 %v1748, %v1773
      %v1785 = vmul.f32 %v1749, %v1773
      %v1786 = vmul.f32 %v1750, %v1773
      %v1787 = vmul.f32 %v1751, %v1773
      %v1788 = vmul.f32 %v1752, %v1773
      %v1789 = vmul.f32 %v1753, %v1773
      %v1790 = vmul.f32 %v1754, %v1773
      %v1791 = vmul.f32 %v1755, %v1773
      %v1792 = vmul.f32 %v1756, %v1773
      %v1793 = vmul.f32 %v1757, %v1773
      %v1794 = vmul.f32 %v1758, %v1773
      %v1795 = vmul.f32 %v1759, %v1773
      %v1796 = vmul.f32 %v1760, %v1773
      %v1797 = vmul.f32 %v1761, %v1773
      %v1798 = vmul.f32 %v1762, %v1773
      %v1799 = vmul.f32 %v1763, %v1773
      %v1800 = vmul.f32 %v1764, %v1773
      %v1801 = vmul.f32 %v1765, %v1773
      %v1802 = vmul.f32 %v1766, %v1773
      %v1803 = vmul.f32 %v1767, %v1773
      %v1804 = vmul.f32 %v1768, %v1773
      %v1805 = vmul.f32 %v1769, %v1773
      %v1806 = vmul.f32 %v1770, %v1773
      %v1807 = vld [vmem:[%s5] sm:$0x1]
      %v1809 = vperm.slane %v1807, 0
      %v1811 = vadd.f32 %v1775, %v1809
      %v1812 = vadd.f32 %v1776, %v1809
      %v1813 = vadd.f32 %v1777, %v1809
      %v1814 = vadd.f32 %v1778, %v1809
      %v1815 = vadd.f32 %v1779, %v1809
      %v1816 = vadd.f32 %v1780, %v1809
      %v1817 = vadd.f32 %v1781, %v1809
      %v1818 = vadd.f32 %v1782, %v1809
      %v1819 = vadd.f32 %v1783, %v1809
      %v1820 = vadd.f32 %v1784, %v1809
      %v1821 = vadd.f32 %v1785, %v1809
      %v1822 = vadd.f32 %v1786, %v1809
      %v1823 = vadd.f32 %v1787, %v1809
      %v1824 = vadd.f32 %v1788, %v1809
      %v1825 = vadd.f32 %v1789, %v1809
      %v1826 = vadd.f32 %v1790, %v1809
      %v1827 = vadd.f32 %v1791, %v1809
      %v1828 = vadd.f32 %v1792, %v1809
      %v1829 = vadd.f32 %v1793, %v1809
      %v1830 = vadd.f32 %v1794, %v1809
      %v1831 = vadd.f32 %v1795, %v1809
      %v1832 = vadd.f32 %v1796, %v1809
      %v1833 = vadd.f32 %v1797, %v1809
      %v1834 = vadd.f32 %v1798, %v1809
      %v1835 = vadd.f32 %v1799, %v1809
      %v1836 = vadd.f32 %v1800, %v1809
      %v1837 = vadd.f32 %v1801, %v1809
      %v1838 = vadd.f32 %v1802, %v1809
      %v1839 = vadd.f32 %v1803, %v1809
      %v1840 = vadd.f32 %v1804, %v1809
      %v1841 = vadd.f32 %v1805, %v1809
      %v1842 = vadd.f32 %v1806, %v1809
      %v1843 = vstv %s327
      %v1844 = vmul.f32 %v1843, %v1675
      %v1845 = vmul.f32 %v1843, %v1676
      %v1846 = vmul.f32 %v1843, %v1677
      %v1847 = vmul.f32 %v1843, %v1678
      %v1848 = vmul.f32 %v1843, %v1679
      %v1849 = vmul.f32 %v1843, %v1680
      %v1850 = vmul.f32 %v1843, %v1681
      %v1851 = vmul.f32 %v1843, %v1682
      %v1852 = vmul.f32 %v1843, %v1683
      %v1853 = vmul.f32 %v1843, %v1684
      %v1854 = vmul.f32 %v1843, %v1685
      %v1855 = vmul.f32 %v1843, %v1686
      %v1856 = vmul.f32 %v1843, %v1687
      %v1857 = vmul.f32 %v1843, %v1688
      %v1858 = vmul.f32 %v1843, %v1689
      %v1859 = vmul.f32 %v1843, %v1690
      %v1860 = vmul.f32 %v1843, %v1691
      %v1861 = vmul.f32 %v1843, %v1692
      %v1862 = vmul.f32 %v1843, %v1693
      %v1863 = vmul.f32 %v1843, %v1694
      %v1864 = vmul.f32 %v1843, %v1695
      %v1865 = vmul.f32 %v1843, %v1696
      %v1866 = vmul.f32 %v1843, %v1697
      %v1867 = vmul.f32 %v1843, %v1698
      %v1868 = vmul.f32 %v1843, %v1699
      %v1869 = vmul.f32 %v1843, %v1700
      %v1870 = vmul.f32 %v1843, %v1701
      %v1871 = vmul.f32 %v1843, %v1702
      %v1872 = vmul.f32 %v1843, %v1703
      %v1873 = vmul.f32 %v1843, %v1704
      %v1874 = vmul.f32 %v1843, %v1705
      %v1875 = vmul.f32 %v1843, %v1706
      %v1876 = vadd.f32 %v1844, %v1811
      %v1877 = vadd.f32 %v1845, %v1812
      %v1878 = vadd.f32 %v1846, %v1813
      %v1879 = vadd.f32 %v1847, %v1814
      %v1880 = vadd.f32 %v1848, %v1815
      %v1881 = vadd.f32 %v1849, %v1816
      %v1882 = vadd.f32 %v1850, %v1817
      %v1883 = vadd.f32 %v1851, %v1818
      %v1884 = vadd.f32 %v1852, %v1819
      %v1885 = vadd.f32 %v1853, %v1820
      %v1886 = vadd.f32 %v1854, %v1821
      %v1887 = vadd.f32 %v1855, %v1822
      %v1888 = vadd.f32 %v1856, %v1823
      %v1889 = vadd.f32 %v1857, %v1824
      %v1890 = vadd.f32 %v1858, %v1825
      %v1891 = vadd.f32 %v1859, %v1826
      %v1892 = vadd.f32 %v1860, %v1827
      %v1893 = vadd.f32 %v1861, %v1828
      %v1894 = vadd.f32 %v1862, %v1829
      %v1895 = vadd.f32 %v1863, %v1830
      %v1896 = vadd.f32 %v1864, %v1831
      %v1897 = vadd.f32 %v1865, %v1832
      %v1898 = vadd.f32 %v1866, %v1833
      %v1899 = vadd.f32 %v1867, %v1834
      %v1900 = vadd.f32 %v1868, %v1835
      %v1901 = vadd.f32 %v1869, %v1836
      %v1902 = vadd.f32 %v1870, %v1837
      %v1903 = vadd.f32 %v1871, %v1838
      %v1904 = vadd.f32 %v1872, %v1839
      %v1905 = vadd.f32 %v1873, %v1840
      %v1906 = vadd.f32 %v1874, %v1841
      %v1907 = vadd.f32 %v1875, %v1842
      %1940 = vrot.lane.b32.xlu0 %v1811, 124
      %v1941 = vpop.permute.xlu0 %1940
      %1942 = vrot.lane.b32.xlu0 %v1812, 124
      %v1943 = vpop.permute.xlu0 %1942
      %1944 = vrot.lane.b32.xlu0 %v1813, 124
      %v1945 = vpop.permute.xlu0 %1944
      %1946 = vrot.lane.b32.xlu0 %v1814, 124
      %v1947 = vpop.permute.xlu0 %1946
      %1948 = vrot.lane.b32.xlu0 %v1815, 124
      %v1949 = vpop.permute.xlu0 %1948
      %1950 = vrot.lane.b32.xlu0 %v1816, 124
      %v1951 = vpop.permute.xlu0 %1950
      %1952 = vrot.lane.b32.xlu0 %v1817, 124
      %v1953 = vpop.permute.xlu0 %1952
      %1954 = vrot.lane.b32.xlu0 %v1818, 124
      %v1955 = vpop.permute.xlu0 %1954
      %1956 = vrot.lane.b32.xlu0 %v1819, 124
      %v1957 = vpop.permute.xlu0 %1956
      %1958 = vrot.lane.b32.xlu0 %v1820, 124
      %v1959 = vpop.permute.xlu0 %1958
      %1960 = vrot.lane.b32.xlu0 %v1821, 124
      %v1961 = vpop.permute.xlu0 %1960
      %1962 = vrot.lane.b32.xlu0 %v1822, 124
      %v1963 = vpop.permute.xlu0 %1962
      %1964 = vrot.lane.b32.xlu0 %v1823, 124
      %v1965 = vpop.permute.xlu0 %1964
      %1966 = vrot.lane.b32.xlu0 %v1824, 124
      %v1967 = vpop.permute.xlu0 %1966
      %1968 = vrot.lane.b32.xlu0 %v1825, 124
      %v1969 = vpop.permute.xlu0 %1968
      %1970 = vrot.lane.b32.xlu0 %v1826, 124
      %v1971 = vpop.permute.xlu0 %1970
      %1972 = vrot.lane.b32.xlu0 %v1827, 124
      %v1973 = vpop.permute.xlu0 %1972
      %1974 = vrot.lane.b32.xlu0 %v1828, 124
      %v1975 = vpop.permute.xlu0 %1974
      %1976 = vrot.lane.b32.xlu0 %v1829, 124
      %v1977 = vpop.permute.xlu0 %1976
      %1978 = vrot.lane.b32.xlu0 %v1830, 124
      %v1979 = vpop.permute.xlu0 %1978
      %1980 = vrot.lane.b32.xlu0 %v1831, 124
      %v1981 = vpop.permute.xlu0 %1980
      %1982 = vrot.lane.b32.xlu0 %v1832, 124
      %v1983 = vpop.permute.xlu0 %1982
      %1984 = vrot.lane.b32.xlu0 %v1833, 124
      %v1985 = vpop.permute.xlu0 %1984
      %1986 = vrot.lane.b32.xlu0 %v1834, 124
      %v1987 = vpop.permute.xlu0 %1986
      %1988 = vrot.lane.b32.xlu0 %v1835, 124
      %v1989 = vpop.permute.xlu0 %1988
      %1990 = vrot.lane.b32.xlu0 %v1836, 124
      %v1991 = vpop.permute.xlu0 %1990
      %1992 = vrot.lane.b32.xlu0 %v1837, 124
      %v1993 = vpop.permute.xlu0 %1992
      %1994 = vrot.lane.b32.xlu0 %v1838, 124
      %v1995 = vpop.permute.xlu0 %1994
      %1996 = vrot.lane.b32.xlu0 %v1839, 124
      %v1997 = vpop.permute.xlu0 %1996
      %1998 = vrot.lane.b32.xlu0 %v1840, 124
      %v1999 = vpop.permute.xlu0 %1998
      %2000 = vrot.lane.b32.xlu0 %v1841, 124
      %v2001 = vpop.permute.xlu0 %2000
      %2002 = vrot.lane.b32.xlu0 %v1842, 124
      %v2003 = vpop.permute.xlu0 %2002
      %v2036 = vadd.f32 %v1876, %v1941
      %v2037 = vadd.f32 %v1877, %v1943
      %v2038 = vadd.f32 %v1878, %v1945
      %v2039 = vadd.f32 %v1879, %v1947
      %v2040 = vadd.f32 %v1880, %v1949
      %v2041 = vadd.f32 %v1881, %v1951
      %v2042 = vadd.f32 %v1882, %v1953
      %v2043 = vadd.f32 %v1883, %v1955
      %v2044 = vadd.f32 %v1884, %v1957
      %v2045 = vadd.f32 %v1885, %v1959
      %v2046 = vadd.f32 %v1886, %v1961
      %v2047 = vadd.f32 %v1887, %v1963
      %v2048 = vadd.f32 %v1888, %v1965
      %v2049 = vadd.f32 %v1889, %v1967
      %v2050 = vadd.f32 %v1890, %v1969
      %v2051 = vadd.f32 %v1891, %v1971
      %v2052 = vadd.f32 %v1892, %v1973
      %v2053 = vadd.f32 %v1893, %v1975
      %v2054 = vadd.f32 %v1894, %v1977
      %v2055 = vadd.f32 %v1895, %v1979
      %v2056 = vadd.f32 %v1896, %v1981
      %v2057 = vadd.f32 %v1897, %v1983
      %v2058 = vadd.f32 %v1898, %v1985
      %v2059 = vadd.f32 %v1899, %v1987
      %v2060 = vadd.f32 %v1900, %v1989
      %v2061 = vadd.f32 %v1901, %v1991
      %v2062 = vadd.f32 %v1902, %v1993
      %v2063 = vadd.f32 %v1903, %v1995
      %v2064 = vadd.f32 %v1904, %v1997
      %v2065 = vadd.f32 %v1905, %v1999
      %v2066 = vadd.f32 %v1906, %v2001
      %v2067 = vadd.f32 %v1907, %v2003
      %v2068 = vld [vmem:[%s6] sm:$0x1]
      %v2070 = vperm.slane %v2068, 0
      %v2072 = vmul.f32 %v1643, %v2070
      %v2073 = vmul.f32 %v1644, %v2070
      %v2074 = vmul.f32 %v1645, %v2070
      %v2075 = vmul.f32 %v1646, %v2070
      %v2076 = vmul.f32 %v1647, %v2070
      %v2077 = vmul.f32 %v1648, %v2070
      %v2078 = vmul.f32 %v1649, %v2070
      %v2079 = vmul.f32 %v1650, %v2070
      %v2080 = vmul.f32 %v1651, %v2070
      %v2081 = vmul.f32 %v1652, %v2070
      %v2082 = vmul.f32 %v1653, %v2070
      %v2083 = vmul.f32 %v1654, %v2070
      %v2084 = vmul.f32 %v1655, %v2070
      %v2085 = vmul.f32 %v1656, %v2070
      %v2086 = vmul.f32 %v1657, %v2070
      %v2087 = vmul.f32 %v1658, %v2070
      %v2088 = vmul.f32 %v1659, %v2070
      %v2089 = vmul.f32 %v1660, %v2070
      %v2090 = vmul.f32 %v1661, %v2070
      %v2091 = vmul.f32 %v1662, %v2070
      %v2092 = vmul.f32 %v1663, %v2070
      %v2093 = vmul.f32 %v1664, %v2070
      %v2094 = vmul.f32 %v1665, %v2070
      %v2095 = vmul.f32 %v1666, %v2070
      %v2096 = vmul.f32 %v1667, %v2070
      %v2097 = vmul.f32 %v1668, %v2070
      %v2098 = vmul.f32 %v1669, %v2070
      %v2099 = vmul.f32 %v1670, %v2070
      %v2100 = vmul.f32 %v1671, %v2070
      %v2101 = vmul.f32 %v1672, %v2070
      %v2102 = vmul.f32 %v1673, %v2070
      %v2103 = vmul.f32 %v1674, %v2070
      %v2104 = vadd.f32 %v2036, %v2072
      %v2105 = vadd.f32 %v2037, %v2073
      %v2106 = vadd.f32 %v2038, %v2074
      %v2107 = vadd.f32 %v2039, %v2075
      %v2108 = vadd.f32 %v2040, %v2076
      %v2109 = vadd.f32 %v2041, %v2077
      %v2110 = vadd.f32 %v2042, %v2078
      %v2111 = vadd.f32 %v2043, %v2079
      %v2112 = vadd.f32 %v2044, %v2080
      %v2113 = vadd.f32 %v2045, %v2081
      %v2114 = vadd.f32 %v2046, %v2082
      %v2115 = vadd.f32 %v2047, %v2083
      %v2116 = vadd.f32 %v2048, %v2084
      %v2117 = vadd.f32 %v2049, %v2085
      %v2118 = vadd.f32 %v2050, %v2086
      %v2119 = vadd.f32 %v2051, %v2087
      %v2120 = vadd.f32 %v2052, %v2088
      %v2121 = vadd.f32 %v2053, %v2089
      %v2122 = vadd.f32 %v2054, %v2090
      %v2123 = vadd.f32 %v2055, %v2091
      %v2124 = vadd.f32 %v2056, %v2092
      %v2125 = vadd.f32 %v2057, %v2093
      %v2126 = vadd.f32 %v2058, %v2094
      %v2127 = vadd.f32 %v2059, %v2095
      %v2128 = vadd.f32 %v2060, %v2096
      %v2129 = vadd.f32 %v2061, %v2097
      %v2130 = vadd.f32 %v2062, %v2098
      %v2131 = vadd.f32 %v2063, %v2099
      %v2132 = vadd.f32 %v2064, %v2100
      %v2133 = vadd.f32 %v2065, %v2101
      %v2134 = vadd.f32 %v2066, %v2102
      %v2135 = vadd.f32 %v2067, %v2103
      %v2136 = vld [vmem:[%s7] sm:$0x1]
      %v2138 = vperm.slane %v2136, 0
      %v2140 = vadd.f32 %v2104, %v2138
      %v2141 = vadd.f32 %v2105, %v2138
      %v2142 = vadd.f32 %v2106, %v2138
      %v2143 = vadd.f32 %v2107, %v2138
      %v2144 = vadd.f32 %v2108, %v2138
      %v2145 = vadd.f32 %v2109, %v2138
      %v2146 = vadd.f32 %v2110, %v2138
      %v2147 = vadd.f32 %v2111, %v2138
      %v2148 = vadd.f32 %v2112, %v2138
      %v2149 = vadd.f32 %v2113, %v2138
      %v2150 = vadd.f32 %v2114, %v2138
      %v2151 = vadd.f32 %v2115, %v2138
      %v2152 = vadd.f32 %v2116, %v2138
      %v2153 = vadd.f32 %v2117, %v2138
      %v2154 = vadd.f32 %v2118, %v2138
      %v2155 = vadd.f32 %v2119, %v2138
      %v2156 = vadd.f32 %v2120, %v2138
      %v2157 = vadd.f32 %v2121, %v2138
      %v2158 = vadd.f32 %v2122, %v2138
      %v2159 = vadd.f32 %v2123, %v2138
      %v2160 = vadd.f32 %v2124, %v2138
      %v2161 = vadd.f32 %v2125, %v2138
      %v2162 = vadd.f32 %v2126, %v2138
      %v2163 = vadd.f32 %v2127, %v2138
      %v2164 = vadd.f32 %v2128, %v2138
      %v2165 = vadd.f32 %v2129, %v2138
      %v2166 = vadd.f32 %v2130, %v2138
      %v2167 = vadd.f32 %v2131, %v2138
      %v2168 = vadd.f32 %v2132, %v2138
      %v2169 = vadd.f32 %v2133, %v2138
      %v2170 = vadd.f32 %v2134, %v2138
      %v2171 = vadd.f32 %v2135, %v2138
      %2172 = vst.msk [vmem:[%s326] sm:$0xff] %vm360, %v2140
      %2173 = vst.msk [vmem:[%s326 + $0x8] sm:$0xff] %vm360, %v2141
      %2174 = vst.msk [vmem:[%s326 + $0x10] sm:$0xff] %vm360, %v2142
      %2175 = vst.msk [vmem:[%s326 + $0x18] sm:$0xff] %vm360, %v2143
      %2176 = vst.msk [vmem:[%s326 + $0x20] sm:$0xff] %vm360, %v2144
      %2177 = vst.msk [vmem:[%s326 + $0x28] sm:$0xff] %vm360, %v2145
      %2178 = vst.msk [vmem:[%s326 + $0x30] sm:$0xff] %vm360, %v2146
      %2179 = vst.msk [vmem:[%s326 + $0x38] sm:$0xff] %vm360, %v2147
      %2180 = vst.msk [vmem:[%s326 + $0x40] sm:$0xff] %vm360, %v2148
      %2181 = vst.msk [vmem:[%s326 + $0x48] sm:$0xff] %vm360, %v2149
      %2182 = vst.msk [vmem:[%s326 + $0x50] sm:$0xff] %vm360, %v2150
      %2183 = vst.msk [vmem:[%s326 + $0x58] sm:$0xff] %vm360, %v2151
      %2184 = vst.msk [vmem:[%s326 + $0x60] sm:$0xff] %vm360, %v2152
      %2185 = vst.msk [vmem:[%s326 + $0x68] sm:$0xff] %vm360, %v2153
      %2186 = vst.msk [vmem:[%s326 + $0x70] sm:$0xff] %vm360, %v2154
      %2187 = vst.msk [vmem:[%s326 + $0x78] sm:$0xff] %vm360, %v2155
      %2188 = vst.msk [vmem:[%s326 + $0x80] sm:$0xff] %vm360, %v2156
      %2189 = vst.msk [vmem:[%s326 + $0x88] sm:$0xff] %vm360, %v2157
      %2190 = vst.msk [vmem:[%s326 + $0x90] sm:$0xff] %vm360, %v2158
      %2191 = vst.msk [vmem:[%s326 + $0x98] sm:$0xff] %vm360, %v2159
      %2192 = vst.msk [vmem:[%s326 + $0xa0] sm:$0xff] %vm360, %v2160
      %2193 = vst.msk [vmem:[%s326 + $0xa8] sm:$0xff] %vm360, %v2161
      %2194 = vst.msk [vmem:[%s326 + $0xb0] sm:$0xff] %vm360, %v2162
      %2195 = vst.msk [vmem:[%s326 + $0xb8] sm:$0xff] %vm360, %v2163
      %2196 = vst.msk [vmem:[%s326 + $0xc0] sm:$0xff] %vm360, %v2164
      %2197 = vst.msk [vmem:[%s326 + $0xc8] sm:$0xff] %vm360, %v2165
      %2198 = vst.msk [vmem:[%s326 + $0xd0] sm:$0xff] %vm360, %v2166
      %2199 = vst.msk [vmem:[%s326 + $0xd8] sm:$0xff] %vm360, %v2167
      %2200 = vst.msk [vmem:[%s326 + $0xe0] sm:$0xff] %vm360, %v2168
      %2201 = vst.msk [vmem:[%s326 + $0xe8] sm:$0xff] %vm360, %v2169
      %2202 = vst.msk [vmem:[%s326 + $0xf0] sm:$0xff] %vm360, %v2170
      %2203 = vst.msk [vmem:[%s326 + $0xf8] sm:$0xff] %vm360, %v2171
      %p2204 = scmp.lt.s32.totalorder %s20, 1
      %s2205 = scalar_select %p2204, %s20, 1
      %s2206 = smul.addr %s2205, 32
      %s2207 = smul.addr %s2206, 8
      %s2208 = scalar_lea.vmem %s8, %s2207
      // Predicated region
      $region53: #{mixed_op_forward.3} parent=51 // pred_check
        %p2209 = pneg %p216
      $region54: #{mixed_op_forward.3} parent=51 // pred_check_branch
        %2211 = sbr.rel (%p2209) target = $region56
      $region55: #{mixed_op_forward.3} parent=51 // pred_region
        _
      $region56: #{mixed_op_forward.3} parent=51 // pred_fallthru
        _
    $region52: #{mixed_op_forward.3} parent=5 // pred_fallthru
      _
    %p2212 = scmp.le.s32.totalorder 2, %s15
    // Predicated region
    $region57: #{mixed_op_forward.3} parent=5 // pred_check
      %p2213 = pneg %p2212
    $region58: #{mixed_op_forward.3} parent=5 // pred_check_branch
      %2215 = sbr.rel (%p2213) target = $region60
    $region59: #{mixed_op_forward.3} parent=5 // pred_region
      %s2216 = ssub.s32 %s15, 2
      // Predicated region
      $region61: #{mixed_op_forward.3} parent=59 // pred_check
        %p2217 = pneg %p222
      $region62: #{mixed_op_forward.3} parent=59 // pred_check_branch
        %2219 = sbr.rel (%p2217) target = $region64
      $region63: #{mixed_op_forward.3} parent=59 // pred_region
        %p2220 = scmp.lt.s32.totalorder %s21, 1
        %s2221 = scalar_select %p2220, %s21, 1
        %s2222 = smul.addr %s2221, 32
        %s2223 = smul.addr %s2222, 8
        %s2224 = scalar_lea.vmem %s8, %s2223
      $region64: #{mixed_op_forward.3} parent=59 // pred_fallthru
        _
    $region60: #{mixed_op_forward.3} parent=5 // pred_fallthru
      _
  $region6: #{mixed_op_forward.3} parent=0 // loop_footer
    %s19 = sadd.s32 1, %s15
  $region7: #{mixed_op_forward.3} parent=0 // loop_footer_branch
    %14 = sbr.rel target = $region3
  $region8: #{mixed_op_forward.3} parent=0 // loop_exit
    _

// kernel: mixed_op_forward.2
$region0: #{mixed_op_forward.2}
  #allocation0 [shape = 'u32[]', space=smem, size = 0x4, offset = 0x4, fixed_abs, tag = 'smem constant byte address 0x4 - core index']
  #allocation1 [shape = 'u32[72,128]{1,0:T(1,128)}', space=vmem, size = 0x9000, scoped, tag = 'internal scratch']
  #allocation2 [shape = 'bf16[1,18,18,4]{3,2,1,0:T(8,128)(2,1)}', space=vmem, size = 0x1b000, scoped, tag = 'scratch operand']
  #allocation3 [shape = 'bf16[256,36]{1,0:T(8,128)(2,1)}', space=vmem, size = 0x10000, scoped, tag = 'scratch operand']
  #allocation4 [shape = 'f32[1,16,16,4]{3,2,1,0:T(8,128)}', space=vmem, size = 0x20000, scoped, tag = 'scratch operand']
  %s0 = inlined_call_operand.vmem [shape: f32[2,18,18,4], index: 0, kind: input, shape index: {}]
  %s1 = inlined_call_operand.vmem [shape: bf16[36,8], index: 1, kind: input, shape index: {}]
  %s2 = inlined_call_operand.vmem [shape: f32[1,16,16,1], index: 2, kind: input, shape index: {}]
  %s3 = inlined_call_operand.vmem [shape: bf16[2,16,16,8], index: 3, kind: output, shape index: {0}]
  %s4 = inlined_call_operand.vmem [shape: f32[2,2,8], index: 4, kind: output, shape index: {1}]
  %s5 = inlined_call_operand.vmem [shape: f32[2,2,4], index: 5, kind: output, shape index: {2}]
  %6 = xla_tuple %s3, %s4, %s5
  %s7 = sld [smem:[#allocation0]]
  $region61: #{mixed_op_forward.2} parent=0
    _
  %s9 = ssub.s32 1, %s7
  %s10 = scalar_select 0, %s9, %s7
  loop: start=0, step=1, limit=4
  $region2: #{mixed_op_forward.2} parent=0 // loop_pre_header
    _
  $region3: #{mixed_op_forward.2} parent=0 // loop_header
    %s12 = sphi 0, %s16
    %p13 = scmp.ge.s32.totalorder %s12, 4
    %s22 = sphi 0, %s24
    %s25 = sphi 0, %s22
    %s26 = sphi 0, %s25
    %s42 = sphi 0, %s26
    %s46 = sphi 0, %s46
    %s48 = sphi 0, %s46
    %s49 = sphi 0, %s48
    %s63 = sphi 0, %s49
    %s67 = sphi 0, %s67
    %s69 = sphi 0, %s67
    %s70 = sphi 0, %s69
    %s84 = sphi 0, %s70
    %s90 = sphi 0, %s92
    %s93 = sphi 0, %s90
    %s94 = sphi 0, %s93
    %s110 = sphi 0, %s94
    %s116 = sphi 0, %s118
    %s119 = sphi 0, %s116
    %s120 = sphi 0, %s119
    %s136 = sphi 0, %s120
    %s142 = sphi 0, %s144
    %s145 = sphi 0, %s142
    %s146 = sphi 0, %s145
    %s162 = sphi 0, %s146
  $region4: #{mixed_op_forward.2} parent=0 // loop_header_branch
    %15 = sbr.rel (%p13) target = $region8
  $region5: #{mixed_op_forward.2} parent=0 // loop_body
    %s17 = ssub.s32 %s12, 1
    %s18 = ssub.s32 %s12, 2
    %s19 = sadd.s32 %s12, 1
    %s20 = ssub.s32 %s12, %s19
    %p21 = scmp.eq.s32.totalorder %s20, 0
    %s23 = sadd.s32 %s22, 1
    %s24 = scalar_select %p21, %s22, %s23
    %p27 = pneg %p21
    %p28 = scmp.eq.s32.totalorder %s12, 1
    %p29 = por %p27, %p28
    %p30 = scmp.ne.s32.totalorder %s22, %s25
    %p31 = scmp.eq.s32.totalorder %s12, 0
    %p32 = por %p30, %p31
    %p33 = scmp.ne.s32.totalorder %s22, %s25
    %p34 = scmp.eq.s32.totalorder %s17, 1
    %p35 = por %p33, %p34
    %p36 = scmp.ne.s32.totalorder %s25, %s26
    %p37 = scmp.eq.s32.totalorder %s17, 0
    %p38 = por %p36, %p37
    %p39 = scmp.ne.s32.totalorder %s25, %s26
    %p40 = scmp.eq.s32.totalorder %s18, 1
    %p41 = por %p39, %p40
    %p43 = scmp.ne.s32.totalorder %s26, %s42
    %p44 = scmp.eq.s32.totalorder %s18, 0
    %p45 = por %p43, %p44
    %s47 = sadd.s32 %s46, 1
    %p50 = scmp.eq.s32.totalorder %s12, 1
    %p51 = scmp.ne.s32.totalorder %s46, %s48
    %p52 = scmp.eq.s32.totalorder %s12, 0
    %p53 = por %p51, %p52
    %p54 = scmp.ne.s32.totalorder %s46, %s48
    %p55 = scmp.eq.s32.totalorder %s17, 1
    %p56 = por %p54, %p55
    %p57 = scmp.ne.s32.totalorder %s48, %s49
    %p58 = scmp.eq.s32.totalorder %s17, 0
    %p59 = por %p57, %p58
    %p60 = scmp.ne.s32.totalorder %s48, %s49
    %p61 = scmp.eq.s32.totalorder %s18, 1
    %p62 = por %p60, %p61
    %p64 = scmp.ne.s32.totalorder %s49, %s63
    %p65 = scmp.eq.s32.totalorder %s18, 0
    %p66 = por %p64, %p65
    %s68 = sadd.s32 %s67, 1
    %p71 = scmp.eq.s32.totalorder %s12, 1
    %p72 = scmp.ne.s32.totalorder %s67, %s69
    %p73 = scmp.eq.s32.totalorder %s12, 0
    %p74 = por %p72, %p73
    %p75 = scmp.ne.s32.totalorder %s67, %s69
    %p76 = scmp.eq.s32.totalorder %s17, 1
    %p77 = por %p75, %p76
    %p78 = scmp.ne.s32.totalorder %s69, %s70
    %p79 = scmp.eq.s32.totalorder %s17, 0
    %p80 = por %p78, %p79
    %p81 = scmp.ne.s32.totalorder %s69, %s70
    %p82 = scmp.eq.s32.totalorder %s18, 1
    %p83 = por %p81, %p82
    %p85 = scmp.ne.s32.totalorder %s70, %s84
    %p86 = scmp.eq.s32.totalorder %s18, 0
    %p87 = por %p85, %p86
    %s88 = ssub.s32 %s12, %s19
    %p89 = scmp.eq.s32.totalorder %s88, 0
    %s91 = sadd.s32 %s90, 1
    %s92 = scalar_select %p89, %s90, %s91
    %p95 = pneg %p89
    %p96 = scmp.eq.s32.totalorder %s12, 1
    %p97 = por %p95, %p96
    %p98 = scmp.ne.s32.totalorder %s90, %s93
    %p99 = scmp.eq.s32.totalorder %s12, 0
    %p100 = por %p98, %p99
    %p101 = scmp.ne.s32.totalorder %s90, %s93
    %p102 = scmp.eq.s32.totalorder %s17, 1
    %p103 = por %p101, %p102
    %p104 = scmp.ne.s32.totalorder %s93, %s94
    %p105 = scmp.eq.s32.totalorder %s17, 0
    %p106 = por %p104, %p105
    %p107 = scmp.ne.s32.totalorder %s93, %s94
    %p108 = scmp.eq.s32.totalorder %s18, 1
    %p109 = por %p107, %p108
    %p111 = scmp.ne.s32.totalorder %s94, %s110
    %p112 = scmp.eq.s32.totalorder %s18, 0
    %p113 = por %p111, %p112
    %s114 = ssub.s32 %s12, %s19
    %p115 = scmp.eq.s32.totalorder %s114, 0
    %s117 = sadd.s32 %s116, 1
    %s118 = scalar_select %p115, %s116, %s117
    %p121 = pneg %p115
    %p122 = scmp.eq.s32.totalorder %s12, 1
    %p123 = por %p121, %p122
    %p124 = scmp.ne.s32.totalorder %s116, %s119
    %p125 = scmp.eq.s32.totalorder %s12, 0
    %p126 = por %p124, %p125
    %p127 = scmp.ne.s32.totalorder %s116, %s119
    %p128 = scmp.eq.s32.totalorder %s17, 1
    %p129 = por %p127, %p128
    %p130 = scmp.ne.s32.totalorder %s119, %s120
    %p131 = scmp.eq.s32.totalorder %s17, 0
    %p132 = por %p130, %p131
    %p133 = scmp.ne.s32.totalorder %s119, %s120
    %p134 = scmp.eq.s32.totalorder %s18, 1
    %p135 = por %p133, %p134
    %p137 = scmp.ne.s32.totalorder %s120, %s136
    %p138 = scmp.eq.s32.totalorder %s18, 0
    %p139 = por %p137, %p138
    %s140 = ssub.s32 %s12, %s19
    %p141 = scmp.eq.s32.totalorder %s140, 0
    %s143 = sadd.s32 %s142, 1
    %s144 = scalar_select %p141, %s142, %s143
    %p147 = pneg %p141
    %p148 = scmp.eq.s32.totalorder %s12, 1
    %p149 = por %p147, %p148
    %p150 = scmp.ne.s32.totalorder %s142, %s145
    %p151 = scmp.eq.s32.totalorder %s12, 0
    %p152 = por %p150, %p151
    %p153 = scmp.ne.s32.totalorder %s142, %s145
    %p154 = scmp.eq.s32.totalorder %s17, 1
    %p155 = por %p153, %p154
    %p156 = scmp.ne.s32.totalorder %s145, %s146
    %p157 = scmp.eq.s32.totalorder %s17, 0
    %p158 = por %p156, %p157
    %p159 = scmp.ne.s32.totalorder %s145, %s146
    %p160 = scmp.eq.s32.totalorder %s18, 1
    %p161 = por %p159, %p160
    %p163 = scmp.ne.s32.totalorder %s146, %s162
    %p164 = scmp.eq.s32.totalorder %s18, 0
    %p165 = por %p163, %p164
    %p166 = scmp.le.s32.totalorder 1, %s12
    %p167 = scmp.lt.s32.totalorder %s12, 3
    %p168 = pnand %p166, %p167
    %p169 = pneg %p168
    // Predicated region
    $region9: #{mixed_op_forward.2} parent=5 // pred_check
      _
    $region10: #{mixed_op_forward.2} parent=5 // pred_check_branch
      %171 = sbr.rel (%p168) target = $region12
    $region11: #{mixed_op_forward.2} parent=5 // pred_region
      %s172 = ssub.s32 %s12, 1
      // Predicated region
      $region13: #{mixed_op_forward.2} parent=11 // pred_check
        %p173 = pneg %p59
      $region14: #{mixed_op_forward.2} parent=11 // pred_check_branch
        %175 = sbr.rel (%p173) target = $region16
      $region15: #{mixed_op_forward.2} parent=11 // pred_region
        _
      $region16: #{mixed_op_forward.2} parent=11 // pred_fallthru
        _
      // Predicated region
      $region17: #{mixed_op_forward.2} parent=11 // pred_check
        %p176 = pneg %p80
      $region18: #{mixed_op_forward.2} parent=11 // pred_check_branch
        %178 = sbr.rel (%p176) target = $region20
      $region19: #{mixed_op_forward.2} parent=11 // pred_region
        _
      $region20: #{mixed_op_forward.2} parent=11 // pred_fallthru
        _
    $region12: #{mixed_op_forward.2} parent=5 // pred_fallthru
      _
    %p179 = scmp.lt.s32.totalorder %s12, 2
    // Predicated region
    $region21: #{mixed_op_forward.2} parent=5 // pred_check
      %p180 = pneg %p179
    $region22: #{mixed_op_forward.2} parent=5 // pred_check_branch
      %182 = sbr.rel (%p180) target = $region24
    $region23: #{mixed_op_forward.2} parent=5 // pred_region
      // Predicated region
      $region25: #{mixed_op_forward.2} parent=23 // pred_check
        %p183 = pneg %p32
      $region26: #{mixed_op_forward.2} parent=23 // pred_check_branch
        %185 = sbr.rel (%p183) target = $region28
      $region27: #{mixed_op_forward.2} parent=23 // pred_region
        %p186 = scmp.lt.s32.totalorder %s12, 1
        %s187 = scalar_select %p186, %s12, 1
        %s188 = smul.addr %s187, 54
        %s189 = smul.addr %s188, 8
        %s190 = scalar_lea.vmem %s0, %s189
      $region28: #{mixed_op_forward.2} parent=23 // pred_fallthru
        _
    $region24: #{mixed_op_forward.2} parent=5 // pred_fallthru
      _
    %p191 = scmp.le.s32.totalorder 1, %s12
    %p192 = scmp.lt.s32.totalorder %s12, 3
    %p193 = pnand %p191, %p192
    %p194 = pneg %p193
    // Predicated region
    $region29: #{mixed_op_forward.2} parent=5 // pred_check
      _
    $region30: #{mixed_op_forward.2} parent=5 // pred_check_branch
      %196 = sbr.rel (%p193) target = $region32
    $region31: #{mixed_op_forward.2} parent=5 // pred_region
      %s197 = ssub.s32 %s12, 1
      %p198 = scmp.lt.s32.totalorder %s17, 1
      %s199 = scalar_select %p198, %s17, 1
      %s200 = smul.addr %s199, 54
      %s201 = smul.addr %s200, 8
      %s202 = scalar_lea.vmem %s0, %s201
      %p203 = pneg %p38
      %p204 = pneg %p35
      %p205 = pneg %p59
      %p206 = pneg %p56
      %p207 = pneg %p80
      %p208 = pneg %p77
      %p209 = pneg %p106
      %p210 = pneg %p103
      %p211 = scmp.lt.s32.totalorder %s17, 1
      %s212 = scalar_select %p211, %s17, 1
      %s213 = smul.addr %s212, 32
      %s214 = smul.addr %s213, 4
      %s215 = scalar_lea.vmem %s3, %s214
      %p216 = pneg %p132
      %p217 = pneg %p129
      %p218 = scmp.lt.s32.totalorder %s17, 1
      %s219 = scalar_select %p218, %s17, 1
      %s220 = smul.addr %s219, 2
      %s221 = scalar_lea.vmem %s4, %s220
      %p222 = pneg %p158
      %p223 = pneg %p155
      %p224 = scmp.lt.s32.totalorder %s17, 1
      %s225 = scalar_select %p224, %s17, 1
      %s226 = smul.addr %s225, 2
      %s227 = scalar_lea.vmem %s5, %s226
      %p228 = scmp.lt.s32.totalorder %s17, 1
      %s229 = scalar_select %p228, %s17, 1
      %s230 = smul.addr %s229, 54
      %s231 = smul.addr %s230, 8
      %s232 = scalar_lea.vmem %s0, %s231
      %p233 = scmp.lt.s32.totalorder %s17, 1
      %s234 = scalar_select %p233, %s17, 1
      %s235 = smul.addr %s234, 32
      %s236 = smul.addr %s235, 4
      %s237 = scalar_lea.vmem %s3, %s236
      %p238 = scmp.lt.s32.totalorder %s17, 1
      %s239 = scalar_select %p238, %s17, 1
      %s240 = smul.addr %s239, 2
      %s241 = scalar_lea.vmem %s4, %s240
      %p242 = scmp.lt.s32.totalorder %s17, 1
      %s243 = scalar_select %p242, %s17, 1
      %s244 = smul.addr %s243, 2
      %s245 = scalar_lea.vmem %s5, %s244
      %v247 = vld [vmem:[%s232] sm:$0xff]
      %v248 = vld [vmem:[%s232 + $0x8] sm:$0xff]
      %v249 = vld [vmem:[%s232 + $0x10] sm:$0x3]
      %v250 = vld [vmem:[%s232 + $0x18] sm:$0xff]
      %v251 = vld [vmem:[%s232 + $0x20] sm:$0xff]
      %v252 = vld [vmem:[%s232 + $0x28] sm:$0x3]
      %v253 = vld [vmem:[%s232 + $0x30] sm:$0xff]
      %v254 = vld [vmem:[%s232 + $0x38] sm:$0xff]
      %v255 = vld [vmem:[%s232 + $0x40] sm:$0x3]
      %v256 = vld [vmem:[%s232 + $0x48] sm:$0xff]
      %v257 = vld [vmem:[%s232 + $0x50] sm:$0xff]
      %v258 = vld [vmem:[%s232 + $0x58] sm:$0x3]
      %v259 = vld [vmem:[%s232 + $0x60] sm:$0xff]
      %v260 = vld [vmem:[%s232 + $0x68] sm:$0xff]
      %v261 = vld [vmem:[%s232 + $0x70] sm:$0x3]
      %v262 = vld [vmem:[%s232 + $0x78] sm:$0xff]
      %v263 = vld [vmem:[%s232 + $0x80] sm:$0xff]
      %v264 = vld [vmem:[%s232 + $0x88] sm:$0x3]
      %v265 = vld [vmem:[%s232 + $0x90] sm:$0xff]
      %v266 = vld [vmem:[%s232 + $0x98] sm:$0xff]
      %v267 = vld [vmem:[%s232 + $0xa0] sm:$0x3]
      %v268 = vld [vmem:[%s232 + $0xa8] sm:$0xff]
      %v269 = vld [vmem:[%s232 + $0xb0] sm:$0xff]
      %v270 = vld [vmem:[%s232 + $0xb8] sm:$0x3]
      %v271 = vld [vmem:[%s232 + $0xc0] sm:$0xff]
      %v272 = vld [vmem:[%s232 + $0xc8] sm:$0xff]
      %v273 = vld [vmem:[%s232 + $0xd0] sm:$0x3]
      %v274 = vld [vmem:[%s232 + $0xd8] sm:$0xff]
      %v275 = vld [vmem:[%s232 + $0xe0] sm:$0xff]
      %v276 = vld [vmem:[%s232 + $0xe8] sm:$0x3]
      %v277 = vld [vmem:[%s232 + $0xf0] sm:$0xff]
      %v278 = vld [vmem:[%s232 + $0xf8] sm:$0xff]
      %v279 = vld [vmem:[%s232 + $0x100] sm:$0x3]
      %v280 = vld [vmem:[%s232 + $0x108] sm:$0xff]
      %v281 = vld [vmem:[%s232 + $0x110] sm:$0xff]
      %v282 = vld [vmem:[%s232 + $0x118] sm:$0x3]
      %v283 = vld [vmem:[%s232 + $0x120] sm:$0xff]
      %v284 = vld [vmem:[%s232 + $0x128] sm:$0xff]
      %v285 = vld [vmem:[%s232 + $0x130] sm:$0x3]
      %v286 = vld [vmem:[%s232 + $0x138] sm:$0xff]
      %v287 = vld [vmem:[%s232 + $0x140] sm:$0xff]
      %v288 = vld [vmem:[%s232 + $0x148] sm:$0x3]
      %v289 = vld [vmem:[%s232 + $0x150] sm:$0xff]
      %v290 = vld [vmem:[%s232 + $0x158] sm:$0xff]
      %v291 = vld [vmem:[%s232 + $0x160] sm:$0x3]
      %v292 = vld [vmem:[%s232 + $0x168] sm:$0xff]
      %v293 = vld [vmem:[%s232 + $0x170] sm:$0xff]
      %v294 = vld [vmem:[%s232 + $0x178] sm:$0x3]
      %v295 = vld [vmem:[%s232 + $0x180] sm:$0xff]
      %v296 = vld [vmem:[%s232 + $0x188] sm:$0xff]
      %v297 = vld [vmem:[%s232 + $0x190] sm:$0x3]
      %v298 = vld [vmem:[%s232 + $0x198] sm:$0xff]
      %v299 = vld [vmem:[%s232 + $0x1a0] sm:$0xff]
      %v300 = vld [vmem:[%s232 + $0x1a8] sm:$0x3]
      %v301 = vmax.f32 %v247, 0.0
      %v302 = vmax.f32 %v248, 0.0
      %v303 = vmax.f32 %v249, 0.0
      %v304 = vmax.f32 %v250, 0.0
      %v305 = vmax.f32 %v251, 0.0
      %v306 = vmax.f32 %v252, 0.0
      %v307 = vmax.f32 %v253, 0.0
      %v308 = vmax.f32 %v254, 0.0
      %v309 = vmax.f32 %v255, 0.0
      %v310 = vmax.f32 %v256, 0.0
      %v311 = vmax.f32 %v257, 0.0
      %v312 = vmax.f32 %v258, 0.0
      %v313 = vmax.f32 %v259, 0.0
      %v314 = vmax.f32 %v260, 0.0
      %v315 = vmax.f32 %v261, 0.0
      %v316 = vmax.f32 %v262, 0.0
      %v317 = vmax.f32 %v263, 0.0
      %v318 = vmax.f32 %v264, 0.0
      %v319 = vmax.f32 %v265, 0.0
      %v320 = vmax.f32 %v266, 0.0
      %v321 = vmax.f32 %v267, 0.0
      %v322 = vmax.f32 %v268, 0.0
      %v323 = vmax.f32 %v269, 0.0
      %v324 = vmax.f32 %v270, 0.0
      %v325 = vmax.f32 %v271, 0.0
      %v326 = vmax.f32 %v272, 0.0
      %v327 = vmax.f32 %v273, 0.0
      %v328 = vmax.f32 %v274, 0.0
      %v329 = vmax.f32 %v275, 0.0
      %v330 = vmax.f32 %v276, 0.0
      %v331 = vmax.f32 %v277, 0.0
      %v332 = vmax.f32 %v278, 0.0
      %v333 = vmax.f32 %v279, 0.0
      %v334 = vmax.f32 %v280, 0.0
      %v335 = vmax.f32 %v281, 0.0
      %v336 = vmax.f32 %v282, 0.0
      %v337 = vmax.f32 %v283, 0.0
      %v338 = vmax.f32 %v284, 0.0
      %v339 = vmax.f32 %v285, 0.0
      %v340 = vmax.f32 %v286, 0.0
      %v341 = vmax.f32 %v287, 0.0
      %v342 = vmax.f32 %v288, 0.0
      %v343 = vmax.f32 %v289, 0.0
      %v344 = vmax.f32 %v290, 0.0
      %v345 = vmax.f32 %v291, 0.0
      %v346 = vmax.f32 %v292, 0.0
      %v347 = vmax.f32 %v293, 0.0
      %v348 = vmax.f32 %v294, 0.0
      %v349 = vmax.f32 %v295, 0.0
      %v350 = vmax.f32 %v296, 0.0
      %v351 = vmax.f32 %v297, 0.0
      %v352 = vmax.f32 %v298, 0.0
      %v353 = vmax.f32 %v299, 0.0
      %v354 = vmax.f32 %v300, 0.0
      %v355 = vpack.c.bf16 %v301, %v301
      %v356 = vpack.c.bf16 %v302, %v302
      %v357 = vpack.c.bf16 %v303, %v303
      %v358 = vpack.c.bf16 %v304, %v304
      %v359 = vpack.c.bf16 %v305, %v305
      %v360 = vpack.c.bf16 %v306, %v306
      %v361 = vpack.c.bf16 %v307, %v307
      %v362 = vpack.c.bf16 %v308, %v308
      %v363 = vpack.c.bf16 %v309, %v309
      %v364 = vpack.c.bf16 %v310, %v310
      %v365 = vpack.c.bf16 %v311, %v311
      %v366 = vpack.c.bf16 %v312, %v312
      %v367 = vpack.c.bf16 %v313, %v313
      %v368 = vpack.c.bf16 %v314, %v314
      %v369 = vpack.c.bf16 %v315, %v315
      %v370 = vpack.c.bf16 %v316, %v316
      %v371 = vpack.c.bf16 %v317, %v317
      %v372 = vpack.c.bf16 %v318, %v318
      %v373 = vpack.c.bf16 %v319, %v319
      %v374 = vpack.c.bf16 %v320, %v320
      %v375 = vpack.c.bf16 %v321, %v321
      %v376 = vpack.c.bf16 %v322, %v322
      %v377 = vpack.c.bf16 %v323, %v323
      %v378 = vpack.c.bf16 %v324, %v324
      %v379 = vpack.c.bf16 %v325, %v325
      %v380 = vpack.c.bf16 %v326, %v326
      %v381 = vpack.c.bf16 %v327, %v327
      %v382 = vpack.c.bf16 %v328, %v328
      %v383 = vpack.c.bf16 %v329, %v329
      %v384 = vpack.c.bf16 %v330, %v330
      %v385 = vpack.c.bf16 %v331, %v331
      %v386 = vpack.c.bf16 %v332, %v332
      %v387 = vpack.c.bf16 %v333, %v333
      %v388 = vpack.c.bf16 %v334, %v334
      %v389 = vpack.c.bf16 %v335, %v335
      %v390 = vpack.c.bf16 %v336, %v336
      %v391 = vpack.c.bf16 %v337, %v337
      %v392 = vpack.c.bf16 %v338, %v338
      %v393 = vpack.c.bf16 %v339, %v339
      %v394 = vpack.c.bf16 %v340, %v340
      %v395 = vpack.c.bf16 %v341, %v341
      %v396 = vpack.c.bf16 %v342, %v342
      %v397 = vpack.c.bf16 %v343, %v343
      %v398 = vpack.c.bf16 %v344, %v344
      %v399 = vpack.c.bf16 %v345, %v345
      %v400 = vpack.c.bf16 %v346, %v346
      %v401 = vpack.c.bf16 %v347, %v347
      %v402 = vpack.c.bf16 %v348, %v348
      %v403 = vpack.c.bf16 %v349, %v349
      %v404 = vpack.c.bf16 %v350, %v350
      %v405 = vpack.c.bf16 %v351, %v351
      %v406 = vpack.c.bf16 %v352, %v352
      %v407 = vpack.c.bf16 %v353, %v353
      %v408 = vpack.c.bf16 %v354, %v354
      %vm409 = vcmask 27648
      %410 = vst.msk [vmem:[#allocation2] sm:$0xf] %vm409, %v355
      %411 = vst.msk [vmem:[#allocation2 + $0x4] sm:$0xf] %vm409, %v356
      %vm412 = vcmask 24576
      %413 = vst.msk [vmem:[#allocation2 + $0x8] sm:$0x1] %vm412, %v357
      %414 = vst.msk [vmem:[#allocation2 + $0xc] sm:$0xf] %vm409, %v358
      %415 = vst.msk [vmem:[#allocation2 + $0x10] sm:$0xf] %vm409, %v359
      %416 = vst.msk [vmem:[#allocation2 + $0x14] sm:$0x1] %vm412, %v360
      %417 = vst.msk [vmem:[#allocation2 + $0x18] sm:$0xf] %vm409, %v361
      %418 = vst.msk [vmem:[#allocation2 + $0x1c] sm:$0xf] %vm409, %v362
      %419 = vst.msk [vmem:[#allocation2 + $0x20] sm:$0x1] %vm412, %v363
      %420 = vst.msk [vmem:[#allocation2 + $0x24] sm:$0xf] %vm409, %v364
      %421 = vst.msk [vmem:[#allocation2 + $0x28] sm:$0xf] %vm409, %v365
      %422 = vst.msk [vmem:[#allocation2 + $0x2c] sm:$0x1] %vm412, %v366
      %423 = vst.msk [vmem:[#allocation2 + $0x30] sm:$0xf] %vm409, %v367
      %424 = vst.msk [vmem:[#allocation2 + $0x34] sm:$0xf] %vm409, %v368
      %425 = vst.msk [vmem:[#allocation2 + $0x38] sm:$0x1] %vm412, %v369
      %426 = vst.msk [vmem:[#allocation2 + $0x3c] sm:$0xf] %vm409, %v370
      %427 = vst.msk [vmem:[#allocation2 + $0x40] sm:$0xf] %vm409, %v371
      %428 = vst.msk [vmem:[#allocation2 + $0x44] sm:$0x1] %vm412, %v372
      %429 = vst.msk [vmem:[#allocation2 + $0x48] sm:$0xf] %vm409, %v373
      %430 = vst.msk [vmem:[#allocation2 + $0x4c] sm:$0xf] %vm409, %v374
      %431 = vst.msk [vmem:[#allocation2 + $0x50] sm:$0x1] %vm412, %v375
      %432 = vst.msk [vmem:[#allocation2 + $0x54] sm:$0xf] %vm409, %v376
      %433 = vst.msk [vmem:[#allocation2 + $0x58] sm:$0xf] %vm409, %v377
      %434 = vst.msk [vmem:[#allocation2 + $0x5c] sm:$0x1] %vm412, %v378
      %435 = vst.msk [vmem:[#allocation2 + $0x60] sm:$0xf] %vm409, %v379
      %436 = vst.msk [vmem:[#allocation2 + $0x64] sm:$0xf] %vm409, %v380
      %437 = vst.msk [vmem:[#allocation2 + $0x68] sm:$0x1] %vm412, %v381
      %438 = vst.msk [vmem:[#allocation2 + $0x6c] sm:$0xf] %vm409, %v382
      %439 = vst.msk [vmem:[#allocation2 + $0x70] sm:$0xf] %vm409, %v383
      %440 = vst.msk [vmem:[#allocation2 + $0x74] sm:$0x1] %vm412, %v384
      %441 = vst.msk [vmem:[#allocation2 + $0x78] sm:$0xf] %vm409, %v385
      %442 = vst.msk [vmem:[#allocation2 + $0x7c] sm:$0xf] %vm409, %v386
      %443 = vst.msk [vmem:[#allocation2 + $0x80] sm:$0x1] %vm412, %v387
      %444 = vst.msk [vmem:[#allocation2 + $0x84] sm:$0xf] %vm409, %v388
      %445 = vst.msk [vmem:[#allocation2 + $0x88] sm:$0xf] %vm409, %v389
      %446 = vst.msk [vmem:[#allocation2 + $0x8c] sm:$0x1] %vm412, %v390
      %447 = vst.msk [vmem:[#allocation2 + $0x90] sm:$0xf] %vm409, %v391
      %448 = vst.msk [vmem:[#allocation2 + $0x94] sm:$0xf] %vm409, %v392
      %449 = vst.msk [vmem:[#allocation2 + $0x98] sm:$0x1] %vm412, %v393
      %450 = vst.msk [vmem:[#allocation2 + $0x9c] sm:$0xf] %vm409, %v394
      %451 = vst.msk [vmem:[#allocation2 + $0xa0] sm:$0xf] %vm409, %v395
      %452 = vst.msk [vmem:[#allocation2 + $0xa4] sm:$0x1] %vm412, %v396
      %453 = vst.msk [vmem:[#allocation2 + $0xa8] sm:$0xf] %vm409, %v397
      %454 = vst.msk [vmem:[#allocation2 + $0xac] sm:$0xf] %vm409, %v398
      %455 = vst.msk [vmem:[#allocation2 + $0xb0] sm:$0x1] %vm412, %v399
      %456 = vst.msk [vmem:[#allocation2 + $0xb4] sm:$0xf] %vm409, %v400
      %457 = vst.msk [vmem:[#allocation2 + $0xb8] sm:$0xf] %vm409, %v401
      %458 = vst.msk [vmem:[#allocation2 + $0xbc] sm:$0x1] %vm412, %v402
      %459 = vst.msk [vmem:[#allocation2 + $0xc0] sm:$0xf] %vm409, %v403
      %460 = vst.msk [vmem:[#allocation2 + $0xc4] sm:$0xf] %vm409, %v404
      %461 = vst.msk [vmem:[#allocation2 + $0xc8] sm:$0x1] %vm412, %v405
      %462 = vst.msk [vmem:[#allocation2 + $0xcc] sm:$0xf] %vm409, %v406
      %463 = vst.msk [vmem:[#allocation2 + $0xd0] sm:$0xf] %vm409, %v407
      %464 = vst.msk [vmem:[#allocation2 + $0xd4] sm:$0x1] %vm412, %v408
      %v465 = vld [vmem:[#allocation2] sm:$0xf]
      %v466 = vld [vmem:[#allocation2 + $0x4] sm:$0xf]
      %v467 = vld [vmem:[#allocation2 + $0xc] sm:$0xf]
      %v468 = vld [vmem:[#allocation2 + $0x10] sm:$0xf]
      %v469 = vld [vmem:[#allocation2 + $0x18] sm:$0xf]
      %v470 = vld [vmem:[#allocation2 + $0x1c] sm:$0xf]
      %v471 = vld [vmem:[#allocation2 + $0x24] sm:$0xf]
      %v472 = vld [vmem:[#allocation2 + $0x28] sm:$0xf]
      %v473 = vld [vmem:[#allocation2 + $0x30] sm:$0xf]
      %v474 = vld [vmem:[#allocation2 + $0x34] sm:$0xf]
      %v475 = vld [vmem:[#allocation2 + $0x3c] sm:$0xf]
      %v476 = vld [vmem:[#allocation2 + $0x40] sm:$0xf]
      %v477 = vld [vmem:[#allocation2 + $0x48] sm:$0xf]
      %v478 = vld [vmem:[#allocation2 + $0x4c] sm:$0xf]
      %v479 = vld [vmem:[#allocation2 + $0x54] sm:$0xf]
      %v480 = vld [vmem:[#allocation2 + $0x58] sm:$0xf]
      %v481 = vld [vmem:[#allocation2 + $0x60] sm:$0xf]
      %v482 = vld [vmem:[#allocation2 + $0x64] sm:$0xf]
      %v483 = vld [vmem:[#allocation2 + $0x6c] sm:$0xf]
      %v484 = vld [vmem:[#allocation2 + $0x70] sm:$0xf]
      %v485 = vld [vmem:[#allocation2 + $0x78] sm:$0xf]
      %v486 = vld [vmem:[#allocation2 + $0x7c] sm:$0xf]
      %v487 = vld [vmem:[#allocation2 + $0x84] sm:$0xf]
      %v488 = vld [vmem:[#allocation2 + $0x88] sm:$0xf]
      %v489 = vld [vmem:[#allocation2 + $0x90] sm:$0xf]
      %v490 = vld [vmem:[#allocation2 + $0x94] sm:$0xf]
      %v491 = vld [vmem:[#allocation2 + $0x9c] sm:$0xf]
      %v492 = vld [vmem:[#allocation2 + $0xa0] sm:$0xf]
      %v493 = vld [vmem:[#allocation2 + $0xa8] sm:$0xf]
      %v494 = vld [vmem:[#allocation2 + $0xac] sm:$0xf]
      %v495 = vld [vmem:[#allocation2 + $0xb4] sm:$0xf]
      %v496 = vld [vmem:[#allocation2 + $0xb8] sm:$0xf]
      %497 = vst.msk [vmem:[#allocation3] sm:$0xf] %vm409, %v465
      %498 = vst.msk [vmem:[#allocation3 + $0x4] sm:$0xf] %vm409, %v466
      %499 = vst.msk [vmem:[#allocation3 + $0x8] sm:$0xf] %vm409, %v467
      %500 = vst.msk [vmem:[#allocation3 + $0xc] sm:$0xf] %vm409, %v468
      %501 = vst.msk [vmem:[#allocation3 + $0x10] sm:$0xf] %vm409, %v469
      %502 = vst.msk [vmem:[#allocation3 + $0x14] sm:$0xf] %vm409, %v470
      %503 = vst.msk [vmem:[#allocation3 + $0x18] sm:$0xf] %vm409, %v471
      %504 = vst.msk [vmem:[#allocation3 + $0x1c] sm:$0xf] %vm409, %v472
      %505 = vst.msk [vmem:[#allocation3 + $0x20] sm:$0xf] %vm409, %v473
      %506 = vst.msk [vmem:[#allocation3 + $0x24] sm:$0xf] %vm409, %v474
      %507 = vst.msk [vmem:[#allocation3 + $0x28] sm:$0xf] %vm409, %v475
      %508 = vst.msk [vmem:[#allocation3 + $0x2c] sm:$0xf] %vm409, %v476
      %509 = vst.msk [vmem:[#allocation3 + $0x30] sm:$0xf] %vm409, %v477
      %510 = vst.msk [vmem:[#allocation3 + $0x34] sm:$0xf] %vm409, %v478
      %511 = vst.msk [vmem:[#allocation3 + $0x38] sm:$0xf] %vm409, %v479
      %512 = vst.msk [vmem:[#allocation3 + $0x3c] sm:$0xf] %vm409, %v480
      %513 = vst.msk [vmem:[#allocation3 + $0x40] sm:$0xf] %vm409, %v481
      %514 = vst.msk [vmem:[#allocation3 + $0x44] sm:$0xf] %vm409, %v482
      %515 = vst.msk [vmem:[#allocation3 + $0x48] sm:$0xf] %vm409, %v483
      %516 = vst.msk [vmem:[#allocation3 + $0x4c] sm:$0xf] %vm409, %v484
      %517 = vst.msk [vmem:[#allocation3 + $0x50] sm:$0xf] %vm409, %v485
      %518 = vst.msk [vmem:[#allocation3 + $0x54] sm:$0xf] %vm409, %v486
      %519 = vst.msk [vmem:[#allocation3 + $0x58] sm:$0xf] %vm409, %v487
      %520 = vst.msk [vmem:[#allocation3 + $0x5c] sm:$0xf] %vm409, %v488
      %521 = vst.msk [vmem:[#allocation3 + $0x60] sm:$0xf] %vm409, %v489
      %522 = vst.msk [vmem:[#allocation3 + $0x64] sm:$0xf] %vm409, %v490
      %523 = vst.msk [vmem:[#allocation3 + $0x68] sm:$0xf] %vm409, %v491
      %524 = vst.msk [vmem:[#allocation3 + $0x6c] sm:$0xf] %vm409, %v492
      %525 = vst.msk [vmem:[#allocation3 + $0x70] sm:$0xf] %vm409, %v493
      %526 = vst.msk [vmem:[#allocation3 + $0x74] sm:$0xf] %vm409, %v494
      %527 = vst.msk [vmem:[#allocation3 + $0x78] sm:$0xf] %vm409, %v495
      %528 = vst.msk [vmem:[#allocation3 + $0x7c] sm:$0xf] %vm409, %v496
      %v529 = vld [vmem:[%s232] sm:$0xff]
      %v530 = vld [vmem:[%s232 + $0x8] sm:$0xff]
      %v531 = vld [vmem:[%s232 + $0x18] sm:$0xff]
      %v532 = vld [vmem:[%s232 + $0x20] sm:$0xff]
      %v533 = vld [vmem:[%s232 + $0x30] sm:$0xff]
      %v534 = vld [vmem:[%s232 + $0x38] sm:$0xff]
      %v535 = vld [vmem:[%s232 + $0x48] sm:$0xff]
      %v536 = vld [vmem:[%s232 + $0x50] sm:$0xff]
      %v537 = vld [vmem:[%s232 + $0x60] sm:$0xff]
      %v538 = vld [vmem:[%s232 + $0x68] sm:$0xff]
      %v539 = vld [vmem:[%s232 + $0x78] sm:$0xff]
      %v540 = vld [vmem:[%s232 + $0x80] sm:$0xff]
      %v541 = vld [vmem:[%s232 + $0x90] sm:$0xff]
      %v542 = vld [vmem:[%s232 + $0x98] sm:$0xff]
      %v543 = vld [vmem:[%s232 + $0xa8] sm:$0xff]
      %v544 = vld [vmem:[%s232 + $0xb0] sm:$0xff]
      %v545 = vld [vmem:[%s232 + $0xc0] sm:$0xff]
      %v546 = vld [vmem:[%s232 + $0xc8] sm:$0xff]
      %v547 = vld [vmem:[%s232 + $0xd8] sm:$0xff]
      %v548 = vld [vmem:[%s232 + $0xe0] sm:$0xff]
      %v549 = vld [vmem:[%s232 + $0xf0] sm:$0xff]
      %v550 = vld [vmem:[%s232 + $0xf8] sm:$0xff]
      %v551 = vld [vmem:[%s232 + $0x108] sm:$0xff]
      %v552 = vld [vmem:[%s232 + $0x110] sm:$0xff]
      %v553 = vld [vmem:[%s232 + $0x120] sm:$0xff]
      %v554 = vld [vmem:[%s232 + $0x128] sm:$0xff]
      %v555 = vld [vmem:[%s232 + $0x138] sm:$0xff]
      %v556 = vld [vmem:[%s232 + $0x140] sm:$0xff]
      %v557 = vld [vmem:[%s232 + $0x150] sm:$0xff]
      %v558 = vld [vmem:[%s232 + $0x158] sm:$0xff]
      %v559 = vld [vmem:[%s232 + $0x168] sm:$0xff]
      %v560 = vld [vmem:[%s232 + $0x170] sm:$0xff]
      %vm561 = vcmask 31744
      %562 = vst.msk [vmem:[#allocation4] sm:$0xff] %vm561, %v529
      %563 = vst.msk [vmem:[#allocation4 + $0x8] sm:$0xff] %vm561, %v530
      %564 = vst.msk [vmem:[#allocation4 + $0x10] sm:$0xff] %vm561, %v531
      %565 = vst.msk [vmem:[#allocation4 + $0x18] sm:$0xff] %vm561, %v532
      %566 = vst.msk [vmem:[#allocation4 + $0x20] sm:$0xff] %vm561, %v533
      %567 = vst.msk [vmem:[#allocation4 + $0x28] sm:$0xff] %vm561, %v534
      %568 = vst.msk [vmem:[#allocation4 + $0x30] sm:$0xff] %vm561, %v535
      %569 = vst.msk [vmem:[#allocation4 + $0x38] sm:$0xff] %vm561, %v536
      %570 = vst.msk [vmem:[#allocation4 + $0x40] sm:$0xff] %vm561, %v537
      %571 = vst.msk [vmem:[#allocation4 + $0x48] sm:$0xff] %vm561, %v538
      %572 = vst.msk [vmem:[#allocation4 + $0x50] sm:$0xff] %vm561, %v539
      %573 = vst.msk [vmem:[#allocation4 + $0x58] sm:$0xff] %vm561, %v540
      %574 = vst.msk [vmem:[#allocation4 + $0x60] sm:$0xff] %vm561, %v541
      %575 = vst.msk [vmem:[#allocation4 + $0x68] sm:$0xff] %vm561, %v542
      %576 = vst.msk [vmem:[#allocation4 + $0x70] sm:$0xff] %vm561, %v543
      %577 = vst.msk [vmem:[#allocation4 + $0x78] sm:$0xff] %vm561, %v544
      %578 = vst.msk [vmem:[#allocation4 + $0x80] sm:$0xff] %vm561, %v545
      %579 = vst.msk [vmem:[#allocation4 + $0x88] sm:$0xff] %vm561, %v546
      %580 = vst.msk [vmem:[#allocation4 + $0x90] sm:$0xff] %vm561, %v547
      %581 = vst.msk [vmem:[#allocation4 + $0x98] sm:$0xff] %vm561, %v548
      %582 = vst.msk [vmem:[#allocation4 + $0xa0] sm:$0xff] %vm561, %v549
      %583 = vst.msk [vmem:[#allocation4 + $0xa8] sm:$0xff] %vm561, %v550
      %584 = vst.msk [vmem:[#allocation4 + $0xb0] sm:$0xff] %vm561, %v551
      %585 = vst.msk [vmem:[#allocation4 + $0xb8] sm:$0xff] %vm561, %v552
      %586 = vst.msk [vmem:[#allocation4 + $0xc0] sm:$0xff] %vm561, %v553
      %587 = vst.msk [vmem:[#allocation4 + $0xc8] sm:$0xff] %vm561, %v554
      %588 = vst.msk [vmem:[#allocation4 + $0xd0] sm:$0xff] %vm561, %v555
      %589 = vst.msk [vmem:[#allocation4 + $0xd8] sm:$0xff] %vm561, %v556
      %590 = vst.msk [vmem:[#allocation4 + $0xe0] sm:$0xff] %vm561, %v557
      %591 = vst.msk [vmem:[#allocation4 + $0xe8] sm:$0xff] %vm561, %v558
      %592 = vst.msk [vmem:[#allocation4 + $0xf0] sm:$0xff] %vm561, %v559
      %593 = vst.msk [vmem:[#allocation4 + $0xf8] sm:$0xff] %vm561, %v560
      %v594 = vld [vmem:[#allocation2] sm:$0xf]
      %v595 = vld [vmem:[#allocation2 + $0x4] sm:$0xf]
      %v596 = vld [vmem:[#allocation2 + $0x8] sm:$0x1]
      %v597 = vld [vmem:[#allocation2 + $0xc] sm:$0xf]
      %v598 = vld [vmem:[#allocation2 + $0x10] sm:$0xf]
      %v599 = vld [vmem:[#allocation2 + $0x14] sm:$0x1]
      %v600 = vld [vmem:[#allocation2 + $0x18] sm:$0xf]
      %v601 = vld [vmem:[#allocation2 + $0x1c] sm:$0xf]
      %v602 = vld [vmem:[#allocation2 + $0x20] sm:$0x1]
      %v603 = vld [vmem:[#allocation2 + $0x24] sm:$0xf]
      %v604 = vld [vmem:[#allocation2 + $0x28] sm:$0xf]
      %v605 = vld [vmem:[#allocation2 + $0x2c] sm:$0x1]
      %v606 = vld [vmem:[#allocation2 + $0x30] sm:$0xf]
      %v607 = vld [vmem:[#allocation2 + $0x34] sm:$0xf]
      %v608 = vld [vmem:[#allocation2 + $0x38] sm:$0x1]
      %v609 = vld [vmem:[#allocation2 + $0x3c] sm:$0xf]
      %v610 = vld [vmem:[#allocation2 + $0x40] sm:$0xf]
      %v611 = vld [vmem:[#allocation2 + $0x44] sm:$0x1]
      %v612 = vld [vmem:[#allocation2 + $0x48] sm:$0xf]
      %v613 = vld [vmem:[#allocation2 + $0x4c] sm:$0xf]
      %v614 = vld [vmem:[#allocation2 + $0x50] sm:$0x1]
      %v615 = vld [vmem:[#allocation2 + $0x54] sm:$0xf]
      %v616 = vld [vmem:[#allocation2 + $0x58] sm:$0xf]
      %v617 = vld [vmem:[#allocation2 + $0x5c] sm:$0x1]
      %v618 = vld [vmem:[#allocation2 + $0x60] sm:$0xf]
      %v619 = vld [vmem:[#allocation2 + $0x64] sm:$0xf]
      %v620 = vld [vmem:[#allocation2 + $0x68] sm:$0x1]
      %v621 = vld [vmem:[#allocation2 + $0x6c] sm:$0xf]
      %v622 = vld [vmem:[#allocation2 + $0x70] sm:$0xf]
      %v623 = vld [vmem:[#allocation2 + $0x74] sm:$0x1]
      %v624 = vld [vmem:[#allocation2 + $0x78] sm:$0xf]
      %v625 = vld [vmem:[#allocation2 + $0x7c] sm:$0xf]
      %v626 = vld [vmem:[#allocation2 + $0x80] sm:$0x1]
      %v627 = vld [vmem:[#allocation2 + $0x84] sm:$0xf]
      %v628 = vld [vmem:[#allocation2 + $0x88] sm:$0xf]
      %v629 = vld [vmem:[#allocation2 + $0x8c] sm:$0x1]
      %v630 = vld [vmem:[#allocation2 + $0x90] sm:$0xf]
      %v631 = vld [vmem:[#allocation2 + $0x94] sm:$0xf]
      %v632 = vld [vmem:[#allocation2 + $0x98] sm:$0x1]
      %v633 = vld [vmem:[#allocation2 + $0x9c] sm:$0xf]
      %v634 = vld [vmem:[#allocation2 + $0xa0] sm:$0xf]
      %v635 = vld [vmem:[#allocation2 + $0xa4] sm:$0x1]
      %v636 = vld [vmem:[#allocation2 + $0xa8] sm:$0xf]
      %v637 = vld [vmem:[#allocation2 + $0xac] sm:$0xf]
      %v638 = vld [vmem:[#allocation2 + $0xb0] sm:$0x1]
      %v639 = vld [vmem:[#allocation2 + $0xb4] sm:$0xf]
      %v640 = vld [vmem:[#allocation2 + $0xb8] sm:$0xf]
      %v641 = vld [vmem:[#allocation2 + $0xbc] sm:$0x1]
      %vm642 = vsmask.f32 3328
      %vm643 = vsmask.f32 7440
      %vm644 = vmor %vm642, %vm643
      %v646 = vshrl.u32 %v594, 16
      %v648 = vrot.slane %v646, 4
      %v649 = vshll.u32 %v594, 16
      %v651 = vrot.slane %v649, 5
      %v652 = vor.u32 %v648, %v651
      %v653 = vrot.slane %v652, 4
      %v655 = vshll.u32 %v595, 16
      %v657 = vrot.slane %v655, 5
      %v658 = vsel %vm644, %v653, %v657
      %v659 = vshrl.u32 %v595, 16
      %v661 = vrot.slane %v659, 4
      %v662 = vor.u32 %v661, %v657
      %v663 = vrot.slane %v662, 4
      %v665 = vshll.u32 %v596, 16
      %v667 = vrot.slane %v665, 5
      %v668 = vsel %vm644, %v663, %v667
      %v670 = vshrl.u32 %v597, 16
      %v672 = vrot.slane %v670, 4
      %v673 = vshll.u32 %v597, 16
      %v675 = vrot.slane %v673, 5
      %v676 = vor.u32 %v672, %v675
      %v677 = vrot.slane %v676, 4
      %v679 = vshll.u32 %v598, 16
      %v681 = vrot.slane %v679, 5
      %v682 = vsel %vm644, %v677, %v681
      %v683 = vshrl.u32 %v598, 16
      %v685 = vrot.slane %v683, 4
      %v686 = vor.u32 %v685, %v681
      %v687 = vrot.slane %v686, 4
      %v689 = vshll.u32 %v599, 16
      %v691 = vrot.slane %v689, 5
      %v692 = vsel %vm644, %v687, %v691
      %v694 = vshrl.u32 %v600, 16
      %v696 = vrot.slane %v694, 4
      %v697 = vshll.u32 %v600, 16
      %v699 = vrot.slane %v697, 5
      %v700 = vor.u32 %v696, %v699
      %v701 = vrot.slane %v700, 4
      %v703 = vshll.u32 %v601, 16
      %v705 = vrot.slane %v703, 5
      %v706 = vsel %vm644, %v701, %v705
      %v707 = vshrl.u32 %v601, 16
      %v709 = vrot.slane %v707, 4
      %v710 = vor.u32 %v709, %v705
      %v711 = vrot.slane %v710, 4
      %v713 = vshll.u32 %v602, 16
      %v715 = vrot.slane %v713, 5
      %v716 = vsel %vm644, %v711, %v715
      %v718 = vshrl.u32 %v603, 16
      %v720 = vrot.slane %v718, 4
      %v721 = vshll.u32 %v603, 16
      %v723 = vrot.slane %v721, 5
      %v724 = vor.u32 %v720, %v723
      %v725 = vrot.slane %v724, 4
      %v727 = vshll.u32 %v604, 16
      %v729 = vrot.slane %v727, 5
      %v730 = vsel %vm644, %v725, %v729
      %v731 = vshrl.u32 %v604, 16
      %v733 = vrot.slane %v731, 4
      %v734 = vor.u32 %v733, %v729
      %v735 = vrot.slane %v734, 4
      %v737 = vshll.u32 %v605, 16
      %v739 = vrot.slane %v737, 5
      %v740 = vsel %vm644, %v735, %v739
      %v742 = vshrl.u32 %v606, 16
      %v744 = vrot.slane %v742, 4
      %v745 = vshll.u32 %v606, 16
      %v747 = vrot.slane %v745, 5
      %v748 = vor.u32 %v744, %v747
      %v749 = vrot.slane %v748, 4
      %v751 = vshll.u32 %v607, 16
      %v753 = vrot.slane %v751, 5
      %v754 = vsel %vm644, %v749, %v753
      %v755 = vshrl.u32 %v607, 16
      %v757 = vrot.slane %v755, 4
      %v758 = vor.u32 %v757, %v753
      %v759 = vrot.slane %v758, 4
      %v761 = vshll.u32 %v608, 16
      %v763 = vrot.slane %v761, 5
      %v764 = vsel %vm644, %v759, %v763
      %v766 = vshrl.u32 %v609, 16
      %v768 = vrot.slane %v766, 4
      %v769 = vshll.u32 %v609, 16
      %v771 = vrot.slane %v769, 5
      %v772 = vor.u32 %v768, %v771
      %v773 = vrot.slane %v772, 4
      %v775 = vshll.u32 %v610, 16
      %v777 = vrot.slane %v775, 5
      %v778 = vsel %vm644, %v773, %v777
      %v779 = vshrl.u32 %v610, 16
      %v781 = vrot.slane %v779, 4
      %v782 = vor.u32 %v781, %v777
      %v783 = vrot.slane %v782, 4
      %v785 = vshll.u32 %v611, 16
      %v787 = vrot.slane %v785, 5
      %v788 = vsel %vm644, %v783, %v787
      %v790 = vshrl.u32 %v612, 16
      %v792 = vrot.slane %v790, 4
      %v793 = vshll.u32 %v612, 16
      %v795 = vrot.slane %v793, 5
      %v796 = vor.u32 %v792, %v795
      %v797 = vrot.slane %v796, 4
      %v799 = vshll.u32 %v613, 16
      %v801 = vrot.slane %v799, 5
      %v802 = vsel %vm644, %v797, %v801
      %v803 = vshrl.u32 %v613, 16
      %v805 = vrot.slane %v803, 4
      %v806 = vor.u32 %v805, %v801
      %v807 = vrot.slane %v806, 4
      %v809 = vshll.u32 %v614, 16
      %v811 = vrot.slane %v809, 5
      %v812 = vsel %vm644, %v807, %v811
      %v814 = vshrl.u32 %v615, 16
      %v816 = vrot.slane %v814, 4
      %v817 = vshll.u32 %v615, 16
      %v819 = vrot.slane %v817, 5
      %v820 = vor.u32 %v816, %v819
      %v821 = vrot.slane %v820, 4
      %v823 = vshll.u32 %v616, 16
      %v825 = vrot.slane %v823, 5
      %v826 = vsel %vm644, %v821, %v825
      %v827 = vshrl.u32 %v616, 16
      %v829 = vrot.slane %v827, 4
      %v830 = vor.u32 %v829, %v825
      %v831 = vrot.slane %v830, 4
      %v833 = vshll.u32 %v617, 16
      %v835 = vrot.slane %v833, 5
      %v836 = vsel %vm644, %v831, %v835
      %v838 = vshrl.u32 %v618, 16
      %v840 = vrot.slane %v838, 4
      %v841 = vshll.u32 %v618, 16
      %v843 = vrot.slane %v841, 5
      %v844 = vor.u32 %v840, %v843
      %v845 = vrot.slane %v844, 4
      %v847 = vshll.u32 %v619, 16
      %v849 = vrot.slane %v847, 5
      %v850 = vsel %vm644, %v845, %v849
      %v851 = vshrl.u32 %v619, 16
      %v853 = vrot.slane %v851, 4
      %v854 = vor.u32 %v853, %v849
      %v855 = vrot.slane %v854, 4
      %v857 = vshll.u32 %v620, 16
      %v859 = vrot.slane %v857, 5
      %v860 = vsel %vm644, %v855, %v859
      %v862 = vshrl.u32 %v621, 16
      %v864 = vrot.slane %v862, 4
      %v865 = vshll.u32 %v621, 16
      %v867 = vrot.slane %v865, 5
      %v868 = vor.u32 %v864, %v867
      %v869 = vrot.slane %v868, 4
      %v871 = vshll.u32 %v622, 16
      %v873 = vrot.slane %v871, 5
      %v874 = vsel %vm644, %v869, %v873
      %v875 = vshrl.u32 %v622, 16
      %v877 = vrot.slane %v875, 4
      %v878 = vor.u32 %v877, %v873
      %v879 = vrot.slane %v878, 4
      %v881 = vshll.u32 %v623, 16
      %v883 = vrot.slane %v881, 5
      %v884 = vsel %vm644, %v879, %v883
      %v886 = vshrl.u32 %v624, 16
      %v888 = vrot.slane %v886, 4
      %v889 = vshll.u32 %v624, 16
      %v891 = vrot.slane %v889, 5
      %v892 = vor.u32 %v888, %v891
      %v893 = vrot.slane %v892, 4
      %v895 = vshll.u32 %v625, 16
      %v897 = vrot.slane %v895, 5
      %v898 = vsel %vm644, %v893, %v897
      %v899 = vshrl.u32 %v625, 16
      %v901 = vrot.slane %v899, 4
      %v902 = vor.u32 %v901, %v897
      %v903 = vrot.slane %v902, 4
      %v905 = vshll.u32 %v626, 16
      %v907 = vrot.slane %v905, 5
      %v908 = vsel %vm644, %v903, %v907
      %v910 = vshrl.u32 %v627, 16
      %v912 = vrot.slane %v910, 4
      %v913 = vshll.u32 %v627, 16
      %v915 = vrot.slane %v913, 5
      %v916 = vor.u32 %v912, %v915
      %v917 = vrot.slane %v916, 4
      %v919 = vshll.u32 %v628, 16
      %v921 = vrot.slane %v919, 5
      %v922 = vsel %vm644, %v917, %v921
      %v923 = vshrl.u32 %v628, 16
      %v925 = vrot.slane %v923, 4
      %v926 = vor.u32 %v925, %v921
      %v927 = vrot.slane %v926, 4
      %v929 = vshll.u32 %v629, 16
      %v931 = vrot.slane %v929, 5
      %v932 = vsel %vm644, %v927, %v931
      %v934 = vshrl.u32 %v630, 16
      %v936 = vrot.slane %v934, 4
      %v937 = vshll.u32 %v630, 16
      %v939 = vrot.slane %v937, 5
      %v940 = vor.u32 %v936, %v939
      %v941 = vrot.slane %v940, 4
      %v943 = vshll.u32 %v631, 16
      %v945 = vrot.slane %v943, 5
      %v946 = vsel %vm644, %v941, %v945
      %v947 = vshrl.u32 %v631, 16
      %v949 = vrot.slane %v947, 4
      %v950 = vor.u32 %v949, %v945
      %v951 = vrot.slane %v950, 4
      %v953 = vshll.u32 %v632, 16
      %v955 = vrot.slane %v953, 5
      %v956 = vsel %vm644, %v951, %v955
      %v958 = vshrl.u32 %v633, 16
      %v960 = vrot.slane %v958, 4
      %v961 = vshll.u32 %v633, 16
      %v963 = vrot.slane %v961, 5
      %v964 = vor.u32 %v960, %v963
      %v965 = vrot.slane %v964, 4
      %v967 = vshll.u32 %v634, 16
      %v969 = vrot.slane %v967, 5
      %v970 = vsel %vm644, %v965, %v969
      %v971 = vshrl.u32 %v634, 16
      %v973 = vrot.slane %v971, 4
      %v974 = vor.u32 %v973, %v969
      %v975 = vrot.slane %v974, 4
      %v977 = vshll.u32 %v635, 16
      %v979 = vrot.slane %v977, 5
      %v980 = vsel %vm644, %v975, %v979
      %v982 = vshrl.u32 %v636, 16
      %v984 = vrot.slane %v982, 4
      %v985 = vshll.u32 %v636, 16
      %v987 = vrot.slane %v985, 5
      %v988 = vor.u32 %v984, %v987
      %v989 = vrot.slane %v988, 4
      %v991 = vshll.u32 %v637, 16
      %v993 = vrot.slane %v991, 5
      %v994 = vsel %vm644, %v989, %v993
      %v995 = vshrl.u32 %v637, 16
      %v997 = vrot.slane %v995, 4
      %v998 = vor.u32 %v997, %v993
      %v999 = vrot.slane %v998, 4
      %v1001 = vshll.u32 %v638, 16
      %v1003 = vrot.slane %v1001, 5
      %v1004 = vsel %vm644, %v999, %v1003
      %v1006 = vshrl.u32 %v639, 16
      %v1008 = vrot.slane %v1006, 4
      %v1009 = vshll.u32 %v639, 16
      %v1011 = vrot.slane %v1009, 5
      %v1012 = vor.u32 %v1008, %v1011
      %v1013 = vrot.slane %v1012, 4
      %v1015 = vshll.u32 %v640, 16
      %v1017 = vrot.slane %v1015, 5
      %v1018 = vsel %vm644, %v1013, %v1017
      %v1019 = vshrl.u32 %v640, 16
      %v1021 = vrot.slane %v1019, 4
      %v1022 = vor.u32 %v1021, %v1017
      %v1023 = vrot.slane %v1022, 4
      %v1025 = vshll.u32 %v641, 16
      %v1027 = vrot.slane %v1025, 5
      %v1028 = vsel %vm644, %v1023, %v1027
      %1029 = vrot.lane.b32.xlu0 %v658, 4
      %v1030 = vpop.permute.xlu0 %1029
      %1031 = vrot.lane.b32.xlu0 %v668, 4
      %v1032 = vpop.permute.xlu0 %1031
      %1033 = vrot.lane.b32.xlu0 %v682, 4
      %v1034 = vpop.permute.xlu0 %1033
      %1035 = vrot.lane.b32.xlu0 %v692, 4
      %v1036 = vpop.permute.xlu0 %1035
      %1037 = vrot.lane.b32.xlu0 %v706, 4
      %v1038 = vpop.permute.xlu0 %1037
      %1039 = vrot.lane.b32.xlu0 %v716, 4
      %v1040 = vpop.permute.xlu0 %1039
      %1041 = vrot.lane.b32.xlu0 %v730, 4
      %v1042 = vpop.permute.xlu0 %1041
      %1043 = vrot.lane.b32.xlu0 %v740, 4
      %v1044 = vpop.permute.xlu0 %1043
      %1045 = vrot.lane.b32.xlu0 %v754, 4
      %v1046 = vpop.permute.xlu0 %1045
      %1047 = vrot.lane.b32.xlu0 %v764, 4
      %v1048 = vpop.permute.xlu0 %1047
      %1049 = vrot.lane.b32.xlu0 %v778, 4
      %v1050 = vpop.permute.xlu0 %1049
      %1051 = vrot.lane.b32.xlu0 %v788, 4
      %v1052 = vpop.permute.xlu0 %1051
      %1053 = vrot.lane.b32.xlu0 %v802, 4
      %v1054 = vpop.permute.xlu0 %1053
      %1055 = vrot.lane.b32.xlu0 %v812, 4
      %v1056 = vpop.permute.xlu0 %1055
      %1057 = vrot.lane.b32.xlu0 %v826, 4
      %v1058 = vpop.permute.xlu0 %1057
      %1059 = vrot.lane.b32.xlu0 %v836, 4
      %v1060 = vpop.permute.xlu0 %1059
      %1061 = vrot.lane.b32.xlu0 %v850, 4
      %v1062 = vpop.permute.xlu0 %1061
      %1063 = vrot.lane.b32.xlu0 %v860, 4
      %v1064 = vpop.permute.xlu0 %1063
      %1065 = vrot.lane.b32.xlu0 %v874, 4
      %v1066 = vpop.permute.xlu0 %1065
      %1067 = vrot.lane.b32.xlu0 %v884, 4
      %v1068 = vpop.permute.xlu0 %1067
      %1069 = vrot.lane.b32.xlu0 %v898, 4
      %v1070 = vpop.permute.xlu0 %1069
      %1071 = vrot.lane.b32.xlu0 %v908, 4
      %v1072 = vpop.permute.xlu0 %1071
      %1073 = vrot.lane.b32.xlu0 %v922, 4
      %v1074 = vpop.permute.xlu0 %1073
      %1075 = vrot.lane.b32.xlu0 %v932, 4
      %v1076 = vpop.permute.xlu0 %1075
      %1077 = vrot.lane.b32.xlu0 %v946, 4
      %v1078 = vpop.permute.xlu0 %1077
      %1079 = vrot.lane.b32.xlu0 %v956, 4
      %v1080 = vpop.permute.xlu0 %1079
      %1081 = vrot.lane.b32.xlu0 %v970, 4
      %v1082 = vpop.permute.xlu0 %1081
      %1083 = vrot.lane.b32.xlu0 %v980, 4
      %v1084 = vpop.permute.xlu0 %1083
      %1085 = vrot.lane.b32.xlu0 %v994, 4
      %v1086 = vpop.permute.xlu0 %1085
      %1087 = vrot.lane.b32.xlu0 %v1004, 4
      %v1088 = vpop.permute.xlu0 %1087
      %1089 = vrot.lane.b32.xlu0 %v1018, 4
      %v1090 = vpop.permute.xlu0 %1089
      %1091 = vrot.lane.b32.xlu0 %v1028, 4
      %v1092 = vpop.permute.xlu0 %1091
      %vm1125 = vcmask 60448
      %1126 = vst.msk [vmem:[#allocation3] sm:$0xf] %vm1125, %v1030
      %1127 = vst.msk [vmem:[#allocation3 + $0x4] sm:$0xf] %vm1125, %v1032
      %1128 = vst.msk [vmem:[#allocation3 + $0x8] sm:$0xf] %vm1125, %v1034
      %1129 = vst.msk [vmem:[#allocation3 + $0xc] sm:$0xf] %vm1125, %v1036
      %1130 = vst.msk [vmem:[#allocation3 + $0x10] sm:$0xf] %vm1125, %v1038
      %1131 = vst.msk [vmem:[#allocation3 + $0x14] sm:$0xf] %vm1125, %v1040
      %1132 = vst.msk [vmem:[#allocation3 + $0x18] sm:$0xf] %vm1125, %v1042
      %1133 = vst.msk [vmem:[#allocation3 + $0x1c] sm:$0xf] %vm1125, %v1044
      %1134 = vst.msk [vmem:[#allocation3 + $0x20] sm:$0xf] %vm1125, %v1046
      %1135 = vst.msk [vmem:[#allocation3 + $0x24] sm:$0xf] %vm1125, %v1048
      %1136 = vst.msk [vmem:[#allocation3 + $0x28] sm:$0xf] %vm1125, %v1050
      %1137 = vst.msk [vmem:[#allocation3 + $0x2c] sm:$0xf] %vm1125, %v1052
      %1138 = vst.msk [vmem:[#allocation3 + $0x30] sm:$0xf] %vm1125, %v1054
      %1139 = vst.msk [vmem:[#allocation3 + $0x34] sm:$0xf] %vm1125, %v1056
      %1140 = vst.msk [vmem:[#allocation3 + $0x38] sm:$0xf] %vm1125, %v1058
      %1141 = vst.msk [vmem:[#allocation3 + $0x3c] sm:$0xf] %vm1125, %v1060
      %1142 = vst.msk [vmem:[#allocation3 + $0x40] sm:$0xf] %vm1125, %v1062
      %1143 = vst.msk [vmem:[#allocation3 + $0x44] sm:$0xf] %vm1125, %v1064
      %1144 = vst.msk [vmem:[#allocation3 + $0x48] sm:$0xf] %vm1125, %v1066
      %1145 = vst.msk [vmem:[#allocation3 + $0x4c] sm:$0xf] %vm1125, %v1068
      %1146 = vst.msk [vmem:[#allocation3 + $0x50] sm:$0xf] %vm1125, %v1070
      %1147 = vst.msk [vmem:[#allocation3 + $0x54] sm:$0xf] %vm1125, %v1072
      %1148 = vst.msk [vmem:[#allocation3 + $0x58] sm:$0xf] %vm1125, %v1074
      %1149 = vst.msk [vmem:[#allocation3 + $0x5c] sm:$0xf] %vm1125, %v1076
      %1150 = vst.msk [vmem:[#allocation3 + $0x60] sm:$0xf] %vm1125, %v1078
      %1151 = vst.msk [vmem:[#allocation3 + $0x64] sm:$0xf] %vm1125, %v1080
      %1152 = vst.msk [vmem:[#allocation3 + $0x68] sm:$0xf] %vm1125, %v1082
      %1153 = vst.msk [vmem:[#allocation3 + $0x6c] sm:$0xf] %vm1125, %v1084
      %1154 = vst.msk [vmem:[#allocation3 + $0x70] sm:$0xf] %vm1125, %v1086
      %1155 = vst.msk [vmem:[#allocation3 + $0x74] sm:$0xf] %vm1125, %v1088
      %1156 = vst.msk [vmem:[#allocation3 + $0x78] sm:$0xf] %vm1125, %v1090
      %1157 = vst.msk [vmem:[#allocation3 + $0x7c] sm:$0xf] %vm1125, %v1092
      %v1158 = vld [vmem:[%s232 + $0x1] sm:$0xff]
      %v1159 = vld [vmem:[%s232 + $0x9] sm:$0xff]
      %v1160 = vld [vmem:[%s232 + $0x19] sm:$0xff]
      %v1161 = vld [vmem:[%s232 + $0x21] sm:$0xff]
      %v1162 = vld [vmem:[%s232 + $0x31] sm:$0xff]
      %v1163 = vld [vmem:[%s232 + $0x39] sm:$0xff]
      %v1164 = vld [vmem:[%s232 + $0x49] sm:$0xff]
      %v1165 = vld [vmem:[%s232 + $0x51] sm:$0xff]
      %v1166 = vld [vmem:[%s232 + $0x61] sm:$0xff]
      %v1167 = vld [vmem:[%s232 + $0x69] sm:$0xff]
      %v1168 = vld [vmem:[%s232 + $0x79] sm:$0xff]
      %v1169 = vld [vmem:[%s232 + $0x81] sm:$0xff]
      %v1170 = vld [vmem:[%s232 + $0x91] sm:$0xff]
      %v1171 = vld [vmem:[%s232 + $0x99] sm:$0xff]
      %v1172 = vld [vmem:[%s232 + $0xa9] sm:$0xff]
      %v1173 = vld [vmem:[%s232 + $0xb1] sm:$0xff]
      %v1174 = vld [vmem:[%s232 + $0xc1] sm:$0xff]
      %v1175 = vld [vmem:[%s232 + $0xc9] sm:$0xff]
      %v1176 = vld [vmem:[%s232 + $0xd9] sm:$0xff]
      %v1177 = vld [vmem:[%s232 + $0xe1] sm:$0xff]
      %v1178 = vld [vmem:[%s232 + $0xf1] sm:$0xff]
      %v1179 = vld [vmem:[%s232 + $0xf9] sm:$0xff]
      %v1180 = vld [vmem:[%s232 + $0x109] sm:$0xff]
      %v1181 = vld [vmem:[%s232 + $0x111] sm:$0xff]
      %v1182 = vld [vmem:[%s232 + $0x121] sm:$0xff]
      %v1183 = vld [vmem:[%s232 + $0x129] sm:$0xff]
      %v1184 = vld [vmem:[%s232 + $0x139] sm:$0xff]
      %v1185 = vld [vmem:[%s232 + $0x141] sm:$0xff]
      %v1186 = vld [vmem:[%s232 + $0x151] sm:$0xff]
      %v1187 = vld [vmem:[%s232 + $0x159] sm:$0xff]
      %v1188 = vld [vmem:[%s232 + $0x169] sm:$0xff]
      %v1189 = vld [vmem:[%s232 + $0x171] sm:$0xff]
      %v1190 = vld [vmem:[#allocation4] sm:$0xff]
      %v1191 = vld [vmem:[#allocation4 + $0x8] sm:$0xff]
      %v1192 = vld [vmem:[#allocation4 + $0x10] sm:$0xff]
      %v1193 = vld [vmem:[#allocation4 + $0x18] sm:$0xff]
      %v1194 = vld [vmem:[#allocation4 + $0x20] sm:$0xff]
      %v1195 = vld [vmem:[#allocation4 + $0x28] sm:$0xff]
      %v1196 = vld [vmem:[#allocation4 + $0x30] sm:$0xff]
      %v1197 = vld [vmem:[#allocation4 + $0x38] sm:$0xff]
      %v1198 = vld [vmem:[#allocation4 + $0x40] sm:$0xff]
      %v1199 = vld [vmem:[#allocation4 + $0x48] sm:$0xff]
      %v1200 = vld [vmem:[#allocation4 + $0x50] sm:$0xff]
      %v1201 = vld [vmem:[#allocation4 + $0x58] sm:$0xff]
      %v1202 = vld [vmem:[#allocation4 + $0x60] sm:$0xff]
      %v1203 = vld [vmem:[#allocation4 + $0x68] sm:$0xff]
      %v1204 = vld [vmem:[#allocation4 + $0x70] sm:$0xff]
      %v1205 = vld [vmem:[#allocation4 + $0x78] sm:$0xff]
      %v1206 = vld [vmem:[#allocation4 + $0x80] sm:$0xff]
      %v1207 = vld [vmem:[#allocation4 + $0x88] sm:$0xff]
      %v1208 = vld [vmem:[#allocation4 + $0x90] sm:$0xff]
      %v1209 = vld [vmem:[#allocation4 + $0x98] sm:$0xff]
      %v1210 = vld [vmem:[#allocation4 + $0xa0] sm:$0xff]
      %v1211 = vld [vmem:[#allocation4 + $0xa8] sm:$0xff]
      %v1212 = vld [vmem:[#allocation4 + $0xb0] sm:$0xff]
      %v1213 = vld [vmem:[#allocation4 + $0xb8] sm:$0xff]
      %v1214 = vld [vmem:[#allocation4 + $0xc0] sm:$0xff]
      %v1215 = vld [vmem:[#allocation4 + $0xc8] sm:$0xff]
      %v1216 = vld [vmem:[#allocation4 + $0xd0] sm:$0xff]
      %v1217 = vld [vmem:[#allocation4 + $0xd8] sm:$0xff]
      %v1218 = vld [vmem:[#allocation4 + $0xe0] sm:$0xff]
      %v1219 = vld [vmem:[#allocation4 + $0xe8] sm:$0xff]
      %v1220 = vld [vmem:[#allocation4 + $0xf0] sm:$0xff]
      %v1221 = vld [vmem:[#allocation4 + $0xf8] sm:$0xff]
      %v1222 = vadd.f32 %v1190, %v1158
      %v1223 = vadd.f32 %v1191, %v1159
      %v1224 = vadd.f32 %v1192, %v1160
      %v1225 = vadd.f32 %v1193, %v1161
      %v1226 = vadd.f32 %v1194, %v1162
      %v1227 = vadd.f32 %v1195, %v1163
      %v1228 = vadd.f32 %v1196, %v1164
      %v1229 = vadd.f32 %v1197, %v1165
      %v1230 = vadd.f32 %v1198, %v1166
      %v1231 = vadd.f32 %v1199, %v1167
      %v1232 = vadd.f32 %v1200, %v1168
      %v1233 = vadd.f32 %v1201, %v1169
      %v1234 = vadd.f32 %v1202, %v1170
      %v1235 = vadd.f32 %v1203, %v1171
      %v1236 = vadd.f32 %v1204, %v1172
      %v1237 = vadd.f32 %v1205, %v1173
      %v1238 = vadd.f32 %v1206, %v1174
      %v1239 = vadd.f32 %v1207, %v1175
      %v1240 = vadd.f32 %v1208, %v1176
      %v1241 = vadd.f32 %v1209, %v1177
      %v1242 = vadd.f32 %v1210, %v1178
      %v1243 = vadd.f32 %v1211, %v1179
      %v1244 = vadd.f32 %v1212, %v1180
      %v1245 = vadd.f32 %v1213, %v1181
      %v1246 = vadd.f32 %v1214, %v1182
      %v1247 = vadd.f32 %v1215, %v1183
      %v1248 = vadd.f32 %v1216, %v1184
      %v1249 = vadd.f32 %v1217, %v1185
      %v1250 = vadd.f32 %v1218, %v1186
      %v1251 = vadd.f32 %v1219, %v1187
      %v1252 = vadd.f32 %v1220, %v1188
      %v1253 = vadd.f32 %v1221, %v1189
      %1254 = vst.msk [vmem:[#allocation4] sm:$0xff] %vm561, %v1222
      %1255 = vst.msk [vmem:[#allocation4 + $0x8] sm:$0xff] %vm561, %v1223
      %1256 = vst.msk [vmem:[#allocation4 + $0x10] sm:$0xff] %vm561, %v1224
      %1257 = vst.msk [vmem:[#allocation4 + $0x18] sm:$0xff] %vm561, %v1225
      %1258 = vst.msk [vmem:[#allocation4 + $0x20] sm:$0xff] %vm561, %v1226
      %1259 = vst.msk [vmem:[#allocation4 + $0x28] sm:$0xff] %vm561, %v1227
      %1260 = vst.msk [vmem:[#allocation4 + $0x30] sm:$0xff] %vm561, %v1228
      %1261 = vst.msk [vmem:[#allocation4 + $0x38] sm:$0xff] %vm561, %v1229
      %1262 = vst.msk [vmem:[#allocation4 + $0x40] sm:$0xff] %vm561, %v1230
      %1263 = vst.msk [vmem:[#allocation4 + $0x48] sm:$0xff] %vm561, %v1231
      %1264 = vst.msk [vmem:[#allocation4 + $0x50] sm:$0xff] %vm561, %v1232
      %1265 = vst.msk [vmem:[#allocation4 + $0x58] sm:$0xff] %vm561, %v1233
      %1266 = vst.msk [vmem:[#allocation4 + $0x60] sm:$0xff] %vm561, %v1234
      %1267 = vst.msk [vmem:[#allocation4 + $0x68] sm:$0xff] %vm561, %v1235
      %1268 = vst.msk [vmem:[#allocation4 + $0x70] sm:$0xff] %vm561, %v1236
      %1269 = vst.msk [vmem:[#allocation4 + $0x78] sm:$0xff] %vm561, %v1237
      %1270 = vst.msk [vmem:[#allocation4 + $0x80] sm:$0xff] %vm561, %v1238
      %1271 = vst.msk [vmem:[#allocation4 + $0x88] sm:$0xff] %vm561, %v1239
      %1272 = vst.msk [vmem:[#allocation4 + $0x90] sm:$0xff] %vm561, %v1240
      %1273 = vst.msk [vmem:[#allocation4 + $0x98] sm:$0xff] %vm561, %v1241
      %1274 = vst.msk [vmem:[#allocation4 + $0xa0] sm:$0xff] %vm561, %v1242
      %1275 = vst.msk [vmem:[#allocation4 + $0xa8] sm:$0xff] %vm561, %v1243
      %1276 = vst.msk [vmem:[#allocation4 + $0xb0] sm:$0xff] %vm561, %v1244
      %1277 = vst.msk [vmem:[#allocation4 + $0xb8] sm:$0xff] %vm561, %v1245
      %1278 = vst.msk [vmem:[#allocation4 + $0xc0] sm:$0xff] %vm561, %v1246
      %1279 = vst.msk [vmem:[#allocation4 + $0xc8] sm:$0xff] %vm561, %v1247
      %1280 = vst.msk [vmem:[#allocation4 + $0xd0] sm:$0xff] %vm561, %v1248
      %1281 = vst.msk [vmem:[#allocation4 + $0xd8] sm:$0xff] %vm561, %v1249
      %1282 = vst.msk [vmem:[#allocation4 + $0xe0] sm:$0xff] %vm561, %v1250
      %1283 = vst.msk [vmem:[#allocation4 + $0xe8] sm:$0xff] %vm561, %v1251
      %1284 = vst.msk [vmem:[#allocation4 + $0xf0] sm:$0xff] %vm561, %v1252
      %1285 = vst.msk [vmem:[#allocation4 + $0xf8] sm:$0xff] %vm561, %v1253
      %v1286 = vld [vmem:[#allocation2] sm:$0xe]
      %v1287 = vld [vmem:[#allocation2 + $0x4] sm:$0xf]
      %v1288 = vld [vmem:[#allocation2 + $0x8] sm:$0x1]
      %v1289 = vld [vmem:[#allocation2 + $0xc] sm:$0xe]
      %v1290 = vld [vmem:[#allocation2 + $0x10] sm:$0xf]
      %v1291 = vld [vmem:[#allocation2 + $0x14] sm:$0x1]
      %v1292 = vld [vmem:[#allocation2 + $0x18] sm:$0xe]
      %v1293 = vld [vmem:[#allocation2 + $0x1c] sm:$0xf]
      %v1294 = vld [vmem:[#allocation2 + $0x20] sm:$0x1]
      %v1295 = vld [vmem:[#allocation2 + $0x24] sm:$0xe]
      %v1296 = vld [vmem:[#allocation2 + $0x28] sm:$0xf]
      %v1297 = vld [vmem:[#allocation2 + $0x2c] sm:$0x1]
      %v1298 = vld [vmem:[#allocation2 + $0x30] sm:$0xe]
      %v1299 = vld [vmem:[#allocation2 + $0x34] sm:$0xf]
      %v1300 = vld [vmem:[#allocation2 + $0x38] sm:$0x1]
      %v1301 = vld [vmem:[#allocation2 + $0x3c] sm:$0xe]
      %v1302 = vld [vmem:[#allocation2 + $0x40] sm:$0xf]
      %v1303 = vld [vmem:[#allocation2 + $0x44] sm:$0x1]
      %v1304 = vld [vmem:[#allocation2 + $0x48] sm:$0xe]
      %v1305 = vld [vmem:[#allocation2 + $0x4c] sm:$0xf]
      %v1306 = vld [vmem:[#allocation2 + $0x50] sm:$0x1]
      %v1307 = vld [vmem:[#allocation2 + $0x54] sm:$0xe]
      %v1308 = vld [vmem:[#allocation2 + $0x58] sm:$0xf]
      %v1309 = vld [vmem:[#allocation2 + $0x5c] sm:$0x1]
      %v1310 = vld [vmem:[#allocation2 + $0x60] sm:$0xe]
      %v1311 = vld [vmem:[#allocation2 + $0x64] sm:$0xf]
      %v1312 = vld [vmem:[#allocation2 + $0x68] sm:$0x1]
      %v1313 = vld [vmem:[#allocation2 + $0x6c] sm:$0xe]
      %v1314 = vld [vmem:[#allocation2 + $0x70] sm:$0xf]
      %v1315 = vld [vmem:[#allocation2 + $0x74] sm:$0x1]
      %v1316 = vld [vmem:[#allocation2 + $0x78] sm:$0xe]
      %v1317 = vld [vmem:[#allocation2 + $0x7c] sm:$0xf]
      %v1318 = vld [vmem:[#allocation2 + $0x80] sm:$0x1]
      %v1319 = vld [vmem:[#allocation2 + $0x84] sm:$0xe]
      %v1320 = vld [vmem:[#allocation2 + $0x88] sm:$0xf]
      %v1321 = vld [vmem:[#allocation2 + $0x8c] sm:$0x1]
      %v1322 = vld [vmem:[#allocation2 + $0x90] sm:$0xe]
      %v1323 = vld [vmem:[#allocation2 + $0x94] sm:$0xf]
      %v1324 = vld [vmem:[#allocation2 + $0x98] sm:$0x1]
      %v1325 = vld [vmem:[#allocation2 + $0x9c] sm:$0xe]
      %v1326 = vld [vmem:[#allocation2 + $0xa0] sm:$0xf]
      %v1327 = vld [vmem:[#allocation2 + $0xa4] sm:$0x1]
      %v1328 = vld [vmem:[#allocation2 + $0xa8] sm:$0xe]
      %v1329 = vld [vmem:[#allocation2 + $0xac] sm:$0xf]
      %v1330 = vld [vmem:[#allocation2 + $0xb0] sm:$0x1]
      %v1331 = vld [vmem:[#allocation2 + $0xb4] sm:$0xe]
      %v1332 = vld [vmem:[#allocation2 + $0xb8] sm:$0xf]
      %v1333 = vld [vmem:[#allocation2 + $0xbc] sm:$0x1]
      %vm1382 = vcmask 1042432
      %vm1383 = vcmask 1046532
      %vm1384 = vmor %vm1382, %vm1383
      %v1385 = vrot.slane %v1286, 5
      %v1386 = vrot.slane %v1385, 4
      %v1387 = vrot.slane %v1287, 5
      %v1388 = vsel %vm1384, %v1386, %v1387
      %v1389 = vrot.slane %v1387, 4
      %v1390 = vrot.slane %v1288, 5
      %v1391 = vsel %vm1384, %v1389, %v1390
      %v1392 = vrot.slane %v1289, 5
      %v1393 = vrot.slane %v1392, 4
      %v1394 = vrot.slane %v1290, 5
      %v1395 = vsel %vm1384, %v1393, %v1394
      %v1396 = vrot.slane %v1394, 4
      %v1397 = vrot.slane %v1291, 5
      %v1398 = vsel %vm1384, %v1396, %v1397
      %v1399 = vrot.slane %v1292, 5
      %v1400 = vrot.slane %v1399, 4
      %v1401 = vrot.slane %v1293, 5
      %v1402 = vsel %vm1384, %v1400, %v1401
      %v1403 = vrot.slane %v1401, 4
      %v1404 = vrot.slane %v1294, 5
      %v1405 = vsel %vm1384, %v1403, %v1404
      %v1406 = vrot.slane %v1295, 5
      %v1407 = vrot.slane %v1406, 4
      %v1408 = vrot.slane %v1296, 5
      %v1409 = vsel %vm1384, %v1407, %v1408
      %v1410 = vrot.slane %v1408, 4
      %v1411 = vrot.slane %v1297, 5
      %v1412 = vsel %vm1384, %v1410, %v1411
      %v1413 = vrot.slane %v1298, 5
      %v1414 = vrot.slane %v1413, 4
      %v1415 = vrot.slane %v1299, 5
      %v1416 = vsel %vm1384, %v1414, %v1415
      %v1417 = vrot.slane %v1415, 4
      %v1418 = vrot.slane %v1300, 5
      %v1419 = vsel %vm1384, %v1417, %v1418
      %v1420 = vrot.slane %v1301, 5
      %v1421 = vrot.slane %v1420, 4
      %v1422 = vrot.slane %v1302, 5
      %v1423 = vsel %vm1384, %v1421, %v1422
      %v1424 = vrot.slane %v1422, 4
      %v1425 = vrot.slane %v1303, 5
      %v1426 = vsel %vm1384, %v1424, %v1425
      %v1427 = vrot.slane %v1304, 5
      %v1428 = vrot.slane %v1427, 4
      %v1429 = vrot.slane %v1305, 5
      %v1430 = vsel %vm1384, %v1428, %v1429
      %v1431 = vrot.slane %v1429, 4
      %v1432 = vrot.slane %v1306, 5
      %v1433 = vsel %vm1384, %v1431, %v1432
      %v1434 = vrot.slane %v1307, 5
      %v1435 = vrot.slane %v1434, 4
      %v1436 = vrot.slane %v1308, 5
      %v1437 = vsel %vm1384, %v1435, %v1436
      %v1438 = vrot.slane %v1436, 4
      %v1439 = vrot.slane %v1309, 5
      %v1440 = vsel %vm1384, %v1438, %v1439
      %v1441 = vrot.slane %v1310, 5
      %v1442 = vrot.slane %v1441, 4
      %v1443 = vrot.slane %v1311, 5
      %v1444 = vsel %vm1384, %v1442, %v1443
      %v1445 = vrot.slane %v1443, 4
      %v1446 = vrot.slane %v1312, 5
      %v1447 = vsel %vm1384, %v1445, %v1446
      %v1448 = vrot.slane %v1313, 5
      %v1449 = vrot.slane %v1448, 4
      %v1450 = vrot.slane %v1314, 5
      %v1451 = vsel %vm1384, %v1449, %v1450
      %v1452 = vrot.slane %v1450, 4
      %v1453 = vrot.slane %v1315, 5
      %v1454 = vsel %vm1384, %v1452, %v1453
      %v1455 = vrot.slane %v1316, 5
      %v1456 = vrot.slane %v1455, 4
      %v1457 = vrot.slane %v1317, 5
      %v1458 = vsel %vm1384, %v1456, %v1457
      %v1459 = vrot.slane %v1457, 4
      %v1460 = vrot.slane %v1318, 5
      %v1461 = vsel %vm1384, %v1459, %v1460
      %v1462 = vrot.slane %v1319, 5
      %v1463 = vrot.slane %v1462, 4
      %v1464 = vrot.slane %v1320, 5
      %v1465 = vsel %vm1384, %v1463, %v1464
      %v1466 = vrot.slane %v1464, 4
      %v1467 = vrot.slane %v1321, 5
      %v1468 = vsel %vm1384, %v1466, %v1467
      %v1469 = vrot.slane %v1322, 5
      %v1470 = vrot.slane %v1469, 4
      %v1471 = vrot.slane %v1323, 5
      %v1472 = vsel %vm1384, %v1470, %v1471
      %v1473 = vrot.slane %v1471, 4
      %v1474 = vrot.slane %v1324, 5
      %v1475 = vsel %vm1384, %v1473, %v1474
      %v1476 = vrot.slane %v1325, 5
      %v1477 = vrot.slane %v1476, 4
      %v1478 = vrot.slane %v1326, 5
      %v1479 = vsel %vm1384, %v1477, %v1478
      %v1480 = vrot.slane %v1478, 4
      %v1481 = vrot.slane %v1327, 5
      %v1482 = vsel %vm1384, %v1480, %v1481
      %v1483 = vrot.slane %v1328, 5
      %v1484 = vrot.slane %v1483, 4
      %v1485 = vrot.slane %v1329, 5
      %v1486 = vsel %vm1384, %v1484, %v1485
      %v1487 = vrot.slane %v1485, 4
      %v1488 = vrot.slane %v1330, 5
      %v1489 = vsel %vm1384, %v1487, %v1488
      %v1490 = vrot.slane %v1331, 5
      %v1491 = vrot.slane %v1490, 4
      %v1492 = vrot.slane %v1332, 5
      %v1493 = vsel %vm1384, %v1491, %v1492
      %v1494 = vrot.slane %v1492, 4
      %v1495 = vrot.slane %v1333, 5
      %v1496 = vsel %vm1384, %v1494, %v1495
      %1497 = vrot.lane.b32.xlu0 %v1388, 8
      %v1498 = vpop.permute.xlu0 %1497
      %1499 = vrot.lane.b32.xlu0 %v1391, 8
      %v1500 = vpop.permute.xlu0 %1499
      %1501 = vrot.lane.b32.xlu0 %v1395, 8
      %v1502 = vpop.permute.xlu0 %1501
      %1503 = vrot.lane.b32.xlu0 %v1398, 8
      %v1504 = vpop.permute.xlu0 %1503
      %1505 = vrot.lane.b32.xlu0 %v1402, 8
      %v1506 = vpop.permute.xlu0 %1505
      %1507 = vrot.lane.b32.xlu0 %v1405, 8
      %v1508 = vpop.permute.xlu0 %1507
      %1509 = vrot.lane.b32.xlu0 %v1409, 8
      %v1510 = vpop.permute.xlu0 %1509
      %1511 = vrot.lane.b32.xlu0 %v1412, 8
      %v1512 = vpop.permute.xlu0 %1511
      %1513 = vrot.lane.b32.xlu0 %v1416, 8
      %v1514 = vpop.permute.xlu0 %1513
      %1515 = vrot.lane.b32.xlu0 %v1419, 8
      %v1516 = vpop.permute.xlu0 %1515
      %1517 = vrot.lane.b32.xlu0 %v1423, 8
      %v1518 = vpop.permute.xlu0 %1517
      %1519 = vrot.lane.b32.xlu0 %v1426, 8
      %v1520 = vpop.permute.xlu0 %1519
      %1521 = vrot.lane.b32.xlu0 %v1430, 8
      %v1522 = vpop.permute.xlu0 %1521
      %1523 = vrot.lane.b32.xlu0 %v1433, 8
      %v1524 = vpop.permute.xlu0 %1523
      %1525 = vrot.lane.b32.xlu0 %v1437, 8
      %v1526 = vpop.permute.xlu0 %1525
      %1527 = vrot.lane.b32.xlu0 %v1440, 8
      %v1528 = vpop.permute.xlu0 %1527
      %1529 = vrot.lane.b32.xlu0 %v1444, 8
      %v1530 = vpop.permute.xlu0 %1529
      %1531 = vrot.lane.b32.xlu0 %v1447, 8
      %v1532 = vpop.permute.xlu0 %1531
      %1533 = vrot.lane.b32.xlu0 %v1451, 8
      %v1534 = vpop.permute.xlu0 %1533
      %1535 = vrot.lane.b32.xlu0 %v1454, 8
      %v1536 = vpop.permute.xlu0 %1535
      %1537 = vrot.lane.b32.xlu0 %v1458, 8
      %v1538 = vpop.permute.xlu0 %1537
      %1539 = vrot.lane.b32.xlu0 %v1461, 8
      %v1540 = vpop.permute.xlu0 %1539
      %1541 = vrot.lane.b32.xlu0 %v1465, 8
      %v1542 = vpop.permute.xlu0 %1541
      %1543 = vrot.lane.b32.xlu0 %v1468, 8
      %v1544 = vpop.permute.xlu0 %1543
      %1545 = vrot.lane.b32.xlu0 %v1472, 8
      %v1546 = vpop.permute.xlu0 %1545
      %1547 = vrot.lane.b32.xlu0 %v1475, 8
      %v1548 = vpop.permute.xlu0 %1547
      %1549 = vrot.lane.b32.xlu0 %v1479, 8
      %v1550 = vpop.permute.xlu0 %1549
      %1551 = vrot.lane.b32.xlu0 %v1482, 8
      %v1552 = vpop.permute.xlu0 %1551
      %1553 = vrot.lane.b32.xlu0 %v1486, 8
      %v1554 = vpop.permute.xlu0 %1553
      %1555 = vrot.lane.b32.xlu0 %v1489, 8
      %v1556 = vpop.permute.xlu0 %1555
      %1557 = vrot.lane.b32.xlu0 %v1493, 8
      %v1558 = vpop.permute.xlu0 %1557
      %1559 = vrot.lane.b32.xlu0 %v1496, 8
      %v1560 = vpop.permute.xlu0 %1559
      %vm1593 = vcmask 93248
      %1594 = vst.msk [vmem:[#allocation3] sm:$0xf] %vm1593, %v1498
      %1595 = vst.msk [vmem:[#allocation3 + $0x4] sm:$0xf] %vm1593, %v1500
      %1596 = vst.msk [vmem:[#allocation3 + $0x8] sm:$0xf] %vm1593, %v1502
      %1597 = vst.msk [vmem:[#allocation3 + $0xc] sm:$0xf] %vm1593, %v1504
      %1598 = vst.msk [vmem:[#allocation3 + $0x10] sm:$0xf] %vm1593, %v1506
      %1599 = vst.msk [vmem:[#allocation3 + $0x14] sm:$0xf] %vm1593, %v1508
      %1600 = vst.msk [vmem:[#allocation3 + $0x18] sm:$0xf] %vm1593, %v1510
      %1601 = vst.msk [vmem:[#allocation3 + $0x1c] sm:$0xf] %vm1593, %v1512
      %1602 = vst.msk [vmem:[#allocation3 + $0x20] sm:$0xf] %vm1593, %v1514
      %1603 = vst.msk [vmem:[#allocation3 + $0x24] sm:$0xf] %vm1593, %v1516
      %1604 = vst.msk [vmem:[#allocation3 + $0x28] sm:$0xf] %vm1593, %v1518
      %1605 = vst.msk [vmem:[#allocation3 + $0x2c] sm:$0xf] %vm1593, %v1520
      %1606 = vst.msk [vmem:[#allocation3 + $0x30] sm:$0xf] %vm1593, %v1522
      %1607 = vst.msk [vmem:[#allocation3 + $0x34] sm:$0xf] %vm1593, %v1524
      %1608 = vst.msk [vmem:[#allocation3 + $0x38] sm:$0xf] %vm1593, %v1526
      %1609 = vst.msk [vmem:[#allocation3 + $0x3c] sm:$0xf] %vm1593, %v1528
      %1610 = vst.msk [vmem:[#allocation3 + $0x40] sm:$0xf] %vm1593, %v1530
      %1611 = vst.msk [vmem:[#allocation3 + $0x44] sm:$0xf] %vm1593, %v1532
      %1612 = vst.msk [vmem:[#allocation3 + $0x48] sm:$0xf] %vm1593, %v1534
      %1613 = vst.msk [vmem:[#allocation3 + $0x4c] sm:$0xf] %vm1593, %v1536
      %1614 = vst.msk [vmem:[#allocation3 + $0x50] sm:$0xf] %vm1593, %v1538
      %1615 = vst.msk [vmem:[#allocation3 + $0x54] sm:$0xf] %vm1593, %v1540
      %1616 = vst.msk [vmem:[#allocation3 + $0x58] sm:$0xf] %vm1593, %v1542
      %1617 = vst.msk [vmem:[#allocation3 + $0x5c] sm:$0xf] %vm1593, %v1544
      %1618 = vst.msk [vmem:[#allocation3 + $0x60] sm:$0xf] %vm1593, %v1546
      %1619 = vst.msk [vmem:[#allocation3 + $0x64] sm:$0xf] %vm1593, %v1548
      %1620 = vst.msk [vmem:[#allocation3 + $0x68] sm:$0xf] %vm1593, %v1550
      %1621 = vst.msk [vmem:[#allocation3 + $0x6c] sm:$0xf] %vm1593, %v1552
      %1622 = vst.msk [vmem:[#allocation3 + $0x70] sm:$0xf] %vm1593, %v1554
      %1623 = vst.msk [vmem:[#allocation3 + $0x74] sm:$0xf] %vm1593, %v1556
      %1624 = vst.msk [vmem:[#allocation3 + $0x78] sm:$0xf] %vm1593, %v1558
      %1625 = vst.msk [vmem:[#allocation3 + $0x7c] sm:$0xf] %vm1593, %v1560
      %v1626 = vld [vmem:[%s232 + $0x2] sm:$0xff]
      %v1627 = vld [vmem:[%s232 + $0xa] sm:$0xff]
      %v1628 = vld [vmem:[%s232 + $0x1a] sm:$0xff]
      %v1629 = vld [vmem:[%s232 + $0x22] sm:$0xff]
      %v1630 = vld [vmem:[%s232 + $0x32] sm:$0xff]
      %v1631 = vld [vmem:[%s232 + $0x3a] sm:$0xff]
      %v1632 = vld [vmem:[%s232 + $0x4a] sm:$0xff]
      %v1633 = vld [vmem:[%s232 + $0x52] sm:$0xff]
      %v1634 = vld [vmem:[%s232 + $0x62] sm:$0xff]
      %v1635 = vld [vmem:[%s232 + $0x6a] sm:$0xff]
      %v1636 = vld [vmem:[%s232 + $0x7a] sm:$0xff]
      %v1637 = vld [vmem:[%s232 + $0x82] sm:$0xff]
      %v1638 = vld [vmem:[%s232 + $0x92] sm:$0xff]
      %v1639 = vld [vmem:[%s232 + $0x9a] sm:$0xff]
      %v1640 = vld [vmem:[%s232 + $0xaa] sm:$0xff]
      %v1641 = vld [vmem:[%s232 + $0xb2] sm:$0xff]
      %v1642 = vld [vmem:[%s232 + $0xc2] sm:$0xff]
      %v1643 = vld [vmem:[%s232 + $0xca] sm:$0xff]
      %v1644 = vld [vmem:[%s232 + $0xda] sm:$0xff]
      %v1645 = vld [vmem:[%s232 + $0xe2] sm:$0xff]
      %v1646 = vld [vmem:[%s232 + $0xf2] sm:$0xff]
      %v1647 = vld [vmem:[%s232 + $0xfa] sm:$0xff]
      %v1648 = vld [vmem:[%s232 + $0x10a] sm:$0xff]
      %v1649 = vld [vmem:[%s232 + $0x112] sm:$0xff]
      %v1650 = vld [vmem:[%s232 + $0x122] sm:$0xff]
      %v1651 = vld [vmem:[%s232 + $0x12a] sm:$0xff]
      %v1652 = vld [vmem:[%s232 + $0x13a] sm:$0xff]
      %v1653 = vld [vmem:[%s232 + $0x142] sm:$0xff]
      %v1654 = vld [vmem:[%s232 + $0x152] sm:$0xff]
      %v1655 = vld [vmem:[%s232 + $0x15a] sm:$0xff]
      %v1656 = vld [vmem:[%s232 + $0x16a] sm:$0xff]
      %v1657 = vld [vmem:[%s232 + $0x172] sm:$0xff]
      %v1658 = vld [vmem:[#allocation4] sm:$0xff]
      %v1659 = vld [vmem:[#allocation4 + $0x8] sm:$0xff]
      %v1660 = vld [vmem:[#allocation4 + $0x10] sm:$0xff]
      %v1661 = vld [vmem:[#allocation4 + $0x18] sm:$0xff]
      %v1662 = vld [vmem:[#allocation4 + $0x20] sm:$0xff]
      %v1663 = vld [vmem:[#allocation4 + $0x28] sm:$0xff]
      %v1664 = vld [vmem:[#allocation4 + $0x30] sm:$0xff]
      %v1665 = vld [vmem:[#allocation4 + $0x38] sm:$0xff]
      %v1666 = vld [vmem:[#allocation4 + $0x40] sm:$0xff]
      %v1667 = vld [vmem:[#allocation4 + $0x48] sm:$0xff]
      %v1668 = vld [vmem:[#allocation4 + $0x50] sm:$0xff]
      %v1669 = vld [vmem:[#allocation4 + $0x58] sm:$0xff]
      %v1670 = vld [vmem:[#allocation4 + $0x60] sm:$0xff]
      %v1671 = vld [vmem:[#allocation4 + $0x68] sm:$0xff]
      %v1672 = vld [vmem:[#allocation4 + $0x70] sm:$0xff]
      %v1673 = vld [vmem:[#allocation4 + $0x78] sm:$0xff]
      %v1674 = vld [vmem:[#allocation4 + $0x80] sm:$0xff]
      %v1675 = vld [vmem:[#allocation4 + $0x88] sm:$0xff]
      %v1676 = vld [vmem:[#allocation4 + $0x90] sm:$0xff]
      %v1677 = vld [vmem:[#allocation4 + $0x98] sm:$0xff]
      %v1678 = vld [vmem:[#allocation4 + $0xa0] sm:$0xff]
      %v1679 = vld [vmem:[#allocation4 + $0xa8] sm:$0xff]
      %v1680 = vld [vmem:[#allocation4 + $0xb0] sm:$0xff]
      %v1681 = vld [vmem:[#allocation4 + $0xb8] sm:$0xff]
      %v1682 = vld [vmem:[#allocation4 + $0xc0] sm:$0xff]
      %v1683 = vld [vmem:[#allocation4 + $0xc8] sm:$0xff]
      %v1684 = vld [vmem:[#allocation4 + $0xd0] sm:$0xff]
      %v1685 = vld [vmem:[#allocation4 + $0xd8] sm:$0xff]
      %v1686 = vld [vmem:[#allocation4 + $0xe0] sm:$0xff]
      %v1687 = vld [vmem:[#allocation4 + $0xe8] sm:$0xff]
      %v1688 = vld [vmem:[#allocation4 + $0xf0] sm:$0xff]
      %v1689 = vld [vmem:[#allocation4 + $0xf8] sm:$0xff]
      %v1690 = vadd.f32 %v1658, %v1626
      %v1691 = vadd.f32 %v1659, %v1627
      %v1692 = vadd.f32 %v1660, %v1628
      %v1693 = vadd.f32 %v1661, %v1629
      %v1694 = vadd.f32 %v1662, %v1630
      %v1695 = vadd.f32 %v1663, %v1631
      %v1696 = vadd.f32 %v1664, %v1632
      %v1697 = vadd.f32 %v1665, %v1633
      %v1698 = vadd.f32 %v1666, %v1634
      %v1699 = vadd.f32 %v1667, %v1635
      %v1700 = vadd.f32 %v1668, %v1636
      %v1701 = vadd.f32 %v1669, %v1637
      %v1702 = vadd.f32 %v1670, %v1638
      %v1703 = vadd.f32 %v1671, %v1639
      %v1704 = vadd.f32 %v1672, %v1640
      %v1705 = vadd.f32 %v1673, %v1641
      %v1706 = vadd.f32 %v1674, %v1642
      %v1707 = vadd.f32 %v1675, %v1643
      %v1708 = vadd.f32 %v1676, %v1644
      %v1709 = vadd.f32 %v1677, %v1645
      %v1710 = vadd.f32 %v1678, %v1646
      %v1711 = vadd.f32 %v1679, %v1647
      %v1712 = vadd.f32 %v1680, %v1648
      %v1713 = vadd.f32 %v1681, %v1649
      %v1714 = vadd.f32 %v1682, %v1650
      %v1715 = vadd.f32 %v1683, %v1651
      %v1716 = vadd.f32 %v1684, %v1652
      %v1717 = vadd.f32 %v1685, %v1653
      %v1718 = vadd.f32 %v1686, %v1654
      %v1719 = vadd.f32 %v1687, %v1655
      %v1720 = vadd.f32 %v1688, %v1656
      %v1721 = vadd.f32 %v1689, %v1657
      %1722 = vst.msk [vmem:[#allocation4] sm:$0xff] %vm561, %v1690
      %1723 = vst.msk [vmem:[#allocation4 + $0x8] sm:$0xff] %vm561, %v1691
      %1724 = vst.msk [vmem:[#allocation4 + $0x10] sm:$0xff] %vm561, %v1692
      %1725 = vst.msk [vmem:[#allocation4 + $0x18] sm:$0xff] %vm561, %v1693
      %1726 = vst.msk [vmem:[#allocation4 + $0x20] sm:$0xff] %vm561, %v1694
      %1727 = vst.msk [vmem:[#allocation4 + $0x28] sm:$0xff] %vm561, %v1695
      %1728 = vst.msk [vmem:[#allocation4 + $0x30] sm:$0xff] %vm561, %v1696
      %1729 = vst.msk [vmem:[#allocation4 + $0x38] sm:$0xff] %vm561, %v1697
      %1730 = vst.msk [vmem:[#allocation4 + $0x40] sm:$0xff] %vm561, %v1698
      %1731 = vst.msk [vmem:[#allocation4 + $0x48] sm:$0xff] %vm561, %v1699
      %1732 = vst.msk [vmem:[#allocation4 + $0x50] sm:$0xff] %vm561, %v1700
      %1733 = vst.msk [vmem:[#allocation4 + $0x58] sm:$0xff] %vm561, %v1701
      %1734 = vst.msk [vmem:[#allocation4 + $0x60] sm:$0xff] %vm561, %v1702
      %1735 = vst.msk [vmem:[#allocation4 + $0x68] sm:$0xff] %vm561, %v1703
      %1736 = vst.msk [vmem:[#allocation4 + $0x70] sm:$0xff] %vm561, %v1704
      %1737 = vst.msk [vmem:[#allocation4 + $0x78] sm:$0xff] %vm561, %v1705
      %1738 = vst.msk [vmem:[#allocation4 + $0x80] sm:$0xff] %vm561, %v1706
      %1739 = vst.msk [vmem:[#allocation4 + $0x88] sm:$0xff] %vm561, %v1707
      %1740 = vst.msk [vmem:[#allocation4 + $0x90] sm:$0xff] %vm561, %v1708
      %1741 = vst.msk [vmem:[#allocation4 + $0x98] sm:$0xff] %vm561, %v1709
      %1742 = vst.msk [vmem:[#allocation4 + $0xa0] sm:$0xff] %vm561, %v1710
      %1743 = vst.msk [vmem:[#allocation4 + $0xa8] sm:$0xff] %vm561, %v1711
      %1744 = vst.msk [vmem:[#allocation4 + $0xb0] sm:$0xff] %vm561, %v1712
      %1745 = vst.msk [vmem:[#allocation4 + $0xb8] sm:$0xff] %vm561, %v1713
      %1746 = vst.msk [vmem:[#allocation4 + $0xc0] sm:$0xff] %vm561, %v1714
      %1747 = vst.msk [vmem:[#allocation4 + $0xc8] sm:$0xff] %vm561, %v1715
      %1748 = vst.msk [vmem:[#allocation4 + $0xd0] sm:$0xff] %vm561, %v1716
      %1749 = vst.msk [vmem:[#allocation4 + $0xd8] sm:$0xff] %vm561, %v1717
      %1750 = vst.msk [vmem:[#allocation4 + $0xe0] sm:$0xff] %vm561, %v1718
      %1751 = vst.msk [vmem:[#allocation4 + $0xe8] sm:$0xff] %vm561, %v1719
      %1752 = vst.msk [vmem:[#allocation4 + $0xf0] sm:$0xff] %vm561, %v1720
      %1753 = vst.msk [vmem:[#allocation4 + $0xf8] sm:$0xff] %vm561, %v1721
      %s1754 = scalar_lea.vmem [#allocation2], 12
      %v1755 = vld [vmem:[%s1754] sm:$0xf]
      %v1756 = vld [vmem:[%s1754 + $0x4] sm:$0xf]
      %v1757 = vld [vmem:[%s1754 + $0xc] sm:$0xf]
      %v1758 = vld [vmem:[%s1754 + $0x10] sm:$0xf]
      %v1759 = vld [vmem:[%s1754 + $0x18] sm:$0xf]
      %v1760 = vld [vmem:[%s1754 + $0x1c] sm:$0xf]
      %v1761 = vld [vmem:[%s1754 + $0x24] sm:$0xf]
      %v1762 = vld [vmem:[%s1754 + $0x28] sm:$0xf]
      %v1763 = vld [vmem:[%s1754 + $0x30] sm:$0xf]
      %v1764 = vld [vmem:[%s1754 + $0x34] sm:$0xf]
      %v1765 = vld [vmem:[%s1754 + $0x3c] sm:$0xf]
      %v1766 = vld [vmem:[%s1754 + $0x40] sm:$0xf]
      %v1767 = vld [vmem:[%s1754 + $0x48] sm:$0xf]
      %v1768 = vld [vmem:[%s1754 + $0x4c] sm:$0xf]
      %v1769 = vld [vmem:[%s1754 + $0x54] sm:$0xf]
      %v1770 = vld [vmem:[%s1754 + $0x58] sm:$0xf]
      %v1771 = vld [vmem:[%s1754 + $0x60] sm:$0xf]
      %v1772 = vld [vmem:[%s1754 + $0x64] sm:$0xf]
      %v1773 = vld [vmem:[%s1754 + $0x6c] sm:$0xf]
      %v1774 = vld [vmem:[%s1754 + $0x70] sm:$0xf]
      %v1775 = vld [vmem:[%s1754 + $0x78] sm:$0xf]
      %v1776 = vld [vmem:[%s1754 + $0x7c] sm:$0xf]
      %v1777 = vld [vmem:[%s1754 + $0x84] sm:$0xf]
      %v1778 = vld [vmem:[%s1754 + $0x88] sm:$0xf]
      %v1779 = vld [vmem:[%s1754 + $0x90] sm:$0xf]
      %v1780 = vld [vmem:[%s1754 + $0x94] sm:$0xf]
      %v1781 = vld [vmem:[%s1754 + $0x9c] sm:$0xf]
      %v1782 = vld [vmem:[%s1754 + $0xa0] sm:$0xf]
      %v1783 = vld [vmem:[%s1754 + $0xa8] sm:$0xf]
      %v1784 = vld [vmem:[%s1754 + $0xac] sm:$0xf]
      %v1785 = vld [vmem:[%s1754 + $0xb4] sm:$0xf]
      %v1786 = vld [vmem:[%s1754 + $0xb8] sm:$0xf]
      %1819 = vrot.lane.b32.xlu0 %v1755, 12
      %v1820 = vpop.permute.xlu0 %1819
      %1821 = vrot.lane.b32.xlu0 %v1756, 12
      %v1822 = vpop.permute.xlu0 %1821
      %1823 = vrot.lane.b32.xlu0 %v1757, 12
      %v1824 = vpop.permute.xlu0 %1823
      %1825 = vrot.lane.b32.xlu0 %v1758, 12
      %v1826 = vpop.permute.xlu0 %1825
      %1827 = vrot.lane.b32.xlu0 %v1759, 12
      %v1828 = vpop.permute.xlu0 %1827
      %1829 = vrot.lane.b32.xlu0 %v1760, 12
      %v1830 = vpop.permute.xlu0 %1829
      %1831 = vrot.lane.b32.xlu0 %v1761, 12
      %v1832 = vpop.permute.xlu0 %1831
      %1833 = vrot.lane.b32.xlu0 %v1762, 12
      %v1834 = vpop.permute.xlu0 %1833
      %1835 = vrot.lane.b32.xlu0 %v1763, 12
      %v1836 = vpop.permute.xlu0 %1835
      %1837 = vrot.lane.b32.xlu0 %v1764, 12
      %v1838 = vpop.permute.xlu0 %1837
      %1839 = vrot.lane.b32.xlu0 %v1765, 12
      %v1840 = vpop.permute.xlu0 %1839
      %1841 = vrot.lane.b32.xlu0 %v1766, 12
      %v1842 = vpop.permute.xlu0 %1841
      %1843 = vrot.lane.b32.xlu0 %v1767, 12
      %v1844 = vpop.permute.xlu0 %1843
      %1845 = vrot.lane.b32.xlu0 %v1768, 12
      %v1846 = vpop.permute.xlu0 %1845
      %1847 = vrot.lane.b32.xlu0 %v1769, 12
      %v1848 = vpop.permute.xlu0 %1847
      %1849 = vrot.lane.b32.xlu0 %v1770, 12
      %v1850 = vpop.permute.xlu0 %1849
      %1851 = vrot.lane.b32.xlu0 %v1771, 12
      %v1852 = vpop.permute.xlu0 %1851
      %1853 = vrot.lane.b32.xlu0 %v1772, 12
      %v1854 = vpop.permute.xlu0 %1853
      %1855 = vrot.lane.b32.xlu0 %v1773, 12
      %v1856 = vpop.permute.xlu0 %1855
      %1857 = vrot.lane.b32.xlu0 %v1774, 12
      %v1858 = vpop.permute.xlu0 %1857
      %1859 = vrot.lane.b32.xlu0 %v1775, 12
      %v1860 = vpop.permute.xlu0 %1859
      %1861 = vrot.lane.b32.xlu0 %v1776, 12
      %v1862 = vpop.permute.xlu0 %1861
      %1863 = vrot.lane.b32.xlu0 %v1777, 12
      %v1864 = vpop.permute.xlu0 %1863
      %1865 = vrot.lane.b32.xlu0 %v1778, 12
      %v1866 = vpop.permute.xlu0 %1865
      %1867 = vrot.lane.b32.xlu0 %v1779, 12
      %v1868 = vpop.permute.xlu0 %1867
      %1869 = vrot.lane.b32.xlu0 %v1780, 12
      %v1870 = vpop.permute.xlu0 %1869
      %1871 = vrot.lane.b32.xlu0 %v1781, 12
      %v1872 = vpop.permute.xlu0 %1871
      %1873 = vrot.lane.b32.xlu0 %v1782, 12
      %v1874 = vpop.permute.xlu0 %1873
      %1875 = vrot.lane.b32.xlu0 %v1783, 12
      %v1876 = vpop.permute.xlu0 %1875
      %1877 = vrot.lane.b32.xlu0 %v1784, 12
      %v1878 = vpop.permute.xlu0 %1877
      %1879 = vrot.lane.b32.xlu0 %v1785, 12
      %v1880 = vpop.permute.xlu0 %1879
      %1881 = vrot.lane.b32.xlu0 %v1786, 12
      %v1882 = vpop.permute.xlu0 %1881
      %vm1915 = vcmask 126048
      %1916 = vst.msk [vmem:[#allocation3] sm:$0xf] %vm1915, %v1820
      %1917 = vst.msk [vmem:[#allocation3 + $0x4] sm:$0xf] %vm1915, %v1822
      %1918 = vst.msk [vmem:[#allocation3 + $0x8] sm:$0xf] %vm1915, %v1824
      %1919 = vst.msk [vmem:[#allocation3 + $0xc] sm:$0xf] %vm1915, %v1826
      %1920 = vst.msk [vmem:[#allocation3 + $0x10] sm:$0xf] %vm1915, %v1828
      %1921 = vst.msk [vmem:[#allocation3 + $0x14] sm:$0xf] %vm1915, %v1830
      %1922 = vst.msk [vmem:[#allocation3 + $0x18] sm:$0xf] %vm1915, %v1832
      %1923 = vst.msk [vmem:[#allocation3 + $0x1c] sm:$0xf] %vm1915, %v1834
      %1924 = vst.msk [vmem:[#allocation3 + $0x20] sm:$0xf] %vm1915, %v1836
      %1925 = vst.msk [vmem:[#allocation3 + $0x24] sm:$0xf] %vm1915, %v1838
      %1926 = vst.msk [vmem:[#allocation3 + $0x28] sm:$0xf] %vm1915, %v1840
      %1927 = vst.msk [vmem:[#allocation3 + $0x2c] sm:$0xf] %vm1915, %v1842
      %1928 = vst.msk [vmem:[#allocation3 + $0x30] sm:$0xf] %vm1915, %v1844
      %1929 = vst.msk [vmem:[#allocation3 + $0x34] sm:$0xf] %vm1915, %v1846
      %1930 = vst.msk [vmem:[#allocation3 + $0x38] sm:$0xf] %vm1915, %v1848
      %1931 = vst.msk [vmem:[#allocation3 + $0x3c] sm:$0xf] %vm1915, %v1850
      %1932 = vst.msk [vmem:[#allocation3 + $0x40] sm:$0xf] %vm1915, %v1852
      %1933 = vst.msk [vmem:[#allocation3 + $0x44] sm:$0xf] %vm1915, %v1854
      %1934 = vst.msk [vmem:[#allocation3 + $0x48] sm:$0xf] %vm1915, %v1856
      %1935 = vst.msk [vmem:[#allocation3 + $0x4c] sm:$0xf] %vm1915, %v1858
      %1936 = vst.msk [vmem:[#allocation3 + $0x50] sm:$0xf] %vm1915, %v1860
      %1937 = vst.msk [vmem:[#allocation3 + $0x54] sm:$0xf] %vm1915, %v1862
      %1938 = vst.msk [vmem:[#allocation3 + $0x58] sm:$0xf] %vm1915, %v1864
      %1939 = vst.msk [vmem:[#allocation3 + $0x5c] sm:$0xf] %vm1915, %v1866
      %1940 = vst.msk [vmem:[#allocation3 + $0x60] sm:$0xf] %vm1915, %v1868
      %1941 = vst.msk [vmem:[#allocation3 + $0x64] sm:$0xf] %vm1915, %v1870
      %1942 = vst.msk [vmem:[#allocation3 + $0x68] sm:$0xf] %vm1915, %v1872
      %1943 = vst.msk [vmem:[#allocation3 + $0x6c] sm:$0xf] %vm1915, %v1874
      %1944 = vst.msk [vmem:[#allocation3 + $0x70] sm:$0xf] %vm1915, %v1876
      %1945 = vst.msk [vmem:[#allocation3 + $0x74] sm:$0xf] %vm1915, %v1878
      %1946 = vst.msk [vmem:[#allocation3 + $0x78] sm:$0xf] %vm1915, %v1880
      %1947 = vst.msk [vmem:[#allocation3 + $0x7c] sm:$0xf] %vm1915, %v1882
      %s1948 = scalar_lea.vmem %s232, 24
      %v1949 = vld [vmem:[%s1948] sm:$0xff]
      %v1950 = vld [vmem:[%s1948 + $0x8] sm:$0xff]
      %v1951 = vld [vmem:[%s1948 + $0x18] sm:$0xff]
      %v1952 = vld [vmem:[%s1948 + $0x20] sm:$0xff]
      %v1953 = vld [vmem:[%s1948 + $0x30] sm:$0xff]
      %v1954 = vld [vmem:[%s1948 + $0x38] sm:$0xff]
      %v1955 = vld [vmem:[%s1948 + $0x48] sm:$0xff]
      %v1956 = vld [vmem:[%s1948 + $0x50] sm:$0xff]
      %v1957 = vld [vmem:[%s1948 + $0x60] sm:$0xff]
      %v1958 = vld [vmem:[%s1948 + $0x68] sm:$0xff]
      %v1959 = vld [vmem:[%s1948 + $0x78] sm:$0xff]
      %v1960 = vld [vmem:[%s1948 + $0x80] sm:$0xff]
      %v1961 = vld [vmem:[%s1948 + $0x90] sm:$0xff]
      %v1962 = vld [vmem:[%s1948 + $0x98] sm:$0xff]
      %v1963 = vld [vmem:[%s1948 + $0xa8] sm:$0xff]
      %v1964 = vld [vmem:[%s1948 + $0xb0] sm:$0xff]
      %v1965 = vld [vmem:[%s1948 + $0xc0] sm:$0xff]
      %v1966 = vld [vmem:[%s1948 + $0xc8] sm:$0xff]
      %v1967 = vld [vmem:[%s1948 + $0xd8] sm:$0xff]
      %v1968 = vld [vmem:[%s1948 + $0xe0] sm:$0xff]
      %v1969 = vld [vmem:[%s1948 + $0xf0] sm:$0xff]
      %v1970 = vld [vmem:[%s1948 + $0xf8] sm:$0xff]
      %v1971 = vld [vmem:[%s1948 + $0x108] sm:$0xff]
      %v1972 = vld [vmem:[%s1948 + $0x110] sm:$0xff]
      %v1973 = vld [vmem:[%s1948 + $0x120] sm:$0xff]
      %v1974 = vld [vmem:[%s1948 + $0x128] sm:$0xff]
      %v1975 = vld [vmem:[%s1948 + $0x138] sm:$0xff]
      %v1976 = vld [vmem:[%s1948 + $0x140] sm:$0xff]
      %v1977 = vld [vmem:[%s1948 + $0x150] sm:$0xff]
      %v1978 = vld [vmem:[%s1948 + $0x158] sm:$0xff]
      %v1979 = vld [vmem:[%s1948 + $0x168] sm:$0xff]
      %v1980 = vld [vmem:[%s1948 + $0x170] sm:$0xff]
      %v1981 = vld [vmem:[#allocation4] sm:$0xff]
      %v1982 = vld [vmem:[#allocation4 + $0x8] sm:$0xff]
      %v1983 = vld [vmem:[#allocation4 + $0x10] sm:$0xff]
      %v1984 = vld [vmem:[#allocation4 + $0x18] sm:$0xff]
      %v1985 = vld [vmem:[#allocation4 + $0x20] sm:$0xff]
      %v1986 = vld [vmem:[#allocation4 + $0x28] sm:$0xff]
      %v1987 = vld [vmem:[#allocation4 + $0x30] sm:$0xff]
      %v1988 = vld [vmem:[#allocation4 + $0x38] sm:$0xff]
      %v1989 = vld [vmem:[#allocation4 + $0x40] sm:$0xff]
      %v1990 = vld [vmem:[#allocation4 + $0x48] sm:$0xff]
      %v1991 = vld [vmem:[#allocation4 + $0x50] sm:$0xff]
      %v1992 = vld [vmem:[#allocation4 + $0x58] sm:$0xff]
      %v1993 = vld [vmem:[#allocation4 + $0x60] sm:$0xff]
      %v1994 = vld [vmem:[#allocation4 + $0x68] sm:$0xff]
      %v1995 = vld [vmem:[#allocation4 + $0x70] sm:$0xff]
      %v1996 = vld [vmem:[#allocation4 + $0x78] sm:$0xff]
      %v1997 = vld [vmem:[#allocation4 + $0x80] sm:$0xff]
      %v1998 = vld [vmem:[#allocation4 + $0x88] sm:$0xff]
      %v1999 = vld [vmem:[#allocation4 + $0x90] sm:$0xff]
      %v2000 = vld [vmem:[#allocation4 + $0x98] sm:$0xff]
      %v2001 = vld [vmem:[#allocation4 + $0xa0] sm:$0xff]
      %v2002 = vld [vmem:[#allocation4 + $0xa8] sm:$0xff]
      %v2003 = vld [vmem:[#allocation4 + $0xb0] sm:$0xff]
      %v2004 = vld [vmem:[#allocation4 + $0xb8] sm:$0xff]
      %v2005 = vld [vmem:[#allocation4 + $0xc0] sm:$0xff]
      %v2006 = vld [vmem:[#allocation4 + $0xc8] sm:$0xff]
      %v2007 = vld [vmem:[#allocation4 + $0xd0] sm:$0xff]
      %v2008 = vld [vmem:[#allocation4 + $0xd8] sm:$0xff]
      %v2009 = vld [vmem:[#allocation4 + $0xe0] sm:$0xff]
      %v2010 = vld [vmem:[#allocation4 + $0xe8] sm:$0xff]
      %v2011 = vld [vmem:[#allocation4 + $0xf0] sm:$0xff]
      %v2012 = vld [vmem:[#allocation4 + $0xf8] sm:$0xff]
      %v2013 = vadd.f32 %v1981, %v1949
      %v2014 = vadd.f32 %v1982, %v1950
      %v2015 = vadd.f32 %v1983, %v1951
      %v2016 = vadd.f32 %v1984, %v1952
      %v2017 = vadd.f32 %v1985, %v1953
      %v2018 = vadd.f32 %v1986, %v1954
      %v2019 = vadd.f32 %v1987, %v1955
      %v2020 = vadd.f32 %v1988, %v1956
      %v2021 = vadd.f32 %v1989, %v1957
      %v2022 = vadd.f32 %v1990, %v1958
      %v2023 = vadd.f32 %v1991, %v1959
      %v2024 = vadd.f32 %v1992, %v1960
      %v2025 = vadd.f32 %v1993, %v1961
      %v2026 = vadd.f32 %v1994, %v1962
      %v2027 = vadd.f32 %v1995, %v1963
      %v2028 = vadd.f32 %v1996, %v1964
      %v2029 = vadd.f32 %v1997, %v1965
      %v2030 = vadd.f32 %v1998, %v1966
      %v2031 = vadd.f32 %v1999, %v1967
      %v2032 = vadd.f32 %v2000, %v1968
      %v2033 = vadd.f32 %v2001, %v1969
      %v2034 = vadd.f32 %v2002, %v1970
      %v2035 = vadd.f32 %v2003, %v1971
      %v2036 = vadd.f32 %v2004, %v1972
      %v2037 = vadd.f32 %v2005, %v1973
      %v2038 = vadd.f32 %v2006, %v1974
      %v2039 = vadd.f32 %v2007, %v1975
      %v2040 = vadd.f32 %v2008, %v1976
      %v2041 = vadd.f32 %v2009, %v1977
      %v2042 = vadd.f32 %v2010, %v1978
      %v2043 = vadd.f32 %v2011, %v1979
      %v2044 = vadd.f32 %v2012, %v1980
      %2045 = vst.msk [vmem:[#allocation4] sm:$0xff] %vm561, %v2013
      %2046 = vst.msk [vmem:[#allocation4 + $0x8] sm:$0xff] %vm561, %v2014
      %2047 = vst.msk [vmem:[#allocation4 + $0x10] sm:$0xff] %vm561, %v2015
      %2048 = vst.msk [vmem:[#allocation4 + $0x18] sm:$0xff] %vm561, %v2016
      %2049 = vst.msk [vmem:[#allocation4 + $0x20] sm:$0xff] %vm561, %v2017
      %2050 = vst.msk [vmem:[#allocation4 + $0x28] sm:$0xff] %vm561, %v2018
      %2051 = vst.msk [vmem:[#allocation4 + $0x30] sm:$0xff] %vm561, %v2019
      %2052 = vst.msk [vmem:[#allocation4 + $0x38] sm:$0xff] %vm561, %v2020
      %2053 = vst.msk [vmem:[#allocation4 + $0x40] sm:$0xff] %vm561, %v2021
      %2054 = vst.msk [vmem:[#allocation4 + $0x48] sm:$0xff] %vm561, %v2022
      %2055 = vst.msk [vmem:[#allocation4 + $0x50] sm:$0xff] %vm561, %v2023
      %2056 = vst.msk [vmem:[#allocation4 + $0x58] sm:$0xff] %vm561, %v2024
      %2057 = vst.msk [vmem:[#allocation4 + $0x60] sm:$0xff] %vm561, %v2025
      %2058 = vst.msk [vmem:[#allocation4 + $0x68] sm:$0xff] %vm561, %v2026
      %2059 = vst.msk [vmem:[#allocation4 + $0x70] sm:$0xff] %vm561, %v2027
      %2060 = vst.msk [vmem:[#allocation4 + $0x78] sm:$0xff] %vm561, %v2028
      %2061 = vst.msk [vmem:[#allocation4 + $0x80] sm:$0xff] %vm561, %v2029
      %2062 = vst.msk [vmem:[#allocation4 + $0x88] sm:$0xff] %vm561, %v2030
      %2063 = vst.msk [vmem:[#allocation4 + $0x90] sm:$0xff] %vm561, %v2031
      %2064 = vst.msk [vmem:[#allocation4 + $0x98] sm:$0xff] %vm561, %v2032
      %2065 = vst.msk [vmem:[#allocation4 + $0xa0] sm:$0xff] %vm561, %v2033
      %2066 = vst.msk [vmem:[#allocation4 + $0xa8] sm:$0xff] %vm561, %v2034
      %2067 = vst.msk [vmem:[#allocation4 + $0xb0] sm:$0xff] %vm561, %v2035
      %2068 = vst.msk [vmem:[#allocation4 + $0xb8] sm:$0xff] %vm561, %v2036
      %2069 = vst.msk [vmem:[#allocation4 + $0xc0] sm:$0xff] %vm561, %v2037
      %2070 = vst.msk [vmem:[#allocation4 + $0xc8] sm:$0xff] %vm561, %v2038
      %2071 = vst.msk [vmem:[#allocation4 + $0xd0] sm:$0xff] %vm561, %v2039
      %2072 = vst.msk [vmem:[#allocation4 + $0xd8] sm:$0xff] %vm561, %v2040
      %2073 = vst.msk [vmem:[#allocation4 + $0xe0] sm:$0xff] %vm561, %v2041
      %2074 = vst.msk [vmem:[#allocation4 + $0xe8] sm:$0xff] %vm561, %v2042
      %2075 = vst.msk [vmem:[#allocation4 + $0xf0] sm:$0xff] %vm561, %v2043
      %2076 = vst.msk [vmem:[#allocation4 + $0xf8] sm:$0xff] %vm561, %v2044
      %v2077 = vld [vmem:[%s1754] sm:$0xf]
      %v2078 = vld [vmem:[%s1754 + $0x4] sm:$0xf]
      %v2079 = vld [vmem:[%s1754 + $0x8] sm:$0x1]
      %v2080 = vld [vmem:[%s1754 + $0xc] sm:$0xf]
      %v2081 = vld [vmem:[%s1754 + $0x10] sm:$0xf]
      %v2082 = vld [vmem:[%s1754 + $0x14] sm:$0x1]
      %v2083 = vld [vmem:[%s1754 + $0x18] sm:$0xf]
      %v2084 = vld [vmem:[%s1754 + $0x1c] sm:$0xf]
      %v2085 = vld [vmem:[%s1754 + $0x20] sm:$0x1]
      %v2086 = vld [vmem:[%s1754 + $0x24] sm:$0xf]
      %v2087 = vld [vmem:[%s1754 + $0x28] sm:$0xf]
      %v2088 = vld [vmem:[%s1754 + $0x2c] sm:$0x1]
      %v2089 = vld [vmem:[%s1754 + $0x30] sm:$0xf]
      %v2090 = vld [vmem:[%s1754 + $0x34] sm:$0xf]
      %v2091 = vld [vmem:[%s1754 + $0x38] sm:$0x1]
      %v2092 = vld [vmem:[%s1754 + $0x3c] sm:$0xf]
      %v2093 = vld [vmem:[%s1754 + $0x40] sm:$0xf]
      %v2094 = vld [vmem:[%s1754 + $0x44] sm:$0x1]
      %v2095 = vld [vmem:[%s1754 + $0x48] sm:$0xf]
      %v2096 = vld [vmem:[%s1754 + $0x4c] sm:$0xf]
      %v2097 = vld [vmem:[%s1754 + $0x50] sm:$0x1]
      %v2098 = vld [vmem:[%s1754 + $0x54] sm:$0xf]
      %v2099 = vld [vmem:[%s1754 + $0x58] sm:$0xf]
      %v2100 = vld [vmem:[%s1754 + $0x5c] sm:$0x1]
      %v2101 = vld [vmem:[%s1754 + $0x60] sm:$0xf]
      %v2102 = vld [vmem:[%s1754 + $0x64] sm:$0xf]
      %v2103 = vld [vmem:[%s1754 + $0x68] sm:$0x1]
      %v2104 = vld [vmem:[%s1754 + $0x6c] sm:$0xf]
      %v2105 = vld [vmem:[%s1754 + $0x70] sm:$0xf]
      %v2106 = vld [vmem:[%s1754 + $0x74] sm:$0x1]
      %v2107 = vld [vmem:[%s1754 + $0x78] sm:$0xf]
      %v2108 = vld [vmem:[%s1754 + $0x7c] sm:$0xf]
      %v2109 = vld [vmem:[%s1754 + $0x80] sm:$0x1]
      %v2110 = vld [vmem:[%s1754 + $0x84] sm:$0xf]
      %v2111 = vld [vmem:[%s1754 + $0x88] sm:$0xf]
      %v2112 = vld [vmem:[%s1754 + $0x8c] sm:$0x1]
      %v2113 = vld [vmem:[%s1754 + $0x90] sm:$0xf]
      %v2114 = vld [vmem:[%s1754 + $0x94] sm:$0xf]
      %v2115 = vld [vmem:[%s1754 + $0x98] sm:$0x1]
      %v2116 = vld [vmem:[%s1754 + $0x9c] sm:$0xf]
      %v2117 = vld [vmem:[%s1754 + $0xa0] sm:$0xf]
      %v2118 = vld [vmem:[%s1754 + $0xa4] sm:$0x1]
      %v2119 = vld [vmem:[%s1754 + $0xa8] sm:$0xf]
      %v2120 = vld [vmem:[%s1754 + $0xac] sm:$0xf]
      %v2121 = vld [vmem:[%s1754 + $0xb0] sm:$0x1]
      %v2122 = vld [vmem:[%s1754 + $0xb4] sm:$0xf]
      %v2123 = vld [vmem:[%s1754 + $0xb8] sm:$0xf]
      %v2124 = vld [vmem:[%s1754 + $0xbc] sm:$0x1]
      %v2126 = vshrl.u32 %v2077, 16
      %v2128 = vrot.slane %v2126, 4
      %v2129 = vshll.u32 %v2077, 16
      %v2131 = vrot.slane %v2129, 5
      %v2132 = vor.u32 %v2128, %v2131
      %v2133 = vrot.slane %v2132, 4
      %v2135 = vshll.u32 %v2078, 16
      %v2137 = vrot.slane %v2135, 5
      %v2138 = vsel %vm644, %v2133, %v2137
      %v2139 = vshrl.u32 %v2078, 16
      %v2141 = vrot.slane %v2139, 4
      %v2142 = vor.u32 %v2141, %v2137
      %v2143 = vrot.slane %v2142, 4
      %v2145 = vshll.u32 %v2079, 16
      %v2147 = vrot.slane %v2145, 5
      %v2148 = vsel %vm644, %v2143, %v2147
      %v2150 = vshrl.u32 %v2080, 16
      %v2152 = vrot.slane %v2150, 4
      %v2153 = vshll.u32 %v2080, 16
      %v2155 = vrot.slane %v2153, 5
      %v2156 = vor.u32 %v2152, %v2155
      %v2157 = vrot.slane %v2156, 4
      %v2159 = vshll.u32 %v2081, 16
      %v2161 = vrot.slane %v2159, 5
      %v2162 = vsel %vm644, %v2157, %v2161
      %v2163 = vshrl.u32 %v2081, 16
      %v2165 = vrot.slane %v2163, 4
      %v2166 = vor.u32 %v2165, %v2161
      %v2167 = vrot.slane %v2166, 4
      %v2169 = vshll.u32 %v2082, 16
      %v2171 = vrot.slane %v2169, 5
      %v2172 = vsel %vm644, %v2167, %v2171
      %v2174 = vshrl.u32 %v2083, 16
      %v2176 = vrot.slane %v2174, 4
      %v2177 = vshll.u32 %v2083, 16
      %v2179 = vrot.slane %v2177, 5
      %v2180 = vor.u32 %v2176, %v2179
      %v2181 = vrot.slane %v2180, 4
      %v2183 = vshll.u32 %v2084, 16
      %v2185 = vrot.slane %v2183, 5
      %v2186 = vsel %vm644, %v2181, %v2185
      %v2187 = vshrl.u32 %v2084, 16
      %v2189 = vrot.slane %v2187, 4
      %v2190 = vor.u32 %v2189, %v2185
      %v2191 = vrot.slane %v2190, 4
      %v2193 = vshll.u32 %v2085, 16
      %v2195 = vrot.slane %v2193, 5
      %v2196 = vsel %vm644, %v2191, %v2195
      %v2198 = vshrl.u32 %v2086, 16
      %v2200 = vrot.slane %v2198, 4
      %v2201 = vshll.u32 %v2086, 16
      %v2203 = vrot.slane %v2201, 5
      %v2204 = vor.u32 %v2200, %v2203
      %v2205 = vrot.slane %v2204, 4
      %v2207 = vshll.u32 %v2087, 16
      %v2209 = vrot.slane %v2207, 5
      %v2210 = vsel %vm644, %v2205, %v2209
      %v2211 = vshrl.u32 %v2087, 16
      %v2213 = vrot.slane %v2211, 4
      %v2214 = vor.u32 %v2213, %v2209
      %v2215 = vrot.slane %v2214, 4
      %v2217 = vshll.u32 %v2088, 16
      %v2219 = vrot.slane %v2217, 5
      %v2220 = vsel %vm644, %v2215, %v2219
      %v2222 = vshrl.u32 %v2089, 16
      %v2224 = vrot.slane %v2222, 4
      %v2225 = vshll.u32 %v2089, 16
      %v2227 = vrot.slane %v2225, 5
      %v2228 = vor.u32 %v2224, %v2227
      %v2229 = vrot.slane %v2228, 4
      %v2231 = vshll.u32 %v2090, 16
      %v2233 = vrot.slane %v2231, 5
      %v2234 = vsel %vm644, %v2229, %v2233
      %v2235 = vshrl.u32 %v2090, 16
      %v2237 = vrot.slane %v2235, 4
      %v2238 = vor.u32 %v2237, %v2233
      %v2239 = vrot.slane %v2238, 4
      %v2241 = vshll.u32 %v2091, 16
      %v2243 = vrot.slane %v2241, 5
      %v2244 = vsel %vm644, %v2239, %v2243
      %v2246 = vshrl.u32 %v2092, 16
      %v2248 = vrot.slane %v2246, 4
      %v2249 = vshll.u32 %v2092, 16
      %v2251 = vrot.slane %v2249, 5
      %v2252 = vor.u32 %v2248, %v2251
      %v2253 = vrot.slane %v2252, 4
      %v2255 = vshll.u32 %v2093, 16
      %v2257 = vrot.slane %v2255, 5
      %v2258 = vsel %vm644, %v2253, %v2257
      %v2259 = vshrl.u32 %v2093, 16
      %v2261 = vrot.slane %v2259, 4
      %v2262 = vor.u32 %v2261, %v2257
      %v2263 = vrot.slane %v2262, 4
      %v2265 = vshll.u32 %v2094, 16
      %v2267 = vrot.slane %v2265, 5
      %v2268 = vsel %vm644, %v2263, %v2267
      %v2270 = vshrl.u32 %v2095, 16
      %v2272 = vrot.slane %v2270, 4
      %v2273 = vshll.u32 %v2095, 16
      %v2275 = vrot.slane %v2273, 5
      %v2276 = vor.u32 %v2272, %v2275
      %v2277 = vrot.slane %v2276, 4
      %v2279 = vshll.u32 %v2096, 16
      %v2281 = vrot.slane %v2279, 5
      %v2282 = vsel %vm644, %v2277, %v2281
      %v2283 = vshrl.u32 %v2096, 16
      %v2285 = vrot.slane %v2283, 4
      %v2286 = vor.u32 %v2285, %v2281
      %v2287 = vrot.slane %v2286, 4
      %v2289 = vshll.u32 %v2097, 16
      %v2291 = vrot.slane %v2289, 5
      %v2292 = vsel %vm644, %v2287, %v2291
      %v2294 = vshrl.u32 %v2098, 16
      %v2296 = vrot.slane %v2294, 4
      %v2297 = vshll.u32 %v2098, 16
      %v2299 = vrot.slane %v2297, 5
      %v2300 = vor.u32 %v2296, %v2299
      %v2301 = vrot.slane %v2300, 4
      %v2303 = vshll.u32 %v2099, 16
      %v2305 = vrot.slane %v2303, 5
      %v2306 = vsel %vm644, %v2301, %v2305
      %v2307 = vshrl.u32 %v2099, 16
      %v2309 = vrot.slane %v2307, 4
      %v2310 = vor.u32 %v2309, %v2305
      %v2311 = vrot.slane %v2310, 4
      %v2313 = vshll.u32 %v2100, 16
      %v2315 = vrot.slane %v2313, 5
      %v2316 = vsel %vm644, %v2311, %v2315
      %v2318 = vshrl.u32 %v2101, 16
      %v2320 = vrot.slane %v2318, 4
      %v2321 = vshll.u32 %v2101, 16
      %v2323 = vrot.slane %v2321, 5
      %v2324 = vor.u32 %v2320, %v2323
      %v2325 = vrot.slane %v2324, 4
      %v2327 = vshll.u32 %v2102, 16
      %v2329 = vrot.slane %v2327, 5
      %v2330 = vsel %vm644, %v2325, %v2329
      %v2331 = vshrl.u32 %v2102, 16
      %v2333 = vrot.slane %v2331, 4
      %v2334 = vor.u32 %v2333, %v2329
      %v2335 = vrot.slane %v2334, 4
      %v2337 = vshll.u32 %v2103, 16
      %v2339 = vrot.slane %v2337, 5
      %v2340 = vsel %vm644, %v2335, %v2339
      %v2342 = vshrl.u32 %v2104, 16
      %v2344 = vrot.slane %v2342, 4
      %v2345 = vshll.u32 %v2104, 16
      %v2347 = vrot.slane %v2345, 5
      %v2348 = vor.u32 %v2344, %v2347
      %v2349 = vrot.slane %v2348, 4
      %v2351 = vshll.u32 %v2105, 16
      %v2353 = vrot.slane %v2351, 5
      %v2354 = vsel %vm644, %v2349, %v2353
      %v2355 = vshrl.u32 %v2105, 16
      %v2357 = vrot.slane %v2355, 4
      %v2358 = vor.u32 %v2357, %v2353
      %v2359 = vrot.slane %v2358, 4
      %v2361 = vshll.u32 %v2106, 16
      %v2363 = vrot.slane %v2361, 5
      %v2364 = vsel %vm644, %v2359, %v2363
      %v2366 = vshrl.u32 %v2107, 16
      %v2368 = vrot.slane %v2366, 4
      %v2369 = vshll.u32 %v2107, 16
      %v2371 = vrot.slane %v2369, 5
      %v2372 = vor.u32 %v2368, %v2371
      %v2373 = vrot.slane %v2372, 4
      %v2375 = vshll.u32 %v2108, 16
      %v2377 = vrot.slane %v2375, 5
      %v2378 = vsel %vm644, %v2373, %v2377
      %v2379 = vshrl.u32 %v2108, 16
      %v2381 = vrot.slane %v2379, 4
      %v2382 = vor.u32 %v2381, %v2377
      %v2383 = vrot.slane %v2382, 4
      %v2385 = vshll.u32 %v2109, 16
      %v2387 = vrot.slane %v2385, 5
      %v2388 = vsel %vm644, %v2383, %v2387
      %v2390 = vshrl.u32 %v2110, 16
      %v2392 = vrot.slane %v2390, 4
      %v2393 = vshll.u32 %v2110, 16
      %v2395 = vrot.slane %v2393, 5
      %v2396 = vor.u32 %v2392, %v2395
      %v2397 = vrot.slane %v2396, 4
      %v2399 = vshll.u32 %v2111, 16
      %v2401 = vrot.slane %v2399, 5
      %v2402 = vsel %vm644, %v2397, %v2401
      %v2403 = vshrl.u32 %v2111, 16
      %v2405 = vrot.slane %v2403, 4
      %v2406 = vor.u32 %v2405, %v2401
      %v2407 = vrot.slane %v2406, 4
      %v2409 = vshll.u32 %v2112, 16
      %v2411 = vrot.slane %v2409, 5
      %v2412 = vsel %vm644, %v2407, %v2411
      %v2414 = vshrl.u32 %v2113, 16
      %v2416 = vrot.slane %v2414, 4
      %v2417 = vshll.u32 %v2113, 16
      %v2419 = vrot.slane %v2417, 5
      %v2420 = vor.u32 %v2416, %v2419
      %v2421 = vrot.slane %v2420, 4
      %v2423 = vshll.u32 %v2114, 16
      %v2425 = vrot.slane %v2423, 5
      %v2426 = vsel %vm644, %v2421, %v2425
      %v2427 = vshrl.u32 %v2114, 16
      %v2429 = vrot.slane %v2427, 4
      %v2430 = vor.u32 %v2429, %v2425
      %v2431 = vrot.slane %v2430, 4
      %v2433 = vshll.u32 %v2115, 16
      %v2435 = vrot.slane %v2433, 5
      %v2436 = vsel %vm644, %v2431, %v2435
      %v2438 = vshrl.u32 %v2116, 16
      %v2440 = vrot.slane %v2438, 4
      %v2441 = vshll.u32 %v2116, 16
      %v2443 = vrot.slane %v2441, 5
      %v2444 = vor.u32 %v2440, %v2443
      %v2445 = vrot.slane %v2444, 4
      %v2447 = vshll.u32 %v2117, 16
      %v2449 = vrot.slane %v2447, 5
      %v2450 = vsel %vm644, %v2445, %v2449
      %v2451 = vshrl.u32 %v2117, 16
      %v2453 = vrot.slane %v2451, 4
      %v2454 = vor.u32 %v2453, %v2449
      %v2455 = vrot.slane %v2454, 4
      %v2457 = vshll.u32 %v2118, 16
      %v2459 = vrot.slane %v2457, 5
      %v2460 = vsel %vm644, %v2455, %v2459
      %v2462 = vshrl.u32 %v2119, 16
      %v2464 = vrot.slane %v2462, 4
      %v2465 = vshll.u32 %v2119, 16
      %v2467 = vrot.slane %v2465, 5
      %v2468 = vor.u32 %v2464, %v2467
      %v2469 = vrot.slane %v2468, 4
      %v2471 = vshll.u32 %v2120, 16
      %v2473 = vrot.slane %v2471, 5
      %v2474 = vsel %vm644, %v2469, %v2473
      %v2475 = vshrl.u32 %v2120, 16
      %v2477 = vrot.slane %v2475, 4
      %v2478 = vor.u32 %v2477, %v2473
      %v2479 = vrot.slane %v2478, 4
      %v2481 = vshll.u32 %v2121, 16
      %v2483 = vrot.slane %v2481, 5
      %v2484 = vsel %vm644, %v2479, %v2483
      %v2486 = vshrl.u32 %v2122, 16
      %v2488 = vrot.slane %v2486, 4
      %v2489 = vshll.u32 %v2122, 16
      %v2491 = vrot.slane %v2489, 5
      %v2492 = vor.u32 %v2488, %v2491
      %v2493 = vrot.slane %v2492, 4
      %v2495 = vshll.u32 %v2123, 16
      %v2497 = vrot.slane %v2495, 5
      %v2498 = vsel %vm644, %v2493, %v2497
      %v2499 = vshrl.u32 %v2123, 16
      %v2501 = vrot.slane %v2499, 4
      %v2502 = vor.u32 %v2501, %v2497
      %v2503 = vrot.slane %v2502, 4
      %v2505 = vshll.u32 %v2124, 16
      %v2507 = vrot.slane %v2505, 5
      %v2508 = vsel %vm644, %v2503, %v2507
      %2509 = vrot.lane.b32.xlu0 %v2138, 16
      %v2510 = vpop.permute.xlu0 %2509
      %2511 = vrot.lane.b32.xlu0 %v2148, 16
      %v2512 = vpop.permute.xlu0 %2511
      %2513 = vrot.lane.b32.xlu0 %v2162, 16
      %v2514 = vpop.permute.xlu0 %2513
      %2515 = vrot.lane.b32.xlu0 %v2172, 16
      %v2516 = vpop.permute.xlu0 %2515
      %2517 = vrot.lane.b32.xlu0 %v2186, 16
      %v2518 = vpop.permute.xlu0 %2517
      %2519 = vrot.lane.b32.xlu0 %v2196, 16
      %v2520 = vpop.permute.xlu0 %2519
      %2521 = vrot.lane.b32.xlu0 %v2210, 16
      %v2522 = vpop.permute.xlu0 %2521
      %2523 = vrot.lane.b32.xlu0 %v2220, 16
      %v2524 = vpop.permute.xlu0 %2523
      %2525 = vrot.lane.b32.xlu0 %v2234, 16
      %v2526 = vpop.permute.xlu0 %2525
      %2527 = vrot.lane.b32.xlu0 %v2244, 16
      %v2528 = vpop.permute.xlu0 %2527
      %2529 = vrot.lane.b32.xlu0 %v2258, 16
      %v2530 = vpop.permute.xlu0 %2529
      %2531 = vrot.lane.b32.xlu0 %v2268, 16
      %v2532 = vpop.permute.xlu0 %2531
      %2533 = vrot.lane.b32.xlu0 %v2282, 16
      %v2534 = vpop.permute.xlu0 %2533
      %2535 = vrot.lane.b32.xlu0 %v2292, 16
      %v2536 = vpop.permute.xlu0 %2535
      %2537 = vrot.lane.b32.xlu0 %v2306, 16
      %v2538 = vpop.permute.xlu0 %2537
      %2539 = vrot.lane.b32.xlu0 %v2316, 16
      %v2540 = vpop.permute.xlu0 %2539
      %2541 = vrot.lane.b32.xlu0 %v2330, 16
      %v2542 = vpop.permute.xlu0 %2541
      %2543 = vrot.lane.b32.xlu0 %v2340, 16
      %v2544 = vpop.permute.xlu0 %2543
      %2545 = vrot.lane.b32.xlu0 %v2354, 16
      %v2546 = vpop.permute.xlu0 %2545
      %2547 = vrot.lane.b32.xlu0 %v2364, 16
      %v2548 = vpop.permute.xlu0 %2547
      %2549 = vrot.lane.b32.xlu0 %v2378, 16
      %v2550 = vpop.permute.xlu0 %2549
      %2551 = vrot.lane.b32.xlu0 %v2388, 16
      %v2552 = vpop.permute.xlu0 %2551
      %2553 = vrot.lane.b32.xlu0 %v2402, 16
      %v2554 = vpop.permute.xlu0 %2553
      %2555 = vrot.lane.b32.xlu0 %v2412, 16
      %v2556 = vpop.permute.xlu0 %2555
      %2557 = vrot.lane.b32.xlu0 %v2426, 16
      %v2558 = vpop.permute.xlu0 %2557
      %2559 = vrot.lane.b32.xlu0 %v2436, 16
      %v2560 = vpop.permute.xlu0 %2559
      %2561 = vrot.lane.b32.xlu0 %v2450, 16
      %v2562 = vpop.permute.xlu0 %2561
      %2563 = vrot.lane.b32.xlu0 %v2460, 16
      %v2564 = vpop.permute.xlu0 %2563
      %2565 = vrot.lane.b32.xlu0 %v2474, 16
      %v2566 = vpop.permute.xlu0 %2565
      %2567 = vrot.lane.b32.xlu0 %v2484, 16
      %v2568 = vpop.permute.xlu0 %2567
      %2569 = vrot.lane.b32.xlu0 %v2498, 16
      %v2570 = vpop.permute.xlu0 %2569
      %2571 = vrot.lane.b32.xlu0 %v2508, 16
      %v2572 = vpop.permute.xlu0 %2571
      %vm2605 = vcmask 158848
      %2606 = vst.msk [vmem:[#allocation3] sm:$0xf] %vm2605, %v2510
      %2607 = vst.msk [vmem:[#allocation3 + $0x4] sm:$0xf] %vm2605, %v2512
      %2608 = vst.msk [vmem:[#allocation3 + $0x8] sm:$0xf] %vm2605, %v2514
      %2609 = vst.msk [vmem:[#allocation3 + $0xc] sm:$0xf] %vm2605, %v2516
      %2610 = vst.msk [vmem:[#allocation3 + $0x10] sm:$0xf] %vm2605, %v2518
      %2611 = vst.msk [vmem:[#allocation3 + $0x14] sm:$0xf] %vm2605, %v2520
      %2612 = vst.msk [vmem:[#allocation3 + $0x18] sm:$0xf] %vm2605, %v2522
      %2613 = vst.msk [vmem:[#allocation3 + $0x1c] sm:$0xf] %vm2605, %v2524
      %2614 = vst.msk [vmem:[#allocation3 + $0x20] sm:$0xf] %vm2605, %v2526
      %2615 = vst.msk [vmem:[#allocation3 + $0x24] sm:$0xf] %vm2605, %v2528
      %2616 = vst.msk [vmem:[#allocation3 + $0x28] sm:$0xf] %vm2605, %v2530
      %2617 = vst.msk [vmem:[#allocation3 + $0x2c] sm:$0xf] %vm2605, %v2532
      %2618 = vst.msk [vmem:[#allocation3 + $0x30] sm:$0xf] %vm2605, %v2534
      %2619 = vst.msk [vmem:[#allocation3 + $0x34] sm:$0xf] %vm2605, %v2536
      %2620 = vst.msk [vmem:[#allocation3 + $0x38] sm:$0xf] %vm2605, %v2538
      %2621 = vst.msk [vmem:[#allocation3 + $0x3c] sm:$0xf] %vm2605, %v2540
      %2622 = vst.msk [vmem:[#allocation3 + $0x40] sm:$0xf] %vm2605, %v2542
      %2623 = vst.msk [vmem:[#allocation3 + $0x44] sm:$0xf] %vm2605, %v2544
      %2624 = vst.msk [vmem:[#allocation3 + $0x48] sm:$0xf] %vm2605, %v2546
      %2625 = vst.msk [vmem:[#allocation3 + $0x4c] sm:$0xf] %vm2605, %v2548
      %2626 = vst.msk [vmem:[#allocation3 + $0x50] sm:$0xf] %vm2605, %v2550
      %2627 = vst.msk [vmem:[#allocation3 + $0x54] sm:$0xf] %vm2605, %v2552
      %2628 = vst.msk [vmem:[#allocation3 + $0x58] sm:$0xf] %vm2605, %v2554
      %2629 = vst.msk [vmem:[#allocation3 + $0x5c] sm:$0xf] %vm2605, %v2556
      %2630 = vst.msk [vmem:[#allocation3 + $0x60] sm:$0xf] %vm2605, %v2558
      %2631 = vst.msk [vmem:[#allocation3 + $0x64] sm:$0xf] %vm2605, %v2560
      %2632 = vst.msk [vmem:[#allocation3 + $0x68] sm:$0xf] %vm2605, %v2562
      %2633 = vst.msk [vmem:[#allocation3 + $0x6c] sm:$0xf] %vm2605, %v2564
      %2634 = vst.msk [vmem:[#allocation3 + $0x70] sm:$0xf] %vm2605, %v2566
      %2635 = vst.msk [vmem:[#allocation3 + $0x74] sm:$0xf] %vm2605, %v2568
      %2636 = vst.msk [vmem:[#allocation3 + $0x78] sm:$0xf] %vm2605, %v2570
      %2637 = vst.msk [vmem:[#allocation3 + $0x7c] sm:$0xf] %vm2605, %v2572
      %v2638 = vld [vmem:[%s1948 + $0x1] sm:$0xff]
      %v2639 = vld [vmem:[%s1948 + $0x9] sm:$0xff]
      %v2640 = vld [vmem:[%s1948 + $0x19] sm:$0xff]
      %v2641 = vld [vmem:[%s1948 + $0x21] sm:$0xff]
      %v2642 = vld [vmem:[%s1948 + $0x31] sm:$0xff]
      %v2643 = vld [vmem:[%s1948 + $0x39] sm:$0xff]
      %v2644 = vld [vmem:[%s1948 + $0x49] sm:$0xff]
      %v2645 = vld [vmem:[%s1948 + $0x51] sm:$0xff]
      %v2646 = vld [vmem:[%s1948 + $0x61] sm:$0xff]
      %v2647 = vld [vmem:[%s1948 + $0x69] sm:$0xff]
      %v2648 = vld [vmem:[%s1948 + $0x79] sm:$0xff]
      %v2649 = vld [vmem:[%s1948 + $0x81] sm:$0xff]
      %v2650 = vld [vmem:[%s1948 + $0x91] sm:$0xff]
      %v2651 = vld [vmem:[%s1948 + $0x99] sm:$0xff]
      %v2652 = vld [vmem:[%s1948 + $0xa9] sm:$0xff]
      %v2653 = vld [vmem:[%s1948 + $0xb1] sm:$0xff]
      %v2654 = vld [vmem:[%s1948 + $0xc1] sm:$0xff]
      %v2655 = vld [vmem:[%s1948 + $0xc9] sm:$0xff]
      %v2656 = vld [vmem:[%s1948 + $0xd9] sm:$0xff]
      %v2657 = vld [vmem:[%s1948 + $0xe1] sm:$0xff]
      %v2658 = vld [vmem:[%s1948 + $0xf1] sm:$0xff]
      %v2659 = vld [vmem:[%s1948 + $0xf9] sm:$0xff]
      %v2660 = vld [vmem:[%s1948 + $0x109] sm:$0xff]
      %v2661 = vld [vmem:[%s1948 + $0x111] sm:$0xff]
      %v2662 = vld [vmem:[%s1948 + $0x121] sm:$0xff]
      %v2663 = vld [vmem:[%s1948 + $0x129] sm:$0xff]
      %v2664 = vld [vmem:[%s1948 + $0x139] sm:$0xff]
      %v2665 = vld [vmem:[%s1948 + $0x141] sm:$0xff]
      %v2666 = vld [vmem:[%s1948 + $0x151] sm:$0xff]
      %v2667 = vld [vmem:[%s1948 + $0x159] sm:$0xff]
      %v2668 = vld [vmem:[%s1948 + $0x169] sm:$0xff]
      %v2669 = vld [vmem:[%s1948 + $0x171] sm:$0xff]
      %v2670 = vld [vmem:[#allocation4] sm:$0xff]
      %v2671 = vld [vmem:[#allocation4 + $0x8] sm:$0xff]
      %v2672 = vld [vmem:[#allocation4 + $0x10] sm:$0xff]
      %v2673 = vld [vmem:[#allocation4 + $0x18] sm:$0xff]
      %v2674 = vld [vmem:[#allocation4 + $0x20] sm:$0xff]
      %v2675 = vld [vmem:[#allocation4 + $0x28] sm:$0xff]
      %v2676 = vld [vmem:[#allocation4 + $0x30] sm:$0xff]
      %v2677 = vld [vmem:[#allocation4 + $0x38] sm:$0xff]
      %v2678 = vld [vmem:[#allocation4 + $0x40] sm:$0xff]
      %v2679 = vld [vmem:[#allocation4 + $0x48] sm:$0xff]
      %v2680 = vld [vmem:[#allocation4 + $0x50] sm:$0xff]
      %v2681 = vld [vmem:[#allocation4 + $0x58] sm:$0xff]
      %v2682 = vld [vmem:[#allocation4 + $0x60] sm:$0xff]
      %v2683 = vld [vmem:[#allocation4 + $0x68] sm:$0xff]
      %v2684 = vld [vmem:[#allocation4 + $0x70] sm:$0xff]
      %v2685 = vld [vmem:[#allocation4 + $0x78] sm:$0xff]
      %v2686 = vld [vmem:[#allocation4 + $0x80] sm:$0xff]
      %v2687 = vld [vmem:[#allocation4 + $0x88] sm:$0xff]
      %v2688 = vld [vmem:[#allocation4 + $0x90] sm:$0xff]
      %v2689 = vld [vmem:[#allocation4 + $0x98] sm:$0xff]
      %v2690 = vld [vmem:[#allocation4 + $0xa0] sm:$0xff]
      %v2691 = vld [vmem:[#allocation4 + $0xa8] sm:$0xff]
      %v2692 = vld [vmem:[#allocation4 + $0xb0] sm:$0xff]
      %v2693 = vld [vmem:[#allocation4 + $0xb8] sm:$0xff]
      %v2694 = vld [vmem:[#allocation4 + $0xc0] sm:$0xff]
      %v2695 = vld [vmem:[#allocation4 + $0xc8] sm:$0xff]
      %v2696 = vld [vmem:[#allocation4 + $0xd0] sm:$0xff]
      %v2697 = vld [vmem:[#allocation4 + $0xd8] sm:$0xff]
      %v2698 = vld [vmem:[#allocation4 + $0xe0] sm:$0xff]
      %v2699 = vld [vmem:[#allocation4 + $0xe8] sm:$0xff]
      %v2700 = vld [vmem:[#allocation4 + $0xf0] sm:$0xff]
      %v2701 = vld [vmem:[#allocation4 + $0xf8] sm:$0xff]
      %v2702 = vadd.f32 %v2670, %v2638
      %v2703 = vadd.f32 %v2671, %v2639
      %v2704 = vadd.f32 %v2672, %v2640
      %v2705 = vadd.f32 %v2673, %v2641
      %v2706 = vadd.f32 %v2674, %v2642
      %v2707 = vadd.f32 %v2675, %v2643
      %v2708 = vadd.f32 %v2676, %v2644
      %v2709 = vadd.f32 %v2677, %v2645
      %v2710 = vadd.f32 %v2678, %v2646
      %v2711 = vadd.f32 %v2679, %v2647
      %v2712 = vadd.f32 %v2680, %v2648
      %v2713 = vadd.f32 %v2681, %v2649
      %v2714 = vadd.f32 %v2682, %v2650
      %v2715 = vadd.f32 %v2683, %v2651
      %v2716 = vadd.f32 %v2684, %v2652
      %v2717 = vadd.f32 %v2685, %v2653
      %v2718 = vadd.f32 %v2686, %v2654
      %v2719 = vadd.f32 %v2687, %v2655
      %v2720 = vadd.f32 %v2688, %v2656
      %v2721 = vadd.f32 %v2689, %v2657
      %v2722 = vadd.f32 %v2690, %v2658
      %v2723 = vadd.f32 %v2691, %v2659
      %v2724 = vadd.f32 %v2692, %v2660
      %v2725 = vadd.f32 %v2693, %v2661
      %v2726 = vadd.f32 %v2694, %v2662
      %v2727 = vadd.f32 %v2695, %v2663
      %v2728 = vadd.f32 %v2696, %v2664
      %v2729 = vadd.f32 %v2697, %v2665
      %v2730 = vadd.f32 %v2698, %v2666
      %v2731 = vadd.f32 %v2699, %v2667
      %v2732 = vadd.f32 %v2700, %v2668
      %v2733 = vadd.f32 %v2701, %v2669
      %2734 = vst.msk [vmem:[#allocation4] sm:$0xff] %vm561, %v2702
      %2735 = vst.msk [vmem:[#allocation4 + $0x8] sm:$0xff] %vm561, %v2703
      %2736 = vst.msk [vmem:[#allocation4 + $0x10] sm:$0xff] %vm561, %v2704
      %2737 = vst.msk [vmem:[#allocation4 + $0x18] sm:$0xff] %vm561, %v2705
      %2738 = vst.msk [vmem:[#allocation4 + $0x20] sm:$0xff] %vm561, %v2706
      %2739 = vst.msk [vmem:[#allocation4 + $0x28] sm:$0xff] %vm561, %v2707
      %2740 = vst.msk [vmem:[#allocation4 + $0x30] sm:$0xff] %vm561, %v2708
      %2741 = vst.msk [vmem:[#allocation4 + $0x38] sm:$0xff] %vm561, %v2709
      %2742 = vst.msk [vmem:[#allocation4 + $0x40] sm:$0xff] %vm561, %v2710
      %2743 = vst.msk [vmem:[#allocation4 + $0x48] sm:$0xff] %vm561, %v2711
      %2744 = vst.msk [vmem:[#allocation4 + $0x50] sm:$0xff] %vm561, %v2712
      %2745 = vst.msk [vmem:[#allocation4 + $0x58] sm:$0xff] %vm561, %v2713
      %2746 = vst.msk [vmem:[#allocation4 + $0x60] sm:$0xff] %vm561, %v2714
      %2747 = vst.msk [vmem:[#allocation4 + $0x68] sm:$0xff] %vm561, %v2715
      %2748 = vst.msk [vmem:[#allocation4 + $0x70] sm:$0xff] %vm561, %v2716
      %2749 = vst.msk [vmem:[#allocation4 + $0x78] sm:$0xff] %vm561, %v2717
      %2750 = vst.msk [vmem:[#allocation4 + $0x80] sm:$0xff] %vm561, %v2718
      %2751 = vst.msk [vmem:[#allocation4 + $0x88] sm:$0xff] %vm561, %v2719
      %2752 = vst.msk [vmem:[#allocation4 + $0x90] sm:$0xff] %vm561, %v2720
      %2753 = vst.msk [vmem:[#allocation4 + $0x98] sm:$0xff] %vm561, %v2721
      %2754 = vst.msk [vmem:[#allocation4 + $0xa0] sm:$0xff] %vm561, %v2722
      %2755 = vst.msk [vmem:[#allocation4 + $0xa8] sm:$0xff] %vm561, %v2723
      %2756 = vst.msk [vmem:[#allocation4 + $0xb0] sm:$0xff] %vm561, %v2724
      %2757 = vst.msk [vmem:[#allocation4 + $0xb8] sm:$0xff] %vm561, %v2725
      %2758 = vst.msk [vmem:[#allocation4 + $0xc0] sm:$0xff] %vm561, %v2726
      %2759 = vst.msk [vmem:[#allocation4 + $0xc8] sm:$0xff] %vm561, %v2727
      %2760 = vst.msk [vmem:[#allocation4 + $0xd0] sm:$0xff] %vm561, %v2728
      %2761 = vst.msk [vmem:[#allocation4 + $0xd8] sm:$0xff] %vm561, %v2729
      %2762 = vst.msk [vmem:[#allocation4 + $0xe0] sm:$0xff] %vm561, %v2730
      %2763 = vst.msk [vmem:[#allocation4 + $0xe8] sm:$0xff] %vm561, %v2731
      %2764 = vst.msk [vmem:[#allocation4 + $0xf0] sm:$0xff] %vm561, %v2732
      %2765 = vst.msk [vmem:[#allocation4 + $0xf8] sm:$0xff] %vm561, %v2733
      %v2766 = vld [vmem:[%s1754] sm:$0xe]
      %v2767 = vld [vmem:[%s1754 + $0x4] sm:$0xf]
      %v2768 = vld [vmem:[%s1754 + $0x8] sm:$0x1]
      %v2769 = vld [vmem:[%s1754 + $0xc] sm:$0xe]
      %v2770 = vld [vmem:[%s1754 + $0x10] sm:$0xf]
      %v2771 = vld [vmem:[%s1754 + $0x14] sm:$0x1]
      %v2772 = vld [vmem:[%s1754 + $0x18] sm:$0xe]
      %v2773 = vld [vmem:[%s1754 + $0x1c] sm:$0xf]
      %v2774 = vld [vmem:[%s1754 + $0x20] sm:$0x1]
      %v2775 = vld [vmem:[%s1754 + $0x24] sm:$0xe]
      %v2776 = vld [vmem:[%s1754 + $0x28] sm:$0xf]
      %v2777 = vld [vmem:[%s1754 + $0x2c] sm:$0x1]
      %v2778 = vld [vmem:[%s1754 + $0x30] sm:$0xe]
      %v2779 = vld [vmem:[%s1754 + $0x34] sm:$0xf]
      %v2780 = vld [vmem:[%s1754 + $0x38] sm:$0x1]
      %v2781 = vld [vmem:[%s1754 + $0x3c] sm:$0xe]
      %v2782 = vld [vmem:[%s1754 + $0x40] sm:$0xf]
      %v2783 = vld [vmem:[%s1754 + $0x44] sm:$0x1]
      %v2784 = vld [vmem:[%s1754 + $0x48] sm:$0xe]
      %v2785 = vld [vmem:[%s1754 + $0x4c] sm:$0xf]
      %v2786 = vld [vmem:[%s1754 + $0x50] sm:$0x1]
      %v2787 = vld [vmem:[%s1754 + $0x54] sm:$0xe]
      %v2788 = vld [vmem:[%s1754 + $0x58] sm:$0xf]
      %v2789 = vld [vmem:[%s1754 + $0x5c] sm:$0x1]
      %v2790 = vld [vmem:[%s1754 + $0x60] sm:$0xe]
      %v2791 = vld [vmem:[%s1754 + $0x64] sm:$0xf]
      %v2792 = vld [vmem:[%s1754 + $0x68] sm:$0x1]
      %v2793 = vld [vmem:[%s1754 + $0x6c] sm:$0xe]
      %v2794 = vld [vmem:[%s1754 + $0x70] sm:$0xf]
      %v2795 = vld [vmem:[%s1754 + $0x74] sm:$0x1]
      %v2796 = vld [vmem:[%s1754 + $0x78] sm:$0xe]
      %v2797 = vld [vmem:[%s1754 + $0x7c] sm:$0xf]
      %v2798 = vld [vmem:[%s1754 + $0x80] sm:$0x1]
      %v2799 = vld [vmem:[%s1754 + $0x84] sm:$0xe]
      %v2800 = vld [vmem:[%s1754 + $0x88] sm:$0xf]
      %v2801 = vld [vmem:[%s1754 + $0x8c] sm:$0x1]
      %v2802 = vld [vmem:[%s1754 + $0x90] sm:$0xe]
      %v2803 = vld [vmem:[%s1754 + $0x94] sm:$0xf]
      %v2804 = vld [vmem:[%s1754 + $0x98] sm:$0x1]
      %v2805 = vld [vmem:[%s1754 + $0x9c] sm:$0xe]
      %v2806 = vld [vmem:[%s1754 + $0xa0] sm:$0xf]
      %v2807 = vld [vmem:[%s1754 + $0xa4] sm:$0x1]
      %v2808 = vld [vmem:[%s1754 + $0xa8] sm:$0xe]
      %v2809 = vld [vmem:[%s1754 + $0xac] sm:$0xf]
      %v2810 = vld [vmem:[%s1754 + $0xb0] sm:$0x1]
      %v2811 = vld [vmem:[%s1754 + $0xb4] sm:$0xe]
      %v2812 = vld [vmem:[%s1754 + $0xb8] sm:$0xf]
      %v2813 = vld [vmem:[%s1754 + $0xbc] sm:$0x1]
      %v2862 = vrot.slane %v2766, 5
      %v2863 = vrot.slane %v2862, 4
      %v2864 = vrot.slane %v2767, 5
      %v2865 = vsel %vm1384, %v2863, %v2864
      %v2866 = vrot.slane %v2864, 4
      %v2867 = vrot.slane %v2768, 5
      %v2868 = vsel %vm1384, %v2866, %v2867
      %v2869 = vrot.slane %v2769, 5
      %v2870 = vrot.slane %v2869, 4
      %v2871 = vrot.slane %v2770, 5
      %v2872 = vsel %vm1384, %v2870, %v2871
      %v2873 = vrot.slane %v2871, 4
      %v2874 = vrot.slane %v2771, 5
      %v2875 = vsel %vm1384, %v2873, %v2874
      %v2876 = vrot.slane %v2772, 5
      %v2877 = vrot.slane %v2876, 4
      %v2878 = vrot.slane %v2773, 5
      %v2879 = vsel %vm1384, %v2877, %v2878
      %v2880 = vrot.slane %v2878, 4
      %v2881 = vrot.slane %v2774, 5
      %v2882 = vsel %vm1384, %v2880, %v2881
      %v2883 = vrot.slane %v2775, 5
      %v2884 = vrot.slane %v2883, 4
      %v2885 = vrot.slane %v2776, 5
      %v2886 = vsel %vm1384, %v2884, %v2885
      %v2887 = vrot.slane %v2885, 4
      %v2888 = vrot.slane %v2777, 5
      %v2889 = vsel %vm1384, %v2887, %v2888
      %v2890 = vrot.slane %v2778, 5
      %v2891 = vrot.slane %v2890, 4
      %v2892 = vrot.slane %v2779, 5
      %v2893 = vsel %vm1384, %v2891, %v2892
      %v2894 = vrot.slane %v2892, 4
      %v2895 = vrot.slane %v2780, 5
      %v2896 = vsel %vm1384, %v2894, %v2895
      %v2897 = vrot.slane %v2781, 5
      %v2898 = vrot.slane %v2897, 4
      %v2899 = vrot.slane %v2782, 5
      %v2900 = vsel %vm1384, %v2898, %v2899
      %v2901 = vrot.slane %v2899, 4
      %v2902 = vrot.slane %v2783, 5
      %v2903 = vsel %vm1384, %v2901, %v2902
      %v2904 = vrot.slane %v2784, 5
      %v2905 = vrot.slane %v2904, 4
      %v2906 = vrot.slane %v2785, 5
      %v2907 = vsel %vm1384, %v2905, %v2906
      %v2908 = vrot.slane %v2906, 4
      %v2909 = vrot.slane %v2786, 5
      %v2910 = vsel %vm1384, %v2908, %v2909
      %v2911 = vrot.slane %v2787, 5
      %v2912 = vrot.slane %v2911, 4
      %v2913 = vrot.slane %v2788, 5
      %v2914 = vsel %vm1384, %v2912, %v2913
      %v2915 = vrot.slane %v2913, 4
      %v2916 = vrot.slane %v2789, 5
      %v2917 = vsel %vm1384, %v2915, %v2916
      %v2918 = vrot.slane %v2790, 5
      %v2919 = vrot.slane %v2918, 4
      %v2920 = vrot.slane %v2791, 5
      %v2921 = vsel %vm1384, %v2919, %v2920
      %v2922 = vrot.slane %v2920, 4
      %v2923 = vrot.slane %v2792, 5
      %v2924 = vsel %vm1384, %v2922, %v2923
      %v2925 = vrot.slane %v2793, 5
      %v2926 = vrot.slane %v2925, 4
      %v2927 = vrot.slane %v2794, 5
      %v2928 = vsel %vm1384, %v2926, %v2927
      %v2929 = vrot.slane %v2927, 4
      %v2930 = vrot.slane %v2795, 5
      %v2931 = vsel %vm1384, %v2929, %v2930
      %v2932 = vrot.slane %v2796, 5
      %v2933 = vrot.slane %v2932, 4
      %v2934 = vrot.slane %v2797, 5
      %v2935 = vsel %vm1384, %v2933, %v2934
      %v2936 = vrot.slane %v2934, 4
      %v2937 = vrot.slane %v2798, 5
      %v2938 = vsel %vm1384, %v2936, %v2937
      %v2939 = vrot.slane %v2799, 5
      %v2940 = vrot.slane %v2939, 4
      %v2941 = vrot.slane %v2800, 5
      %v2942 = vsel %vm1384, %v2940, %v2941
      %v2943 = vrot.slane %v2941, 4
      %v2944 = vrot.slane %v2801, 5
      %v2945 = vsel %vm1384, %v2943, %v2944
      %v2946 = vrot.slane %v2802, 5
      %v2947 = vrot.slane %v2946, 4
      %v2948 = vrot.slane %v2803, 5
      %v2949 = vsel %vm1384, %v2947, %v2948
      %v2950 = vrot.slane %v2948, 4
      %v2951 = vrot.slane %v2804, 5
      %v2952 = vsel %vm1384, %v2950, %v2951
      %v2953 = vrot.slane %v2805, 5
      %v2954 = vrot.slane %v2953, 4
      %v2955 = vrot.slane %v2806, 5
      %v2956 = vsel %vm1384, %v2954, %v2955
      %v2957 = vrot.slane %v2955, 4
      %v2958 = vrot.slane %v2807, 5
      %v2959 = vsel %vm1384, %v2957, %v2958
      %v2960 = vrot.slane %v2808, 5
      %v2961 = vrot.slane %v2960, 4
      %v2962 = vrot.slane %v2809, 5
      %v2963 = vsel %vm1384, %v2961, %v2962
      %v2964 = vrot.slane %v2962, 4
      %v2965 = vrot.slane %v2810, 5
      %v2966 = vsel %vm1384, %v2964, %v2965
      %v2967 = vrot.slane %v2811, 5
      %v2968 = vrot.slane %v2967, 4
      %v2969 = vrot.slane %v2812, 5
      %v2970 = vsel %vm1384, %v2968, %v2969
      %v2971 = vrot.slane %v2969, 4
      %v2972 = vrot.slane %v2813, 5
      %v2973 = vsel %vm1384, %v2971, %v2972
      %2974 = vrot.lane.b32.xlu0 %v2865, 20
      %v2975 = vpop.permute.xlu0 %2974
      %2976 = vrot.lane.b32.xlu0 %v2868, 20
      %v2977 = vpop.permute.xlu0 %2976
      %2978 = vrot.lane.b32.xlu0 %v2872, 20
      %v2979 = vpop.permute.xlu0 %2978
      %2980 = vrot.lane.b32.xlu0 %v2875, 20
      %v2981 = vpop.permute.xlu0 %2980
      %2982 = vrot.lane.b32.xlu0 %v2879, 20
      %v2983 = vpop.permute.xlu0 %2982
      %2984 = vrot.lane.b32.xlu0 %v2882, 20
      %v2985 = vpop.permute.xlu0 %2984
      %2986 = vrot.lane.b32.xlu0 %v2886, 20
      %v2987 = vpop.permute.xlu0 %2986
      %2988 = vrot.lane.b32.xlu0 %v2889, 20
      %v2989 = vpop.permute.xlu0 %2988
      %2990 = vrot.lane.b32.xlu0 %v2893, 20
      %v2991 = vpop.permute.xlu0 %2990
      %2992 = vrot.lane.b32.xlu0 %v2896, 20
      %v2993 = vpop.permute.xlu0 %2992
      %2994 = vrot.lane.b32.xlu0 %v2900, 20
      %v2995 = vpop.permute.xlu0 %2994
      %2996 = vrot.lane.b32.xlu0 %v2903, 20
      %v2997 = vpop.permute.xlu0 %2996
      %2998 = vrot.lane.b32.xlu0 %v2907, 20
      %v2999 = vpop.permute.xlu0 %2998
      %3000 = vrot.lane.b32.xlu0 %v2910, 20
      %v3001 = vpop.permute.xlu0 %3000
      %3002 = vrot.lane.b32.xlu0 %v2914, 20
      %v3003 = vpop.permute.xlu0 %3002
      %3004 = vrot.lane.b32.xlu0 %v2917, 20
      %v3005 = vpop.permute.xlu0 %3004
      %3006 = vrot.lane.b32.xlu0 %v2921, 20
      %v3007 = vpop.permute.xlu0 %3006
      %3008 = vrot.lane.b32.xlu0 %v2924, 20
      %v3009 = vpop.permute.xlu0 %3008
      %3010 = vrot.lane.b32.xlu0 %v2928, 20
      %v3011 = vpop.permute.xlu0 %3010
      %3012 = vrot.lane.b32.xlu0 %v2931, 20
      %v3013 = vpop.permute.xlu0 %3012
      %3014 = vrot.lane.b32.xlu0 %v2935, 20
      %v3015 = vpop.permute.xlu0 %3014
      %3016 = vrot.lane.b32.xlu0 %v2938, 20
      %v3017 = vpop.permute.xlu0 %3016
      %3018 = vrot.lane.b32.xlu0 %v2942, 20
      %v3019 = vpop.permute.xlu0 %3018
      %3020 = vrot.lane.b32.xlu0 %v2945, 20
      %v3021 = vpop.permute.xlu0 %3020
      %3022 = vrot.lane.b32.xlu0 %v2949, 20
      %v3023 = vpop.permute.xlu0 %3022
      %3024 = vrot.lane.b32.xlu0 %v2952, 20
      %v3025 = vpop.permute.xlu0 %3024
      %3026 = vrot.lane.b32.xlu0 %v2956, 20
      %v3027 = vpop.permute.xlu0 %3026
      %3028 = vrot.lane.b32.xlu0 %v2959, 20
      %v3029 = vpop.permute.xlu0 %3028
      %3030 = vrot.lane.b32.xlu0 %v2963, 20
      %v3031 = vpop.permute.xlu0 %3030
      %3032 = vrot.lane.b32.xlu0 %v2966, 20
      %v3033 = vpop.permute.xlu0 %3032
      %3034 = vrot.lane.b32.xlu0 %v2970, 20
      %v3035 = vpop.permute.xlu0 %3034
      %3036 = vrot.lane.b32.xlu0 %v2973, 20
      %v3037 = vpop.permute.xlu0 %3036
      %vm3070 = vcmask 191648
      %3071 = vst.msk [vmem:[#allocation3] sm:$0xf] %vm3070, %v2975
      %3072 = vst.msk [vmem:[#allocation3 + $0x4] sm:$0xf] %vm3070, %v2977
      %3073 = vst.msk [vmem:[#allocation3 + $0x8] sm:$0xf] %vm3070, %v2979
      %3074 = vst.msk [vmem:[#allocation3 + $0xc] sm:$0xf] %vm3070, %v2981
      %3075 = vst.msk [vmem:[#allocation3 + $0x10] sm:$0xf] %vm3070, %v2983
      %3076 = vst.msk [vmem:[#allocation3 + $0x14] sm:$0xf] %vm3070, %v2985
      %3077 = vst.msk [vmem:[#allocation3 + $0x18] sm:$0xf] %vm3070, %v2987
      %3078 = vst.msk [vmem:[#allocation3 + $0x1c] sm:$0xf] %vm3070, %v2989
      %3079 = vst.msk [vmem:[#allocation3 + $0x20] sm:$0xf] %vm3070, %v2991
      %3080 = vst.msk [vmem:[#allocation3 + $0x24] sm:$0xf] %vm3070, %v2993
      %3081 = vst.msk [vmem:[#allocation3 + $0x28] sm:$0xf] %vm3070, %v2995
      %3082 = vst.msk [vmem:[#allocation3 + $0x2c] sm:$0xf] %vm3070, %v2997
      %3083 = vst.msk [vmem:[#allocation3 + $0x30] sm:$0xf] %vm3070, %v2999
      %3084 = vst.msk [vmem:[#allocation3 + $0x34] sm:$0xf] %vm3070, %v3001
      %3085 = vst.msk [vmem:[#allocation3 + $0x38] sm:$0xf] %vm3070, %v3003
      %3086 = vst.msk [vmem:[#allocation3 + $0x3c] sm:$0xf] %vm3070, %v3005
      %3087 = vst.msk [vmem:[#allocation3 + $0x40] sm:$0xf] %vm3070, %v3007
      %3088 = vst.msk [vmem:[#allocation3 + $0x44] sm:$0xf] %vm3070, %v3009
      %3089 = vst.msk [vmem:[#allocation3 + $0x48] sm:$0xf] %vm3070, %v3011
      %3090 = vst.msk [vmem:[#allocation3 + $0x4c] sm:$0xf] %vm3070, %v3013
      %3091 = vst.msk [vmem:[#allocation3 + $0x50] sm:$0xf] %vm3070, %v3015
      %3092 = vst.msk [vmem:[#allocation3 + $0x54] sm:$0xf] %vm3070, %v3017
      %3093 = vst.msk [vmem:[#allocation3 + $0x58] sm:$0xf] %vm3070, %v3019
      %3094 = vst.msk [vmem:[#allocation3 + $0x5c] sm:$0xf] %vm3070, %v3021
      %3095 = vst.msk [vmem:[#allocation3 + $0x60] sm:$0xf] %vm3070, %v3023
      %3096 = vst.msk [vmem:[#allocation3 + $0x64] sm:$0xf] %vm3070, %v3025
      %3097 = vst.msk [vmem:[#allocation3 + $0x68] sm:$0xf] %vm3070, %v3027
      %3098 = vst.msk [vmem:[#allocation3 + $0x6c] sm:$0xf] %vm3070, %v3029
      %3099 = vst.msk [vmem:[#allocation3 + $0x70] sm:$0xf] %vm3070, %v3031
      %3100 = vst.msk [vmem:[#allocation3 + $0x74] sm:$0xf] %vm3070, %v3033
      %3101 = vst.msk [vmem:[#allocation3 + $0x78] sm:$0xf] %vm3070, %v3035
      %3102 = vst.msk [vmem:[#allocation3 + $0x7c] sm:$0xf] %vm3070, %v3037
      %v3103 = vld [vmem:[%s1948 + $0x2] sm:$0xff]
      %v3104 = vld [vmem:[%s1948 + $0xa] sm:$0xff]
      %v3105 = vld [vmem:[%s1948 + $0x1a] sm:$0xff]
      %v3106 = vld [vmem:[%s1948 + $0x22] sm:$0xff]
      %v3107 = vld [vmem:[%s1948 + $0x32] sm:$0xff]
      %v3108 = vld [vmem:[%s1948 + $0x3a] sm:$0xff]
      %v3109 = vld [vmem:[%s1948 + $0x4a] sm:$0xff]
      %v3110 = vld [vmem:[%s1948 + $0x52] sm:$0xff]
      %v3111 = vld [vmem:[%s1948 + $0x62] sm:$0xff]
      %v3112 = vld [vmem:[%s1948 + $0x6a] sm:$0xff]
      %v3113 = vld [vmem:[%s1948 + $0x7a] sm:$0xff]
      %v3114 = vld [vmem:[%s1948 + $0x82] sm:$0xff]
      %v3115 = vld [vmem:[%s1948 + $0x92] sm:$0xff]
      %v3116 = vld [vmem:[%s1948 + $0x9a] sm:$0xff]
      %v3117 = vld [vmem:[%s1948 + $0xaa] sm:$0xff]
      %v3118 = vld [vmem:[%s1948 + $0xb2] sm:$0xff]
      %v3119 = vld [vmem:[%s1948 + $0xc2] sm:$0xff]
      %v3120 = vld [vmem:[%s1948 + $0xca] sm:$0xff]
      %v3121 = vld [vmem:[%s1948 + $0xda] sm:$0xff]
      %v3122 = vld [vmem:[%s1948 + $0xe2] sm:$0xff]
      %v3123 = vld [vmem:[%s1948 + $0xf2] sm:$0xff]
      %v3124 = vld [vmem:[%s1948 + $0xfa] sm:$0xff]
      %v3125 = vld [vmem:[%s1948 + $0x10a] sm:$0xff]
      %v3126 = vld [vmem:[%s1948 + $0x112] sm:$0xff]
      %v3127 = vld [vmem:[%s1948 + $0x122] sm:$0xff]
      %v3128 = vld [vmem:[%s1948 + $0x12a] sm:$0xff]
      %v3129 = vld [vmem:[%s1948 + $0x13a] sm:$0xff]
      %v3130 = vld [vmem:[%s1948 + $0x142] sm:$0xff]
      %v3131 = vld [vmem:[%s1948 + $0x152] sm:$0xff]
      %v3132 = vld [vmem:[%s1948 + $0x15a] sm:$0xff]
      %v3133 = vld [vmem:[%s1948 + $0x16a] sm:$0xff]
      %v3134 = vld [vmem:[%s1948 + $0x172] sm:$0xff]
      %v3135 = vld [vmem:[#allocation4] sm:$0xff]
      %v3136 = vld [vmem:[#allocation4 + $0x8] sm:$0xff]
      %v3137 = vld [vmem:[#allocation4 + $0x10] sm:$0xff]
      %v3138 = vld [vmem:[#allocation4 + $0x18] sm:$0xff]
      %v3139 = vld [vmem:[#allocation4 + $0x20] sm:$0xff]
      %v3140 = vld [vmem:[#allocation4 + $0x28] sm:$0xff]
      %v3141 = vld [vmem:[#allocation4 + $0x30] sm:$0xff]
      %v3142 = vld [vmem:[#allocation4 + $0x38] sm:$0xff]
      %v3143 = vld [vmem:[#allocation4 + $0x40] sm:$0xff]
      %v3144 = vld [vmem:[#allocation4 + $0x48] sm:$0xff]
      %v3145 = vld [vmem:[#allocation4 + $0x50] sm:$0xff]
      %v3146 = vld [vmem:[#allocation4 + $0x58] sm:$0xff]
      %v3147 = vld [vmem:[#allocation4 + $0x60] sm:$0xff]
      %v3148 = vld [vmem:[#allocation4 + $0x68] sm:$0xff]
      %v3149 = vld [vmem:[#allocation4 + $0x70] sm:$0xff]
      %v3150 = vld [vmem:[#allocation4 + $0x78] sm:$0xff]
      %v3151 = vld [vmem:[#allocation4 + $0x80] sm:$0xff]
      %v3152 = vld [vmem:[#allocation4 + $0x88] sm:$0xff]
      %v3153 = vld [vmem:[#allocation4 + $0x90] sm:$0xff]
      %v3154 = vld [vmem:[#allocation4 + $0x98] sm:$0xff]
      %v3155 = vld [vmem:[#allocation4 + $0xa0] sm:$0xff]
      %v3156 = vld [vmem:[#allocation4 + $0xa8] sm:$0xff]
      %v3157 = vld [vmem:[#allocation4 + $0xb0] sm:$0xff]
      %v3158 = vld [vmem:[#allocation4 + $0xb8] sm:$0xff]
      %v3159 = vld [vmem:[#allocation4 + $0xc0] sm:$0xff]
      %v3160 = vld [vmem:[#allocation4 + $0xc8] sm:$0xff]
      %v3161 = vld [vmem:[#allocation4 + $0xd0] sm:$0xff]
      %v3162 = vld [vmem:[#allocation4 + $0xd8] sm:$0xff]
      %v3163 = vld [vmem:[#allocation4 + $0xe0] sm:$0xff]
      %v3164 = vld [vmem:[#allocation4 + $0xe8] sm:$0xff]
      %v3165 = vld [vmem:[#allocation4 + $0xf0] sm:$0xff]
      %v3166 = vld [vmem:[#allocation4 + $0xf8] sm:$0xff]
      %v3167 = vadd.f32 %v3135, %v3103
      %v3168 = vadd.f32 %v3136, %v3104
      %v3169 = vadd.f32 %v3137, %v3105
      %v3170 = vadd.f32 %v3138, %v3106
      %v3171 = vadd.f32 %v3139, %v3107
      %v3172 = vadd.f32 %v3140, %v3108
      %v3173 = vadd.f32 %v3141, %v3109
      %v3174 = vadd.f32 %v3142, %v3110
      %v3175 = vadd.f32 %v3143, %v3111
      %v3176 = vadd.f32 %v3144, %v3112
      %v3177 = vadd.f32 %v3145, %v3113
      %v3178 = vadd.f32 %v3146, %v3114
      %v3179 = vadd.f32 %v3147, %v3115
      %v3180 = vadd.f32 %v3148, %v3116
      %v3181 = vadd.f32 %v3149, %v3117
      %v3182 = vadd.f32 %v3150, %v3118
      %v3183 = vadd.f32 %v3151, %v3119
      %v3184 = vadd.f32 %v3152, %v3120
      %v3185 = vadd.f32 %v3153, %v3121
      %v3186 = vadd.f32 %v3154, %v3122
      %v3187 = vadd.f32 %v3155, %v3123
      %v3188 = vadd.f32 %v3156, %v3124
      %v3189 = vadd.f32 %v3157, %v3125
      %v3190 = vadd.f32 %v3158, %v3126
      %v3191 = vadd.f32 %v3159, %v3127
      %v3192 = vadd.f32 %v3160, %v3128
      %v3193 = vadd.f32 %v3161, %v3129
      %v3194 = vadd.f32 %v3162, %v3130
      %v3195 = vadd.f32 %v3163, %v3131
      %v3196 = vadd.f32 %v3164, %v3132
      %v3197 = vadd.f32 %v3165, %v3133
      %v3198 = vadd.f32 %v3166, %v3134
      %3199 = vst.msk [vmem:[#allocation4] sm:$0xff] %vm561, %v3167
      %3200 = vst.msk [vmem:[#allocation4 + $0x8] sm:$0xff] %vm561, %v3168
      %3201 = vst.msk [vmem:[#allocation4 + $0x10] sm:$0xff] %vm561, %v3169
      %3202 = vst.msk [vmem:[#allocation4 + $0x18] sm:$0xff] %vm561, %v3170
      %3203 = vst.msk [vmem:[#allocation4 + $0x20] sm:$0xff] %vm561, %v3171
      %3204 = vst.msk [vmem:[#allocation4 + $0x28] sm:$0xff] %vm561, %v3172
      %3205 = vst.msk [vmem:[#allocation4 + $0x30] sm:$0xff] %vm561, %v3173
      %3206 = vst.msk [vmem:[#allocation4 + $0x38] sm:$0xff] %vm561, %v3174
      %3207 = vst.msk [vmem:[#allocation4 + $0x40] sm:$0xff] %vm561, %v3175
      %3208 = vst.msk [vmem:[#allocation4 + $0x48] sm:$0xff] %vm561, %v3176
      %3209 = vst.msk [vmem:[#allocation4 + $0x50] sm:$0xff] %vm561, %v3177
      %3210 = vst.msk [vmem:[#allocation4 + $0x58] sm:$0xff] %vm561, %v3178
      %3211 = vst.msk [vmem:[#allocation4 + $0x60] sm:$0xff] %vm561, %v3179
      %3212 = vst.msk [vmem:[#allocation4 + $0x68] sm:$0xff] %vm561, %v3180
      %3213 = vst.msk [vmem:[#allocation4 + $0x70] sm:$0xff] %vm561, %v3181
      %3214 = vst.msk [vmem:[#allocation4 + $0x78] sm:$0xff] %vm561, %v3182
      %3215 = vst.msk [vmem:[#allocation4 + $0x80] sm:$0xff] %vm561, %v3183
      %3216 = vst.msk [vmem:[#allocation4 + $0x88] sm:$0xff] %vm561, %v3184
      %3217 = vst.msk [vmem:[#allocation4 + $0x90] sm:$0xff] %vm561, %v3185
      %3218 = vst.msk [vmem:[#allocation4 + $0x98] sm:$0xff] %vm561, %v3186
      %3219 = vst.msk [vmem:[#allocation4 + $0xa0] sm:$0xff] %vm561, %v3187
      %3220 = vst.msk [vmem:[#allocation4 + $0xa8] sm:$0xff] %vm561, %v3188
      %3221 = vst.msk [vmem:[#allocation4 + $0xb0] sm:$0xff] %vm561, %v3189
      %3222 = vst.msk [vmem:[#allocation4 + $0xb8] sm:$0xff] %vm561, %v3190
      %3223 = vst.msk [vmem:[#allocation4 + $0xc0] sm:$0xff] %vm561, %v3191
      %3224 = vst.msk [vmem:[#allocation4 + $0xc8] sm:$0xff] %vm561, %v3192
      %3225 = vst.msk [vmem:[#allocation4 + $0xd0] sm:$0xff] %vm561, %v3193
      %3226 = vst.msk [vmem:[#allocation4 + $0xd8] sm:$0xff] %vm561, %v3194
      %3227 = vst.msk [vmem:[#allocation4 + $0xe0] sm:$0xff] %vm561, %v3195
      %3228 = vst.msk [vmem:[#allocation4 + $0xe8] sm:$0xff] %vm561, %v3196
      %3229 = vst.msk [vmem:[#allocation4 + $0xf0] sm:$0xff] %vm561, %v3197
      %3230 = vst.msk [vmem:[#allocation4 + $0xf8] sm:$0xff] %vm561, %v3198
      %s3231 = scalar_lea.vmem [#allocation2], 24
      %v3232 = vld [vmem:[%s3231] sm:$0xf]
      %v3233 = vld [vmem:[%s3231 + $0x4] sm:$0xf]
      %v3234 = vld [vmem:[%s3231 + $0xc] sm:$0xf]
      %v3235 = vld [vmem:[%s3231 + $0x10] sm:$0xf]
      %v3236 = vld [vmem:[%s3231 + $0x18] sm:$0xf]
      %v3237 = vld [vmem:[%s3231 + $0x1c] sm:$0xf]
      %v3238 = vld [vmem:[%s3231 + $0x24] sm:$0xf]
      %v3239 = vld [vmem:[%s3231 + $0x28] sm:$0xf]
      %v3240 = vld [vmem:[%s3231 + $0x30] sm:$0xf]
      %v3241 = vld [vmem:[%s3231 + $0x34] sm:$0xf]
      %v3242 = vld [vmem:[%s3231 + $0x3c] sm:$0xf]
      %v3243 = vld [vmem:[%s3231 + $0x40] sm:$0xf]
      %v3244 = vld [vmem:[%s3231 + $0x48] sm:$0xf]
      %v3245 = vld [vmem:[%s3231 + $0x4c] sm:$0xf]
      %v3246 = vld [vmem:[%s3231 + $0x54] sm:$0xf]
      %v3247 = vld [vmem:[%s3231 + $0x58] sm:$0xf]
      %v3248 = vld [vmem:[%s3231 + $0x60] sm:$0xf]
      %v3249 = vld [vmem:[%s3231 + $0x64] sm:$0xf]
      %v3250 = vld [vmem:[%s3231 + $0x6c] sm:$0xf]
      %v3251 = vld [vmem:[%s3231 + $0x70] sm:$0xf]
      %v3252 = vld [vmem:[%s3231 + $0x78] sm:$0xf]
      %v3253 = vld [vmem:[%s3231 + $0x7c] sm:$0xf]
      %v3254 = vld [vmem:[%s3231 + $0x84] sm:$0xf]
      %v3255 = vld [vmem:[%s3231 + $0x88] sm:$0xf]
      %v3256 = vld [vmem:[%s3231 + $0x90] sm:$0xf]
      %v3257 = vld [vmem:[%s3231 + $0x94] sm:$0xf]
      %v3258 = vld [vmem:[%s3231 + $0x9c] sm:$0xf]
      %v3259 = vld [vmem:[%s3231 + $0xa0] sm:$0xf]
      %v3260 = vld [vmem:[%s3231 + $0xa8] sm:$0xf]
      %v3261 = vld [vmem:[%s3231 + $0xac] sm:$0xf]
      %v3262 = vld [vmem:[%s3231 + $0xb4] sm:$0xf]
      %v3263 = vld [vmem:[%s3231 + $0xb8] sm:$0xf]
      %3296 = vrot.lane.b32.xlu0 %v3232, 24
      %v3297 = vpop.permute.xlu0 %3296
      %3298 = vrot.lane.b32.xlu0 %v3233, 24
      %v3299 = vpop.permute.xlu0 %3298
      %3300 = vrot.lane.b32.xlu0 %v3234, 24
      %v3301 = vpop.permute.xlu0 %3300
      %3302 = vrot.lane.b32.xlu0 %v3235, 24
      %v3303 = vpop.permute.xlu0 %3302
      %3304 = vrot.lane.b32.xlu0 %v3236, 24
      %v3305 = vpop.permute.xlu0 %3304
      %3306 = vrot.lane.b32.xlu0 %v3237, 24
      %v3307 = vpop.permute.xlu0 %3306
      %3308 = vrot.lane.b32.xlu0 %v3238, 24
      %v3309 = vpop.permute.xlu0 %3308
      %3310 = vrot.lane.b32.xlu0 %v3239, 24
      %v3311 = vpop.permute.xlu0 %3310
      %3312 = vrot.lane.b32.xlu0 %v3240, 24
      %v3313 = vpop.permute.xlu0 %3312
      %3314 = vrot.lane.b32.xlu0 %v3241, 24
      %v3315 = vpop.permute.xlu0 %3314
      %3316 = vrot.lane.b32.xlu0 %v3242, 24
      %v3317 = vpop.permute.xlu0 %3316
      %3318 = vrot.lane.b32.xlu0 %v3243, 24
      %v3319 = vpop.permute.xlu0 %3318
      %3320 = vrot.lane.b32.xlu0 %v3244, 24
      %v3321 = vpop.permute.xlu0 %3320
      %3322 = vrot.lane.b32.xlu0 %v3245, 24
      %v3323 = vpop.permute.xlu0 %3322
      %3324 = vrot.lane.b32.xlu0 %v3246, 24
      %v3325 = vpop.permute.xlu0 %3324
      %3326 = vrot.lane.b32.xlu0 %v3247, 24
      %v3327 = vpop.permute.xlu0 %3326
      %3328 = vrot.lane.b32.xlu0 %v3248, 24
      %v3329 = vpop.permute.xlu0 %3328
      %3330 = vrot.lane.b32.xlu0 %v3249, 24
      %v3331 = vpop.permute.xlu0 %3330
      %3332 = vrot.lane.b32.xlu0 %v3250, 24
      %v3333 = vpop.permute.xlu0 %3332
      %3334 = vrot.lane.b32.xlu0 %v3251, 24
      %v3335 = vpop.permute.xlu0 %3334
      %3336 = vrot.lane.b32.xlu0 %v3252, 24
      %v3337 = vpop.permute.xlu0 %3336
      %3338 = vrot.lane.b32.xlu0 %v3253, 24
      %v3339 = vpop.permute.xlu0 %3338
      %3340 = vrot.lane.b32.xlu0 %v3254, 24
      %v3341 = vpop.permute.xlu0 %3340
      %3342 = vrot.lane.b32.xlu0 %v3255, 24
      %v3343 = vpop.permute.xlu0 %3342
      %3344 = vrot.lane.b32.xlu0 %v3256, 24
      %v3345 = vpop.permute.xlu0 %3344
      %3346 = vrot.lane.b32.xlu0 %v3257, 24
      %v3347 = vpop.permute.xlu0 %3346
      %3348 = vrot.lane.b32.xlu0 %v3258, 24
      %v3349 = vpop.permute.xlu0 %3348
      %3350 = vrot.lane.b32.xlu0 %v3259, 24
      %v3351 = vpop.permute.xlu0 %3350
      %3352 = vrot.lane.b32.xlu0 %v3260, 24
      %v3353 = vpop.permute.xlu0 %3352
      %3354 = vrot.lane.b32.xlu0 %v3261, 24
      %v3355 = vpop.permute.xlu0 %3354
      %3356 = vrot.lane.b32.xlu0 %v3262, 24
      %v3357 = vpop.permute.xlu0 %3356
      %3358 = vrot.lane.b32.xlu0 %v3263, 24
      %v3359 = vpop.permute.xlu0 %3358
      %vm3392 = vcmask 224448
      %3393 = vst.msk [vmem:[#allocation3] sm:$0xf] %vm3392, %v3297
      %3394 = vst.msk [vmem:[#allocation3 + $0x4] sm:$0xf] %vm3392, %v3299
      %3395 = vst.msk [vmem:[#allocation3 + $0x8] sm:$0xf] %vm3392, %v3301
      %3396 = vst.msk [vmem:[#allocation3 + $0xc] sm:$0xf] %vm3392, %v3303
      %3397 = vst.msk [vmem:[#allocation3 + $0x10] sm:$0xf] %vm3392, %v3305
      %3398 = vst.msk [vmem:[#allocation3 + $0x14] sm:$0xf] %vm3392, %v3307
      %3399 = vst.msk [vmem:[#allocation3 + $0x18] sm:$0xf] %vm3392, %v3309
      %3400 = vst.msk [vmem:[#allocation3 + $0x1c] sm:$0xf] %vm3392, %v3311
      %3401 = vst.msk [vmem:[#allocation3 + $0x20] sm:$0xf] %vm3392, %v3313
      %3402 = vst.msk [vmem:[#allocation3 + $0x24] sm:$0xf] %vm3392, %v3315
      %3403 = vst.msk [vmem:[#allocation3 + $0x28] sm:$0xf] %vm3392, %v3317
      %3404 = vst.msk [vmem:[#allocation3 + $0x2c] sm:$0xf] %vm3392, %v3319
      %3405 = vst.msk [vmem:[#allocation3 + $0x30] sm:$0xf] %vm3392, %v3321
      %3406 = vst.msk [vmem:[#allocation3 + $0x34] sm:$0xf] %vm3392, %v3323
      %3407 = vst.msk [vmem:[#allocation3 + $0x38] sm:$0xf] %vm3392, %v3325
      %3408 = vst.msk [vmem:[#allocation3 + $0x3c] sm:$0xf] %vm3392, %v3327
      %3409 = vst.msk [vmem:[#allocation3 + $0x40] sm:$0xf] %vm3392, %v3329
      %3410 = vst.msk [vmem:[#allocation3 + $0x44] sm:$0xf] %vm3392, %v3331
      %3411 = vst.msk [vmem:[#allocation3 + $0x48] sm:$0xf] %vm3392, %v3333
      %3412 = vst.msk [vmem:[#allocation3 + $0x4c] sm:$0xf] %vm3392, %v3335
      %3413 = vst.msk [vmem:[#allocation3 + $0x50] sm:$0xf] %vm3392, %v3337
      %3414 = vst.msk [vmem:[#allocation3 + $0x54] sm:$0xf] %vm3392, %v3339
      %3415 = vst.msk [vmem:[#allocation3 + $0x58] sm:$0xf] %vm3392, %v3341
      %3416 = vst.msk [vmem:[#allocation3 + $0x5c] sm:$0xf] %vm3392, %v3343
      %3417 = vst.msk [vmem:[#allocation3 + $0x60] sm:$0xf] %vm3392, %v3345
      %3418 = vst.msk [vmem:[#allocation3 + $0x64] sm:$0xf] %vm3392, %v3347
      %3419 = vst.msk [vmem:[#allocation3 + $0x68] sm:$0xf] %vm3392, %v3349
      %3420 = vst.msk [vmem:[#allocation3 + $0x6c] sm:$0xf] %vm3392, %v3351
      %3421 = vst.msk [vmem:[#allocation3 + $0x70] sm:$0xf] %vm3392, %v3353
      %3422 = vst.msk [vmem:[#allocation3 + $0x74] sm:$0xf] %vm3392, %v3355
      %3423 = vst.msk [vmem:[#allocation3 + $0x78] sm:$0xf] %vm3392, %v3357
      %3424 = vst.msk [vmem:[#allocation3 + $0x7c] sm:$0xf] %vm3392, %v3359
      %s3425 = scalar_lea.vmem %s232, 48
      %v3426 = vld [vmem:[%s3425] sm:$0xff]
      %v3427 = vld [vmem:[%s3425 + $0x8] sm:$0xff]
      %v3428 = vld [vmem:[%s3425 + $0x18] sm:$0xff]
      %v3429 = vld [vmem:[%s3425 + $0x20] sm:$0xff]
      %v3430 = vld [vmem:[%s3425 + $0x30] sm:$0xff]
      %v3431 = vld [vmem:[%s3425 + $0x38] sm:$0xff]
      %v3432 = vld [vmem:[%s3425 + $0x48] sm:$0xff]
      %v3433 = vld [vmem:[%s3425 + $0x50] sm:$0xff]
      %v3434 = vld [vmem:[%s3425 + $0x60] sm:$0xff]
      %v3435 = vld [vmem:[%s3425 + $0x68] sm:$0xff]
      %v3436 = vld [vmem:[%s3425 + $0x78] sm:$0xff]
      %v3437 = vld [vmem:[%s3425 + $0x80] sm:$0xff]
      %v3438 = vld [vmem:[%s3425 + $0x90] sm:$0xff]
      %v3439 = vld [vmem:[%s3425 + $0x98] sm:$0xff]
      %v3440 = vld [vmem:[%s3425 + $0xa8] sm:$0xff]
      %v3441 = vld [vmem:[%s3425 + $0xb0] sm:$0xff]
      %v3442 = vld [vmem:[%s3425 + $0xc0] sm:$0xff]
      %v3443 = vld [vmem:[%s3425 + $0xc8] sm:$0xff]
      %v3444 = vld [vmem:[%s3425 + $0xd8] sm:$0xff]
      %v3445 = vld [vmem:[%s3425 + $0xe0] sm:$0xff]
      %v3446 = vld [vmem:[%s3425 + $0xf0] sm:$0xff]
      %v3447 = vld [vmem:[%s3425 + $0xf8] sm:$0xff]
      %v3448 = vld [vmem:[%s3425 + $0x108] sm:$0xff]
      %v3449 = vld [vmem:[%s3425 + $0x110] sm:$0xff]
      %v3450 = vld [vmem:[%s3425 + $0x120] sm:$0xff]
      %v3451 = vld [vmem:[%s3425 + $0x128] sm:$0xff]
      %v3452 = vld [vmem:[%s3425 + $0x138] sm:$0xff]
      %v3453 = vld [vmem:[%s3425 + $0x140] sm:$0xff]
      %v3454 = vld [vmem:[%s3425 + $0x150] sm:$0xff]
      %v3455 = vld [vmem:[%s3425 + $0x158] sm:$0xff]
      %v3456 = vld [vmem:[%s3425 + $0x168] sm:$0xff]
      %v3457 = vld [vmem:[%s3425 + $0x170] sm:$0xff]
      %v3458 = vld [vmem:[#allocation4] sm:$0xff]
      %v3459 = vld [vmem:[#allocation4 + $0x8] sm:$0xff]
      %v3460 = vld [vmem:[#allocation4 + $0x10] sm:$0xff]
      %v3461 = vld [vmem:[#allocation4 + $0x18] sm:$0xff]
      %v3462 = vld [vmem:[#allocation4 + $0x20] sm:$0xff]
      %v3463 = vld [vmem:[#allocation4 + $0x28] sm:$0xff]
      %v3464 = vld [vmem:[#allocation4 + $0x30] sm:$0xff]
      %v3465 = vld [vmem:[#allocation4 + $0x38] sm:$0xff]
      %v3466 = vld [vmem:[#allocation4 + $0x40] sm:$0xff]
      %v3467 = vld [vmem:[#allocation4 + $0x48] sm:$0xff]
      %v3468 = vld [vmem:[#allocation4 + $0x50] sm:$0xff]
      %v3469 = vld [vmem:[#allocation4 + $0x58] sm:$0xff]
      %v3470 = vld [vmem:[#allocation4 + $0x60] sm:$0xff]
      %v3471 = vld [vmem:[#allocation4 + $0x68] sm:$0xff]
      %v3472 = vld [vmem:[#allocation4 + $0x70] sm:$0xff]
      %v3473 = vld [vmem:[#allocation4 + $0x78] sm:$0xff]
      %v3474 = vld [vmem:[#allocation4 + $0x80] sm:$0xff]
      %v3475 = vld [vmem:[#allocation4 + $0x88] sm:$0xff]
      %v3476 = vld [vmem:[#allocation4 + $0x90] sm:$0xff]
      %v3477 = vld [vmem:[#allocation4 + $0x98] sm:$0xff]
      %v3478 = vld [vmem:[#allocation4 + $0xa0] sm:$0xff]
      %v3479 = vld [vmem:[#allocation4 + $0xa8] sm:$0xff]
      %v3480 = vld [vmem:[#allocation4 + $0xb0] sm:$0xff]
      %v3481 = vld [vmem:[#allocation4 + $0xb8] sm:$0xff]
      %v3482 = vld [vmem:[#allocation4 + $0xc0] sm:$0xff]
      %v3483 = vld [vmem:[#allocation4 + $0xc8] sm:$0xff]
      %v3484 = vld [vmem:[#allocation4 + $0xd0] sm:$0xff]
      %v3485 = vld [vmem:[#allocation4 + $0xd8] sm:$0xff]
      %v3486 = vld [vmem:[#allocation4 + $0xe0] sm:$0xff]
      %v3487 = vld [vmem:[#allocation4 + $0xe8] sm:$0xff]
      %v3488 = vld [vmem:[#allocation4 + $0xf0] sm:$0xff]
      %v3489 = vld [vmem:[#allocation4 + $0xf8] sm:$0xff]
      %v3490 = vadd.f32 %v3458, %v3426
      %v3491 = vadd.f32 %v3459, %v3427
      %v3492 = vadd.f32 %v3460, %v3428
      %v3493 = vadd.f32 %v3461, %v3429
      %v3494 = vadd.f32 %v3462, %v3430
      %v3495 = vadd.f32 %v3463, %v3431
      %v3496 = vadd.f32 %v3464, %v3432
      %v3497 = vadd.f32 %v3465, %v3433
      %v3498 = vadd.f32 %v3466, %v3434
      %v3499 = vadd.f32 %v3467, %v3435
      %v3500 = vadd.f32 %v3468, %v3436
      %v3501 = vadd.f32 %v3469, %v3437
      %v3502 = vadd.f32 %v3470, %v3438
      %v3503 = vadd.f32 %v3471, %v3439
      %v3504 = vadd.f32 %v3472, %v3440
      %v3505 = vadd.f32 %v3473, %v3441
      %v3506 = vadd.f32 %v3474, %v3442
      %v3507 = vadd.f32 %v3475, %v3443
      %v3508 = vadd.f32 %v3476, %v3444
      %v3509 = vadd.f32 %v3477, %v3445
      %v3510 = vadd.f32 %v3478, %v3446
      %v3511 = vadd.f32 %v3479, %v3447
      %v3512 = vadd.f32 %v3480, %v3448
      %v3513 = vadd.f32 %v3481, %v3449
      %v3514 = vadd.f32 %v3482, %v3450
      %v3515 = vadd.f32 %v3483, %v3451
      %v3516 = vadd.f32 %v3484, %v3452
      %v3517 = vadd.f32 %v3485, %v3453
      %v3518 = vadd.f32 %v3486, %v3454
      %v3519 = vadd.f32 %v3487, %v3455
      %v3520 = vadd.f32 %v3488, %v3456
      %v3521 = vadd.f32 %v3489, %v3457
      %3522 = vst.msk [vmem:[#allocation4] sm:$0xff] %vm561, %v3490
      %3523 = vst.msk [vmem:[#allocation4 + $0x8] sm:$0xff] %vm561, %v3491
      %3524 = vst.msk [vmem:[#allocation4 + $0x10] sm:$0xff] %vm561, %v3492
      %3525 = vst.msk [vmem:[#allocation4 + $0x18] sm:$0xff] %vm561, %v3493
      %3526 = vst.msk [vmem:[#allocation4 + $0x20] sm:$0xff] %vm561, %v3494
      %3527 = vst.msk [vmem:[#allocation4 + $0x28] sm:$0xff] %vm561, %v3495
      %3528 = vst.msk [vmem:[#allocation4 + $0x30] sm:$0xff] %vm561, %v3496
      %3529 = vst.msk [vmem:[#allocation4 + $0x38] sm:$0xff] %vm561, %v3497
      %3530 = vst.msk [vmem:[#allocation4 + $0x40] sm:$0xff] %vm561, %v3498
      %3531 = vst.msk [vmem:[#allocation4 + $0x48] sm:$0xff] %vm561, %v3499
      %3532 = vst.msk [vmem:[#allocation4 + $0x50] sm:$0xff] %vm561, %v3500
      %3533 = vst.msk [vmem:[#allocation4 + $0x58] sm:$0xff] %vm561, %v3501
      %3534 = vst.msk [vmem:[#allocation4 + $0x60] sm:$0xff] %vm561, %v3502
      %3535 = vst.msk [vmem:[#allocation4 + $0x68] sm:$0xff] %vm561, %v3503
      %3536 = vst.msk [vmem:[#allocation4 + $0x70] sm:$0xff] %vm561, %v3504
      %3537 = vst.msk [vmem:[#allocation4 + $0x78] sm:$0xff] %vm561, %v3505
      %3538 = vst.msk [vmem:[#allocation4 + $0x80] sm:$0xff] %vm561, %v3506
      %3539 = vst.msk [vmem:[#allocation4 + $0x88] sm:$0xff] %vm561, %v3507
      %3540 = vst.msk [vmem:[#allocation4 + $0x90] sm:$0xff] %vm561, %v3508
      %3541 = vst.msk [vmem:[#allocation4 + $0x98] sm:$0xff] %vm561, %v3509
      %3542 = vst.msk [vmem:[#allocation4 + $0xa0] sm:$0xff] %vm561, %v3510
      %3543 = vst.msk [vmem:[#allocation4 + $0xa8] sm:$0xff] %vm561, %v3511
      %3544 = vst.msk [vmem:[#allocation4 + $0xb0] sm:$0xff] %vm561, %v3512
      %3545 = vst.msk [vmem:[#allocation4 + $0xb8] sm:$0xff] %vm561, %v3513
      %3546 = vst.msk [vmem:[#allocation4 + $0xc0] sm:$0xff] %vm561, %v3514
      %3547 = vst.msk [vmem:[#allocation4 + $0xc8] sm:$0xff] %vm561, %v3515
      %3548 = vst.msk [vmem:[#allocation4 + $0xd0] sm:$0xff] %vm561, %v3516
      %3549 = vst.msk [vmem:[#allocation4 + $0xd8] sm:$0xff] %vm561, %v3517
      %3550 = vst.msk [vmem:[#allocation4 + $0xe0] sm:$0xff] %vm561, %v3518
      %3551 = vst.msk [vmem:[#allocation4 + $0xe8] sm:$0xff] %vm561, %v3519
      %3552 = vst.msk [vmem:[#allocation4 + $0xf0] sm:$0xff] %vm561, %v3520
      %3553 = vst.msk [vmem:[#allocation4 + $0xf8] sm:$0xff] %vm561, %v3521
      %v3554 = vld [vmem:[%s3231] sm:$0xf]
      %v3555 = vld [vmem:[%s3231 + $0x4] sm:$0xf]
      %v3556 = vld [vmem:[%s3231 + $0x8] sm:$0x1]
      %v3557 = vld [vmem:[%s3231 + $0xc] sm:$0xf]
      %v3558 = vld [vmem:[%s3231 + $0x10] sm:$0xf]
      %v3559 = vld [vmem:[%s3231 + $0x14] sm:$0x1]
      %v3560 = vld [vmem:[%s3231 + $0x18] sm:$0xf]
      %v3561 = vld [vmem:[%s3231 + $0x1c] sm:$0xf]
      %v3562 = vld [vmem:[%s3231 + $0x20] sm:$0x1]
      %v3563 = vld [vmem:[%s3231 + $0x24] sm:$0xf]
      %v3564 = vld [vmem:[%s3231 + $0x28] sm:$0xf]
      %v3565 = vld [vmem:[%s3231 + $0x2c] sm:$0x1]
      %v3566 = vld [vmem:[%s3231 + $0x30] sm:$0xf]
      %v3567 = vld [vmem:[%s3231 + $0x34] sm:$0xf]
      %v3568 = vld [vmem:[%s3231 + $0x38] sm:$0x1]
      %v3569 = vld [vmem:[%s3231 + $0x3c] sm:$0xf]
      %v3570 = vld [vmem:[%s3231 + $0x40] sm:$0xf]
      %v3571 = vld [vmem:[%s3231 + $0x44] sm:$0x1]
      %v3572 = vld [vmem:[%s3231 + $0x48] sm:$0xf]
      %v3573 = vld [vmem:[%s3231 + $0x4c] sm:$0xf]
      %v3574 = vld [vmem:[%s3231 + $0x50] sm:$0x1]
      %v3575 = vld [vmem:[%s3231 + $0x54] sm:$0xf]
      %v3576 = vld [vmem:[%s3231 + $0x58] sm:$0xf]
      %v3577 = vld [vmem:[%s3231 + $0x5c] sm:$0x1]
      %v3578 = vld [vmem:[%s3231 + $0x60] sm:$0xf]
      %v3579 = vld [vmem:[%s3231 + $0x64] sm:$0xf]
      %v3580 = vld [vmem:[%s3231 + $0x68] sm:$0x1]
      %v3581 = vld [vmem:[%s3231 + $0x6c] sm:$0xf]
      %v3582 = vld [vmem:[%s3231 + $0x70] sm:$0xf]
      %v3583 = vld [vmem:[%s3231 + $0x74] sm:$0x1]
      %v3584 = vld [vmem:[%s3231 + $0x78] sm:$0xf]
      %v3585 = vld [vmem:[%s3231 + $0x7c] sm:$0xf]
      %v3586 = vld [vmem:[%s3231 + $0x80] sm:$0x1]
      %v3587 = vld [vmem:[%s3231 + $0x84] sm:$0xf]
      %v3588 = vld [vmem:[%s3231 + $0x88] sm:$0xf]
      %v3589 = vld [vmem:[%s3231 + $0x8c] sm:$0x1]
      %v3590 = vld [vmem:[%s3231 + $0x90] sm:$0xf]
      %v3591 = vld [vmem:[%s3231 + $0x94] sm:$0xf]
      %v3592 = vld [vmem:[%s3231 + $0x98] sm:$0x1]
      %v3593 = vld [vmem:[%s3231 + $0x9c] sm:$0xf]
      %v3594 = vld [vmem:[%s3231 + $0xa0] sm:$0xf]
      %v3595 = vld [vmem:[%s3231 + $0xa4] sm:$0x1]
      %v3596 = vld [vmem:[%s3231 + $0xa8] sm:$0xf]
      %v3597 = vld [vmem:[%s3231 + $0xac] sm:$0xf]
      %v3598 = vld [vmem:[%s3231 + $0xb0] sm:$0x1]
      %v3599 = vld [vmem:[%s3231 + $0xb4] sm:$0xf]
      %v3600 = vld [vmem:[%s3231 + $0xb8] sm:$0xf]
      %v3601 = vld [vmem:[%s3231 + $0xbc] sm:$0x1]
      %v3603 = vshrl.u32 %v3554, 16
      %v3605 = vrot.slane %v3603, 4
      %v3606 = vshll.u32 %v3554, 16
      %v3608 = vrot.slane %v3606, 5
      %v3609 = vor.u32 %v3605, %v3608
      %v3610 = vrot.slane %v3609, 4
      %v3612 = vshll.u32 %v3555, 16
      %v3614 = vrot.slane %v3612, 5
      %v3615 = vsel %vm644, %v3610, %v3614
      %v3616 = vshrl.u32 %v3555, 16
      %v3618 = vrot.slane %v3616, 4
      %v3619 = vor.u32 %v3618, %v3614
      %v3620 = vrot.slane %v3619, 4
      %v3622 = vshll.u32 %v3556, 16
      %v3624 = vrot.slane %v3622, 5
      %v3625 = vsel %vm644, %v3620, %v3624
      %v3627 = vshrl.u32 %v3557, 16
      %v3629 = vrot.slane %v3627, 4
      %v3630 = vshll.u32 %v3557, 16
      %v3632 = vrot.slane %v3630, 5
      %v3633 = vor.u32 %v3629, %v3632
      %v3634 = vrot.slane %v3633, 4
      %v3636 = vshll.u32 %v3558, 16
      %v3638 = vrot.slane %v3636, 5
      %v3639 = vsel %vm644, %v3634, %v3638
      %v3640 = vshrl.u32 %v3558, 16
      %v3642 = vrot.slane %v3640, 4
      %v3643 = vor.u32 %v3642, %v3638
      %v3644 = vrot.slane %v3643, 4
      %v3646 = vshll.u32 %v3559, 16
      %v3648 = vrot.slane %v3646, 5
      %v3649 = vsel %vm644, %v3644, %v3648
      %v3651 = vshrl.u32 %v3560, 16
      %v3653 = vrot.slane %v3651, 4
      %v3654 = vshll.u32 %v3560, 16
      %v3656 = vrot.slane %v3654, 5
      %v3657 = vor.u32 %v3653, %v3656
      %v3658 = vrot.slane %v3657, 4
      %v3660 = vshll.u32 %v3561, 16
      %v3662 = vrot.slane %v3660, 5
      %v3663 = vsel %vm644, %v3658, %v3662
      %v3664 = vshrl.u32 %v3561, 16
      %v3666 = vrot.slane %v3664, 4
      %v3667 = vor.u32 %v3666, %v3662
      %v3668 = vrot.slane %v3667, 4
      %v3670 = vshll.u32 %v3562, 16
      %v3672 = vrot.slane %v3670, 5
      %v3673 = vsel %vm644, %v3668, %v3672
      %v3675 = vshrl.u32 %v3563, 16
      %v3677 = vrot.slane %v3675, 4
      %v3678 = vshll.u32 %v3563, 16
      %v3680 = vrot.slane %v3678, 5
      %v3681 = vor.u32 %v3677, %v3680
      %v3682 = vrot.slane %v3681, 4
      %v3684 = vshll.u32 %v3564, 16
      %v3686 = vrot.slane %v3684, 5
      %v3687 = vsel %vm644, %v3682, %v3686
      %v3688 = vshrl.u32 %v3564, 16
      %v3690 = vrot.slane %v3688, 4
      %v3691 = vor.u32 %v3690, %v3686
      %v3692 = vrot.slane %v3691, 4
      %v3694 = vshll.u32 %v3565, 16
      %v3696 = vrot.slane %v3694, 5
      %v3697 = vsel %vm644, %v3692, %v3696
      %v3699 = vshrl.u32 %v3566, 16
      %v3701 = vrot.slane %v3699, 4
      %v3702 = vshll.u32 %v3566, 16
      %v3704 = vrot.slane %v3702, 5
      %v3705 = vor.u32 %v3701, %v3704
      %v3706 = vrot.slane %v3705, 4
      %v3708 = vshll.u32 %v3567, 16
      %v3710 = vrot.slane %v3708, 5
      %v3711 = vsel %vm644, %v3706, %v3710
      %v3712 = vshrl.u32 %v3567, 16
      %v3714 = vrot.slane %v3712, 4
      %v3715 = vor.u32 %v3714, %v3710
      %v3716 = vrot.slane %v3715, 4
      %v3718 = vshll.u32 %v3568, 16
      %v3720 = vrot.slane %v3718, 5
      %v3721 = vsel %vm644, %v3716, %v3720
      %v3723 = vshrl.u32 %v3569, 16
      %v3725 = vrot.slane %v3723, 4
      %v3726 = vshll.u32 %v3569, 16
      %v3728 = vrot.slane %v3726, 5
      %v3729 = vor.u32 %v3725, %v3728
      %v3730 = vrot.slane %v3729, 4
      %v3732 = vshll.u32 %v3570, 16
      %v3734 = vrot.slane %v3732, 5
      %v3735 = vsel %vm644, %v3730, %v3734
      %v3736 = vshrl.u32 %v3570, 16
      %v3738 = vrot.slane %v3736, 4
      %v3739 = vor.u32 %v3738, %v3734
      %v3740 = vrot.slane %v3739, 4
      %v3742 = vshll.u32 %v3571, 16
      %v3744 = vrot.slane %v3742, 5
      %v3745 = vsel %vm644, %v3740, %v3744
      %v3747 = vshrl.u32 %v3572, 16
      %v3749 = vrot.slane %v3747, 4
      %v3750 = vshll.u32 %v3572, 16
      %v3752 = vrot.slane %v3750, 5
      %v3753 = vor.u32 %v3749, %v3752
      %v3754 = vrot.slane %v3753, 4
      %v3756 = vshll.u32 %v3573, 16
      %v3758 = vrot.slane %v3756, 5
      %v3759 = vsel %vm644, %v3754, %v3758
      %v3760 = vshrl.u32 %v3573, 16
      %v3762 = vrot.slane %v3760, 4
      %v3763 = vor.u32 %v3762, %v3758
      %v3764 = vrot.slane %v3763, 4
      %v3766 = vshll.u32 %v3574, 16
      %v3768 = vrot.slane %v3766, 5
      %v3769 = vsel %vm644, %v3764, %v3768
      %v3771 = vshrl.u32 %v3575, 16
      %v3773 = vrot.slane %v3771, 4
      %v3774 = vshll.u32 %v3575, 16
      %v3776 = vrot.slane %v3774, 5
      %v3777 = vor.u32 %v3773, %v3776
      %v3778 = vrot.slane %v3777, 4
      %v3780 = vshll.u32 %v3576, 16
      %v3782 = vrot.slane %v3780, 5
      %v3783 = vsel %vm644, %v3778, %v3782
      %v3784 = vshrl.u32 %v3576, 16
      %v3786 = vrot.slane %v3784, 4
      %v3787 = vor.u32 %v3786, %v3782
      %v3788 = vrot.slane %v3787, 4
      %v3790 = vshll.u32 %v3577, 16
      %v3792 = vrot.slane %v3790, 5
      %v3793 = vsel %vm644, %v3788, %v3792
      %v3795 = vshrl.u32 %v3578, 16
      %v3797 = vrot.slane %v3795, 4
      %v3798 = vshll.u32 %v3578, 16
      %v3800 = vrot.slane %v3798, 5
      %v3801 = vor.u32 %v3797, %v3800
      %v3802 = vrot.slane %v3801, 4
      %v3804 = vshll.u32 %v3579, 16
      %v3806 = vrot.slane %v3804, 5
      %v3807 = vsel %vm644, %v3802, %v3806
      %v3808 = vshrl.u32 %v3579, 16
      %v3810 = vrot.slane %v3808, 4
      %v3811 = vor.u32 %v3810, %v3806
      %v3812 = vrot.slane %v3811, 4
      %v3814 = vshll.u32 %v3580, 16
      %v3816 = vrot.slane %v3814, 5
      %v3817 = vsel %vm644, %v3812, %v3816
      %v3819 = vshrl.u32 %v3581, 16
      %v3821 = vrot.slane %v3819, 4
      %v3822 = vshll.u32 %v3581, 16
      %v3824 = vrot.slane %v3822, 5
      %v3825 = vor.u32 %v3821, %v3824
      %v3826 = vrot.slane %v3825, 4
      %v3828 = vshll.u32 %v3582, 16
      %v3830 = vrot.slane %v3828, 5
      %v3831 = vsel %vm644, %v3826, %v3830
      %v3832 = vshrl.u32 %v3582, 16
      %v3834 = vrot.slane %v3832, 4
      %v3835 = vor.u32 %v3834, %v3830
      %v3836 = vrot.slane %v3835, 4
      %v3838 = vshll.u32 %v3583, 16
      %v3840 = vrot.slane %v3838, 5
      %v3841 = vsel %vm644, %v3836, %v3840
      %v3843 = vshrl.u32 %v3584, 16
      %v3845 = vrot.slane %v3843, 4
      %v3846 = vshll.u32 %v3584, 16
      %v3848 = vrot.slane %v3846, 5
      %v3849 = vor.u32 %v3845, %v3848
      %v3850 = vrot.slane %v3849, 4
      %v3852 = vshll.u32 %v3585, 16
      %v3854 = vrot.slane %v3852, 5
      %v3855 = vsel %vm644, %v3850, %v3854
      %v3856 = vshrl.u32 %v3585, 16
      %v3858 = vrot.slane %v3856, 4
      %v3859 = vor.u32 %v3858, %v3854
      %v3860 = vrot.slane %v3859, 4
      %v3862 = vshll.u32 %v3586, 16
      %v3864 = vrot.slane %v3862, 5
      %v3865 = vsel %vm644, %v3860, %v3864
      %v3867 = vshrl.u32 %v3587, 16
      %v3869 = vrot.slane %v3867, 4
      %v3870 = vshll.u32 %v3587, 16
      %v3872 = vrot.slane %v3870, 5
      %v3873 = vor.u32 %v3869, %v3872
      %v3874 = vrot.slane %v3873, 4
      %v3876 = vshll.u32 %v3588, 16
      %v3878 = vrot.slane %v3876, 5
      %v3879 = vsel %vm644, %v3874, %v3878
      %v3880 = vshrl.u32 %v3588, 16
      %v3882 = vrot.slane %v3880, 4
      %v3883 = vor.u32 %v3882, %v3878
      %v3884 = vrot.slane %v3883, 4
      %v3886 = vshll.u32 %v3589, 16
      %v3888 = vrot.slane %v3886, 5
      %v3889 = vsel %vm644, %v3884, %v3888
      %v3891 = vshrl.u32 %v3590, 16
      %v3893 = vrot.slane %v3891, 4
      %v3894 = vshll.u32 %v3590, 16
      %v3896 = vrot.slane %v3894, 5
      %v3897 = vor.u32 %v3893, %v3896
      %v3898 = vrot.slane %v3897, 4
      %v3900 = vshll.u32 %v3591, 16
      %v3902 = vrot.slane %v3900, 5
      %v3903 = vsel %vm644, %v3898, %v3902
      %v3904 = vshrl.u32 %v3591, 16
      %v3906 = vrot.slane %v3904, 4
      %v3907 = vor.u32 %v3906, %v3902
      %v3908 = vrot.slane %v3907, 4
      %v3910 = vshll.u32 %v3592, 16
      %v3912 = vrot.slane %v3910, 5
      %v3913 = vsel %vm644, %v3908, %v3912
      %v3915 = vshrl.u32 %v3593, 16
      %v3917 = vrot.slane %v3915, 4
      %v3918 = vshll.u32 %v3593, 16
      %v3920 = vrot.slane %v3918, 5
      %v3921 = vor.u32 %v3917, %v3920
      %v3922 = vrot.slane %v3921, 4
      %v3924 = vshll.u32 %v3594, 16
      %v3926 = vrot.slane %v3924, 5
      %v3927 = vsel %vm644, %v3922, %v3926
      %v3928 = vshrl.u32 %v3594, 16
      %v3930 = vrot.slane %v3928, 4
      %v3931 = vor.u32 %v3930, %v3926
      %v3932 = vrot.slane %v3931, 4
      %v3934 = vshll.u32 %v3595, 16
      %v3936 = vrot.slane %v3934, 5
      %v3937 = vsel %vm644, %v3932, %v3936
      %v3939 = vshrl.u32 %v3596, 16
      %v3941 = vrot.slane %v3939, 4
      %v3942 = vshll.u32 %v3596, 16
      %v3944 = vrot.slane %v3942, 5
      %v3945 = vor.u32 %v3941, %v3944
      %v3946 = vrot.slane %v3945, 4
      %v3948 = vshll.u32 %v3597, 16
      %v3950 = vrot.slane %v3948, 5
      %v3951 = vsel %vm644, %v3946, %v3950
      %v3952 = vshrl.u32 %v3597, 16
      %v3954 = vrot.slane %v3952, 4
      %v3955 = vor.u32 %v3954, %v3950
      %v3956 = vrot.slane %v3955, 4
      %v3958 = vshll.u32 %v3598, 16
      %v3960 = vrot.slane %v3958, 5
      %v3961 = vsel %vm644, %v3956, %v3960
      %v3963 = vshrl.u32 %v3599, 16
      %v3965 = vrot.slane %v3963, 4
      %v3966 = vshll.u32 %v3599, 16
      %v3968 = vrot.slane %v3966, 5
      %v3969 = vor.u32 %v3965, %v3968
      %v3970 = vrot.slane %v3969, 4
      %v3972 = vshll.u32 %v3600, 16
      %v3974 = vrot.slane %v3972, 5
      %v3975 = vsel %vm644, %v3970, %v3974
      %v3976 = vshrl.u32 %v3600, 16
      %v3978 = vrot.slane %v3976, 4
      %v3979 = vor.u32 %v3978, %v3974
      %v3980 = vrot.slane %v3979, 4
      %v3982 = vshll.u32 %v3601, 16
      %v3984 = vrot.slane %v3982, 5
      %v3985 = vsel %vm644, %v3980, %v3984
      %3986 = vrot.lane.b32.xlu0 %v3615, 28
      %v3987 = vpop.permute.xlu0 %3986
      %3988 = vrot.lane.b32.xlu0 %v3625, 28
      %v3989 = vpop.permute.xlu0 %3988
      %3990 = vrot.lane.b32.xlu0 %v3639, 28
      %v3991 = vpop.permute.xlu0 %3990
      %3992 = vrot.lane.b32.xlu0 %v3649, 28
      %v3993 = vpop.permute.xlu0 %3992
      %3994 = vrot.lane.b32.xlu0 %v3663, 28
      %v3995 = vpop.permute.xlu0 %3994
      %3996 = vrot.lane.b32.xlu0 %v3673, 28
      %v3997 = vpop.permute.xlu0 %3996
      %3998 = vrot.lane.b32.xlu0 %v3687, 28
      %v3999 = vpop.permute.xlu0 %3998
      %4000 = vrot.lane.b32.xlu0 %v3697, 28
      %v4001 = vpop.permute.xlu0 %4000
      %4002 = vrot.lane.b32.xlu0 %v3711, 28
      %v4003 = vpop.permute.xlu0 %4002
      %4004 = vrot.lane.b32.xlu0 %v3721, 28
      %v4005 = vpop.permute.xlu0 %4004
      %4006 = vrot.lane.b32.xlu0 %v3735, 28
      %v4007 = vpop.permute.xlu0 %4006
      %4008 = vrot.lane.b32.xlu0 %v3745, 28
      %v4009 = vpop.permute.xlu0 %4008
      %4010 = vrot.lane.b32.xlu0 %v3759, 28
      %v4011 = vpop.permute.xlu0 %4010
      %4012 = vrot.lane.b32.xlu0 %v3769, 28
      %v4013 = vpop.permute.xlu0 %4012
      %4014 = vrot.lane.b32.xlu0 %v3783, 28
      %v4015 = vpop.permute.xlu0 %4014
      %4016 = vrot.lane.b32.xlu0 %v3793, 28
      %v4017 = vpop.permute.xlu0 %4016
      %4018 = vrot.lane.b32.xlu0 %v3807, 28
      %v4019 = vpop.permute.xlu0 %4018
      %4020 = vrot.lane.b32.xlu0 %v3817, 28
      %v4021 = vpop.permute.xlu0 %4020
      %4022 = vrot.lane.b32.xlu0 %v3831, 28
      %v4023 = vpop.permute.xlu0 %4022
      %4024 = vrot.lane.b32.xlu0 %v3841, 28
      %v4025 = vpop.permute.xlu0 %4024
      %4026 = vrot.lane.b32.xlu0 %v3855, 28
      %v4027 = vpop.permute.xlu0 %4026
      %4028 = vrot.lane.b32.xlu0 %v3865, 28
      %v4029 = vpop.permute.xlu0 %4028
      %4030 = vrot.lane.b32.xlu0 %v3879, 28
      %v4031 = vpop.permute.xlu0 %4030
      %4032 = vrot.lane.b32.xlu0 %v3889, 28
      %v4033 = vpop.permute.xlu0 %4032
      %4034 = vrot.lane.b32.xlu0 %v3903, 28
      %v4035 = vpop.permute.xlu0 %4034
      %4036 = vrot.lane.b32.xlu0 %v3913, 28
      %v4037 = vpop.permute.xlu0 %4036
      %4038 = vrot.lane.b32.xlu0 %v3927, 28
      %v4039 = vpop.permute.xlu0 %4038
      %4040 = vrot.lane.b32.xlu0 %v3937, 28
      %v4041 = vpop.permute.xlu0 %4040
      %4042 = vrot.lane.b32.xlu0 %v3951, 28
      %v4043 = vpop.permute.xlu0 %4042
      %4044 = vrot.lane.b32.xlu0 %v3961, 28
      %v4045 = vpop.permute.xlu0 %4044
      %4046 = vrot.lane.b32.xlu0 %v3975, 28
      %v4047 = vpop.permute.xlu0 %4046
      %4048 = vrot.lane.b32.xlu0 %v3985, 28
      %v4049 = vpop.permute.xlu0 %4048
      %vm4082 = vcmask 257248
      %4083 = vst.msk [vmem:[#allocation3] sm:$0xf] %vm4082, %v3987
      %4084 = vst.msk [vmem:[#allocation3 + $0x4] sm:$0xf] %vm4082, %v3989
      %4085 = vst.msk [vmem:[#allocation3 + $0x8] sm:$0xf] %vm4082, %v3991
      %4086 = vst.msk [vmem:[#allocation3 + $0xc] sm:$0xf] %vm4082, %v3993
      %4087 = vst.msk [vmem:[#allocation3 + $0x10] sm:$0xf] %vm4082, %v3995
      %4088 = vst.msk [vmem:[#allocation3 + $0x14] sm:$0xf] %vm4082, %v3997
      %4089 = vst.msk [vmem:[#allocation3 + $0x18] sm:$0xf] %vm4082, %v3999
      %4090 = vst.msk [vmem:[#allocation3 + $0x1c] sm:$0xf] %vm4082, %v4001
      %4091 = vst.msk [vmem:[#allocation3 + $0x20] sm:$0xf] %vm4082, %v4003
      %4092 = vst.msk [vmem:[#allocation3 + $0x24] sm:$0xf] %vm4082, %v4005
      %4093 = vst.msk [vmem:[#allocation3 + $0x28] sm:$0xf] %vm4082, %v4007
      %4094 = vst.msk [vmem:[#allocation3 + $0x2c] sm:$0xf] %vm4082, %v4009
      %4095 = vst.msk [vmem:[#allocation3 + $0x30] sm:$0xf] %vm4082, %v4011
      %4096 = vst.msk [vmem:[#allocation3 + $0x34] sm:$0xf] %vm4082, %v4013
      %4097 = vst.msk [vmem:[#allocation3 + $0x38] sm:$0xf] %vm4082, %v4015
      %4098 = vst.msk [vmem:[#allocation3 + $0x3c] sm:$0xf] %vm4082, %v4017
      %4099 = vst.msk [vmem:[#allocation3 + $0x40] sm:$0xf] %vm4082, %v4019
      %4100 = vst.msk [vmem:[#allocation3 + $0x44] sm:$0xf] %vm4082, %v4021
      %4101 = vst.msk [vmem:[#allocation3 + $0x48] sm:$0xf] %vm4082, %v4023
      %4102 = vst.msk [vmem:[#allocation3 + $0x4c] sm:$0xf] %vm4082, %v4025
      %4103 = vst.msk [vmem:[#allocation3 + $0x50] sm:$0xf] %vm4082, %v4027
      %4104 = vst.msk [vmem:[#allocation3 + $0x54] sm:$0xf] %vm4082, %v4029
      %4105 = vst.msk [vmem:[#allocation3 + $0x58] sm:$0xf] %vm4082, %v4031
      %4106 = vst.msk [vmem:[#allocation3 + $0x5c] sm:$0xf] %vm4082, %v4033
      %4107 = vst.msk [vmem:[#allocation3 + $0x60] sm:$0xf] %vm4082, %v4035
      %4108 = vst.msk [vmem:[#allocation3 + $0x64] sm:$0xf] %vm4082, %v4037
      %4109 = vst.msk [vmem:[#allocation3 + $0x68] sm:$0xf] %vm4082, %v4039
      %4110 = vst.msk [vmem:[#allocation3 + $0x6c] sm:$0xf] %vm4082, %v4041
      %4111 = vst.msk [vmem:[#allocation3 + $0x70] sm:$0xf] %vm4082, %v4043
      %4112 = vst.msk [vmem:[#allocation3 + $0x74] sm:$0xf] %vm4082, %v4045
      %4113 = vst.msk [vmem:[#allocation3 + $0x78] sm:$0xf] %vm4082, %v4047
      %4114 = vst.msk [vmem:[#allocation3 + $0x7c] sm:$0xf] %vm4082, %v4049
      %v4115 = vld [vmem:[%s3425 + $0x1] sm:$0xff]
      %v4116 = vld [vmem:[%s3425 + $0x9] sm:$0xff]
      %v4117 = vld [vmem:[%s3425 + $0x19] sm:$0xff]
      %v4118 = vld [vmem:[%s3425 + $0x21] sm:$0xff]
      %v4119 = vld [vmem:[%s3425 + $0x31] sm:$0xff]
      %v4120 = vld [vmem:[%s3425 + $0x39] sm:$0xff]
      %v4121 = vld [vmem:[%s3425 + $0x49] sm:$0xff]
      %v4122 = vld [vmem:[%s3425 + $0x51] sm:$0xff]
      %v4123 = vld [vmem:[%s3425 + $0x61] sm:$0xff]
      %v4124 = vld [vmem:[%s3425 + $0x69] sm:$0xff]
      %v4125 = vld [vmem:[%s3425 + $0x79] sm:$0xff]
      %v4126 = vld [vmem:[%s3425 + $0x81] sm:$0xff]
      %v4127 = vld [vmem:[%s3425 + $0x91] sm:$0xff]
      %v4128 = vld [vmem:[%s3425 + $0x99] sm:$0xff]
      %v4129 = vld [vmem:[%s3425 + $0xa9] sm:$0xff]
      %v4130 = vld [vmem:[%s3425 + $0xb1] sm:$0xff]
      %v4131 = vld [vmem:[%s3425 + $0xc1] sm:$0xff]
      %v4132 = vld [vmem:[%s3425 + $0xc9] sm:$0xff]
      %v4133 = vld [vmem:[%s3425 + $0xd9] sm:$0xff]
      %v4134 = vld [vmem:[%s3425 + $0xe1] sm:$0xff]
      %v4135 = vld [vmem:[%s3425 + $0xf1] sm:$0xff]
      %v4136 = vld [vmem:[%s3425 + $0xf9] sm:$0xff]
      %v4137 = vld [vmem:[%s3425 + $0x109] sm:$0xff]
      %v4138 = vld [vmem:[%s3425 + $0x111] sm:$0xff]
      %v4139 = vld [vmem:[%s3425 + $0x121] sm:$0xff]
      %v4140 = vld [vmem:[%s3425 + $0x129] sm:$0xff]
      %v4141 = vld [vmem:[%s3425 + $0x139] sm:$0xff]
      %v4142 = vld [vmem:[%s3425 + $0x141] sm:$0xff]
      %v4143 = vld [vmem:[%s3425 + $0x151] sm:$0xff]
      %v4144 = vld [vmem:[%s3425 + $0x159] sm:$0xff]
      %v4145 = vld [vmem:[%s3425 + $0x169] sm:$0xff]
      %v4146 = vld [vmem:[%s3425 + $0x171] sm:$0xff]
      %v4147 = vld [vmem:[#allocation4] sm:$0xff]
      %v4148 = vld [vmem:[#allocation4 + $0x8] sm:$0xff]
      %v4149 = vld [vmem:[#allocation4 + $0x10] sm:$0xff]
      %v4150 = vld [vmem:[#allocation4 + $0x18] sm:$0xff]
      %v4151 = vld [vmem:[#allocation4 + $0x20] sm:$0xff]
      %v4152 = vld [vmem:[#allocation4 + $0x28] sm:$0xff]
      %v4153 = vld [vmem:[#allocation4 + $0x30] sm:$0xff]
      %v4154 = vld [vmem:[#allocation4 + $0x38] sm:$0xff]
      %v4155 = vld [vmem:[#allocation4 + $0x40] sm:$0xff]
      %v4156 = vld [vmem:[#allocation4 + $0x48] sm:$0xff]
      %v4157 = vld [vmem:[#allocation4 + $0x50] sm:$0xff]
      %v4158 = vld [vmem:[#allocation4 + $0x58] sm:$0xff]
      %v4159 = vld [vmem:[#allocation4 + $0x60] sm:$0xff]
      %v4160 = vld [vmem:[#allocation4 + $0x68] sm:$0xff]
      %v4161 = vld [vmem:[#allocation4 + $0x70] sm:$0xff]
      %v4162 = vld [vmem:[#allocation4 + $0x78] sm:$0xff]
      %v4163 = vld [vmem:[#allocation4 + $0x80] sm:$0xff]
      %v4164 = vld [vmem:[#allocation4 + $0x88] sm:$0xff]
      %v4165 = vld [vmem:[#allocation4 + $0x90] sm:$0xff]
      %v4166 = vld [vmem:[#allocation4 + $0x98] sm:$0xff]
      %v4167 = vld [vmem:[#allocation4 + $0xa0] sm:$0xff]
      %v4168 = vld [vmem:[#allocation4 + $0xa8] sm:$0xff]
      %v4169 = vld [vmem:[#allocation4 + $0xb0] sm:$0xff]
      %v4170 = vld [vmem:[#allocation4 + $0xb8] sm:$0xff]
      %v4171 = vld [vmem:[#allocation4 + $0xc0] sm:$0xff]
      %v4172 = vld [vmem:[#allocation4 + $0xc8] sm:$0xff]
      %v4173 = vld [vmem:[#allocation4 + $0xd0] sm:$0xff]
      %v4174 = vld [vmem:[#allocation4 + $0xd8] sm:$0xff]
      %v4175 = vld [vmem:[#allocation4 + $0xe0] sm:$0xff]
      %v4176 = vld [vmem:[#allocation4 + $0xe8] sm:$0xff]
      %v4177 = vld [vmem:[#allocation4 + $0xf0] sm:$0xff]
      %v4178 = vld [vmem:[#allocation4 + $0xf8] sm:$0xff]
      %v4179 = vadd.f32 %v4147, %v4115
      %v4180 = vadd.f32 %v4148, %v4116
      %v4181 = vadd.f32 %v4149, %v4117
      %v4182 = vadd.f32 %v4150, %v4118
      %v4183 = vadd.f32 %v4151, %v4119
      %v4184 = vadd.f32 %v4152, %v4120
      %v4185 = vadd.f32 %v4153, %v4121
      %v4186 = vadd.f32 %v4154, %v4122
      %v4187 = vadd.f32 %v4155, %v4123
      %v4188 = vadd.f32 %v4156, %v4124
      %v4189 = vadd.f32 %v4157, %v4125
      %v4190 = vadd.f32 %v4158, %v4126
      %v4191 = vadd.f32 %v4159, %v4127
      %v4192 = vadd.f32 %v4160, %v4128
      %v4193 = vadd.f32 %v4161, %v4129
      %v4194 = vadd.f32 %v4162, %v4130
      %v4195 = vadd.f32 %v4163, %v4131
      %v4196 = vadd.f32 %v4164, %v4132
      %v4197 = vadd.f32 %v4165, %v4133
      %v4198 = vadd.f32 %v4166, %v4134
      %v4199 = vadd.f32 %v4167, %v4135
      %v4200 = vadd.f32 %v4168, %v4136
      %v4201 = vadd.f32 %v4169, %v4137
      %v4202 = vadd.f32 %v4170, %v4138
      %v4203 = vadd.f32 %v4171, %v4139
      %v4204 = vadd.f32 %v4172, %v4140
      %v4205 = vadd.f32 %v4173, %v4141
      %v4206 = vadd.f32 %v4174, %v4142
      %v4207 = vadd.f32 %v4175, %v4143
      %v4208 = vadd.f32 %v4176, %v4144
      %v4209 = vadd.f32 %v4177, %v4145
      %v4210 = vadd.f32 %v4178, %v4146
      %4211 = vst.msk [vmem:[#allocation4] sm:$0xff] %vm561, %v4179
      %4212 = vst.msk [vmem:[#allocation4 + $0x8] sm:$0xff] %vm561, %v4180
      %4213 = vst.msk [vmem:[#allocation4 + $0x10] sm:$0xff] %vm561, %v4181
      %4214 = vst.msk [vmem:[#allocation4 + $0x18] sm:$0xff] %vm561, %v4182
      %4215 = vst.msk [vmem:[#allocation4 + $0x20] sm:$0xff] %vm561, %v4183
      %4216 = vst.msk [vmem:[#allocation4 + $0x28] sm:$0xff] %vm561, %v4184
      %4217 = vst.msk [vmem:[#allocation4 + $0x30] sm:$0xff] %vm561, %v4185
      %4218 = vst.msk [vmem:[#allocation4 + $0x38] sm:$0xff] %vm561, %v4186
      %4219 = vst.msk [vmem:[#allocation4 + $0x40] sm:$0xff] %vm561, %v4187
      %4220 = vst.msk [vmem:[#allocation4 + $0x48] sm:$0xff] %vm561, %v4188
      %4221 = vst.msk [vmem:[#allocation4 + $0x50] sm:$0xff] %vm561, %v4189
      %4222 = vst.msk [vmem:[#allocation4 + $0x58] sm:$0xff] %vm561, %v4190
      %4223 = vst.msk [vmem:[#allocation4 + $0x60] sm:$0xff] %vm561, %v4191
      %4224 = vst.msk [vmem:[#allocation4 + $0x68] sm:$0xff] %vm561, %v4192
      %4225 = vst.msk [vmem:[#allocation4 + $0x70] sm:$0xff] %vm561, %v4193
      %4226 = vst.msk [vmem:[#allocation4 + $0x78] sm:$0xff] %vm561, %v4194
      %4227 = vst.msk [vmem:[#allocation4 + $0x80] sm:$0xff] %vm561, %v4195
      %4228 = vst.msk [vmem:[#allocation4 + $0x88] sm:$0xff] %vm561, %v4196
      %4229 = vst.msk [vmem:[#allocation4 + $0x90] sm:$0xff] %vm561, %v4197
      %4230 = vst.msk [vmem:[#allocation4 + $0x98] sm:$0xff] %vm561, %v4198
      %4231 = vst.msk [vmem:[#allocation4 + $0xa0] sm:$0xff] %vm561, %v4199
      %4232 = vst.msk [vmem:[#allocation4 + $0xa8] sm:$0xff] %vm561, %v4200
      %4233 = vst.msk [vmem:[#allocation4 + $0xb0] sm:$0xff] %vm561, %v4201
      %4234 = vst.msk [vmem:[#allocation4 + $0xb8] sm:$0xff] %vm561, %v4202
      %4235 = vst.msk [vmem:[#allocation4 + $0xc0] sm:$0xff] %vm561, %v4203
      %4236 = vst.msk [vmem:[#allocation4 + $0xc8] sm:$0xff] %vm561, %v4204
      %4237 = vst.msk [vmem:[#allocation4 + $0xd0] sm:$0xff] %vm561, %v4205
      %4238 = vst.msk [vmem:[#allocation4 + $0xd8] sm:$0xff] %vm561, %v4206
      %4239 = vst.msk [vmem:[#allocation4 + $0xe0] sm:$0xff] %vm561, %v4207
      %4240 = vst.msk [vmem:[#allocation4 + $0xe8] sm:$0xff] %vm561, %v4208
      %4241 = vst.msk [vmem:[#allocation4 + $0xf0] sm:$0xff] %vm561, %v4209
      %4242 = vst.msk [vmem:[#allocation4 + $0xf8] sm:$0xff] %vm561, %v4210
      %v4243 = vld [vmem:[%s3231] sm:$0xe]
      %v4244 = vld [vmem:[%s3231 + $0x4] sm:$0xf]
      %v4245 = vld [vmem:[%s3231 + $0x8] sm:$0x1]
      %v4246 = vld [vmem:[%s3231 + $0xc] sm:$0xe]
      %v4247 = vld [vmem:[%s3231 + $0x10] sm:$0xf]
      %v4248 = vld [vmem:[%s3231 + $0x14] sm:$0x1]
      %v4249 = vld [vmem:[%s3231 + $0x18] sm:$0xe]
      %v4250 = vld [vmem:[%s3231 + $0x1c] sm:$0xf]
      %v4251 = vld [vmem:[%s3231 + $0x20] sm:$0x1]
      %v4252 = vld [vmem:[%s3231 + $0x24] sm:$0xe]
      %v4253 = vld [vmem:[%s3231 + $0x28] sm:$0xf]
      %v4254 = vld [vmem:[%s3231 + $0x2c] sm:$0x1]
      %v4255 = vld [vmem:[%s3231 + $0x30] sm:$0xe]
      %v4256 = vld [vmem:[%s3231 + $0x34] sm:$0xf]
      %v4257 = vld [vmem:[%s3231 + $0x38] sm:$0x1]
      %v4258 = vld [vmem:[%s3231 + $0x3c] sm:$0xe]
      %v4259 = vld [vmem:[%s3231 + $0x40] sm:$0xf]
      %v4260 = vld [vmem:[%s3231 + $0x44] sm:$0x1]
      %v4261 = vld [vmem:[%s3231 + $0x48] sm:$0xe]
      %v4262 = vld [vmem:[%s3231 + $0x4c] sm:$0xf]
      %v4263 = vld [vmem:[%s3231 + $0x50] sm:$0x1]
      %v4264 = vld [vmem:[%s3231 + $0x54] sm:$0xe]
      %v4265 = vld [vmem:[%s3231 + $0x58] sm:$0xf]
      %v4266 = vld [vmem:[%s3231 + $0x5c] sm:$0x1]
      %v4267 = vld [vmem:[%s3231 + $0x60] sm:$0xe]
      %v4268 = vld [vmem:[%s3231 + $0x64] sm:$0xf]
      %v4269 = vld [vmem:[%s3231 + $0x68] sm:$0x1]
      %v4270 = vld [vmem:[%s3231 + $0x6c] sm:$0xe]
      %v4271 = vld [vmem:[%s3231 + $0x70] sm:$0xf]
      %v4272 = vld [vmem:[%s3231 + $0x74] sm:$0x1]
      %v4273 = vld [vmem:[%s3231 + $0x78] sm:$0xe]
      %v4274 = vld [vmem:[%s3231 + $0x7c] sm:$0xf]
      %v4275 = vld [vmem:[%s3231 + $0x80] sm:$0x1]
      %v4276 = vld [vmem:[%s3231 + $0x84] sm:$0xe]
      %v4277 = vld [vmem:[%s3231 + $0x88] sm:$0xf]
      %v4278 = vld [vmem:[%s3231 + $0x8c] sm:$0x1]
      %v4279 = vld [vmem:[%s3231 + $0x90] sm:$0xe]
      %v4280 = vld [vmem:[%s3231 + $0x94] sm:$0xf]
      %v4281 = vld [vmem:[%s3231 + $0x98] sm:$0x1]
      %v4282 = vld [vmem:[%s3231 + $0x9c] sm:$0xe]
      %v4283 = vld [vmem:[%s3231 + $0xa0] sm:$0xf]
      %v4284 = vld [vmem:[%s3231 + $0xa4] sm:$0x1]
      %v4285 = vld [vmem:[%s3231 + $0xa8] sm:$0xe]
      %v4286 = vld [vmem:[%s3231 + $0xac] sm:$0xf]
      %v4287 = vld [vmem:[%s3231 + $0xb0] sm:$0x1]
      %v4288 = vld [vmem:[%s3231 + $0xb4] sm:$0xe]
      %v4289 = vld [vmem:[%s3231 + $0xb8] sm:$0xf]
      %v4290 = vld [vmem:[%s3231 + $0xbc] sm:$0x1]
      %v4339 = vrot.slane %v4243, 5
      %v4340 = vrot.slane %v4339, 4
      %v4341 = vrot.slane %v4244, 5
      %v4342 = vsel %vm1384, %v4340, %v4341
      %v4343 = vrot.slane %v4341, 4
      %v4344 = vrot.slane %v4245, 5
      %v4345 = vsel %vm1384, %v4343, %v4344
      %v4346 = vrot.slane %v4246, 5
      %v4347 = vrot.slane %v4346, 4
      %v4348 = vrot.slane %v4247, 5
      %v4349 = vsel %vm1384, %v4347, %v4348
      %v4350 = vrot.slane %v4348, 4
      %v4351 = vrot.slane %v4248, 5
      %v4352 = vsel %vm1384, %v4350, %v4351
      %v4353 = vrot.slane %v4249, 5
      %v4354 = vrot.slane %v4353, 4
      %v4355 = vrot.slane %v4250, 5
      %v4356 = vsel %vm1384, %v4354, %v4355
      %v4357 = vrot.slane %v4355, 4
      %v4358 = vrot.slane %v4251, 5
      %v4359 = vsel %vm1384, %v4357, %v4358
      %v4360 = vrot.slane %v4252, 5
      %v4361 = vrot.slane %v4360, 4
      %v4362 = vrot.slane %v4253, 5
      %v4363 = vsel %vm1384, %v4361, %v4362
      %v4364 = vrot.slane %v4362, 4
      %v4365 = vrot.slane %v4254, 5
      %v4366 = vsel %vm1384, %v4364, %v4365
      %v4367 = vrot.slane %v4255, 5
      %v4368 = vrot.slane %v4367, 4
      %v4369 = vrot.slane %v4256, 5
      %v4370 = vsel %vm1384, %v4368, %v4369
      %v4371 = vrot.slane %v4369, 4
      %v4372 = vrot.slane %v4257, 5
      %v4373 = vsel %vm1384, %v4371, %v4372
      %v4374 = vrot.slane %v4258, 5
      %v4375 = vrot.slane %v4374, 4
      %v4376 = vrot.slane %v4259, 5
      %v4377 = vsel %vm1384, %v4375, %v4376
      %v4378 = vrot.slane %v4376, 4
      %v4379 = vrot.slane %v4260, 5
      %v4380 = vsel %vm1384, %v4378, %v4379
      %v4381 = vrot.slane %v4261, 5
      %v4382 = vrot.slane %v4381, 4
      %v4383 = vrot.slane %v4262, 5
      %v4384 = vsel %vm1384, %v4382, %v4383
      %v4385 = vrot.slane %v4383, 4
      %v4386 = vrot.slane %v4263, 5
      %v4387 = vsel %vm1384, %v4385, %v4386
      %v4388 = vrot.slane %v4264, 5
      %v4389 = vrot.slane %v4388, 4
      %v4390 = vrot.slane %v4265, 5
      %v4391 = vsel %vm1384, %v4389, %v4390
      %v4392 = vrot.slane %v4390, 4
      %v4393 = vrot.slane %v4266, 5
      %v4394 = vsel %vm1384, %v4392, %v4393
      %v4395 = vrot.slane %v4267, 5
      %v4396 = vrot.slane %v4395, 4
      %v4397 = vrot.slane %v4268, 5
      %v4398 = vsel %vm1384, %v4396, %v4397
      %v4399 = vrot.slane %v4397, 4
      %v4400 = vrot.slane %v4269, 5
      %v4401 = vsel %vm1384, %v4399, %v4400
      %v4402 = vrot.slane %v4270, 5
      %v4403 = vrot.slane %v4402, 4
      %v4404 = vrot.slane %v4271, 5
      %v4405 = vsel %vm1384, %v4403, %v4404
      %v4406 = vrot.slane %v4404, 4
      %v4407 = vrot.slane %v4272, 5
      %v4408 = vsel %vm1384, %v4406, %v4407
      %v4409 = vrot.slane %v4273, 5
      %v4410 = vrot.slane %v4409, 4
      %v4411 = vrot.slane %v4274, 5
      %v4412 = vsel %vm1384, %v4410, %v4411
      %v4413 = vrot.slane %v4411, 4
      %v4414 = vrot.slane %v4275, 5
      %v4415 = vsel %vm1384, %v4413, %v4414
      %v4416 = vrot.slane %v4276, 5
      %v4417 = vrot.slane %v4416, 4
      %v4418 = vrot.slane %v4277, 5
      %v4419 = vsel %vm1384, %v4417, %v4418
      %v4420 = vrot.slane %v4418, 4
      %v4421 = vrot.slane %v4278, 5
      %v4422 = vsel %vm1384, %v4420, %v4421
      %v4423 = vrot.slane %v4279, 5
      %v4424 = vrot.slane %v4423, 4
      %v4425 = vrot.slane %v4280, 5
      %v4426 = vsel %vm1384, %v4424, %v4425
      %v4427 = vrot.slane %v4425, 4
      %v4428 = vrot.slane %v4281, 5
      %v4429 = vsel %vm1384, %v4427, %v4428
      %v4430 = vrot.slane %v4282, 5
      %v4431 = vrot.slane %v4430, 4
      %v4432 = vrot.slane %v4283, 5
      %v4433 = vsel %vm1384, %v4431, %v4432
      %v4434 = vrot.slane %v4432, 4
      %v4435 = vrot.slane %v4284, 5
      %v4436 = vsel %vm1384, %v4434, %v4435
      %v4437 = vrot.slane %v4285, 5
      %v4438 = vrot.slane %v4437, 4
      %v4439 = vrot.slane %v4286, 5
      %v4440 = vsel %vm1384, %v4438, %v4439
      %v4441 = vrot.slane %v4439, 4
      %v4442 = vrot.slane %v4287, 5
      %v4443 = vsel %vm1384, %v4441, %v4442
      %v4444 = vrot.slane %v4288, 5
      %v4445 = vrot.slane %v4444, 4
      %v4446 = vrot.slane %v4289, 5
      %v4447 = vsel %vm1384, %v4445, %v4446
      %v4448 = vrot.slane %v4446, 4
      %v4449 = vrot.slane %v4290, 5
      %v4450 = vsel %vm1384, %v4448, %v4449
      %4451 = vrot.lane.b32.xlu0 %v4342, 32
      %v4452 = vpop.permute.xlu0 %4451
      %4453 = vrot.lane.b32.xlu0 %v4345, 32
      %v4454 = vpop.permute.xlu0 %4453
      %4455 = vrot.lane.b32.xlu0 %v4349, 32
      %v4456 = vpop.permute.xlu0 %4455
      %4457 = vrot.lane.b32.xlu0 %v4352, 32
      %v4458 = vpop.permute.xlu0 %4457
      %4459 = vrot.lane.b32.xlu0 %v4356, 32
      %v4460 = vpop.permute.xlu0 %4459
      %4461 = vrot.lane.b32.xlu0 %v4359, 32
      %v4462 = vpop.permute.xlu0 %4461
      %4463 = vrot.lane.b32.xlu0 %v4363, 32
      %v4464 = vpop.permute.xlu0 %4463
      %4465 = vrot.lane.b32.xlu0 %v4366, 32
      %v4466 = vpop.permute.xlu0 %4465
      %4467 = vrot.lane.b32.xlu0 %v4370, 32
      %v4468 = vpop.permute.xlu0 %4467
      %4469 = vrot.lane.b32.xlu0 %v4373, 32
      %v4470 = vpop.permute.xlu0 %4469
      %4471 = vrot.lane.b32.xlu0 %v4377, 32
      %v4472 = vpop.permute.xlu0 %4471
      %4473 = vrot.lane.b32.xlu0 %v4380, 32
      %v4474 = vpop.permute.xlu0 %4473
      %4475 = vrot.lane.b32.xlu0 %v4384, 32
      %v4476 = vpop.permute.xlu0 %4475
      %4477 = vrot.lane.b32.xlu0 %v4387, 32
      %v4478 = vpop.permute.xlu0 %4477
      %4479 = vrot.lane.b32.xlu0 %v4391, 32
      %v4480 = vpop.permute.xlu0 %4479
      %4481 = vrot.lane.b32.xlu0 %v4394, 32
      %v4482 = vpop.permute.xlu0 %4481
      %4483 = vrot.lane.b32.xlu0 %v4398, 32
      %v4484 = vpop.permute.xlu0 %4483
      %4485 = vrot.lane.b32.xlu0 %v4401, 32
      %v4486 = vpop.permute.xlu0 %4485
      %4487 = vrot.lane.b32.xlu0 %v4405, 32
      %v4488 = vpop.permute.xlu0 %4487
      %4489 = vrot.lane.b32.xlu0 %v4408, 32
      %v4490 = vpop.permute.xlu0 %4489
      %4491 = vrot.lane.b32.xlu0 %v4412, 32
      %v4492 = vpop.permute.xlu0 %4491
      %4493 = vrot.lane.b32.xlu0 %v4415, 32
      %v4494 = vpop.permute.xlu0 %4493
      %4495 = vrot.lane.b32.xlu0 %v4419, 32
      %v4496 = vpop.permute.xlu0 %4495
      %4497 = vrot.lane.b32.xlu0 %v4422, 32
      %v4498 = vpop.permute.xlu0 %4497
      %4499 = vrot.lane.b32.xlu0 %v4426, 32
      %v4500 = vpop.permute.xlu0 %4499
      %4501 = vrot.lane.b32.xlu0 %v4429, 32
      %v4502 = vpop.permute.xlu0 %4501
      %4503 = vrot.lane.b32.xlu0 %v4433, 32
      %v4504 = vpop.permute.xlu0 %4503
      %4505 = vrot.lane.b32.xlu0 %v4436, 32
      %v4506 = vpop.permute.xlu0 %4505
      %4507 = vrot.lane.b32.xlu0 %v4440, 32
      %v4508 = vpop.permute.xlu0 %4507
      %4509 = vrot.lane.b32.xlu0 %v4443, 32
      %v4510 = vpop.permute.xlu0 %4509
      %4511 = vrot.lane.b32.xlu0 %v4447, 32
      %v4512 = vpop.permute.xlu0 %4511
      %4513 = vrot.lane.b32.xlu0 %v4450, 32
      %v4514 = vpop.permute.xlu0 %4513
      %vm4547 = vcmask 290048
      %4548 = vst.msk [vmem:[#allocation3] sm:$0xf] %vm4547, %v4452
      %4549 = vst.msk [vmem:[#allocation3 + $0x4] sm:$0xf] %vm4547, %v4454
      %4550 = vst.msk [vmem:[#allocation3 + $0x8] sm:$0xf] %vm4547, %v4456
      %4551 = vst.msk [vmem:[#allocation3 + $0xc] sm:$0xf] %vm4547, %v4458
      %4552 = vst.msk [vmem:[#allocation3 + $0x10] sm:$0xf] %vm4547, %v4460
      %4553 = vst.msk [vmem:[#allocation3 + $0x14] sm:$0xf] %vm4547, %v4462
      %4554 = vst.msk [vmem:[#allocation3 + $0x18] sm:$0xf] %vm4547, %v4464
      %4555 = vst.msk [vmem:[#allocation3 + $0x1c] sm:$0xf] %vm4547, %v4466
      %4556 = vst.msk [vmem:[#allocation3 + $0x20] sm:$0xf] %vm4547, %v4468
      %4557 = vst.msk [vmem:[#allocation3 + $0x24] sm:$0xf] %vm4547, %v4470
      %4558 = vst.msk [vmem:[#allocation3 + $0x28] sm:$0xf] %vm4547, %v4472
      %4559 = vst.msk [vmem:[#allocation3 + $0x2c] sm:$0xf] %vm4547, %v4474
      %4560 = vst.msk [vmem:[#allocation3 + $0x30] sm:$0xf] %vm4547, %v4476
      %4561 = vst.msk [vmem:[#allocation3 + $0x34] sm:$0xf] %vm4547, %v4478
      %4562 = vst.msk [vmem:[#allocation3 + $0x38] sm:$0xf] %vm4547, %v4480
      %4563 = vst.msk [vmem:[#allocation3 + $0x3c] sm:$0xf] %vm4547, %v4482
      %4564 = vst.msk [vmem:[#allocation3 + $0x40] sm:$0xf] %vm4547, %v4484
      %4565 = vst.msk [vmem:[#allocation3 + $0x44] sm:$0xf] %vm4547, %v4486
      %4566 = vst.msk [vmem:[#allocation3 + $0x48] sm:$0xf] %vm4547, %v4488
      %4567 = vst.msk [vmem:[#allocation3 + $0x4c] sm:$0xf] %vm4547, %v4490
      %4568 = vst.msk [vmem:[#allocation3 + $0x50] sm:$0xf] %vm4547, %v4492
      %4569 = vst.msk [vmem:[#allocation3 + $0x54] sm:$0xf] %vm4547, %v4494
      %4570 = vst.msk [vmem:[#allocation3 + $0x58] sm:$0xf] %vm4547, %v4496
      %4571 = vst.msk [vmem:[#allocation3 + $0x5c] sm:$0xf] %vm4547, %v4498
      %4572 = vst.msk [vmem:[#allocation3 + $0x60] sm:$0xf] %vm4547, %v4500
      %4573 = vst.msk [vmem:[#allocation3 + $0x64] sm:$0xf] %vm4547, %v4502
      %4574 = vst.msk [vmem:[#allocation3 + $0x68] sm:$0xf] %vm4547, %v4504
      %4575 = vst.msk [vmem:[#allocation3 + $0x6c] sm:$0xf] %vm4547, %v4506
      %4576 = vst.msk [vmem:[#allocation3 + $0x70] sm:$0xf] %vm4547, %v4508
      %4577 = vst.msk [vmem:[#allocation3 + $0x74] sm:$0xf] %vm4547, %v4510
      %4578 = vst.msk [vmem:[#allocation3 + $0x78] sm:$0xf] %vm4547, %v4512
      %4579 = vst.msk [vmem:[#allocation3 + $0x7c] sm:$0xf] %vm4547, %v4514
      %v4580 = vld [vmem:[%s3425 + $0x2] sm:$0xff]
      %v4581 = vld [vmem:[%s3425 + $0xa] sm:$0xff]
      %v4582 = vld [vmem:[%s3425 + $0x1a] sm:$0xff]
      %v4583 = vld [vmem:[%s3425 + $0x22] sm:$0xff]
      %v4584 = vld [vmem:[%s3425 + $0x32] sm:$0xff]
      %v4585 = vld [vmem:[%s3425 + $0x3a] sm:$0xff]
      %v4586 = vld [vmem:[%s3425 + $0x4a] sm:$0xff]
      %v4587 = vld [vmem:[%s3425 + $0x52] sm:$0xff]
      %v4588 = vld [vmem:[%s3425 + $0x62] sm:$0xff]
      %v4589 = vld [vmem:[%s3425 + $0x6a] sm:$0xff]
      %v4590 = vld [vmem:[%s3425 + $0x7a] sm:$0xff]
      %v4591 = vld [vmem:[%s3425 + $0x82] sm:$0xff]
      %v4592 = vld [vmem:[%s3425 + $0x92] sm:$0xff]
      %v4593 = vld [vmem:[%s3425 + $0x9a] sm:$0xff]
      %v4594 = vld [vmem:[%s3425 + $0xaa] sm:$0xff]
      %v4595 = vld [vmem:[%s3425 + $0xb2] sm:$0xff]
      %v4596 = vld [vmem:[%s3425 + $0xc2] sm:$0xff]
      %v4597 = vld [vmem:[%s3425 + $0xca] sm:$0xff]
      %v4598 = vld [vmem:[%s3425 + $0xda] sm:$0xff]
      %v4599 = vld [vmem:[%s3425 + $0xe2] sm:$0xff]
      %v4600 = vld [vmem:[%s3425 + $0xf2] sm:$0xff]
      %v4601 = vld [vmem:[%s3425 + $0xfa] sm:$0xff]
      %v4602 = vld [vmem:[%s3425 + $0x10a] sm:$0xff]
      %v4603 = vld [vmem:[%s3425 + $0x112] sm:$0xff]
      %v4604 = vld [vmem:[%s3425 + $0x122] sm:$0xff]
      %v4605 = vld [vmem:[%s3425 + $0x12a] sm:$0xff]
      %v4606 = vld [vmem:[%s3425 + $0x13a] sm:$0xff]
      %v4607 = vld [vmem:[%s3425 + $0x142] sm:$0xff]
      %v4608 = vld [vmem:[%s3425 + $0x152] sm:$0xff]
      %v4609 = vld [vmem:[%s3425 + $0x15a] sm:$0xff]
      %v4610 = vld [vmem:[%s3425 + $0x16a] sm:$0xff]
      %v4611 = vld [vmem:[%s3425 + $0x172] sm:$0xff]
      %v4612 = vld [vmem:[#allocation4] sm:$0xff]
      %v4613 = vld [vmem:[#allocation4 + $0x8] sm:$0xff]
      %v4614 = vld [vmem:[#allocation4 + $0x10] sm:$0xff]
      %v4615 = vld [vmem:[#allocation4 + $0x18] sm:$0xff]
      %v4616 = vld [vmem:[#allocation4 + $0x20] sm:$0xff]
      %v4617 = vld [vmem:[#allocation4 + $0x28] sm:$0xff]
      %v4618 = vld [vmem:[#allocation4 + $0x30] sm:$0xff]
      %v4619 = vld [vmem:[#allocation4 + $0x38] sm:$0xff]
      %v4620 = vld [vmem:[#allocation4 + $0x40] sm:$0xff]
      %v4621 = vld [vmem:[#allocation4 + $0x48] sm:$0xff]
      %v4622 = vld [vmem:[#allocation4 + $0x50] sm:$0xff]
      %v4623 = vld [vmem:[#allocation4 + $0x58] sm:$0xff]
      %v4624 = vld [vmem:[#allocation4 + $0x60] sm:$0xff]
      %v4625 = vld [vmem:[#allocation4 + $0x68] sm:$0xff]
      %v4626 = vld [vmem:[#allocation4 + $0x70] sm:$0xff]
      %v4627 = vld [vmem:[#allocation4 + $0x78] sm:$0xff]
      %v4628 = vld [vmem:[#allocation4 + $0x80] sm:$0xff]
      %v4629 = vld [vmem:[#allocation4 + $0x88] sm:$0xff]
      %v4630 = vld [vmem:[#allocation4 + $0x90] sm:$0xff]
      %v4631 = vld [vmem:[#allocation4 + $0x98] sm:$0xff]
      %v4632 = vld [vmem:[#allocation4 + $0xa0] sm:$0xff]
      %v4633 = vld [vmem:[#allocation4 + $0xa8] sm:$0xff]
      %v4634 = vld [vmem:[#allocation4 + $0xb0] sm:$0xff]
      %v4635 = vld [vmem:[#allocation4 + $0xb8] sm:$0xff]
      %v4636 = vld [vmem:[#allocation4 + $0xc0] sm:$0xff]
      %v4637 = vld [vmem:[#allocation4 + $0xc8] sm:$0xff]
      %v4638 = vld [vmem:[#allocation4 + $0xd0] sm:$0xff]
      %v4639 = vld [vmem:[#allocation4 + $0xd8] sm:$0xff]
      %v4640 = vld [vmem:[#allocation4 + $0xe0] sm:$0xff]
      %v4641 = vld [vmem:[#allocation4 + $0xe8] sm:$0xff]
      %v4642 = vld [vmem:[#allocation4 + $0xf0] sm:$0xff]
      %v4643 = vld [vmem:[#allocation4 + $0xf8] sm:$0xff]
      %v4644 = vadd.f32 %v4612, %v4580
      %v4645 = vadd.f32 %v4613, %v4581
      %v4646 = vadd.f32 %v4614, %v4582
      %v4647 = vadd.f32 %v4615, %v4583
      %v4648 = vadd.f32 %v4616, %v4584
      %v4649 = vadd.f32 %v4617, %v4585
      %v4650 = vadd.f32 %v4618, %v4586
      %v4651 = vadd.f32 %v4619, %v4587
      %v4652 = vadd.f32 %v4620, %v4588
      %v4653 = vadd.f32 %v4621, %v4589
      %v4654 = vadd.f32 %v4622, %v4590
      %v4655 = vadd.f32 %v4623, %v4591
      %v4656 = vadd.f32 %v4624, %v4592
      %v4657 = vadd.f32 %v4625, %v4593
      %v4658 = vadd.f32 %v4626, %v4594
      %v4659 = vadd.f32 %v4627, %v4595
      %v4660 = vadd.f32 %v4628, %v4596
      %v4661 = vadd.f32 %v4629, %v4597
      %v4662 = vadd.f32 %v4630, %v4598
      %v4663 = vadd.f32 %v4631, %v4599
      %v4664 = vadd.f32 %v4632, %v4600
      %v4665 = vadd.f32 %v4633, %v4601
      %v4666 = vadd.f32 %v4634, %v4602
      %v4667 = vadd.f32 %v4635, %v4603
      %v4668 = vadd.f32 %v4636, %v4604
      %v4669 = vadd.f32 %v4637, %v4605
      %v4670 = vadd.f32 %v4638, %v4606
      %v4671 = vadd.f32 %v4639, %v4607
      %v4672 = vadd.f32 %v4640, %v4608
      %v4673 = vadd.f32 %v4641, %v4609
      %v4674 = vadd.f32 %v4642, %v4610
      %v4675 = vadd.f32 %v4643, %v4611
      %4676 = vst.msk [vmem:[#allocation4] sm:$0xff] %vm561, %v4644
      %4677 = vst.msk [vmem:[#allocation4 + $0x8] sm:$0xff] %vm561, %v4645
      %4678 = vst.msk [vmem:[#allocation4 + $0x10] sm:$0xff] %vm561, %v4646
      %4679 = vst.msk [vmem:[#allocation4 + $0x18] sm:$0xff] %vm561, %v4647
      %4680 = vst.msk [vmem:[#allocation4 + $0x20] sm:$0xff] %vm561, %v4648
      %4681 = vst.msk [vmem:[#allocation4 + $0x28] sm:$0xff] %vm561, %v4649
      %4682 = vst.msk [vmem:[#allocation4 + $0x30] sm:$0xff] %vm561, %v4650
      %4683 = vst.msk [vmem:[#allocation4 + $0x38] sm:$0xff] %vm561, %v4651
      %4684 = vst.msk [vmem:[#allocation4 + $0x40] sm:$0xff] %vm561, %v4652
      %4685 = vst.msk [vmem:[#allocation4 + $0x48] sm:$0xff] %vm561, %v4653
      %4686 = vst.msk [vmem:[#allocation4 + $0x50] sm:$0xff] %vm561, %v4654
      %4687 = vst.msk [vmem:[#allocation4 + $0x58] sm:$0xff] %vm561, %v4655
      %4688 = vst.msk [vmem:[#allocation4 + $0x60] sm:$0xff] %vm561, %v4656
      %4689 = vst.msk [vmem:[#allocation4 + $0x68] sm:$0xff] %vm561, %v4657
      %4690 = vst.msk [vmem:[#allocation4 + $0x70] sm:$0xff] %vm561, %v4658
      %4691 = vst.msk [vmem:[#allocation4 + $0x78] sm:$0xff] %vm561, %v4659
      %4692 = vst.msk [vmem:[#allocation4 + $0x80] sm:$0xff] %vm561, %v4660
      %4693 = vst.msk [vmem:[#allocation4 + $0x88] sm:$0xff] %vm561, %v4661
      %4694 = vst.msk [vmem:[#allocation4 + $0x90] sm:$0xff] %vm561, %v4662
      %4695 = vst.msk [vmem:[#allocation4 + $0x98] sm:$0xff] %vm561, %v4663
      %4696 = vst.msk [vmem:[#allocation4 + $0xa0] sm:$0xff] %vm561, %v4664
      %4697 = vst.msk [vmem:[#allocation4 + $0xa8] sm:$0xff] %vm561, %v4665
      %4698 = vst.msk [vmem:[#allocation4 + $0xb0] sm:$0xff] %vm561, %v4666
      %4699 = vst.msk [vmem:[#allocation4 + $0xb8] sm:$0xff] %vm561, %v4667
      %4700 = vst.msk [vmem:[#allocation4 + $0xc0] sm:$0xff] %vm561, %v4668
      %4701 = vst.msk [vmem:[#allocation4 + $0xc8] sm:$0xff] %vm561, %v4669
      %4702 = vst.msk [vmem:[#allocation4 + $0xd0] sm:$0xff] %vm561, %v4670
      %4703 = vst.msk [vmem:[#allocation4 + $0xd8] sm:$0xff] %vm561, %v4671
      %4704 = vst.msk [vmem:[#allocation4 + $0xe0] sm:$0xff] %vm561, %v4672
      %4705 = vst.msk [vmem:[#allocation4 + $0xe8] sm:$0xff] %vm561, %v4673
      %4706 = vst.msk [vmem:[#allocation4 + $0xf0] sm:$0xff] %vm561, %v4674
      %4707 = vst.msk [vmem:[#allocation4 + $0xf8] sm:$0xff] %vm561, %v4675
      %v4708 = vld [vmem:[#allocation3] sm:$0xf]
      %v4709 = vld [vmem:[#allocation3 + $0x4] sm:$0xf]
      %v4710 = vld [vmem:[#allocation3 + $0x8] sm:$0xf]
      %v4711 = vld [vmem:[#allocation3 + $0xc] sm:$0xf]
      %v4712 = vld [vmem:[#allocation3 + $0x10] sm:$0xf]
      %v4713 = vld [vmem:[#allocation3 + $0x14] sm:$0xf]
      %v4714 = vld [vmem:[#allocation3 + $0x18] sm:$0xf]
      %v4715 = vld [vmem:[#allocation3 + $0x1c] sm:$0xf]
      %v4716 = vld [vmem:[#allocation3 + $0x20] sm:$0xf]
      %v4717 = vld [vmem:[#allocation3 + $0x24] sm:$0xf]
      %v4718 = vld [vmem:[#allocation3 + $0x28] sm:$0xf]
      %v4719 = vld [vmem:[#allocation3 + $0x2c] sm:$0xf]
      %v4720 = vld [vmem:[#allocation3 + $0x30] sm:$0xf]
      %v4721 = vld [vmem:[#allocation3 + $0x34] sm:$0xf]
      %v4722 = vld [vmem:[#allocation3 + $0x38] sm:$0xf]
      %v4723 = vld [vmem:[#allocation3 + $0x3c] sm:$0xf]
      %v4724 = vld [vmem:[#allocation3 + $0x40] sm:$0xf]
      %v4725 = vld [vmem:[#allocation3 + $0x44] sm:$0xf]
      %v4726 = vld [vmem:[#allocation3 + $0x48] sm:$0xf]
      %v4727 = vld [vmem:[#allocation3 + $0x4c] sm:$0xf]
      %v4728 = vld [vmem:[#allocation3 + $0x50] sm:$0xf]
      %v4729 = vld [vmem:[#allocation3 + $0x54] sm:$0xf]
      %v4730 = vld [vmem:[#allocation3 + $0x58] sm:$0xf]
      %v4731 = vld [vmem:[#allocation3 + $0x5c] sm:$0xf]
      %v4732 = vld [vmem:[#allocation3 + $0x60] sm:$0xf]
      %v4733 = vld [vmem:[#allocation3 + $0x64] sm:$0xf]
      %v4734 = vld [vmem:[#allocation3 + $0x68] sm:$0xf]
      %v4735 = vld [vmem:[#allocation3 + $0x6c] sm:$0xf]
      %v4736 = vld [vmem:[#allocation3 + $0x70] sm:$0xf]
      %v4737 = vld [vmem:[#allocation3 + $0x74] sm:$0xf]
      %v4738 = vld [vmem:[#allocation3 + $0x78] sm:$0xf]
      %v4739 = vld [vmem:[#allocation3 + $0x7c] sm:$0xf]
      %v4740 = vld [vmem:[%s1] sm:$0xf]
      %v4741 = vld [vmem:[%s1 + $0x4] sm:$0xf]
      %v4742 = vld [vmem:[%s1 + $0x8] sm:$0xf]
      %v4743 = vld [vmem:[%s1 + $0xc] sm:$0xf]
      %v4744 = vld [vmem:[%s1 + $0x10] sm:$0x3]
      %v4777 = vunpack.c.l.b16 %v4708
      %v4778 = vunpack.c.l.b16 %v4709
      %v4779 = vunpack.c.l.b16 %v4710
      %v4780 = vunpack.c.l.b16 %v4711
      %v4781 = vunpack.c.l.b16 %v4712
      %v4782 = vunpack.c.l.b16 %v4713
      %v4783 = vunpack.c.l.b16 %v4714
      %v4784 = vunpack.c.l.b16 %v4715
      %v4785 = vunpack.c.l.b16 %v4716
      %v4786 = vunpack.c.l.b16 %v4717
      %v4787 = vunpack.c.l.b16 %v4718
      %v4788 = vunpack.c.l.b16 %v4719
      %v4789 = vunpack.c.l.b16 %v4720
      %v4790 = vunpack.c.l.b16 %v4721
      %v4791 = vunpack.c.l.b16 %v4722
      %v4792 = vunpack.c.l.b16 %v4723
      %v4793 = vunpack.c.l.b16 %v4724
      %v4794 = vunpack.c.l.b16 %v4725
      %v4795 = vunpack.c.l.b16 %v4726
      %v4796 = vunpack.c.l.b16 %v4727
      %v4797 = vunpack.c.l.b16 %v4728
      %v4798 = vunpack.c.l.b16 %v4729
      %v4799 = vunpack.c.l.b16 %v4730
      %v4800 = vunpack.c.l.b16 %v4731
      %v4801 = vunpack.c.l.b16 %v4732
      %v4802 = vunpack.c.l.b16 %v4733
      %v4803 = vunpack.c.l.b16 %v4734
      %v4804 = vunpack.c.l.b16 %v4735
      %v4805 = vunpack.c.l.b16 %v4736
      %v4806 = vunpack.c.l.b16 %v4737
      %v4807 = vunpack.c.l.b16 %v4738
      %v4808 = vunpack.c.l.b16 %v4739
      %v4809 = vpack.c.b16 %v4778, %v4777
      %v4810 = vpack.c.b16 %v4780, %v4779
      %v4811 = vpack.c.b16 %v4782, %v4781
      %v4812 = vpack.c.b16 %v4784, %v4783
      %v4813 = vpack.c.b16 %v4786, %v4785
      %v4814 = vpack.c.b16 %v4788, %v4787
      %v4815 = vpack.c.b16 %v4790, %v4789
      %v4816 = vpack.c.b16 %v4792, %v4791
      %v4817 = vpack.c.b16 %v4794, %v4793
      %v4818 = vpack.c.b16 %v4796, %v4795
      %v4819 = vpack.c.b16 %v4798, %v4797
      %v4820 = vpack.c.b16 %v4800, %v4799
      %v4821 = vpack.c.b16 %v4802, %v4801
      %v4822 = vpack.c.b16 %v4804, %v4803
      %v4823 = vpack.c.b16 %v4806, %v4805
      %v4824 = vpack.c.b16 %v4808, %v4807
      %v4830 = vunpack.c.l.b16 %v4740
      %v4831 = vunpack.c.l.b16 %v4741
      %v4832 = vunpack.c.l.b16 %v4742
      %v4833 = vunpack.c.l.b16 %v4743
      %v4834 = vunpack.c.l.b16 %v4744
      %v4835 = vpack.c.b16 %v4831, %v4830
      %v4836 = vpack.c.b16 %v4833, %v4832
      %v4837 = vpack.c.b16 %v4834, %v4834
      %vm4840 = vcmask 293888
      %v4842 = vsel %vm4840, %v4809, 0
      %v4845 = vsel %vm4840, %v4810, 0
      %v4848 = vsel %vm4840, %v4811, 0
      %v4851 = vsel %vm4840, %v4812, 0
      %v4854 = vsel %vm4840, %v4813, 0
      %v4857 = vsel %vm4840, %v4814, 0
      %v4860 = vsel %vm4840, %v4815, 0
      %v4863 = vsel %vm4840, %v4816, 0
      %v4866 = vsel %vm4840, %v4817, 0
      %v4869 = vsel %vm4840, %v4818, 0
      %v4872 = vsel %vm4840, %v4819, 0
      %v4875 = vsel %vm4840, %v4820, 0
      %v4878 = vsel %vm4840, %v4821, 0
      %v4881 = vsel %vm4840, %v4822, 0
      %v4884 = vsel %vm4840, %v4823, 0
      %v4887 = vsel %vm4840, %v4824, 0
      %vm4889 = vcmask 1041408
      %v4891 = vsel %vm4889, %v4837, 0
      %4893 = vmatpush.bf16.msra.mxu0 0
      %4894 = vmatpush.bf16.msra.mxu0 0
      %4895 = vmatpush.bf16.msra.mxu0 0
      %4896 = vmatpush.bf16.msra.mxu0 0
      %4897 = vmatpush.bf16.msra.mxu0 0
      %4898 = vmatpush.bf16.msra.mxu0 %v4891
      %4899 = vmatpush.bf16.msra.mxu0 %v4836
      %4900 = vmatpush.bf16.msra.mxu0 %v4835
      %4901 = vmatmul.bf16.gmra.mxu0 %v4842
      %v4902 = vpop.f32.mrf.mxu0
      %v4903 = vadd.f32 0.0, %v4902
      %v4904 = vpop.f32.mrf.mxu0
      %v4905 = vadd.f32 0.0, %v4904
      %4906 = vmatmul.bf16.gmra.mxu0 %v4845
      %v4907 = vpop.f32.mrf.mxu0
      %v4908 = vadd.f32 0.0, %v4907
      %v4909 = vpop.f32.mrf.mxu0
      %v4910 = vadd.f32 0.0, %v4909
      %4911 = vmatmul.bf16.gmra.mxu0 %v4848
      %v4912 = vpop.f32.mrf.mxu0
      %v4913 = vadd.f32 0.0, %v4912
      %v4914 = vpop.f32.mrf.mxu0
      %v4915 = vadd.f32 0.0, %v4914
      %4916 = vmatmul.bf16.gmra.mxu0 %v4851
      %v4917 = vpop.f32.mrf.mxu0
      %v4918 = vadd.f32 0.0, %v4917
      %v4919 = vpop.f32.mrf.mxu0
      %v4920 = vadd.f32 0.0, %v4919
      %4921 = vmatmul.bf16.gmra.mxu0 %v4854
      %v4922 = vpop.f32.mrf.mxu0
      %v4923 = vadd.f32 0.0, %v4922
      %v4924 = vpop.f32.mrf.mxu0
      %v4925 = vadd.f32 0.0, %v4924
      %4926 = vmatmul.bf16.gmra.mxu0 %v4857
      %v4927 = vpop.f32.mrf.mxu0
      %v4928 = vadd.f32 0.0, %v4927
      %v4929 = vpop.f32.mrf.mxu0
      %v4930 = vadd.f32 0.0, %v4929
      %4931 = vmatmul.bf16.gmra.mxu0 %v4860
      %v4932 = vpop.f32.mrf.mxu0
      %v4933 = vadd.f32 0.0, %v4932
      %v4934 = vpop.f32.mrf.mxu0
      %v4935 = vadd.f32 0.0, %v4934
      %4936 = vmatmul.bf16.gmra.mxu0 %v4863
      %v4937 = vpop.f32.mrf.mxu0
      %v4938 = vadd.f32 0.0, %v4937
      %v4939 = vpop.f32.mrf.mxu0
      %v4940 = vadd.f32 0.0, %v4939
      %4941 = vmatmul.bf16.gmra.mxu0 %v4866
      %v4942 = vpop.f32.mrf.mxu0
      %v4943 = vadd.f32 0.0, %v4942
      %v4944 = vpop.f32.mrf.mxu0
      %v4945 = vadd.f32 0.0, %v4944
      %4946 = vmatmul.bf16.gmra.mxu0 %v4869
      %v4947 = vpop.f32.mrf.mxu0
      %v4948 = vadd.f32 0.0, %v4947
      %v4949 = vpop.f32.mrf.mxu0
      %v4950 = vadd.f32 0.0, %v4949
      %4951 = vmatmul.bf16.gmra.mxu0 %v4872
      %v4952 = vpop.f32.mrf.mxu0
      %v4953 = vadd.f32 0.0, %v4952
      %v4954 = vpop.f32.mrf.mxu0
      %v4955 = vadd.f32 0.0, %v4954
      %4956 = vmatmul.bf16.gmra.mxu0 %v4875
      %v4957 = vpop.f32.mrf.mxu0
      %v4958 = vadd.f32 0.0, %v4957
      %v4959 = vpop.f32.mrf.mxu0
      %v4960 = vadd.f32 0.0, %v4959
      %4961 = vmatmul.bf16.gmra.mxu0 %v4878
      %v4962 = vpop.f32.mrf.mxu0
      %v4963 = vadd.f32 0.0, %v4962
      %v4964 = vpop.f32.mrf.mxu0
      %v4965 = vadd.f32 0.0, %v4964
      %4966 = vmatmul.bf16.gmra.mxu0 %v4881
      %v4967 = vpop.f32.mrf.mxu0
      %v4968 = vadd.f32 0.0, %v4967
      %v4969 = vpop.f32.mrf.mxu0
      %v4970 = vadd.f32 0.0, %v4969
      %4971 = vmatmul.bf16.gmra.mxu0 %v4884
      %v4972 = vpop.f32.mrf.mxu0
      %v4973 = vadd.f32 0.0, %v4972
      %v4974 = vpop.f32.mrf.mxu0
      %v4975 = vadd.f32 0.0, %v4974
      %4976 = vmatmul.bf16.gmra.mxu0 %v4887
      %v4977 = vpop.f32.mrf.mxu0
      %v4978 = vadd.f32 0.0, %v4977
      %v4979 = vpop.f32.mrf.mxu0
      %v4980 = vadd.f32 0.0, %v4979
      %4981 = vdwg.mxu0
      %v4982 = vpack.c.bf16 %v4903, %v4903
      %v4983 = vpack.c.bf16 %v4905, %v4905
      %v4984 = vpack.c.bf16 %v4908, %v4908
      %v4985 = vpack.c.bf16 %v4910, %v4910
      %v4986 = vpack.c.bf16 %v4913, %v4913
      %v4987 = vpack.c.bf16 %v4915, %v4915
      %v4988 = vpack.c.bf16 %v4918, %v4918
      %v4989 = vpack.c.bf16 %v4920, %v4920
      %v4990 = vpack.c.bf16 %v4923, %v4923
      %v4991 = vpack.c.bf16 %v4925, %v4925
      %v4992 = vpack.c.bf16 %v4928, %v4928
      %v4993 = vpack.c.bf16 %v4930, %v4930
      %v4994 = vpack.c.bf16 %v4933, %v4933
      %v4995 = vpack.c.bf16 %v4935, %v4935
      %v4996 = vpack.c.bf16 %v4938, %v4938
      %v4997 = vpack.c.bf16 %v4940, %v4940
      %v4998 = vpack.c.bf16 %v4943, %v4943
      %v4999 = vpack.c.bf16 %v4945, %v4945
      %v5000 = vpack.c.bf16 %v4948, %v4948
      %v5001 = vpack.c.bf16 %v4950, %v4950
      %v5002 = vpack.c.bf16 %v4953, %v4953
      %v5003 = vpack.c.bf16 %v4955, %v4955
      %v5004 = vpack.c.bf16 %v4958, %v4958
      %v5005 = vpack.c.bf16 %v4960, %v4960
      %v5006 = vpack.c.bf16 %v4963, %v4963
      %v5007 = vpack.c.bf16 %v4965, %v4965
      %v5008 = vpack.c.bf16 %v4968, %v4968
      %v5009 = vpack.c.bf16 %v4970, %v4970
      %v5010 = vpack.c.bf16 %v4973, %v4973
      %v5011 = vpack.c.bf16 %v4975, %v4975
      %v5012 = vpack.c.bf16 %v4978, %v4978
      %v5013 = vpack.c.bf16 %v4980, %v4980
      %vm5014 = vcmask 60416
      %5015 = vst.msk [vmem:[%s237] sm:$0xf] %vm5014, %v4982
      %5016 = vst.msk [vmem:[%s237 + $0x4] sm:$0xf] %vm5014, %v4983
      %5017 = vst.msk [vmem:[%s237 + $0x8] sm:$0xf] %vm5014, %v4984
      %5018 = vst.msk [vmem:[%s237 + $0xc] sm:$0xf] %vm5014, %v4985
      %5019 = vst.msk [vmem:[%s237 + $0x10] sm:$0xf] %vm5014, %v4986
      %5020 = vst.msk [vmem:[%s237 + $0x14] sm:$0xf] %vm5014, %v4987
      %5021 = vst.msk [vmem:[%s237 + $0x18] sm:$0xf] %vm5014, %v4988
      %5022 = vst.msk [vmem:[%s237 + $0x1c] sm:$0xf] %vm5014, %v4989
      %5023 = vst.msk [vmem:[%s237 + $0x20] sm:$0xf] %vm5014, %v4990
      %5024 = vst.msk [vmem:[%s237 + $0x24] sm:$0xf] %vm5014, %v4991
      %5025 = vst.msk [vmem:[%s237 + $0x28] sm:$0xf] %vm5014, %v4992
      %5026 = vst.msk [vmem:[%s237 + $0x2c] sm:$0xf] %vm5014, %v4993
      %5027 = vst.msk [vmem:[%s237 + $0x30] sm:$0xf] %vm5014, %v4994
      %5028 = vst.msk [vmem:[%s237 + $0x34] sm:$0xf] %vm5014, %v4995
      %5029 = vst.msk [vmem:[%s237 + $0x38] sm:$0xf] %vm5014, %v4996
      %5030 = vst.msk [vmem:[%s237 + $0x3c] sm:$0xf] %vm5014, %v4997
      %5031 = vst.msk [vmem:[%s237 + $0x40] sm:$0xf] %vm5014, %v4998
      %5032 = vst.msk [vmem:[%s237 + $0x44] sm:$0xf] %vm5014, %v4999
      %5033 = vst.msk [vmem:[%s237 + $0x48] sm:$0xf] %vm5014, %v5000
      %5034 = vst.msk [vmem:[%s237 + $0x4c] sm:$0xf] %vm5014, %v5001
      %5035 = vst.msk [vmem:[%s237 + $0x50] sm:$0xf] %vm5014, %v5002
      %5036 = vst.msk [vmem:[%s237 + $0x54] sm:$0xf] %vm5014, %v5003
      %5037 = vst.msk [vmem:[%s237 + $0x58] sm:$0xf] %vm5014, %v5004
      %5038 = vst.msk [vmem:[%s237 + $0x5c] sm:$0xf] %vm5014, %v5005
      %5039 = vst.msk [vmem:[%s237 + $0x60] sm:$0xf] %vm5014, %v5006
      %5040 = vst.msk [vmem:[%s237 + $0x64] sm:$0xf] %vm5014, %v5007
      %5041 = vst.msk [vmem:[%s237 + $0x68] sm:$0xf] %vm5014, %v5008
      %5042 = vst.msk [vmem:[%s237 + $0x6c] sm:$0xf] %vm5014, %v5009
      %5043 = vst.msk [vmem:[%s237 + $0x70] sm:$0xf] %vm5014, %v5010
      %5044 = vst.msk [vmem:[%s237 + $0x74] sm:$0xf] %vm5014, %v5011
      %5045 = vst.msk [vmem:[%s237 + $0x78] sm:$0xf] %vm5014, %v5012
      %5046 = vst.msk [vmem:[%s237 + $0x7c] sm:$0xf] %vm5014, %v5013
      %vm5047 = vcmask 64512
      %v5048 = vsel %vm5047, %v4903, 0.0
      %v5049 = vsel %vm5047, %v4905, 0.0
      %v5050 = vadd.f32 %v5048, %v5049
      %v5051 = vsel %vm5047, %v4908, 0.0
      %v5052 = vadd.f32 %v5050, %v5051
      %v5053 = vsel %vm5047, %v4910, 0.0
      %v5054 = vadd.f32 %v5052, %v5053
      %v5055 = vsel %vm5047, %v4913, 0.0
      %v5056 = vadd.f32 %v5054, %v5055
      %v5057 = vsel %vm5047, %v4915, 0.0
      %v5058 = vadd.f32 %v5056, %v5057
      %v5059 = vsel %vm5047, %v4918, 0.0
      %v5060 = vadd.f32 %v5058, %v5059
      %v5061 = vsel %vm5047, %v4920, 0.0
      %v5062 = vadd.f32 %v5060, %v5061
      %v5063 = vsel %vm5047, %v4923, 0.0
      %v5064 = vadd.f32 %v5062, %v5063
      %v5065 = vsel %vm5047, %v4925, 0.0
      %v5066 = vadd.f32 %v5064, %v5065
      %v5067 = vsel %vm5047, %v4928, 0.0
      %v5068 = vadd.f32 %v5066, %v5067
      %v5069 = vsel %vm5047, %v4930, 0.0
      %v5070 = vadd.f32 %v5068, %v5069
      %v5071 = vsel %vm5047, %v4933, 0.0
      %v5072 = vadd.f32 %v5070, %v5071
      %v5073 = vsel %vm5047, %v4935, 0.0
      %v5074 = vadd.f32 %v5072, %v5073
      %v5075 = vsel %vm5047, %v4938, 0.0
      %v5076 = vadd.f32 %v5074, %v5075
      %v5077 = vsel %vm5047, %v4940, 0.0
      %v5078 = vadd.f32 %v5076, %v5077
      %v5079 = vsel %vm5047, %v4943, 0.0
      %v5080 = vadd.f32 %v5078, %v5079
      %v5081 = vsel %vm5047, %v4945, 0.0
      %v5082 = vadd.f32 %v5080, %v5081
      %v5083 = vsel %vm5047, %v4948, 0.0
      %v5084 = vadd.f32 %v5082, %v5083
      %v5085 = vsel %vm5047, %v4950, 0.0
      %v5086 = vadd.f32 %v5084, %v5085
      %v5087 = vsel %vm5047, %v4953, 0.0
      %v5088 = vadd.f32 %v5086, %v5087
      %v5089 = vsel %vm5047, %v4955, 0.0
      %v5090 = vadd.f32 %v5088, %v5089
      %v5091 = vsel %vm5047, %v4958, 0.0
      %v5092 = vadd.f32 %v5090, %v5091
      %v5093 = vsel %vm5047, %v4960, 0.0
      %v5094 = vadd.f32 %v5092, %v5093
      %v5095 = vsel %vm5047, %v4963, 0.0
      %v5096 = vadd.f32 %v5094, %v5095
      %v5097 = vsel %vm5047, %v4965, 0.0
      %v5098 = vadd.f32 %v5096, %v5097
      %v5099 = vsel %vm5047, %v4968, 0.0
      %v5100 = vadd.f32 %v5098, %v5099
      %v5101 = vsel %vm5047, %v4970, 0.0
      %v5102 = vadd.f32 %v5100, %v5101
      %v5103 = vsel %vm5047, %v4973, 0.0
      %v5104 = vadd.f32 %v5102, %v5103
      %v5105 = vsel %vm5047, %v4975, 0.0
      %v5106 = vadd.f32 %v5104, %v5105
      %v5107 = vsel %vm5047, %v4978, 0.0
      %v5108 = vadd.f32 %v5106, %v5107
      %v5109 = vsel %vm5047, %v4980, 0.0
      %v5110 = vadd.f32 %v5108, %v5109
      %v5111 = vrot.slane %v5110, 4
      %v5112 = vadd.f32 %v5110, %v5111
      %v5113 = vrot.slane %v5112, 2
      %v5114 = vadd.f32 %v5112, %v5113
      %v5115 = vrot.slane %v5114, 1
      %v5116 = vadd.f32 %v5114, %v5115
      %v5117 = vmul.f32 %v5116, 0.00390625
      %v5118 = vsub.f32 %v4903, %v5117
      %v5119 = vsub.f32 %v4905, %v5117
      %v5120 = vsub.f32 %v4908, %v5117
      %v5121 = vsub.f32 %v4910, %v5117
      %v5122 = vsub.f32 %v4913, %v5117
      %v5123 = vsub.f32 %v4915, %v5117
      %v5124 = vsub.f32 %v4918, %v5117
      %v5125 = vsub.f32 %v4920, %v5117
      %v5126 = vsub.f32 %v4923, %v5117
      %v5127 = vsub.f32 %v4925, %v5117
      %v5128 = vsub.f32 %v4928, %v5117
      %v5129 = vsub.f32 %v4930, %v5117
      %v5130 = vsub.f32 %v4933, %v5117
      %v5131 = vsub.f32 %v4935, %v5117
      %v5132 = vsub.f32 %v4938, %v5117
      %v5133 = vsub.f32 %v4940, %v5117
      %v5134 = vsub.f32 %v4943, %v5117
      %v5135 = vsub.f32 %v4945, %v5117
      %v5136 = vsub.f32 %v4948, %v5117
      %v5137 = vsub.f32 %v4950, %v5117
      %v5138 = vsub.f32 %v4953, %v5117
      %v5139 = vsub.f32 %v4955, %v5117
      %v5140 = vsub.f32 %v4958, %v5117
      %v5141 = vsub.f32 %v4960, %v5117
      %v5142 = vsub.f32 %v4963, %v5117
      %v5143 = vsub.f32 %v4965, %v5117
      %v5144 = vsub.f32 %v4968, %v5117
      %v5145 = vsub.f32 %v4970, %v5117
      %v5146 = vsub.f32 %v4973, %v5117
      %v5147 = vsub.f32 %v4975, %v5117
      %v5148 = vsub.f32 %v4978, %v5117
      %v5149 = vsub.f32 %v4980, %v5117
      %v5150 = vmul.f32 %v5118, %v5118
      %v5151 = vmul.f32 %v5119, %v5119
      %v5152 = vmul.f32 %v5120, %v5120
      %v5153 = vmul.f32 %v5121, %v5121
      %v5154 = vmul.f32 %v5122, %v5122
      %v5155 = vmul.f32 %v5123, %v5123
      %v5156 = vmul.f32 %v5124, %v5124
      %v5157 = vmul.f32 %v5125, %v5125
      %v5158 = vmul.f32 %v5126, %v5126
      %v5159 = vmul.f32 %v5127, %v5127
      %v5160 = vmul.f32 %v5128, %v5128
      %v5161 = vmul.f32 %v5129, %v5129
      %v5162 = vmul.f32 %v5130, %v5130
      %v5163 = vmul.f32 %v5131, %v5131
      %v5164 = vmul.f32 %v5132, %v5132
      %v5165 = vmul.f32 %v5133, %v5133
      %v5166 = vmul.f32 %v5134, %v5134
      %v5167 = vmul.f32 %v5135, %v5135
      %v5168 = vmul.f32 %v5136, %v5136
      %v5169 = vmul.f32 %v5137, %v5137
      %v5170 = vmul.f32 %v5138, %v5138
      %v5171 = vmul.f32 %v5139, %v5139
      %v5172 = vmul.f32 %v5140, %v5140
      %v5173 = vmul.f32 %v5141, %v5141
      %v5174 = vmul.f32 %v5142, %v5142
      %v5175 = vmul.f32 %v5143, %v5143
      %v5176 = vmul.f32 %v5144, %v5144
      %v5177 = vmul.f32 %v5145, %v5145
      %v5178 = vmul.f32 %v5146, %v5146
      %v5179 = vmul.f32 %v5147, %v5147
      %v5180 = vmul.f32 %v5148, %v5148
      %v5181 = vmul.f32 %v5149, %v5149
      %v5182 = vsel %vm5047, %v5150, 0.0
      %v5183 = vsel %vm5047, %v5151, 0.0
      %v5184 = vadd.f32 %v5182, %v5183
      %v5185 = vsel %vm5047, %v5152, 0.0
      %v5186 = vadd.f32 %v5184, %v5185
      %v5187 = vsel %vm5047, %v5153, 0.0
      %v5188 = vadd.f32 %v5186, %v5187
      %v5189 = vsel %vm5047, %v5154, 0.0
      %v5190 = vadd.f32 %v5188, %v5189
      %v5191 = vsel %vm5047, %v5155, 0.0
      %v5192 = vadd.f32 %v5190, %v5191
      %v5193 = vsel %vm5047, %v5156, 0.0
      %v5194 = vadd.f32 %v5192, %v5193
      %v5195 = vsel %vm5047, %v5157, 0.0
      %v5196 = vadd.f32 %v5194, %v5195
      %v5197 = vsel %vm5047, %v5158, 0.0
      %v5198 = vadd.f32 %v5196, %v5197
      %v5199 = vsel %vm5047, %v5159, 0.0
      %v5200 = vadd.f32 %v5198, %v5199
      %v5201 = vsel %vm5047, %v5160, 0.0
      %v5202 = vadd.f32 %v5200, %v5201
      %v5203 = vsel %vm5047, %v5161, 0.0
      %v5204 = vadd.f32 %v5202, %v5203
      %v5205 = vsel %vm5047, %v5162, 0.0
      %v5206 = vadd.f32 %v5204, %v5205
      %v5207 = vsel %vm5047, %v5163, 0.0
      %v5208 = vadd.f32 %v5206, %v5207
      %v5209 = vsel %vm5047, %v5164, 0.0
      %v5210 = vadd.f32 %v5208, %v5209
      %v5211 = vsel %vm5047, %v5165, 0.0
      %v5212 = vadd.f32 %v5210, %v5211
      %v5213 = vsel %vm5047, %v5166, 0.0
      %v5214 = vadd.f32 %v5212, %v5213
      %v5215 = vsel %vm5047, %v5167, 0.0
      %v5216 = vadd.f32 %v5214, %v5215
      %v5217 = vsel %vm5047, %v5168, 0.0
      %v5218 = vadd.f32 %v5216, %v5217
      %v5219 = vsel %vm5047, %v5169, 0.0
      %v5220 = vadd.f32 %v5218, %v5219
      %v5221 = vsel %vm5047, %v5170, 0.0
      %v5222 = vadd.f32 %v5220, %v5221
      %v5223 = vsel %vm5047, %v5171, 0.0
      %v5224 = vadd.f32 %v5222, %v5223
      %v5225 = vsel %vm5047, %v5172, 0.0
      %v5226 = vadd.f32 %v5224, %v5225
      %v5227 = vsel %vm5047, %v5173, 0.0
      %v5228 = vadd.f32 %v5226, %v5227
      %v5229 = vsel %vm5047, %v5174, 0.0
      %v5230 = vadd.f32 %v5228, %v5229
      %v5231 = vsel %vm5047, %v5175, 0.0
      %v5232 = vadd.f32 %v5230, %v5231
      %v5233 = vsel %vm5047, %v5176, 0.0
      %v5234 = vadd.f32 %v5232, %v5233
      %v5235 = vsel %vm5047, %v5177, 0.0
      %v5236 = vadd.f32 %v5234, %v5235
      %v5237 = vsel %vm5047, %v5178, 0.0
      %v5238 = vadd.f32 %v5236, %v5237
      %v5239 = vsel %vm5047, %v5179, 0.0
      %v5240 = vadd.f32 %v5238, %v5239
      %v5241 = vsel %vm5047, %v5180, 0.0
      %v5242 = vadd.f32 %v5240, %v5241
      %v5243 = vsel %vm5047, %v5181, 0.0
      %v5244 = vadd.f32 %v5242, %v5243
      %v5245 = vrot.slane %v5244, 4
      %v5246 = vadd.f32 %v5244, %v5245
      %v5247 = vrot.slane %v5246, 2
      %v5248 = vadd.f32 %v5246, %v5247
      %v5249 = vrot.slane %v5248, 1
      %v5250 = vadd.f32 %v5248, %v5249
      %vm5251 = vcmask 1040384
      %v5252 = vsel %vm5251, %v5116, %v5250
      %vm5253 = vcmask 58368
      %5254 = vst.msk [vmem:[%s241] sm:$0x3] %vm5253, %v5252
      %v5255 = vld [vmem:[#allocation4] sm:$0xff]
      %v5256 = vld [vmem:[#allocation4 + $0x8] sm:$0xff]
      %v5257 = vld [vmem:[#allocation4 + $0x10] sm:$0xff]
      %v5258 = vld [vmem:[#allocation4 + $0x18] sm:$0xff]
      %v5259 = vld [vmem:[#allocation4 + $0x20] sm:$0xff]
      %v5260 = vld [vmem:[#allocation4 + $0x28] sm:$0xff]
      %v5261 = vld [vmem:[#allocation4 + $0x30] sm:$0xff]
      %v5262 = vld [vmem:[#allocation4 + $0x38] sm:$0xff]
      %v5263 = vld [vmem:[#allocation4 + $0x40] sm:$0xff]
      %v5264 = vld [vmem:[#allocation4 + $0x48] sm:$0xff]
      %v5265 = vld [vmem:[#allocation4 + $0x50] sm:$0xff]
      %v5266 = vld [vmem:[#allocation4 + $0x58] sm:$0xff]
      %v5267 = vld [vmem:[#allocation4 + $0x60] sm:$0xff]
      %v5268 = vld [vmem:[#allocation4 + $0x68] sm:$0xff]
      %v5269 = vld [vmem:[#allocation4 + $0x70] sm:$0xff]
      %v5270 = vld [vmem:[#allocation4 + $0x78] sm:$0xff]
      %v5271 = vld [vmem:[#allocation4 + $0x80] sm:$0xff]
      %v5272 = vld [vmem:[#allocation4 + $0x88] sm:$0xff]
      %v5273 = vld [vmem:[#allocation4 + $0x90] sm:$0xff]
      %v5274 = vld [vmem:[#allocation4 + $0x98] sm:$0xff]
      %v5275 = vld [vmem:[#allocation4 + $0xa0] sm:$0xff]
      %v5276 = vld [vmem:[#allocation4 + $0xa8] sm:$0xff]
      %v5277 = vld [vmem:[#allocation4 + $0xb0] sm:$0xff]
      %v5278 = vld [vmem:[#allocation4 + $0xb8] sm:$0xff]
      %v5279 = vld [vmem:[#allocation4 + $0xc0] sm:$0xff]
      %v5280 = vld [vmem:[#allocation4 + $0xc8] sm:$0xff]
      %v5281 = vld [vmem:[#allocation4 + $0xd0] sm:$0xff]
      %v5282 = vld [vmem:[#allocation4 + $0xd8] sm:$0xff]
      %v5283 = vld [vmem:[#allocation4 + $0xe0] sm:$0xff]
      %v5284 = vld [vmem:[#allocation4 + $0xe8] sm:$0xff]
      %v5285 = vld [vmem:[#allocation4 + $0xf0] sm:$0xff]
      %v5286 = vld [vmem:[#allocation4 + $0xf8] sm:$0xff]
      %v5287 = vld [vmem:[%s2] sm:$0xff]
      %v5288 = vld [vmem:[%s2 + $0x8] sm:$0xff]
      %v5289 = vld [vmem:[%s2 + $0x10] sm:$0xff]
      %v5290 = vld [vmem:[%s2 + $0x18] sm:$0xff]
      %v5291 = vld [vmem:[%s2 + $0x20] sm:$0xff]
      %v5292 = vld [vmem:[%s2 + $0x28] sm:$0xff]
      %v5293 = vld [vmem:[%s2 + $0x30] sm:$0xff]
      %v5294 = vld [vmem:[%s2 + $0x38] sm:$0xff]
      %v5295 = vld [vmem:[%s2 + $0x40] sm:$0xff]
      %v5296 = vld [vmem:[%s2 + $0x48] sm:$0xff]
      %v5297 = vld [vmem:[%s2 + $0x50] sm:$0xff]
      %v5298 = vld [vmem:[%s2 + $0x58] sm:$0xff]
      %v5299 = vld [vmem:[%s2 + $0x60] sm:$0xff]
      %v5300 = vld [vmem:[%s2 + $0x68] sm:$0xff]
      %v5301 = vld [vmem:[%s2 + $0x70] sm:$0xff]
      %v5302 = vld [vmem:[%s2 + $0x78] sm:$0xff]
      %v5303 = vld [vmem:[%s2 + $0x80] sm:$0xff]
      %v5304 = vld [vmem:[%s2 + $0x88] sm:$0xff]
      %v5305 = vld [vmem:[%s2 + $0x90] sm:$0xff]
      %v5306 = vld [vmem:[%s2 + $0x98] sm:$0xff]
      %v5307 = vld [vmem:[%s2 + $0xa0] sm:$0xff]
      %v5308 = vld [vmem:[%s2 + $0xa8] sm:$0xff]
      %v5309 = vld [vmem:[%s2 + $0xb0] sm:$0xff]
      %v5310 = vld [vmem:[%s2 + $0xb8] sm:$0xff]
      %v5311 = vld [vmem:[%s2 + $0xc0] sm:$0xff]
      %v5312 = vld [vmem:[%s2 + $0xc8] sm:$0xff]
      %v5313 = vld [vmem:[%s2 + $0xd0] sm:$0xff]
      %v5314 = vld [vmem:[%s2 + $0xd8] sm:$0xff]
      %v5315 = vld [vmem:[%s2 + $0xe0] sm:$0xff]
      %v5316 = vld [vmem:[%s2 + $0xe8] sm:$0xff]
      %v5317 = vld [vmem:[%s2 + $0xf0] sm:$0xff]
      %v5318 = vld [vmem:[%s2 + $0xf8] sm:$0xff]
      %5320 = vset.pattern.permute.xlu0 0
      %5321 = vperm.xlu0 %5320, %v5287
      %v5322 = vpop.permute.xlu0 %5321
      %5325 = vset.pattern.permute.xlu0 0
      %5326 = vperm.xlu0 %5325, %v5288
      %v5327 = vpop.permute.xlu0 %5326
      %5330 = vset.pattern.permute.xlu0 0
      %5331 = vperm.xlu0 %5330, %v5289
      %v5332 = vpop.permute.xlu0 %5331
      %5335 = vset.pattern.permute.xlu0 0
      %5336 = vperm.xlu0 %5335, %v5290
      %v5337 = vpop.permute.xlu0 %5336
      %5340 = vset.pattern.permute.xlu0 0
      %5341 = vperm.xlu0 %5340, %v5291
      %v5342 = vpop.permute.xlu0 %5341
      %5345 = vset.pattern.permute.xlu0 0
      %5346 = vperm.xlu0 %5345, %v5292
      %v5347 = vpop.permute.xlu0 %5346
      %5350 = vset.pattern.permute.xlu0 0
      %5351 = vperm.xlu0 %5350, %v5293
      %v5352 = vpop.permute.xlu0 %5351
      %5355 = vset.pattern.permute.xlu0 0
      %5356 = vperm.xlu0 %5355, %v5294
      %v5357 = vpop.permute.xlu0 %5356
      %5360 = vset.pattern.permute.xlu0 0
      %5361 = vperm.xlu0 %5360, %v5295
      %v5362 = vpop.permute.xlu0 %5361
      %5365 = vset.pattern.permute.xlu0 0
      %5366 = vperm.xlu0 %5365, %v5296
      %v5367 = vpop.permute.xlu0 %5366
      %5370 = vset.pattern.permute.xlu0 0
      %5371 = vperm.xlu0 %5370, %v5297
      %v5372 = vpop.permute.xlu0 %5371
      %5375 = vset.pattern.permute.xlu0 0
      %5376 = vperm.xlu0 %5375, %v5298
      %v5377 = vpop.permute.xlu0 %5376
      %5380 = vset.pattern.permute.xlu0 0
      %5381 = vperm.xlu0 %5380, %v5299
      %v5382 = vpop.permute.xlu0 %5381
      %5385 = vset.pattern.permute.xlu0 0
      %5386 = vperm.xlu0 %5385, %v5300
      %v5387 = vpop.permute.xlu0 %5386
      %5390 = vset.pattern.permute.xlu0 0
      %5391 = vperm.xlu0 %5390, %v5301
      %v5392 = vpop.permute.xlu0 %5391
      %5395 = vset.pattern.permute.xlu0 0
      %5396 = vperm.xlu0 %5395, %v5302
      %v5397 = vpop.permute.xlu0 %5396
      %5400 = vset.pattern.permute.xlu0 0
      %5401 = vperm.xlu0 %5400, %v5303
      %v5402 = vpop.permute.xlu0 %5401
      %5405 = vset.pattern.permute.xlu0 0
      %5406 = vperm.xlu0 %5405, %v5304
      %v5407 = vpop.permute.xlu0 %5406
      %5410 = vset.pattern.permute.xlu0 0
      %5411 = vperm.xlu0 %5410, %v5305
      %v5412 = vpop.permute.xlu0 %5411
      %5415 = vset.pattern.permute.xlu0 0
      %5416 = vperm.xlu0 %5415, %v5306
      %v5417 = vpop.permute.xlu0 %5416
      %5420 = vset.pattern.permute.xlu0 0
      %5421 = vperm.xlu0 %5420, %v5307
      %v5422 = vpop.permute.xlu0 %5421
      %5425 = vset.pattern.permute.xlu0 0
      %5426 = vperm.xlu0 %5425, %v5308
      %v5427 = vpop.permute.xlu0 %5426
      %5430 = vset.pattern.permute.xlu0 0
      %5431 = vperm.xlu0 %5430, %v5309
      %v5432 = vpop.permute.xlu0 %5431
      %5435 = vset.pattern.permute.xlu0 0
      %5436 = vperm.xlu0 %5435, %v5310
      %v5437 = vpop.permute.xlu0 %5436
      %5440 = vset.pattern.permute.xlu0 0
      %5441 = vperm.xlu0 %5440, %v5311
      %v5442 = vpop.permute.xlu0 %5441
      %5445 = vset.pattern.permute.xlu0 0
      %5446 = vperm.xlu0 %5445, %v5312
      %v5447 = vpop.permute.xlu0 %5446
      %5450 = vset.pattern.permute.xlu0 0
      %5451 = vperm.xlu0 %5450, %v5313
      %v5452 = vpop.permute.xlu0 %5451
      %5455 = vset.pattern.permute.xlu0 0
      %5456 = vperm.xlu0 %5455, %v5314
      %v5457 = vpop.permute.xlu0 %5456
      %5460 = vset.pattern.permute.xlu0 0
      %5461 = vperm.xlu0 %5460, %v5315
      %v5462 = vpop.permute.xlu0 %5461
      %5465 = vset.pattern.permute.xlu0 0
      %5466 = vperm.xlu0 %5465, %v5316
      %v5467 = vpop.permute.xlu0 %5466
      %5470 = vset.pattern.permute.xlu0 0
      %5471 = vperm.xlu0 %5470, %v5317
      %v5472 = vpop.permute.xlu0 %5471
      %5475 = vset.pattern.permute.xlu0 0
      %5476 = vperm.xlu0 %5475, %v5318
      %v5477 = vpop.permute.xlu0 %5476
      %v5479 = vmul.f32 %v5255, %v5322
      %v5480 = vmul.f32 %v5256, %v5327
      %v5481 = vmul.f32 %v5257, %v5332
      %v5482 = vmul.f32 %v5258, %v5337
      %v5483 = vmul.f32 %v5259, %v5342
      %v5484 = vmul.f32 %v5260, %v5347
      %v5485 = vmul.f32 %v5261, %v5352
      %v5486 = vmul.f32 %v5262, %v5357
      %v5487 = vmul.f32 %v5263, %v5362
      %v5488 = vmul.f32 %v5264, %v5367
      %v5489 = vmul.f32 %v5265, %v5372
      %v5490 = vmul.f32 %v5266, %v5377
      %v5491 = vmul.f32 %v5267, %v5382
      %v5492 = vmul.f32 %v5268, %v5387
      %v5493 = vmul.f32 %v5269, %v5392
      %v5494 = vmul.f32 %v5270, %v5397
      %v5495 = vmul.f32 %v5271, %v5402
      %v5496 = vmul.f32 %v5272, %v5407
      %v5497 = vmul.f32 %v5273, %v5412
      %v5498 = vmul.f32 %v5274, %v5417
      %v5499 = vmul.f32 %v5275, %v5422
      %v5500 = vmul.f32 %v5276, %v5427
      %v5501 = vmul.f32 %v5277, %v5432
      %v5502 = vmul.f32 %v5278, %v5437
      %v5503 = vmul.f32 %v5279, %v5442
      %v5504 = vmul.f32 %v5280, %v5447
      %v5505 = vmul.f32 %v5281, %v5452
      %v5506 = vmul.f32 %v5282, %v5457
      %v5507 = vmul.f32 %v5283, %v5462
      %v5508 = vmul.f32 %v5284, %v5467
      %v5509 = vmul.f32 %v5285, %v5472
      %v5510 = vmul.f32 %v5286, %v5477
      %v5511 = vsel %vm561, %v5479, 0.0
      %v5512 = vsel %vm561, %v5480, 0.0
      %v5513 = vadd.f32 %v5511, %v5512
      %v5514 = vsel %vm561, %v5481, 0.0
      %v5515 = vadd.f32 %v5513, %v5514
      %v5516 = vsel %vm561, %v5482, 0.0
      %v5517 = vadd.f32 %v5515, %v5516
      %v5518 = vsel %vm561, %v5483, 0.0
      %v5519 = vadd.f32 %v5517, %v5518
      %v5520 = vsel %vm561, %v5484, 0.0
      %v5521 = vadd.f32 %v5519, %v5520
      %v5522 = vsel %vm561, %v5485, 0.0
      %v5523 = vadd.f32 %v5521, %v5522
      %v5524 = vsel %vm561, %v5486, 0.0
      %v5525 = vadd.f32 %v5523, %v5524
      %v5526 = vsel %vm561, %v5487, 0.0
      %v5527 = vadd.f32 %v5525, %v5526
      %v5528 = vsel %vm561, %v5488, 0.0
      %v5529 = vadd.f32 %v5527, %v5528
      %v5530 = vsel %vm561, %v5489, 0.0
      %v5531 = vadd.f32 %v5529, %v5530
      %v5532 = vsel %vm561, %v5490, 0.0
      %v5533 = vadd.f32 %v5531, %v5532
      %v5534 = vsel %vm561, %v5491, 0.0
      %v5535 = vadd.f32 %v5533, %v5534
      %v5536 = vsel %vm561, %v5492, 0.0
      %v5537 = vadd.f32 %v5535, %v5536
      %v5538 = vsel %vm561, %v5493, 0.0
      %v5539 = vadd.f32 %v5537, %v5538
      %v5540 = vsel %vm561, %v5494, 0.0
      %v5541 = vadd.f32 %v5539, %v5540
      %v5542 = vsel %vm561, %v5495, 0.0
      %v5543 = vadd.f32 %v5541, %v5542
      %v5544 = vsel %vm561, %v5496, 0.0
      %v5545 = vadd.f32 %v5543, %v5544
      %v5546 = vsel %vm561, %v5497, 0.0
      %v5547 = vadd.f32 %v5545, %v5546
      %v5548 = vsel %vm561, %v5498, 0.0
      %v5549 = vadd.f32 %v5547, %v5548
      %v5550 = vsel %vm561, %v5499, 0.0
      %v5551 = vadd.f32 %v5549, %v5550
      %v5552 = vsel %vm561, %v5500, 0.0
      %v5553 = vadd.f32 %v5551, %v5552
      %v5554 = vsel %vm561, %v5501, 0.0
      %v5555 = vadd.f32 %v5553, %v5554
      %v5556 = vsel %vm561, %v5502, 0.0
      %v5557 = vadd.f32 %v5555, %v5556
      %v5558 = vsel %vm561, %v5503, 0.0
      %v5559 = vadd.f32 %v5557, %v5558
      %v5560 = vsel %vm561, %v5504, 0.0
      %v5561 = vadd.f32 %v5559, %v5560
      %v5562 = vsel %vm561, %v5505, 0.0
      %v5563 = vadd.f32 %v5561, %v5562
      %v5564 = vsel %vm561, %v5506, 0.0
      %v5565 = vadd.f32 %v5563, %v5564
      %v5566 = vsel %vm561, %v5507, 0.0
      %v5567 = vadd.f32 %v5565, %v5566
      %v5568 = vsel %vm561, %v5508, 0.0
      %v5569 = vadd.f32 %v5567, %v5568
      %v5570 = vsel %vm561, %v5509, 0.0
      %v5571 = vadd.f32 %v5569, %v5570
      %v5572 = vsel %vm561, %v5510, 0.0
      %v5573 = vadd.f32 %v5571, %v5572
      %v5574 = vrot.slane %v5573, 4
      %v5575 = vadd.f32 %v5573, %v5574
      %v5576 = vrot.slane %v5575, 2
      %v5577 = vadd.f32 %v5575, %v5576
      %v5578 = vrot.slane %v5577, 1
      %v5579 = vadd.f32 %v5577, %v5578
      %v5580 = vmul.f32 %v5579, 0.00390625
      %v5581 = vsub.f32 %v5479, %v5580
      %v5582 = vsub.f32 %v5480, %v5580
      %v5583 = vsub.f32 %v5481, %v5580
      %v5584 = vsub.f32 %v5482, %v5580
      %v5585 = vsub.f32 %v5483, %v5580
      %v5586 = vsub.f32 %v5484, %v5580
      %v5587 = vsub.f32 %v5485, %v5580
      %v5588 = vsub.f32 %v5486, %v5580
      %v5589 = vsub.f32 %v5487, %v5580
      %v5590 = vsub.f32 %v5488, %v5580
      %v5591 = vsub.f32 %v5489, %v5580
      %v5592 = vsub.f32 %v5490, %v5580
      %v5593 = vsub.f32 %v5491, %v5580
      %v5594 = vsub.f32 %v5492, %v5580
      %v5595 = vsub.f32 %v5493, %v5580
      %v5596 = vsub.f32 %v5494, %v5580
      %v5597 = vsub.f32 %v5495, %v5580
      %v5598 = vsub.f32 %v5496, %v5580
      %v5599 = vsub.f32 %v5497, %v5580
      %v5600 = vsub.f32 %v5498, %v5580
      %v5601 = vsub.f32 %v5499, %v5580
      %v5602 = vsub.f32 %v5500, %v5580
      %v5603 = vsub.f32 %v5501, %v5580
      %v5604 = vsub.f32 %v5502, %v5580
      %v5605 = vsub.f32 %v5503, %v5580
      %v5606 = vsub.f32 %v5504, %v5580
      %v5607 = vsub.f32 %v5505, %v5580
      %v5608 = vsub.f32 %v5506, %v5580
      %v5609 = vsub.f32 %v5507, %v5580
      %v5610 = vsub.f32 %v5508, %v5580
      %v5611 = vsub.f32 %v5509, %v5580
      %v5612 = vsub.f32 %v5510, %v5580
      %v5613 = vmul.f32 %v5581, %v5581
      %v5614 = vmul.f32 %v5582, %v5582
      %v5615 = vmul.f32 %v5583, %v5583
      %v5616 = vmul.f32 %v5584, %v5584
      %v5617 = vmul.f32 %v5585, %v5585
      %v5618 = vmul.f32 %v5586, %v5586
      %v5619 = vmul.f32 %v5587, %v5587
      %v5620 = vmul.f32 %v5588, %v5588
      %v5621 = vmul.f32 %v5589, %v5589
      %v5622 = vmul.f32 %v5590, %v5590
      %v5623 = vmul.f32 %v5591, %v5591
      %v5624 = vmul.f32 %v5592, %v5592
      %v5625 = vmul.f32 %v5593, %v5593
      %v5626 = vmul.f32 %v5594, %v5594
      %v5627 = vmul.f32 %v5595, %v5595
      %v5628 = vmul.f32 %v5596, %v5596
      %v5629 = vmul.f32 %v5597, %v5597
      %v5630 = vmul.f32 %v5598, %v5598
      %v5631 = vmul.f32 %v5599, %v5599
      %v5632 = vmul.f32 %v5600, %v5600
      %v5633 = vmul.f32 %v5601, %v5601
      %v5634 = vmul.f32 %v5602, %v5602
      %v5635 = vmul.f32 %v5603, %v5603
      %v5636 = vmul.f32 %v5604, %v5604
      %v5637 = vmul.f32 %v5605, %v5605
      %v5638 = vmul.f32 %v5606, %v5606
      %v5639 = vmul.f32 %v5607, %v5607
      %v5640 = vmul.f32 %v5608, %v5608
      %v5641 = vmul.f32 %v5609, %v5609
      %v5642 = vmul.f32 %v5610, %v5610
      %v5643 = vmul.f32 %v5611, %v5611
      %v5644 = vmul.f32 %v5612, %v5612
      %v5645 = vsel %vm561, %v5613, 0.0
      %v5646 = vsel %vm561, %v5614, 0.0
      %v5647 = vadd.f32 %v5645, %v5646
      %v5648 = vsel %vm561, %v5615, 0.0
      %v5649 = vadd.f32 %v5647, %v5648
      %v5650 = vsel %vm561, %v5616, 0.0
      %v5651 = vadd.f32 %v5649, %v5650
      %v5652 = vsel %vm561, %v5617, 0.0
      %v5653 = vadd.f32 %v5651, %v5652
      %v5654 = vsel %vm561, %v5618, 0.0
      %v5655 = vadd.f32 %v5653, %v5654
      %v5656 = vsel %vm561, %v5619, 0.0
      %v5657 = vadd.f32 %v5655, %v5656
      %v5658 = vsel %vm561, %v5620, 0.0
      %v5659 = vadd.f32 %v5657, %v5658
      %v5660 = vsel %vm561, %v5621, 0.0
      %v5661 = vadd.f32 %v5659, %v5660
      %v5662 = vsel %vm561, %v5622, 0.0
      %v5663 = vadd.f32 %v5661, %v5662
      %v5664 = vsel %vm561, %v5623, 0.0
      %v5665 = vadd.f32 %v5663, %v5664
      %v5666 = vsel %vm561, %v5624, 0.0
      %v5667 = vadd.f32 %v5665, %v5666
      %v5668 = vsel %vm561, %v5625, 0.0
      %v5669 = vadd.f32 %v5667, %v5668
      %v5670 = vsel %vm561, %v5626, 0.0
      %v5671 = vadd.f32 %v5669, %v5670
      %v5672 = vsel %vm561, %v5627, 0.0
      %v5673 = vadd.f32 %v5671, %v5672
      %v5674 = vsel %vm561, %v5628, 0.0
      %v5675 = vadd.f32 %v5673, %v5674
      %v5676 = vsel %vm561, %v5629, 0.0
      %v5677 = vadd.f32 %v5675, %v5676
      %v5678 = vsel %vm561, %v5630, 0.0
      %v5679 = vadd.f32 %v5677, %v5678
      %v5680 = vsel %vm561, %v5631, 0.0
      %v5681 = vadd.f32 %v5679, %v5680
      %v5682 = vsel %vm561, %v5632, 0.0
      %v5683 = vadd.f32 %v5681, %v5682
      %v5684 = vsel %vm561, %v5633, 0.0
      %v5685 = vadd.f32 %v5683, %v5684
      %v5686 = vsel %vm561, %v5634, 0.0
      %v5687 = vadd.f32 %v5685, %v5686
      %v5688 = vsel %vm561, %v5635, 0.0
      %v5689 = vadd.f32 %v5687, %v5688
      %v5690 = vsel %vm561, %v5636, 0.0
      %v5691 = vadd.f32 %v5689, %v5690
      %v5692 = vsel %vm561, %v5637, 0.0
      %v5693 = vadd.f32 %v5691, %v5692
      %v5694 = vsel %vm561, %v5638, 0.0
      %v5695 = vadd.f32 %v5693, %v5694
      %v5696 = vsel %vm561, %v5639, 0.0
      %v5697 = vadd.f32 %v5695, %v5696
      %v5698 = vsel %vm561, %v5640, 0.0
      %v5699 = vadd.f32 %v5697, %v5698
      %v5700 = vsel %vm561, %v5641, 0.0
      %v5701 = vadd.f32 %v5699, %v5700
      %v5702 = vsel %vm561, %v5642, 0.0
      %v5703 = vadd.f32 %v5701, %v5702
      %v5704 = vsel %vm561, %v5643, 0.0
      %v5705 = vadd.f32 %v5703, %v5704
      %v5706 = vsel %vm561, %v5644, 0.0
      %v5707 = vadd.f32 %v5705, %v5706
      %v5708 = vrot.slane %v5707, 4
      %v5709 = vadd.f32 %v5707, %v5708
      %v5710 = vrot.slane %v5709, 2
      %v5711 = vadd.f32 %v5709, %v5710
      %v5712 = vrot.slane %v5711, 1
      %v5713 = vadd.f32 %v5711, %v5712
      %v5714 = vsel %vm5251, %v5579, %v5713
      %vm5715 = vcmask 25600
      %5716 = vst.msk [vmem:[%s245] sm:$0x3] %vm5715, %v5714
      %p5717 = scmp.lt.s32.totalorder %s17, 1
      %s5718 = scalar_select %p5717, %s17, 1
      %s5719 = smul.addr %s5718, 32
      %s5720 = smul.addr %s5719, 4
      %s5721 = scalar_lea.vmem %s3, %s5720
      %p5722 = scmp.lt.s32.totalorder %s17, 1
      %s5723 = scalar_select %p5722, %s17, 1
      %s5724 = smul.addr %s5723, 2
      %s5725 = scalar_lea.vmem %s4, %s5724
      %p5726 = scmp.lt.s32.totalorder %s17, 1
      %s5727 = scalar_select %p5726, %s17, 1
      %s5728 = smul.addr %s5727, 2
      %s5729 = scalar_lea.vmem %s5, %s5728
      // Predicated region
      $region33: #{mixed_op_forward.2} parent=31 // pred_check
        %p5730 = pneg %p103
      $region34: #{mixed_op_forward.2} parent=31 // pred_check_branch
        %5732 = sbr.rel (%p5730) target = $region36
      $region35: #{mixed_op_forward.2} parent=31 // pred_region
        _
      $region36: #{mixed_op_forward.2} parent=31 // pred_fallthru
        _
      // Predicated region
      $region37: #{mixed_op_forward.2} parent=31 // pred_check
        %p5733 = pneg %p129
      $region38: #{mixed_op_forward.2} parent=31 // pred_check_branch
        %5735 = sbr.rel (%p5733) target = $region40
      $region39: #{mixed_op_forward.2} parent=31 // pred_region
        _
      $region40: #{mixed_op_forward.2} parent=31 // pred_fallthru
        _
      // Predicated region
      $region41: #{mixed_op_forward.2} parent=31 // pred_check
        %p5736 = pneg %p155
      $region42: #{mixed_op_forward.2} parent=31 // pred_check_branch
        %5738 = sbr.rel (%p5736) target = $region44
      $region43: #{mixed_op_forward.2} parent=31 // pred_region
        _
      $region44: #{mixed_op_forward.2} parent=31 // pred_fallthru
        _
    $region32: #{mixed_op_forward.2} parent=5 // pred_fallthru
      _
    %p5739 = scmp.le.s32.totalorder 2, %s12
    // Predicated region
    $region45: #{mixed_op_forward.2} parent=5 // pred_check
      %p5740 = pneg %p5739
    $region46: #{mixed_op_forward.2} parent=5 // pred_check_branch
      %5742 = sbr.rel (%p5740) target = $region48
    $region47: #{mixed_op_forward.2} parent=5 // pred_region
      %s5743 = ssub.s32 %s12, 2
      // Predicated region
      $region49: #{mixed_op_forward.2} parent=47 // pred_check
        %p5744 = pneg %p109
      $region50: #{mixed_op_forward.2} parent=47 // pred_check_branch
        %5746 = sbr.rel (%p5744) target = $region52
      $region51: #{mixed_op_forward.2} parent=47 // pred_region
        %p5747 = scmp.lt.s32.totalorder %s18, 1
        %s5748 = scalar_select %p5747, %s18, 1
        %s5749 = smul.addr %s5748, 32
        %s5750 = smul.addr %s5749, 4
        %s5751 = scalar_lea.vmem %s3, %s5750
      $region52: #{mixed_op_forward.2} parent=47 // pred_fallthru
        _
      // Predicated region
      $region53: #{mixed_op_forward.2} parent=47 // pred_check
        %p5752 = pneg %p135
      $region54: #{mixed_op_forward.2} parent=47 // pred_check_branch
        %5754 = sbr.rel (%p5752) target = $region56
      $region55: #{mixed_op_forward.2} parent=47 // pred_region
        %p5755 = scmp.lt.s32.totalorder %s18, 1
        %s5756 = scalar_select %p5755, %s18, 1
        %s5757 = smul.addr %s5756, 2
        %s5758 = scalar_lea.vmem %s4, %s5757
      $region56: #{mixed_op_forward.2} parent=47 // pred_fallthru
        _
      // Predicated region
      $region57: #{mixed_op_forward.2} parent=47 // pred_check
        %p5759 = pneg %p161
      $region58: #{mixed_op_forward.2} parent=47 // pred_check_branch
        %5761 = sbr.rel (%p5759) target = $region60
      $region59: #{mixed_op_forward.2} parent=47 // pred_region
        %p5762 = scmp.lt.s32.totalorder %s18, 1
        %s5763 = scalar_select %p5762, %s18, 1
        %s5764 = smul.addr %s5763, 2
        %s5765 = scalar_lea.vmem %s5, %s5764
      $region60: #{mixed_op_forward.2} parent=47 // pred_fallthru
        _
    $region48: #{mixed_op_forward.2} parent=5 // pred_fallthru
      _
  $region6: #{mixed_op_forward.2} parent=0 // loop_footer
    %s16 = sadd.s32 1, %s12
  $region7: #{mixed_op_forward.2} parent=0 // loop_footer_branch
    %11 = sbr.rel target = $region3
  $region8: #{mixed_op_forward.2} parent=0 // loop_exit
    _

</llo_original>
